<compile_context>
chip_gen: v7x
topology: tpu7x:2x2x1
jax: 0.10.0
libtpu: 0.0.40
codegen_flags: <defaults>
</compile_context>

<pallas_src>
import functools

import jax
import jax.numpy as jnp
from jax import lax
from jax.experimental import pallas as pl
from jax.experimental.pallas import tpu as pltpu


def block_down_kernel(x_ref, w1_ref, g1_ref, b1_ref, w2_ref, g2_ref, b2_ref,
                      o_ref, xp2_ref, *, eps, compute_dtype):
    # x_ref  : (N, H+2, W+2, Cin)   wrapper halo-padded NHWC input (f32)
    # w*_ref : (9, Cin_pad, Cpad)   per-tap conv weights, already in compute_dtype
    # g*/b*  : (1, Cpad)            BN gamma/beta, zero-padded, f32
    # o_ref  : (N*Ho*Wo, Cpad)      lane-dense pooled output
    # xp2_ref: (N, H+2, W+2, Cpad)  VMEM scratch: halo-padded, lane-dense block-2 input
    N, Hp, Wp, _ = x_ref.shape
    H, W = Hp - 2, Wp - 2
    Ho, Wo = H // 2, W // 2
    Cpad = o_ref.shape[-1]
    P = N * H * W
    inv_p = jnp.float32(1.0 / P)

    def conv3x3(src_ref, w_ref):
        # 9 per-tap accumulated MXU matmuls; f32 accumulator stays live.
        cin = src_ref.shape[-1]
        acc = None
        for dw in range(3):
            xw = src_ref[:, :, dw:dw + W, :]                      # (N, Hp, W, cin)
            for dh in range(3):                                   # major-axis slices
                slab = xw[:, dh:dh + H].reshape(P, cin).astype(compute_dtype)
                part = jnp.dot(slab, w_ref[dh * 3 + dw],
                               preferred_element_type=jnp.float32)
                acc = part if acc is None else acc + part
        return acc                                                # (P, Cpad) f32

    def bn_affine(acc, gamma, beta):
        # Train-mode batch stats in f32.  Conv bias omitted: cancels under mean-sub.
        mean = jnp.sum(acc, axis=0, keepdims=True) * inv_p        # (1, Cpad)
        ex2 = jnp.sum(acc * acc, axis=0, keepdims=True) * inv_p   # (1, Cpad)
        var = jnp.maximum(ex2 - mean * mean, 0.0)                 # clamp f32 rounding
        a = lax.rsqrt(var + eps) * gamma
        b = beta - mean * a
        return acc * a + b                                        # (P, Cpad)

    # ---------------- Block 1: Conv(Cin->Cout) + BN + ReLU ---------------------------
    y1 = jnp.maximum(bn_affine(conv3x3(x_ref, w1_ref), g1_ref[...], b1_ref[...]), 0.0)

    # ------- Stage y1 into the halo-padded, lane-dense block-2 input scratch ---------
    # Zero ONLY the 1-pixel border; the interior is fully overwritten by y1.
    xp2_ref[:, 0:1, :, :] = jnp.zeros((N, 1, Wp, Cpad), xp2_ref.dtype)
    xp2_ref[:, H + 1:H + 2, :, :] = jnp.zeros((N, 1, Wp, Cpad), xp2_ref.dtype)
    xp2_ref[:, 1:H + 1, 0:1, :] = jnp.zeros((N, H, 1, Cpad), xp2_ref.dtype)
    xp2_ref[:, 1:H + 1, W + 1:W + 2, :] = jnp.zeros((N, H, 1, Cpad), xp2_ref.dtype)
    xp2_ref[:, 1:H + 1, 1:W + 1, :] = y1.reshape(N, H, W, Cpad).astype(xp2_ref.dtype)

    # -------- Block 2: Conv(Cout->Cout) + BN (ReLU deferred past the pool) -----------
    y2 = bn_affine(conv3x3(xp2_ref, w2_ref), g2_ref[...], b2_ref[...])

    # ---------------- MaxPool2d(2,2) + deferred ReLU ---------------------------------
    # H-direction pairs via major-axis regrouping (layout-preserving), then the only
    # sublane-splitting reshape (W pairs) runs on half the rows.
    y4 = y2.reshape(N, Ho, 2, W, Cpad)                            # free regroup
    mh = jnp.maximum(y4[:, :, 0], y4[:, :, 1])                    # (N, Ho, W, Cpad)
    mw = mh.reshape(N * Ho * Wo, 2, Cpad)                         # W-pair split
    pooled = jnp.maximum(mw[:, 0, :], mw[:, 1, :])                # (N*Ho*Wo, Cpad)
    o_ref[...] = jnp.maximum(pooled, 0.0).astype(o_ref.dtype)     # ReLU on P/4 rows


def _prep_conv_taps(w_oihw, cin_pad, cout_pad, compute_dtype):
    """OIHW -> (9, cin_pad, cout_pad) per-tap matrices, zero-padded channels."""
    cout, cin = w_oihw.shape[0], w_oihw.shape[1]
    w = jnp.transpose(w_oihw, (2, 3, 1, 0)).reshape(9, cin, cout)   # t=kh*3+kw
    w = jnp.pad(w, ((0, 0), (0, cin_pad - cin), (0, cout_pad - cout)))
    return w.astype(compute_dtype)


def _prep_bn_param(p, cpad):
    return jnp.pad(p.reshape(1, -1), ((0, 0), (0, cpad - p.shape[0]))).astype(jnp.float32)


def block_down_forward(x_nchw, w1, b1_conv, g1, be1, w2, b2_conv, g2, be2,
                       eps=1e-5, compute_dtype=jnp.bfloat16):
    """Pallas forward matching BlockDown.forward (PyTorch NCHW in / NCHW out)."""
    # Conv biases cancel exactly under train-mode BN mean subtraction.
    del b1_conv, b2_conv

    N, Cin, H, W = x_nchw.shape
    Cout = w1.shape[0]
    assert H % 2 == 0 and W % 2 == 0, "MaxPool2d(2,2) needs even spatial dims"
    Cpad = pl.cdiv(Cout, 128) * 128                                 # lane-dense channels
    Ho, Wo = H // 2, W // 2
    rows_out = N * Ho * Wo

    # NCHW -> NHWC + 1-px halo pad in the wrapper (few-KB HBM pad, no in-kernel
    # zero+rewrite for block-1).
    xp = jnp.pad(jnp.transpose(x_nchw, (0, 2, 3, 1)).astype(jnp.float32),
                 ((0, 0), (1, 1), (1, 1), (0, 0)))

    w1t = _prep_conv_taps(w1, Cin, Cpad, compute_dtype)             # (9, Cin, Cpad)
    w2t = _prep_conv_taps(w2, Cpad, Cpad, compute_dtype)            # (9, Cpad, Cpad)
    g1p, be1p = _prep_bn_param(g1, Cpad), _prep_bn_param(be1, Cpad)
    g2p, be2p = _prep_bn_param(g2, Cpad), _prep_bn_param(be2, Cpad)

    kernel = functools.partial(block_down_kernel, eps=eps, compute_dtype=compute_dtype)
    out2d = pl.pallas_call(
        kernel,
        out_shape=jax.ShapeDtypeStruct((rows_out, Cpad), jnp.float32),
        grid=(1,),
        in_specs=[
            pl.BlockSpec((N, H + 2, W + 2, Cin), lambda i: (0, 0, 0, 0)),
            pl.BlockSpec((9, Cin, Cpad), lambda i: (0, 0, 0)),
            pl.BlockSpec((1, Cpad), lambda i: (0, 0)),
            pl.BlockSpec((1, Cpad), lambda i: (0, 0)),
            pl.BlockSpec((9, Cpad, Cpad), lambda i: (0, 0, 0)),
            pl.BlockSpec((1, Cpad), lambda i: (0, 0)),
            pl.BlockSpec((1, Cpad), lambda i: (0, 0)),
        ],
        out_specs=pl.BlockSpec((rows_out, Cpad), lambda i: (0, 0)),
        scratch_shapes=[
            pltpu.VMEM((N, H + 2, W + 2, Cpad), jnp.float32),   # block-2 halo input
        ],
        compiler_params=pltpu.CompilerParams(
            dimension_semantics=("arbitrary",),
            vmem_limit_bytes=32 * 1024 * 1024),
    )(xp, w1t, g1p, be1p, w2t, g2p, be2p)

    out_nhwc = out2d[:, :Cout].reshape(N, Ho, Wo, Cout)             # drop channel pad
    return jnp.transpose(out_nhwc, (0, 3, 1, 2)).astype(x_nchw.dtype)


# ------------------------------ pure-JAX reference ----------------------------------
def _block_ref(x, w, b, gamma, beta, eps):
    y = lax.conv_general_dilated(
        x.astype(jnp.float32), w.astype(jnp.float32),
        window_strides=(1, 1), padding=((1, 1), (1, 1)),
        dimension_numbers=("NCHW", "OIHW", "NCHW"))
    y = y + b.reshape(1, -1, 1, 1)
    mean = jnp.mean(y, axis=(0, 2, 3), keepdims=True)
    var = jnp.mean((y - mean) ** 2, axis=(0, 2, 3), keepdims=True)
    y = (y - mean) * lax.rsqrt(var + eps) * gamma.reshape(1, -1, 1, 1) \
        + beta.reshape(1, -1, 1, 1)
    return jnp.maximum(y, 0.0)


def block_down_ref(x, w1, b1, g1, be1, w2, b2, g2, be2, eps=1e-5):
    y = _block_ref(x, w1, b1, g1, be1, eps)
    y = _block_ref(y, w2, b2, g2, be2, eps)
    N, C, H, W = y.shape
    return jnp.max(y.reshape(N, C, H // 2, 2, W // 2, 2), axis=(3, 5))


if __name__ == "__main__":
    N, Cin, Cout, H, W = 2, 4, 8, 16, 16

    key = jax.random.PRNGKey(0)
    ks = jax.random.split(key, 9)

    x = jax.random.normal(ks[0], (N, Cin, H, W), dtype=jnp.float32)
    # Parameter shapes as in Conv2d(Cin, Cout, 3) / BatchNorm2d(Cout), twice.
    w1 = jax.random.normal(ks[1], (Cout, Cin, 3, 3), jnp.float32) / jnp.sqrt(Cin * 9)
    b1 = 0.1 * jax.random.normal(ks[2], (Cout,), jnp.float32)
    g1 = 1.0 + 0.1 * jax.random.normal(ks[3], (Cout,), jnp.float32)
    be1 = 0.1 * jax.random.normal(ks[4], (Cout,), jnp.float32)
    w2 = jax.random.normal(ks[5], (Cout, Cout, 3, 3), jnp.float32) / jnp.sqrt(Cout * 9)
    b2 = 0.1 * jax.random.normal(ks[6], (Cout,), jnp.float32)
    g2 = 1.0 + 0.1 * jax.random.normal(ks[7], (Cout,), jnp.float32)
    be2 = 0.1 * jax.random.normal(ks[8], (Cout,), jnp.float32)

    out = block_down_forward(x, w1, b1, g1, be1, w2, b2, g2, be2)
    out = jax.block_until_ready(out)

    ref = block_down_ref(x, w1, b1, g1, be1, w2, b2, g2, be2)
    assert out.shape == (N, Cout, H // 2, W // 2), out.shape
    # bf16 MXU operands (f32 accumulation / f32 BN stats) -> loosened tolerance.
    assert jnp.allclose(out, ref, atol=5e-2, rtol=5e-2), "mismatch vs reference"

    print("KERNEL_OK")
</pallas_src>

<mosaic_0001>
module attributes {stable_mosaic.version = 11 : i64} {
  func.func @block_down_kernel(%arg0: i32, %arg1: memref<2x18x18x4xf32, #tpu.memory_space<vmem>>, %arg2: memref<9x4x128xbf16, #tpu.memory_space<vmem>>, %arg3: memref<1x128xf32, #tpu.memory_space<vmem>>, %arg4: memref<1x128xf32, #tpu.memory_space<vmem>>, %arg5: memref<9x128x128xbf16, #tpu.memory_space<vmem>>, %arg6: memref<1x128xf32, #tpu.memory_space<vmem>>, %arg7: memref<1x128xf32, #tpu.memory_space<vmem>>, %arg8: memref<128x128xf32, #tpu.memory_space<vmem>>, %arg9: memref<2x18x18x128xf32, #tpu.memory_space<vmem>>) attributes {dimension_semantics = [#tpu.dimension_semantics<arbitrary>], iteration_bounds = array<i64: 1>, scalar_prefetch = 0 : i64, scratch_operands = 1 : i64, tpu.core_type = #tpu.core_type<tc>, window_params = [{pipeline_mode = #tpu.pipeline_mode<synchronous>, transform_indices = @transform_0, window_bounds = array<i64: 2, 18, 18, 4>}, {pipeline_mode = #tpu.pipeline_mode<synchronous>, transform_indices = @transform_1, window_bounds = array<i64: 9, 4, 128>}, {pipeline_mode = #tpu.pipeline_mode<synchronous>, transform_indices = @transform_2, window_bounds = array<i64: 1, 128>}, {pipeline_mode = #tpu.pipeline_mode<synchronous>, transform_indices = @transform_3, window_bounds = array<i64: 1, 128>}, {pipeline_mode = #tpu.pipeline_mode<synchronous>, transform_indices = @transform_4, window_bounds = array<i64: 9, 128, 128>}, {pipeline_mode = #tpu.pipeline_mode<synchronous>, transform_indices = @transform_5, window_bounds = array<i64: 1, 128>}, {pipeline_mode = #tpu.pipeline_mode<synchronous>, transform_indices = @transform_6, window_bounds = array<i64: 1, 128>}, {pipeline_mode = #tpu.pipeline_mode<synchronous>, transform_indices = @transform_7, window_bounds = array<i64: 128, 128>}]} {
    %c0 = arith.constant 0 : index
    %c0_0 = arith.constant 0 : index
    %c0_1 = arith.constant 0 : index
    %c0_2 = arith.constant 0 : index
    %0 = vector.load %arg1[%c0, %c0_0, %c0_1, %c0_2] : memref<2x18x18x4xf32, #tpu.memory_space<vmem>>, vector<2x18x16x4xf32>
    %1 = vector.extract_strided_slice %0 {offsets = [0, 0, 0, 0], sizes = [2, 16, 16, 4], strides = [1, 1, 1, 1]} : vector<2x18x16x4xf32> to vector<2x16x16x4xf32>
    %2 = vector.shape_cast %1 : vector<2x16x16x4xf32> to vector<512x4xf32>
    %3 = arith.truncf %2 : vector<512x4xf32> to vector<512x4xbf16>
    %c0_3 = arith.constant 0 : index
    %c0_4 = arith.constant 0 : index
    %c0_5 = arith.constant 0 : index
    %4 = vector.load %arg2[%c0_3, %c0_4, %c0_5] : memref<9x4x128xbf16, #tpu.memory_space<vmem>>, vector<1x4x128xbf16>
    %5 = vector.shape_cast %4 : vector<1x4x128xbf16> to vector<4x128xbf16>
    %cst = arith.constant dense<0.000000e+00> : vector<512x128xf32>
    %6 = tpu.matmul %3, %5, %cst {dimension_numbers = #tpu.dot_dimension_numbers<[1], [0], [0], [1], [0, 0, 1, 1], [], []>} : vector<512x4xbf16>, vector<4x128xbf16>, vector<512x128xf32> -> vector<512x128xf32>
    %7 = vector.extract_strided_slice %0 {offsets = [0, 1, 0, 0], sizes = [2, 16, 16, 4], strides = [1, 1, 1, 1]} : vector<2x18x16x4xf32> to vector<2x16x16x4xf32>
    %8 = vector.shape_cast %7 : vector<2x16x16x4xf32> to vector<512x4xf32>
    %9 = arith.truncf %8 : vector<512x4xf32> to vector<512x4xbf16>
    %c3 = arith.constant 3 : index
    %c0_6 = arith.constant 0 : index
    %c0_7 = arith.constant 0 : index
    %10 = vector.load %arg2[%c3, %c0_6, %c0_7] : memref<9x4x128xbf16, #tpu.memory_space<vmem>>, vector<1x4x128xbf16>
    %11 = vector.shape_cast %10 : vector<1x4x128xbf16> to vector<4x128xbf16>
    %cst_8 = arith.constant dense<0.000000e+00> : vector<512x128xf32>
    %12 = tpu.matmul %9, %11, %cst_8 {dimension_numbers = #tpu.dot_dimension_numbers<[1], [0], [0], [1], [0, 0, 1, 1], [], []>} : vector<512x4xbf16>, vector<4x128xbf16>, vector<512x128xf32> -> vector<512x128xf32>
    %13 = arith.addf %6, %12 : vector<512x128xf32>
    %14 = vector.extract_strided_slice %0 {offsets = [0, 2, 0, 0], sizes = [2, 16, 16, 4], strides = [1, 1, 1, 1]} : vector<2x18x16x4xf32> to vector<2x16x16x4xf32>
    %15 = vector.shape_cast %14 : vector<2x16x16x4xf32> to vector<512x4xf32>
    %16 = arith.truncf %15 : vector<512x4xf32> to vector<512x4xbf16>
    %c6 = arith.constant 6 : index
    %c0_9 = arith.constant 0 : index
    %c0_10 = arith.constant 0 : index
    %17 = vector.load %arg2[%c6, %c0_9, %c0_10] : memref<9x4x128xbf16, #tpu.memory_space<vmem>>, vector<1x4x128xbf16>
    %18 = vector.shape_cast %17 : vector<1x4x128xbf16> to vector<4x128xbf16>
    %cst_11 = arith.constant dense<0.000000e+00> : vector<512x128xf32>
    %19 = tpu.matmul %16, %18, %cst_11 {dimension_numbers = #tpu.dot_dimension_numbers<[1], [0], [0], [1], [0, 0, 1, 1], [], []>} : vector<512x4xbf16>, vector<4x128xbf16>, vector<512x128xf32> -> vector<512x128xf32>
    %20 = arith.addf %13, %19 : vector<512x128xf32>
    %c0_12 = arith.constant 0 : index
    %c0_13 = arith.constant 0 : index
    %c1 = arith.constant 1 : index
    %c0_14 = arith.constant 0 : index
    %21 = vector.load %arg1[%c0_12, %c0_13, %c1, %c0_14] : memref<2x18x18x4xf32, #tpu.memory_space<vmem>>, vector<2x18x16x4xf32>
    %22 = vector.extract_strided_slice %21 {offsets = [0, 0, 0, 0], sizes = [2, 16, 16, 4], strides = [1, 1, 1, 1]} : vector<2x18x16x4xf32> to vector<2x16x16x4xf32>
    %23 = vector.shape_cast %22 : vector<2x16x16x4xf32> to vector<512x4xf32>
    %24 = arith.truncf %23 : vector<512x4xf32> to vector<512x4xbf16>
    %c1_15 = arith.constant 1 : index
    %c0_16 = arith.constant 0 : index
    %c0_17 = arith.constant 0 : index
    %25 = vector.load %arg2[%c1_15, %c0_16, %c0_17] : memref<9x4x128xbf16, #tpu.memory_space<vmem>>, vector<1x4x128xbf16>
    %26 = vector.shape_cast %25 : vector<1x4x128xbf16> to vector<4x128xbf16>
    %cst_18 = arith.constant dense<0.000000e+00> : vector<512x128xf32>
    %27 = tpu.matmul %24, %26, %cst_18 {dimension_numbers = #tpu.dot_dimension_numbers<[1], [0], [0], [1], [0, 0, 1, 1], [], []>} : vector<512x4xbf16>, vector<4x128xbf16>, vector<512x128xf32> -> vector<512x128xf32>
    %28 = arith.addf %20, %27 : vector<512x128xf32>
    %29 = vector.extract_strided_slice %21 {offsets = [0, 1, 0, 0], sizes = [2, 16, 16, 4], strides = [1, 1, 1, 1]} : vector<2x18x16x4xf32> to vector<2x16x16x4xf32>
    %30 = vector.shape_cast %29 : vector<2x16x16x4xf32> to vector<512x4xf32>
    %31 = arith.truncf %30 : vector<512x4xf32> to vector<512x4xbf16>
    %c4 = arith.constant 4 : index
    %c0_19 = arith.constant 0 : index
    %c0_20 = arith.constant 0 : index
    %32 = vector.load %arg2[%c4, %c0_19, %c0_20] : memref<9x4x128xbf16, #tpu.memory_space<vmem>>, vector<1x4x128xbf16>
    %33 = vector.shape_cast %32 : vector<1x4x128xbf16> to vector<4x128xbf16>
    %cst_21 = arith.constant dense<0.000000e+00> : vector<512x128xf32>
    %34 = tpu.matmul %31, %33, %cst_21 {dimension_numbers = #tpu.dot_dimension_numbers<[1], [0], [0], [1], [0, 0, 1, 1], [], []>} : vector<512x4xbf16>, vector<4x128xbf16>, vector<512x128xf32> -> vector<512x128xf32>
    %35 = arith.addf %28, %34 : vector<512x128xf32>
    %36 = vector.extract_strided_slice %21 {offsets = [0, 2, 0, 0], sizes = [2, 16, 16, 4], strides = [1, 1, 1, 1]} : vector<2x18x16x4xf32> to vector<2x16x16x4xf32>
    %37 = vector.shape_cast %36 : vector<2x16x16x4xf32> to vector<512x4xf32>
    %38 = arith.truncf %37 : vector<512x4xf32> to vector<512x4xbf16>
    %c7 = arith.constant 7 : index
    %c0_22 = arith.constant 0 : index
    %c0_23 = arith.constant 0 : index
    %39 = vector.load %arg2[%c7, %c0_22, %c0_23] : memref<9x4x128xbf16, #tpu.memory_space<vmem>>, vector<1x4x128xbf16>
    %40 = vector.shape_cast %39 : vector<1x4x128xbf16> to vector<4x128xbf16>
    %cst_24 = arith.constant dense<0.000000e+00> : vector<512x128xf32>
    %41 = tpu.matmul %38, %40, %cst_24 {dimension_numbers = #tpu.dot_dimension_numbers<[1], [0], [0], [1], [0, 0, 1, 1], [], []>} : vector<512x4xbf16>, vector<4x128xbf16>, vector<512x128xf32> -> vector<512x128xf32>
    %42 = arith.addf %35, %41 : vector<512x128xf32>
    %c0_25 = arith.constant 0 : index
    %c0_26 = arith.constant 0 : index
    %c2 = arith.constant 2 : index
    %c0_27 = arith.constant 0 : index
    %43 = vector.load %arg1[%c0_25, %c0_26, %c2, %c0_27] : memref<2x18x18x4xf32, #tpu.memory_space<vmem>>, vector<2x18x16x4xf32>
    %44 = vector.extract_strided_slice %43 {offsets = [0, 0, 0, 0], sizes = [2, 16, 16, 4], strides = [1, 1, 1, 1]} : vector<2x18x16x4xf32> to vector<2x16x16x4xf32>
    %45 = vector.shape_cast %44 : vector<2x16x16x4xf32> to vector<512x4xf32>
    %46 = arith.truncf %45 : vector<512x4xf32> to vector<512x4xbf16>
    %c2_28 = arith.constant 2 : index
    %c0_29 = arith.constant 0 : index
    %c0_30 = arith.constant 0 : index
    %47 = vector.load %arg2[%c2_28, %c0_29, %c0_30] : memref<9x4x128xbf16, #tpu.memory_space<vmem>>, vector<1x4x128xbf16>
    %48 = vector.shape_cast %47 : vector<1x4x128xbf16> to vector<4x128xbf16>
    %cst_31 = arith.constant dense<0.000000e+00> : vector<512x128xf32>
    %49 = tpu.matmul %46, %48, %cst_31 {dimension_numbers = #tpu.dot_dimension_numbers<[1], [0], [0], [1], [0, 0, 1, 1], [], []>} : vector<512x4xbf16>, vector<4x128xbf16>, vector<512x128xf32> -> vector<512x128xf32>
    %50 = arith.addf %42, %49 : vector<512x128xf32>
    %51 = vector.extract_strided_slice %43 {offsets = [0, 1, 0, 0], sizes = [2, 16, 16, 4], strides = [1, 1, 1, 1]} : vector<2x18x16x4xf32> to vector<2x16x16x4xf32>
    %52 = vector.shape_cast %51 : vector<2x16x16x4xf32> to vector<512x4xf32>
    %53 = arith.truncf %52 : vector<512x4xf32> to vector<512x4xbf16>
    %c5 = arith.constant 5 : index
    %c0_32 = arith.constant 0 : index
    %c0_33 = arith.constant 0 : index
    %54 = vector.load %arg2[%c5, %c0_32, %c0_33] : memref<9x4x128xbf16, #tpu.memory_space<vmem>>, vector<1x4x128xbf16>
    %55 = vector.shape_cast %54 : vector<1x4x128xbf16> to vector<4x128xbf16>
    %cst_34 = arith.constant dense<0.000000e+00> : vector<512x128xf32>
    %56 = tpu.matmul %53, %55, %cst_34 {dimension_numbers = #tpu.dot_dimension_numbers<[1], [0], [0], [1], [0, 0, 1, 1], [], []>} : vector<512x4xbf16>, vector<4x128xbf16>, vector<512x128xf32> -> vector<512x128xf32>
    %57 = arith.addf %50, %56 : vector<512x128xf32>
    %58 = vector.extract_strided_slice %43 {offsets = [0, 2, 0, 0], sizes = [2, 16, 16, 4], strides = [1, 1, 1, 1]} : vector<2x18x16x4xf32> to vector<2x16x16x4xf32>
    %59 = vector.shape_cast %58 : vector<2x16x16x4xf32> to vector<512x4xf32>
    %60 = arith.truncf %59 : vector<512x4xf32> to vector<512x4xbf16>
    %c8 = arith.constant 8 : index
    %c0_35 = arith.constant 0 : index
    %c0_36 = arith.constant 0 : index
    %61 = vector.load %arg2[%c8, %c0_35, %c0_36] : memref<9x4x128xbf16, #tpu.memory_space<vmem>>, vector<1x4x128xbf16>
    %62 = vector.shape_cast %61 : vector<1x4x128xbf16> to vector<4x128xbf16>
    %cst_37 = arith.constant dense<0.000000e+00> : vector<512x128xf32>
    %63 = tpu.matmul %60, %62, %cst_37 {dimension_numbers = #tpu.dot_dimension_numbers<[1], [0], [0], [1], [0, 0, 1, 1], [], []>} : vector<512x4xbf16>, vector<4x128xbf16>, vector<512x128xf32> -> vector<512x128xf32>
    %64 = arith.addf %57, %63 : vector<512x128xf32>
    %c0_38 = arith.constant 0 : index
    %c0_39 = arith.constant 0 : index
    %65 = vector.load %arg3[%c0_38, %c0_39] : memref<1x128xf32, #tpu.memory_space<vmem>>, vector<1x128xf32>
    %c0_40 = arith.constant 0 : index
    %c0_41 = arith.constant 0 : index
    %66 = vector.load %arg4[%c0_40, %c0_41] : memref<1x128xf32, #tpu.memory_space<vmem>>, vector<1x128xf32>
    %cst_42 = arith.constant dense<0.000000e+00> : vector<128xf32>
    %67 = vector.multi_reduction <add>, %64, %cst_42 [0] : vector<512x128xf32> to vector<128xf32>
    %68 = vector.shape_cast %67 : vector<128xf32> to vector<1x128xf32>
    %cst_43 = arith.constant 0.001953125 : f32
    %69 = vector.broadcast %cst_43 : f32 to vector<1x128xf32>
    %70 = arith.mulf %68, %69 : vector<1x128xf32>
    %71 = arith.mulf %64, %64 : vector<512x128xf32>
    %cst_44 = arith.constant dense<0.000000e+00> : vector<128xf32>
    %72 = vector.multi_reduction <add>, %71, %cst_44 [0] : vector<512x128xf32> to vector<128xf32>
    %73 = vector.shape_cast %72 : vector<128xf32> to vector<1x128xf32>
    %cst_45 = arith.constant 0.001953125 : f32
    %74 = vector.broadcast %cst_45 : f32 to vector<1x128xf32>
    %75 = arith.mulf %73, %74 : vector<1x128xf32>
    %76 = arith.mulf %70, %70 : vector<1x128xf32>
    %77 = arith.subf %75, %76 : vector<1x128xf32>
    %cst_46 = arith.constant 0.000000e+00 : f32
    %78 = vector.broadcast %cst_46 : f32 to vector<1x128xf32>
    %79 = arith.maximumf %77, %78 : vector<1x128xf32>
    %cst_47 = arith.constant 9.99999974E-6 : f32
    %80 = vector.broadcast %cst_47 : f32 to vector<1x128xf32>
    %81 = arith.addf %79, %80 : vector<1x128xf32>
    %82 = math.rsqrt %81 : vector<1x128xf32>
    %83 = arith.mulf %82, %65 : vector<1x128xf32>
    %84 = arith.mulf %70, %83 : vector<1x128xf32>
    %85 = arith.subf %66, %84 : vector<1x128xf32>
    %86 = vector.broadcast %83 : vector<1x128xf32> to vector<512x128xf32>
    %87 = arith.mulf %64, %86 : vector<512x128xf32>
    %88 = vector.broadcast %85 : vector<1x128xf32> to vector<512x128xf32>
    %89 = arith.addf %87, %88 : vector<512x128xf32>
    %cst_48 = arith.constant 0.000000e+00 : f32
    %90 = vector.broadcast %cst_48 : f32 to vector<512x128xf32>
    %91 = arith.maximumf %89, %90 : vector<512x128xf32>
    %cst_49 = arith.constant 0.000000e+00 : f32
    %92 = vector.broadcast %cst_49 : f32 to vector<2x1x18x128xf32>
    %c0_50 = arith.constant 0 : index
    %c0_51 = arith.constant 0 : index
    %c0_52 = arith.constant 0 : index
    %c0_53 = arith.constant 0 : index
    %93 = vector.load %arg9[%c0_50, %c0_51, %c0_52, %c0_53] : memref<2x18x18x128xf32, #tpu.memory_space<vmem>>, vector<2x1x18x128xf32>
    tpu.vector_store %arg9[%c0_50, %c0_51, %c0_52, %c0_53], %92 {strides = array<i32>} : memref<2x18x18x128xf32, #tpu.memory_space<vmem>>, vector<2x1x18x128xf32>,
    %cst_54 = arith.constant 0.000000e+00 : f32
    %94 = vector.broadcast %cst_54 : f32 to vector<2x1x18x128xf32>
    %c0_55 = arith.constant 0 : index
    %c17 = arith.constant 17 : index
    %c0_56 = arith.constant 0 : index
    %c0_57 = arith.constant 0 : index
    %95 = vector.load %arg9[%c0_55, %c17, %c0_56, %c0_57] : memref<2x18x18x128xf32, #tpu.memory_space<vmem>>, vector<2x1x18x128xf32>
    tpu.vector_store %arg9[%c0_55, %c17, %c0_56, %c0_57], %94 {strides = array<i32>} : memref<2x18x18x128xf32, #tpu.memory_space<vmem>>, vector<2x1x18x128xf32>,
    %cst_58 = arith.constant 0.000000e+00 : f32
    %96 = vector.broadcast %cst_58 : f32 to vector<2x16x1x128xf32>
    %c0_59 = arith.constant 0 : index
    %c1_60 = arith.constant 1 : index
    %c0_61 = arith.constant 0 : index
    %c0_62 = arith.constant 0 : index
    %97 = vector.load %arg9[%c0_59, %c1_60, %c0_61, %c0_62] : memref<2x18x18x128xf32, #tpu.memory_space<vmem>>, vector<2x16x1x128xf32>
    tpu.vector_store %arg9[%c0_59, %c1_60, %c0_61, %c0_62], %96 {strides = array<i32>} : memref<2x18x18x128xf32, #tpu.memory_space<vmem>>, vector<2x16x1x128xf32>,
    %cst_63 = arith.constant 0.000000e+00 : f32
    %98 = vector.broadcast %cst_63 : f32 to vector<2x16x1x128xf32>
    %c0_64 = arith.constant 0 : index
    %c1_65 = arith.constant 1 : index
    %c17_66 = arith.constant 17 : index
    %c0_67 = arith.constant 0 : index
    %99 = vector.load %arg9[%c0_64, %c1_65, %c17_66, %c0_67] : memref<2x18x18x128xf32, #tpu.memory_space<vmem>>, vector<2x16x1x128xf32>
    tpu.vector_store %arg9[%c0_64, %c1_65, %c17_66, %c0_67], %98 {strides = array<i32>} : memref<2x18x18x128xf32, #tpu.memory_space<vmem>>, vector<2x16x1x128xf32>,
    %100 = vector.shape_cast %91 : vector<512x128xf32> to vector<2x16x16x128xf32>
    %c0_68 = arith.constant 0 : index
    %c1_69 = arith.constant 1 : index
    %c1_70 = arith.constant 1 : index
    %c0_71 = arith.constant 0 : index
    %101 = vector.load %arg9[%c0_68, %c1_69, %c1_70, %c0_71] : memref<2x18x18x128xf32, #tpu.memory_space<vmem>>, vector<2x16x16x128xf32>
    tpu.vector_store %arg9[%c0_68, %c1_69, %c1_70, %c0_71], %100 {strides = array<i32>} : memref<2x18x18x128xf32, #tpu.memory_space<vmem>>, vector<2x16x16x128xf32>,
    %c0_72 = arith.constant 0 : index
    %c0_73 = arith.constant 0 : index
    %c0_74 = arith.constant 0 : index
    %c0_75 = arith.constant 0 : index
    %102 = vector.load %arg9[%c0_72, %c0_73, %c0_74, %c0_75] : memref<2x18x18x128xf32, #tpu.memory_space<vmem>>, vector<2x18x16x128xf32>
    %103 = vector.extract_strided_slice %102 {offsets = [0, 0, 0, 0], sizes = [2, 16, 16, 128], strides = [1, 1, 1, 1]} : vector<2x18x16x128xf32> to vector<2x16x16x128xf32>
    %104 = vector.shape_cast %103 : vector<2x16x16x128xf32> to vector<512x128xf32>
    %105 = arith.truncf %104 : vector<512x128xf32> to vector<512x128xbf16>
    %c0_76 = arith.constant 0 : index
    %c0_77 = arith.constant 0 : index
    %c0_78 = arith.constant 0 : index
    %106 = vector.load %arg5[%c0_76, %c0_77, %c0_78] : memref<9x128x128xbf16, #tpu.memory_space<vmem>>, vector<1x128x128xbf16>
    %107 = vector.shape_cast %106 : vector<1x128x128xbf16> to vector<128x128xbf16>
    %cst_79 = arith.constant dense<0.000000e+00> : vector<512x128xf32>
    %108 = tpu.matmul %105, %107, %cst_79 {dimension_numbers = #tpu.dot_dimension_numbers<[1], [0], [0], [1], [0, 0, 1, 1], [], []>} : vector<512x128xbf16>, vector<128x128xbf16>, vector<512x128xf32> -> vector<512x128xf32>
    %109 = vector.extract_strided_slice %102 {offsets = [0, 1, 0, 0], sizes = [2, 16, 16, 128], strides = [1, 1, 1, 1]} : vector<2x18x16x128xf32> to vector<2x16x16x128xf32>
    %110 = vector.shape_cast %109 : vector<2x16x16x128xf32> to vector<512x128xf32>
    %111 = arith.truncf %110 : vector<512x128xf32> to vector<512x128xbf16>
    %c3_80 = arith.constant 3 : index
    %c0_81 = arith.constant 0 : index
    %c0_82 = arith.constant 0 : index
    %112 = vector.load %arg5[%c3_80, %c0_81, %c0_82] : memref<9x128x128xbf16, #tpu.memory_space<vmem>>, vector<1x128x128xbf16>
    %113 = vector.shape_cast %112 : vector<1x128x128xbf16> to vector<128x128xbf16>
    %cst_83 = arith.constant dense<0.000000e+00> : vector<512x128xf32>
    %114 = tpu.matmul %111, %113, %cst_83 {dimension_numbers = #tpu.dot_dimension_numbers<[1], [0], [0], [1], [0, 0, 1, 1], [], []>} : vector<512x128xbf16>, vector<128x128xbf16>, vector<512x128xf32> -> vector<512x128xf32>
    %115 = arith.addf %108, %114 : vector<512x128xf32>
    %116 = vector.extract_strided_slice %102 {offsets = [0, 2, 0, 0], sizes = [2, 16, 16, 128], strides = [1, 1, 1, 1]} : vector<2x18x16x128xf32> to vector<2x16x16x128xf32>
    %117 = vector.shape_cast %116 : vector<2x16x16x128xf32> to vector<512x128xf32>
    %118 = arith.truncf %117 : vector<512x128xf32> to vector<512x128xbf16>
    %c6_84 = arith.constant 6 : index
    %c0_85 = arith.constant 0 : index
    %c0_86 = arith.constant 0 : index
    %119 = vector.load %arg5[%c6_84, %c0_85, %c0_86] : memref<9x128x128xbf16, #tpu.memory_space<vmem>>, vector<1x128x128xbf16>
    %120 = vector.shape_cast %119 : vector<1x128x128xbf16> to vector<128x128xbf16>
    %cst_87 = arith.constant dense<0.000000e+00> : vector<512x128xf32>
    %121 = tpu.matmul %118, %120, %cst_87 {dimension_numbers = #tpu.dot_dimension_numbers<[1], [0], [0], [1], [0, 0, 1, 1], [], []>} : vector<512x128xbf16>, vector<128x128xbf16>, vector<512x128xf32> -> vector<512x128xf32>
    %122 = arith.addf %115, %121 : vector<512x128xf32>
    %c0_88 = arith.constant 0 : index
    %c0_89 = arith.constant 0 : index
    %c1_90 = arith.constant 1 : index
    %c0_91 = arith.constant 0 : index
    %123 = vector.load %arg9[%c0_88, %c0_89, %c1_90, %c0_91] : memref<2x18x18x128xf32, #tpu.memory_space<vmem>>, vector<2x18x16x128xf32>
    %124 = vector.extract_strided_slice %123 {offsets = [0, 0, 0, 0], sizes = [2, 16, 16, 128], strides = [1, 1, 1, 1]} : vector<2x18x16x128xf32> to vector<2x16x16x128xf32>
    %125 = vector.shape_cast %124 : vector<2x16x16x128xf32> to vector<512x128xf32>
    %126 = arith.truncf %125 : vector<512x128xf32> to vector<512x128xbf16>
    %c1_92 = arith.constant 1 : index
    %c0_93 = arith.constant 0 : index
    %c0_94 = arith.constant 0 : index
    %127 = vector.load %arg5[%c1_92, %c0_93, %c0_94] : memref<9x128x128xbf16, #tpu.memory_space<vmem>>, vector<1x128x128xbf16>
    %128 = vector.shape_cast %127 : vector<1x128x128xbf16> to vector<128x128xbf16>
    %cst_95 = arith.constant dense<0.000000e+00> : vector<512x128xf32>
    %129 = tpu.matmul %126, %128, %cst_95 {dimension_numbers = #tpu.dot_dimension_numbers<[1], [0], [0], [1], [0, 0, 1, 1], [], []>} : vector<512x128xbf16>, vector<128x128xbf16>, vector<512x128xf32> -> vector<512x128xf32>
    %130 = arith.addf %122, %129 : vector<512x128xf32>
    %131 = vector.extract_strided_slice %123 {offsets = [0, 1, 0, 0], sizes = [2, 16, 16, 128], strides = [1, 1, 1, 1]} : vector<2x18x16x128xf32> to vector<2x16x16x128xf32>
    %132 = vector.shape_cast %131 : vector<2x16x16x128xf32> to vector<512x128xf32>
    %133 = arith.truncf %132 : vector<512x128xf32> to vector<512x128xbf16>
    %c4_96 = arith.constant 4 : index
    %c0_97 = arith.constant 0 : index
    %c0_98 = arith.constant 0 : index
    %134 = vector.load %arg5[%c4_96, %c0_97, %c0_98] : memref<9x128x128xbf16, #tpu.memory_space<vmem>>, vector<1x128x128xbf16>
    %135 = vector.shape_cast %134 : vector<1x128x128xbf16> to vector<128x128xbf16>
    %cst_99 = arith.constant dense<0.000000e+00> : vector<512x128xf32>
    %136 = tpu.matmul %133, %135, %cst_99 {dimension_numbers = #tpu.dot_dimension_numbers<[1], [0], [0], [1], [0, 0, 1, 1], [], []>} : vector<512x128xbf16>, vector<128x128xbf16>, vector<512x128xf32> -> vector<512x128xf32>
    %137 = arith.addf %130, %136 : vector<512x128xf32>
    %138 = vector.extract_strided_slice %123 {offsets = [0, 2, 0, 0], sizes = [2, 16, 16, 128], strides = [1, 1, 1, 1]} : vector<2x18x16x128xf32> to vector<2x16x16x128xf32>
    %139 = vector.shape_cast %138 : vector<2x16x16x128xf32> to vector<512x128xf32>
    %140 = arith.truncf %139 : vector<512x128xf32> to vector<512x128xbf16>
    %c7_100 = arith.constant 7 : index
    %c0_101 = arith.constant 0 : index
    %c0_102 = arith.constant 0 : index
    %141 = vector.load %arg5[%c7_100, %c0_101, %c0_102] : memref<9x128x128xbf16, #tpu.memory_space<vmem>>, vector<1x128x128xbf16>
    %142 = vector.shape_cast %141 : vector<1x128x128xbf16> to vector<128x128xbf16>
    %cst_103 = arith.constant dense<0.000000e+00> : vector<512x128xf32>
    %143 = tpu.matmul %140, %142, %cst_103 {dimension_numbers = #tpu.dot_dimension_numbers<[1], [0], [0], [1], [0, 0, 1, 1], [], []>} : vector<512x128xbf16>, vector<128x128xbf16>, vector<512x128xf32> -> vector<512x128xf32>
    %144 = arith.addf %137, %143 : vector<512x128xf32>
    %c0_104 = arith.constant 0 : index
    %c0_105 = arith.constant 0 : index
    %c2_106 = arith.constant 2 : index
    %c0_107 = arith.constant 0 : index
    %145 = vector.load %arg9[%c0_104, %c0_105, %c2_106, %c0_107] : memref<2x18x18x128xf32, #tpu.memory_space<vmem>>, vector<2x18x16x128xf32>
    %146 = vector.extract_strided_slice %145 {offsets = [0, 0, 0, 0], sizes = [2, 16, 16, 128], strides = [1, 1, 1, 1]} : vector<2x18x16x128xf32> to vector<2x16x16x128xf32>
    %147 = vector.shape_cast %146 : vector<2x16x16x128xf32> to vector<512x128xf32>
    %148 = arith.truncf %147 : vector<512x128xf32> to vector<512x128xbf16>
    %c2_108 = arith.constant 2 : index
    %c0_109 = arith.constant 0 : index
    %c0_110 = arith.constant 0 : index
    %149 = vector.load %arg5[%c2_108, %c0_109, %c0_110] : memref<9x128x128xbf16, #tpu.memory_space<vmem>>, vector<1x128x128xbf16>
    %150 = vector.shape_cast %149 : vector<1x128x128xbf16> to vector<128x128xbf16>
    %cst_111 = arith.constant dense<0.000000e+00> : vector<512x128xf32>
    %151 = tpu.matmul %148, %150, %cst_111 {dimension_numbers = #tpu.dot_dimension_numbers<[1], [0], [0], [1], [0, 0, 1, 1], [], []>} : vector<512x128xbf16>, vector<128x128xbf16>, vector<512x128xf32> -> vector<512x128xf32>
    %152 = arith.addf %144, %151 : vector<512x128xf32>
    %153 = vector.extract_strided_slice %145 {offsets = [0, 1, 0, 0], sizes = [2, 16, 16, 128], strides = [1, 1, 1, 1]} : vector<2x18x16x128xf32> to vector<2x16x16x128xf32>
    %154 = vector.shape_cast %153 : vector<2x16x16x128xf32> to vector<512x128xf32>
    %155 = arith.truncf %154 : vector<512x128xf32> to vector<512x128xbf16>
    %c5_112 = arith.constant 5 : index
    %c0_113 = arith.constant 0 : index
    %c0_114 = arith.constant 0 : index
    %156 = vector.load %arg5[%c5_112, %c0_113, %c0_114] : memref<9x128x128xbf16, #tpu.memory_space<vmem>>, vector<1x128x128xbf16>
    %157 = vector.shape_cast %156 : vector<1x128x128xbf16> to vector<128x128xbf16>
    %cst_115 = arith.constant dense<0.000000e+00> : vector<512x128xf32>
    %158 = tpu.matmul %155, %157, %cst_115 {dimension_numbers = #tpu.dot_dimension_numbers<[1], [0], [0], [1], [0, 0, 1, 1], [], []>} : vector<512x128xbf16>, vector<128x128xbf16>, vector<512x128xf32> -> vector<512x128xf32>
    %159 = arith.addf %152, %158 : vector<512x128xf32>
    %160 = vector.extract_strided_slice %145 {offsets = [0, 2, 0, 0], sizes = [2, 16, 16, 128], strides = [1, 1, 1, 1]} : vector<2x18x16x128xf32> to vector<2x16x16x128xf32>
    %161 = vector.shape_cast %160 : vector<2x16x16x128xf32> to vector<512x128xf32>
    %162 = arith.truncf %161 : vector<512x128xf32> to vector<512x128xbf16>
    %c8_116 = arith.constant 8 : index
    %c0_117 = arith.constant 0 : index
    %c0_118 = arith.constant 0 : index
    %163 = vector.load %arg5[%c8_116, %c0_117, %c0_118] : memref<9x128x128xbf16, #tpu.memory_space<vmem>>, vector<1x128x128xbf16>
    %164 = vector.shape_cast %163 : vector<1x128x128xbf16> to vector<128x128xbf16>
    %cst_119 = arith.constant dense<0.000000e+00> : vector<512x128xf32>
    %165 = tpu.matmul %162, %164, %cst_119 {dimension_numbers = #tpu.dot_dimension_numbers<[1], [0], [0], [1], [0, 0, 1, 1], [], []>} : vector<512x128xbf16>, vector<128x128xbf16>, vector<512x128xf32> -> vector<512x128xf32>
    %166 = arith.addf %159, %165 : vector<512x128xf32>
    %c0_120 = arith.constant 0 : index
    %c0_121 = arith.constant 0 : index
    %167 = vector.load %arg6[%c0_120, %c0_121] : memref<1x128xf32, #tpu.memory_space<vmem>>, vector<1x128xf32>
    %c0_122 = arith.constant 0 : index
    %c0_123 = arith.constant 0 : index
    %168 = vector.load %arg7[%c0_122, %c0_123] : memref<1x128xf32, #tpu.memory_space<vmem>>, vector<1x128xf32>
    %cst_124 = arith.constant dense<0.000000e+00> : vector<128xf32>
    %169 = vector.multi_reduction <add>, %166, %cst_124 [0] : vector<512x128xf32> to vector<128xf32>
    %170 = vector.shape_cast %169 : vector<128xf32> to vector<1x128xf32>
    %cst_125 = arith.constant 0.001953125 : f32
    %171 = vector.broadcast %cst_125 : f32 to vector<1x128xf32>
    %172 = arith.mulf %170, %171 : vector<1x128xf32>
    %173 = arith.mulf %166, %166 : vector<512x128xf32>
    %cst_126 = arith.constant dense<0.000000e+00> : vector<128xf32>
    %174 = vector.multi_reduction <add>, %173, %cst_126 [0] : vector<512x128xf32> to vector<128xf32>
    %175 = vector.shape_cast %174 : vector<128xf32> to vector<1x128xf32>
    %cst_127 = arith.constant 0.001953125 : f32
    %176 = vector.broadcast %cst_127 : f32 to vector<1x128xf32>
    %177 = arith.mulf %175, %176 : vector<1x128xf32>
    %178 = arith.mulf %172, %172 : vector<1x128xf32>
    %179 = arith.subf %177, %178 : vector<1x128xf32>
    %cst_128 = arith.constant 0.000000e+00 : f32
    %180 = vector.broadcast %cst_128 : f32 to vector<1x128xf32>
    %181 = arith.maximumf %179, %180 : vector<1x128xf32>
    %cst_129 = arith.constant 9.99999974E-6 : f32
    %182 = vector.broadcast %cst_129 : f32 to vector<1x128xf32>
    %183 = arith.addf %181, %182 : vector<1x128xf32>
    %184 = math.rsqrt %183 : vector<1x128xf32>
    %185 = arith.mulf %184, %167 : vector<1x128xf32>
    %186 = arith.mulf %172, %185 : vector<1x128xf32>
    %187 = arith.subf %168, %186 : vector<1x128xf32>
    %188 = vector.broadcast %185 : vector<1x128xf32> to vector<512x128xf32>
    %189 = arith.mulf %166, %188 : vector<512x128xf32>
    %190 = vector.broadcast %187 : vector<1x128xf32> to vector<512x128xf32>
    %191 = arith.addf %189, %190 : vector<512x128xf32>
    %192 = vector.shape_cast %191 : vector<512x128xf32> to vector<2x8x2x16x128xf32>
    %193 = vector.extract_strided_slice %192 {offsets = [0, 0, 0, 0, 0], sizes = [2, 8, 1, 16, 128], strides = [1, 1, 1, 1, 1]} : vector<2x8x2x16x128xf32> to vector<2x8x1x16x128xf32>
    %194 = vector.shape_cast %193 : vector<2x8x1x16x128xf32> to vector<2x8x16x128xf32>
    %195 = vector.extract_strided_slice %192 {offsets = [0, 0, 1, 0, 0], sizes = [2, 8, 1, 16, 128], strides = [1, 1, 1, 1, 1]} : vector<2x8x2x16x128xf32> to vector<2x8x1x16x128xf32>
    %196 = vector.shape_cast %195 : vector<2x8x1x16x128xf32> to vector<2x8x16x128xf32>
    %197 = arith.maximumf %194, %196 : vector<2x8x16x128xf32>
    %198 = vector.shape_cast %197 : vector<2x8x16x128xf32> to vector<128x2x128xf32>
    %199 = vector.extract_strided_slice %198 {offsets = [0, 0, 0], sizes = [128, 1, 128], strides = [1, 1, 1]} : vector<128x2x128xf32> to vector<128x1x128xf32>
    %200 = vector.shape_cast %199 : vector<128x1x128xf32> to vector<128x128xf32>
    %201 = vector.extract_strided_slice %198 {offsets = [0, 1, 0], sizes = [128, 1, 128], strides = [1, 1, 1]} : vector<128x2x128xf32> to vector<128x1x128xf32>
    %202 = vector.shape_cast %201 : vector<128x1x128xf32> to vector<128x128xf32>
    %203 = arith.maximumf %200, %202 : vector<128x128xf32>
    %cst_130 = arith.constant 0.000000e+00 : f32
    %204 = vector.broadcast %cst_130 : f32 to vector<128x128xf32>
    %205 = arith.maximumf %203, %204 : vector<128x128xf32>
    %c0_131 = arith.constant 0 : index
    %c0_132 = arith.constant 0 : index
    %206 = vector.load %arg8[%c0_131, %c0_132] : memref<128x128xf32, #tpu.memory_space<vmem>>, vector<128x128xf32>
    tpu.vector_store %arg8[%c0_131, %c0_132], %205 {strides = array<i32>} : memref<128x128xf32, #tpu.memory_space<vmem>>, vector<128x128xf32>,
    return
  }
  func.func @transform_0(%arg0: i32) -> (i32, i32, i32, i32) {
    %c0_i32 = arith.constant 0 : i32
    %c0_i32_0 = arith.constant 0 : i32
    %c0_i32_1 = arith.constant 0 : i32
    %c0_i32_2 = arith.constant 0 : i32
    %c0_i32_3 = arith.constant 0 : i32
    return %c0_i32, %c0_i32_0, %c0_i32_1, %c0_i32_2 : i32, i32, i32, i32
  }
  func.func @transform_1(%arg0: i32) -> (i32, i32, i32) {
    %c0_i32 = arith.constant 0 : i32
    %c0_i32_0 = arith.constant 0 : i32
    %c0_i32_1 = arith.constant 0 : i32
    %c0_i32_2 = arith.constant 0 : i32
    return %c0_i32, %c0_i32_0, %c0_i32_1 : i32, i32, i32
  }
  func.func @transform_2(%arg0: i32) -> (i32, i32) {
    %c0_i32 = arith.constant 0 : i32
    %c0_i32_0 = arith.constant 0 : i32
    %c0_i32_1 = arith.constant 0 : i32
    return %c0_i32, %c0_i32_0 : i32, i32
  }
  func.func @transform_3(%arg0: i32) -> (i32, i32) {
    %c0_i32 = arith.constant 0 : i32
    %c0_i32_0 = arith.constant 0 : i32
    %c0_i32_1 = arith.constant 0 : i32
    return %c0_i32, %c0_i32_0 : i32, i32
  }
  func.func @transform_4(%arg0: i32) -> (i32, i32, i32) {
    %c0_i32 = arith.constant 0 : i32
    %c0_i32_0 = arith.constant 0 : i32
    %c0_i32_1 = arith.constant 0 : i32
    %c0_i32_2 = arith.constant 0 : i32
    return %c0_i32, %c0_i32_0, %c0_i32_1 : i32, i32, i32
  }
  func.func @transform_5(%arg0: i32) -> (i32, i32) {
    %c0_i32 = arith.constant 0 : i32
    %c0_i32_0 = arith.constant 0 : i32
    %c0_i32_1 = arith.constant 0 : i32
    return %c0_i32, %c0_i32_0 : i32, i32
  }
  func.func @transform_6(%arg0: i32) -> (i32, i32) {
    %c0_i32 = arith.constant 0 : i32
    %c0_i32_0 = arith.constant 0 : i32
    %c0_i32_1 = arith.constant 0 : i32
    return %c0_i32, %c0_i32_0 : i32, i32
  }
  func.func @transform_7(%arg0: i32) -> (i32, i32) {
    %c0_i32 = arith.constant 0 : i32
    %c0_i32_0 = arith.constant 0 : i32
    %c0_i32_1 = arith.constant 0 : i32
    return %c0_i32, %c0_i32_0 : i32, i32
  }
}

</mosaic_0001>

<llo_original>
// kernel: tpu_custom_call.1
$region0: #{tpu_custom_call.1}
  #allocation0 [shape = 'u32[]', space=smem, size = 0x4, offset = 0x4, fixed_abs, tag = 'smem constant byte address 0x4 - core index']
  #allocation1 [shape = 'u32[144,128]{1,0:T(1,128)}', space=vmem, size = 0x12000, scoped, tag = 'internal scratch']
  #allocation2 [shape = 'f32[2,18,18,128]{3,2,1,0:T(8,128)}', space=vmem, size = 0x6c000, scoped, tag = 'scratch operand']
  %s0 = inlined_call_operand.vmem [shape: f32[2,18,18,4], index: 0, kind: input, shape index: {}]
  %s1 = inlined_call_operand.vmem [shape: bf16[9,4,128], index: 1, kind: input, shape index: {}]
  %s2 = inlined_call_operand.vmem [shape: f32[1,128], index: 2, kind: input, shape index: {}]
  %s3 = inlined_call_operand.vmem [shape: f32[1,128], index: 3, kind: input, shape index: {}]
  %s4 = inlined_call_operand.vmem [shape: bf16[9,128,128], index: 4, kind: input, shape index: {}]
  %s5 = inlined_call_operand.vmem [shape: f32[1,128], index: 5, kind: input, shape index: {}]
  %s6 = inlined_call_operand.vmem [shape: f32[1,128], index: 6, kind: input, shape index: {}]
  %s7 = inlined_call_operand.hbm [shape: f32[128,128], index: 7, kind: output, shape index: {}]
  %s8 = sld [smem:[#allocation0]]
  $region38: #{tpu_custom_call.1} parent=0
    _
  %s10 = ssub.s32 1, %s8
  %s11 = scalar_select 0, %s10, %s8
  $region1: #{tpu_custom_call.1} parent=0
    #allocation3 [shape = 'u8[65536]{0}', space=vmem, size = 0x10000, scoped, tag = 'output window, operand 0, single buffered']
    #allocation4 [shape = 's32[1]{0}', space=sflag, size = 0x4, scoped, tag = 'scoped memory for tpu_custom_call.1']
    %12 = vsyncpa [#allocation4], 0
    // Predicated region
    $region2: #{tpu_custom_call.1} parent=1 // pred_check
      _
    $region3: #{tpu_custom_call.1} parent=1 // pred_check_branch
      %14 = sbr.rel (0) target = $region5
    $region4: #{tpu_custom_call.1} parent=1 // pred_region
      _
    $region5: #{tpu_custom_call.1} parent=1 // pred_fallthru
      _
    // Predicated region
    $region6: #{tpu_custom_call.1} parent=1 // pred_check
      _
    $region7: #{tpu_custom_call.1} parent=1 // pred_check_branch
      %16 = sbr.rel (0) target = $region9
    $region8: #{tpu_custom_call.1} parent=1 // pred_region
      _
    $region9: #{tpu_custom_call.1} parent=1 // pred_fallthru
      _
    // Predicated region
    $region10: #{tpu_custom_call.1} parent=1 // pred_check
      _
    $region11: #{tpu_custom_call.1} parent=1 // pred_check_branch
      %18 = sbr.rel (0) target = $region13
    $region12: #{tpu_custom_call.1} parent=1 // pred_region
      _
    $region13: #{tpu_custom_call.1} parent=1 // pred_fallthru
      _
    // Predicated region
    $region14: #{tpu_custom_call.1} parent=1 // pred_check
      _
    $region15: #{tpu_custom_call.1} parent=1 // pred_check_branch
      %20 = sbr.rel (0) target = $region17
    $region16: #{tpu_custom_call.1} parent=1 // pred_region
      _
    $region17: #{tpu_custom_call.1} parent=1 // pred_fallthru
      _
    // Predicated region
    $region18: #{tpu_custom_call.1} parent=1 // pred_check
      _
    $region19: #{tpu_custom_call.1} parent=1 // pred_check_branch
      %22 = sbr.rel (0) target = $region21
    $region20: #{tpu_custom_call.1} parent=1 // pred_region
      _
    $region21: #{tpu_custom_call.1} parent=1 // pred_fallthru
      _
    // Predicated region
    $region22: #{tpu_custom_call.1} parent=1 // pred_check
      _
    $region23: #{tpu_custom_call.1} parent=1 // pred_check_branch
      %24 = sbr.rel (0) target = $region25
    $region24: #{tpu_custom_call.1} parent=1 // pred_region
      _
    $region25: #{tpu_custom_call.1} parent=1 // pred_fallthru
      _
    // Predicated region
    $region26: #{tpu_custom_call.1} parent=1 // pred_check
      _
    $region27: #{tpu_custom_call.1} parent=1 // pred_check_branch
      %26 = sbr.rel (0) target = $region29
    $region28: #{tpu_custom_call.1} parent=1 // pred_region
      _
    $region29: #{tpu_custom_call.1} parent=1 // pred_fallthru
      _
    %v28 = vld [vmem:[%s0] sm:$0xff]
    %v29 = vld [vmem:[%s0 + $0x8] sm:$0xff]
    %v30 = vld [vmem:[%s0 + $0x18] sm:$0xff]
    %v31 = vld [vmem:[%s0 + $0x20] sm:$0xff]
    %v32 = vld [vmem:[%s0 + $0x30] sm:$0xff]
    %v33 = vld [vmem:[%s0 + $0x38] sm:$0xff]
    %v34 = vld [vmem:[%s0 + $0x48] sm:$0xff]
    %v35 = vld [vmem:[%s0 + $0x50] sm:$0xff]
    %v36 = vld [vmem:[%s0 + $0x60] sm:$0xff]
    %v37 = vld [vmem:[%s0 + $0x68] sm:$0xff]
    %v38 = vld [vmem:[%s0 + $0x78] sm:$0xff]
    %v39 = vld [vmem:[%s0 + $0x80] sm:$0xff]
    %v40 = vld [vmem:[%s0 + $0x90] sm:$0xff]
    %v41 = vld [vmem:[%s0 + $0x98] sm:$0xff]
    %v42 = vld [vmem:[%s0 + $0xa8] sm:$0xff]
    %v43 = vld [vmem:[%s0 + $0xb0] sm:$0xff]
    %v44 = vld [vmem:[%s0 + $0xc0] sm:$0xff]
    %v45 = vld [vmem:[%s0 + $0xc8] sm:$0xff]
    %v46 = vld [vmem:[%s0 + $0xd8] sm:$0xff]
    %v47 = vld [vmem:[%s0 + $0xe0] sm:$0xff]
    %v48 = vld [vmem:[%s0 + $0xf0] sm:$0xff]
    %v49 = vld [vmem:[%s0 + $0xf8] sm:$0xff]
    %v50 = vld [vmem:[%s0 + $0x108] sm:$0xff]
    %v51 = vld [vmem:[%s0 + $0x110] sm:$0xff]
    %v52 = vld [vmem:[%s0 + $0x120] sm:$0xff]
    %v53 = vld [vmem:[%s0 + $0x128] sm:$0xff]
    %v54 = vld [vmem:[%s0 + $0x138] sm:$0xff]
    %v55 = vld [vmem:[%s0 + $0x140] sm:$0xff]
    %v56 = vld [vmem:[%s0 + $0x150] sm:$0xff]
    %v57 = vld [vmem:[%s0 + $0x158] sm:$0xff]
    %v58 = vld [vmem:[%s0 + $0x168] sm:$0xff]
    %v59 = vld [vmem:[%s0 + $0x170] sm:$0xff]
    %v60 = vld [vmem:[%s0 + $0x180] sm:$0xff]
    %v61 = vld [vmem:[%s0 + $0x188] sm:$0xff]
    %v62 = vld [vmem:[%s0 + $0x198] sm:$0xff]
    %v63 = vld [vmem:[%s0 + $0x1a0] sm:$0xff]
    %v64 = vld [vmem:[%s0 + $0x1b0] sm:$0xff]
    %v65 = vld [vmem:[%s0 + $0x1b8] sm:$0xff]
    %v66 = vld [vmem:[%s0 + $0x1c8] sm:$0xff]
    %v67 = vld [vmem:[%s0 + $0x1d0] sm:$0xff]
    %v68 = vld [vmem:[%s0 + $0x1e0] sm:$0xff]
    %v69 = vld [vmem:[%s0 + $0x1e8] sm:$0xff]
    %v70 = vld [vmem:[%s0 + $0x1f8] sm:$0xff]
    %v71 = vld [vmem:[%s0 + $0x200] sm:$0xff]
    %v72 = vld [vmem:[%s0 + $0x210] sm:$0xff]
    %v73 = vld [vmem:[%s0 + $0x218] sm:$0xff]
    %v74 = vld [vmem:[%s0 + $0x228] sm:$0xff]
    %v75 = vld [vmem:[%s0 + $0x230] sm:$0xff]
    %v76 = vld [vmem:[%s0 + $0x240] sm:$0xff]
    %v77 = vld [vmem:[%s0 + $0x248] sm:$0xff]
    %v78 = vld [vmem:[%s0 + $0x258] sm:$0xff]
    %v79 = vld [vmem:[%s0 + $0x260] sm:$0xff]
    %v80 = vld [vmem:[%s0 + $0x270] sm:$0xff]
    %v81 = vld [vmem:[%s0 + $0x278] sm:$0xff]
    %v82 = vld [vmem:[%s0 + $0x288] sm:$0xff]
    %v83 = vld [vmem:[%s0 + $0x290] sm:$0xff]
    %v84 = vld [vmem:[%s0 + $0x2a0] sm:$0xff]
    %v85 = vld [vmem:[%s0 + $0x2a8] sm:$0xff]
    %v86 = vld [vmem:[%s0 + $0x2b8] sm:$0xff]
    %v87 = vld [vmem:[%s0 + $0x2c0] sm:$0xff]
    %v88 = vld [vmem:[%s0 + $0x2d0] sm:$0xff]
    %v89 = vld [vmem:[%s0 + $0x2d8] sm:$0xff]
    %v90 = vld [vmem:[%s0 + $0x2e8] sm:$0xff]
    %v91 = vld [vmem:[%s0 + $0x2f0] sm:$0xff]
    %v92 = vld [vmem:[%s0 + $0x300] sm:$0xff]
    %v93 = vld [vmem:[%s0 + $0x308] sm:$0xff]
    %v94 = vld [vmem:[%s0 + $0x318] sm:$0xff]
    %v95 = vld [vmem:[%s0 + $0x320] sm:$0xff]
    %v96 = vld [vmem:[%s0 + $0x330] sm:$0xff]
    %v97 = vld [vmem:[%s0 + $0x338] sm:$0xff]
    %v98 = vld [vmem:[%s0 + $0x348] sm:$0xff]
    %v99 = vld [vmem:[%s0 + $0x350] sm:$0xff]
    %v100 = vpack.c.bf16 %v29, %v28
    %v101 = vpack.c.bf16 %v31, %v30
    %v102 = vpack.c.bf16 %v33, %v32
    %v103 = vpack.c.bf16 %v35, %v34
    %v104 = vpack.c.bf16 %v37, %v36
    %v105 = vpack.c.bf16 %v39, %v38
    %v106 = vpack.c.bf16 %v41, %v40
    %v107 = vpack.c.bf16 %v43, %v42
    %v108 = vpack.c.bf16 %v45, %v44
    %v109 = vpack.c.bf16 %v47, %v46
    %v110 = vpack.c.bf16 %v49, %v48
    %v111 = vpack.c.bf16 %v51, %v50
    %v112 = vpack.c.bf16 %v53, %v52
    %v113 = vpack.c.bf16 %v55, %v54
    %v114 = vpack.c.bf16 %v57, %v56
    %v115 = vpack.c.bf16 %v59, %v58
    %v116 = vpack.c.bf16 %v65, %v64
    %v117 = vpack.c.bf16 %v67, %v66
    %v118 = vpack.c.bf16 %v69, %v68
    %v119 = vpack.c.bf16 %v71, %v70
    %v120 = vpack.c.bf16 %v73, %v72
    %v121 = vpack.c.bf16 %v75, %v74
    %v122 = vpack.c.bf16 %v77, %v76
    %v123 = vpack.c.bf16 %v79, %v78
    %v124 = vpack.c.bf16 %v81, %v80
    %v125 = vpack.c.bf16 %v83, %v82
    %v126 = vpack.c.bf16 %v85, %v84
    %v127 = vpack.c.bf16 %v87, %v86
    %v128 = vpack.c.bf16 %v89, %v88
    %v129 = vpack.c.bf16 %v91, %v90
    %v130 = vpack.c.bf16 %v93, %v92
    %v131 = vpack.c.bf16 %v95, %v94
    %v132 = vld [vmem:[%s1] sm:$0x3]
    %v133 = vpack.c.bf16 %v61, %v60
    %v134 = vpack.c.bf16 %v97, %v96
    %s135 = scalar_lea.vmem %s1, 6
    %v136 = vld [vmem:[%s135] sm:$0x3]
    %vm137 = vcmask 31744
    %v139 = vsel %vm137, %v101, 0
    %v142 = vsel %vm137, %v102, 0
    %v145 = vsel %vm137, %v103, 0
    %v148 = vsel %vm137, %v104, 0
    %v151 = vsel %vm137, %v105, 0
    %v154 = vsel %vm137, %v106, 0
    %v157 = vsel %vm137, %v107, 0
    %v160 = vsel %vm137, %v108, 0
    %v163 = vsel %vm137, %v109, 0
    %v166 = vsel %vm137, %v110, 0
    %v169 = vsel %vm137, %v111, 0
    %v172 = vsel %vm137, %v112, 0
    %v175 = vsel %vm137, %v113, 0
    %v178 = vsel %vm137, %v114, 0
    %v181 = vsel %vm137, %v115, 0
    %v184 = vsel %vm137, %v133, 0
    %v187 = vsel %vm137, %v117, 0
    %v190 = vsel %vm137, %v118, 0
    %v193 = vsel %vm137, %v119, 0
    %v196 = vsel %vm137, %v120, 0
    %v199 = vsel %vm137, %v121, 0
    %v202 = vsel %vm137, %v122, 0
    %v205 = vsel %vm137, %v123, 0
    %v208 = vsel %vm137, %v124, 0
    %v211 = vsel %vm137, %v125, 0
    %v214 = vsel %vm137, %v126, 0
    %v217 = vsel %vm137, %v127, 0
    %v220 = vsel %vm137, %v128, 0
    %v223 = vsel %vm137, %v129, 0
    %v226 = vsel %vm137, %v130, 0
    %v229 = vsel %vm137, %v131, 0
    %v232 = vsel %vm137, %v134, 0
    %vm234 = vcmask 1041408
    %v236 = vsel %vm234, %v136, 0
    %238 = vmatprep.subr.bf16.mxu0 0
    %239 = vmatpush1.bf16.msra.mxu0 %v236
    %240 = vmatprep.subr.bf16.mxu0 0
    %241 = vmatpush1.bf16.msra.mxu0 0
    %242 = vmatprep.subr.bf16.mxu0 0
    %243 = vmatpush1.bf16.msra.mxu0 0
    %244 = vmatprep.subr.bf16.mxu0 0
    %245 = vmatpush1.bf16.msra.mxu0 0
    %246 = vmatprep.subr.bf16.mxu0 0
    %247 = vmatpush1.bf16.msra.mxu0 0
    %248 = vmatprep.subr.bf16.mxu0 0
    %249 = vmatpush1.bf16.msra.mxu0 0
    %250 = vmatprep.subr.bf16.mxu0 0
    %251 = vmatpush1.bf16.msra.mxu0 0
    %252 = vmatprep.subr.bf16.mxu0 0
    %253 = vmatpush1.bf16.msra.mxu0 0
    %254 = vmatprep.subr.bf16.mxu0 0
    %255 = vmatpush1.bf16.msra.mxu0 0
    %256 = vmatprep.subr.bf16.mxu0 0
    %257 = vmatpush1.bf16.msra.mxu0 0
    %258 = vmatprep.subr.bf16.mxu0 0
    %259 = vmatpush1.bf16.msra.mxu0 0
    %260 = vmatprep.subr.bf16.mxu0 0
    %261 = vmatpush1.bf16.msra.mxu0 0
    %262 = vmatprep.subr.bf16.mxu0 0
    %263 = vmatpush1.bf16.msra.mxu0 0
    %264 = vmatprep.subr.bf16.mxu0 0
    %265 = vmatpush1.bf16.msra.mxu0 0
    %266 = vmatprep.subr.bf16.mxu0 0
    %267 = vmatpush1.bf16.msra.mxu0 0
    %268 = vmatprep.subr.bf16.mxu0 0
    %269 = vmatpush1.bf16.msra.mxu0 0
    %270 = vmatprep.mubr.bf16.mxu0 0
    %271 = vmatmul.mubr.bf16.gmra.mrb[0].mxu0 %v139
    %v272 = vpop.f32.mrb[0].mxu0
    %v273 = vadd.f32 0.0, %v272
    %v274 = vpop.f32.mrb[0].mxu0
    %v275 = vpop.f32.mrb[0].mxu0
    %v276 = vadd.f32 0.0, %v275
    %v277 = vpop.f32.mrb[0].mxu0
    %278 = vmatprep.mubr.bf16.mxu0 0
    %279 = vmatmul.mubr.bf16.gmra.mrb[0].mxu0 %v142
    %v280 = vpop.f32.mrb[0].mxu0
    %v281 = vadd.f32 0.0, %v280
    %v282 = vpop.f32.mrb[0].mxu0
    %v283 = vpop.f32.mrb[0].mxu0
    %v284 = vadd.f32 0.0, %v283
    %v285 = vpop.f32.mrb[0].mxu0
    %286 = vmatprep.mubr.bf16.mxu0 0
    %287 = vmatmul.mubr.bf16.gmra.mrb[0].mxu0 %v145
    %v288 = vpop.f32.mrb[0].mxu0
    %v289 = vadd.f32 0.0, %v288
    %v290 = vpop.f32.mrb[0].mxu0
    %v291 = vpop.f32.mrb[0].mxu0
    %v292 = vadd.f32 0.0, %v291
    %v293 = vpop.f32.mrb[0].mxu0
    %294 = vmatprep.mubr.bf16.mxu0 0
    %295 = vmatmul.mubr.bf16.gmra.mrb[0].mxu0 %v148
    %v296 = vpop.f32.mrb[0].mxu0
    %v297 = vadd.f32 0.0, %v296
    %v298 = vpop.f32.mrb[0].mxu0
    %v299 = vpop.f32.mrb[0].mxu0
    %v300 = vadd.f32 0.0, %v299
    %v301 = vpop.f32.mrb[0].mxu0
    %302 = vmatprep.mubr.bf16.mxu0 0
    %303 = vmatmul.mubr.bf16.gmra.mrb[0].mxu0 %v151
    %v304 = vpop.f32.mrb[0].mxu0
    %v305 = vadd.f32 0.0, %v304
    %v306 = vpop.f32.mrb[0].mxu0
    %v307 = vpop.f32.mrb[0].mxu0
    %v308 = vadd.f32 0.0, %v307
    %v309 = vpop.f32.mrb[0].mxu0
    %310 = vmatprep.mubr.bf16.mxu0 0
    %311 = vmatmul.mubr.bf16.gmra.mrb[0].mxu0 %v154
    %v312 = vpop.f32.mrb[0].mxu0
    %v313 = vadd.f32 0.0, %v312
    %v314 = vpop.f32.mrb[0].mxu0
    %v315 = vpop.f32.mrb[0].mxu0
    %v316 = vadd.f32 0.0, %v315
    %v317 = vpop.f32.mrb[0].mxu0
    %318 = vmatprep.mubr.bf16.mxu0 0
    %319 = vmatmul.mubr.bf16.gmra.mrb[0].mxu0 %v157
    %v320 = vpop.f32.mrb[0].mxu0
    %v321 = vadd.f32 0.0, %v320
    %v322 = vpop.f32.mrb[0].mxu0
    %v323 = vpop.f32.mrb[0].mxu0
    %v324 = vadd.f32 0.0, %v323
    %v325 = vpop.f32.mrb[0].mxu0
    %326 = vmatprep.mubr.bf16.mxu0 0
    %327 = vmatmul.mubr.bf16.gmra.mrb[0].mxu0 %v160
    %v328 = vpop.f32.mrb[0].mxu0
    %v329 = vadd.f32 0.0, %v328
    %v330 = vpop.f32.mrb[0].mxu0
    %v331 = vpop.f32.mrb[0].mxu0
    %v332 = vadd.f32 0.0, %v331
    %v333 = vpop.f32.mrb[0].mxu0
    %334 = vmatprep.mubr.bf16.mxu0 0
    %335 = vmatmul.mubr.bf16.gmra.mrb[0].mxu0 %v163
    %v336 = vpop.f32.mrb[0].mxu0
    %v337 = vadd.f32 0.0, %v336
    %v338 = vpop.f32.mrb[0].mxu0
    %v339 = vpop.f32.mrb[0].mxu0
    %v340 = vadd.f32 0.0, %v339
    %v341 = vpop.f32.mrb[0].mxu0
    %342 = vmatprep.mubr.bf16.mxu0 0
    %343 = vmatmul.mubr.bf16.gmra.mrb[0].mxu0 %v166
    %v344 = vpop.f32.mrb[0].mxu0
    %v345 = vadd.f32 0.0, %v344
    %v346 = vpop.f32.mrb[0].mxu0
    %v347 = vpop.f32.mrb[0].mxu0
    %v348 = vadd.f32 0.0, %v347
    %v349 = vpop.f32.mrb[0].mxu0
    %350 = vmatprep.mubr.bf16.mxu0 0
    %351 = vmatmul.mubr.bf16.gmra.mrb[0].mxu0 %v169
    %v352 = vpop.f32.mrb[0].mxu0
    %v353 = vadd.f32 0.0, %v352
    %v354 = vpop.f32.mrb[0].mxu0
    %v355 = vpop.f32.mrb[0].mxu0
    %v356 = vadd.f32 0.0, %v355
    %v357 = vpop.f32.mrb[0].mxu0
    %358 = vmatprep.mubr.bf16.mxu0 0
    %359 = vmatmul.mubr.bf16.gmra.mrb[0].mxu0 %v172
    %v360 = vpop.f32.mrb[0].mxu0
    %v361 = vadd.f32 0.0, %v360
    %v362 = vpop.f32.mrb[0].mxu0
    %v363 = vpop.f32.mrb[0].mxu0
    %v364 = vadd.f32 0.0, %v363
    %v365 = vpop.f32.mrb[0].mxu0
    %366 = vmatprep.mubr.bf16.mxu0 0
    %367 = vmatmul.mubr.bf16.gmra.mrb[0].mxu0 %v175
    %v368 = vpop.f32.mrb[0].mxu0
    %v369 = vadd.f32 0.0, %v368
    %v370 = vpop.f32.mrb[0].mxu0
    %v371 = vpop.f32.mrb[0].mxu0
    %v372 = vadd.f32 0.0, %v371
    %v373 = vpop.f32.mrb[0].mxu0
    %374 = vmatprep.mubr.bf16.mxu0 0
    %375 = vmatmul.mubr.bf16.gmra.mrb[0].mxu0 %v178
    %v376 = vpop.f32.mrb[0].mxu0
    %v377 = vadd.f32 0.0, %v376
    %v378 = vpop.f32.mrb[0].mxu0
    %v379 = vpop.f32.mrb[0].mxu0
    %v380 = vadd.f32 0.0, %v379
    %v381 = vpop.f32.mrb[0].mxu0
    %382 = vmatprep.mubr.bf16.mxu0 0
    %383 = vmatmul.mubr.bf16.gmra.mrb[0].mxu0 %v181
    %v384 = vpop.f32.mrb[0].mxu0
    %v385 = vadd.f32 0.0, %v384
    %v386 = vpop.f32.mrb[0].mxu0
    %v387 = vpop.f32.mrb[0].mxu0
    %v388 = vadd.f32 0.0, %v387
    %v389 = vpop.f32.mrb[0].mxu0
    %390 = vmatprep.mubr.bf16.mxu0 0
    %391 = vmatmul.mubr.bf16.gmra.mrb[0].mxu0 %v184
    %v392 = vpop.f32.mrb[0].mxu0
    %v393 = vadd.f32 0.0, %v392
    %v394 = vpop.f32.mrb[0].mxu0
    %v395 = vpop.f32.mrb[0].mxu0
    %v396 = vadd.f32 0.0, %v395
    %v397 = vpop.f32.mrb[0].mxu0
    %398 = vmatprep.mubr.bf16.mxu0 0
    %399 = vmatmul.mubr.bf16.gmra.mrb[0].mxu0 %v187
    %v400 = vpop.f32.mrb[0].mxu0
    %v401 = vadd.f32 0.0, %v400
    %v402 = vpop.f32.mrb[0].mxu0
    %v403 = vpop.f32.mrb[0].mxu0
    %v404 = vadd.f32 0.0, %v403
    %v405 = vpop.f32.mrb[0].mxu0
    %406 = vmatprep.mubr.bf16.mxu0 0
    %407 = vmatmul.mubr.bf16.gmra.mrb[0].mxu0 %v190
    %v408 = vpop.f32.mrb[0].mxu0
    %v409 = vadd.f32 0.0, %v408
    %v410 = vpop.f32.mrb[0].mxu0
    %v411 = vpop.f32.mrb[0].mxu0
    %v412 = vadd.f32 0.0, %v411
    %v413 = vpop.f32.mrb[0].mxu0
    %414 = vmatprep.mubr.bf16.mxu0 0
    %415 = vmatmul.mubr.bf16.gmra.mrb[0].mxu0 %v193
    %v416 = vpop.f32.mrb[0].mxu0
    %v417 = vadd.f32 0.0, %v416
    %v418 = vpop.f32.mrb[0].mxu0
    %v419 = vpop.f32.mrb[0].mxu0
    %v420 = vadd.f32 0.0, %v419
    %v421 = vpop.f32.mrb[0].mxu0
    %422 = vmatprep.mubr.bf16.mxu0 0
    %423 = vmatmul.mubr.bf16.gmra.mrb[0].mxu0 %v196
    %v424 = vpop.f32.mrb[0].mxu0
    %v425 = vadd.f32 0.0, %v424
    %v426 = vpop.f32.mrb[0].mxu0
    %v427 = vpop.f32.mrb[0].mxu0
    %v428 = vadd.f32 0.0, %v427
    %v429 = vpop.f32.mrb[0].mxu0
    %430 = vmatprep.mubr.bf16.mxu0 0
    %431 = vmatmul.mubr.bf16.gmra.mrb[0].mxu0 %v199
    %v432 = vpop.f32.mrb[0].mxu0
    %v433 = vadd.f32 0.0, %v432
    %v434 = vpop.f32.mrb[0].mxu0
    %v435 = vpop.f32.mrb[0].mxu0
    %v436 = vadd.f32 0.0, %v435
    %v437 = vpop.f32.mrb[0].mxu0
    %438 = vmatprep.mubr.bf16.mxu0 0
    %439 = vmatmul.mubr.bf16.gmra.mrb[0].mxu0 %v202
    %v440 = vpop.f32.mrb[0].mxu0
    %v441 = vadd.f32 0.0, %v440
    %v442 = vpop.f32.mrb[0].mxu0
    %v443 = vpop.f32.mrb[0].mxu0
    %v444 = vadd.f32 0.0, %v443
    %v445 = vpop.f32.mrb[0].mxu0
    %446 = vmatprep.mubr.bf16.mxu0 0
    %447 = vmatmul.mubr.bf16.gmra.mrb[0].mxu0 %v205
    %v448 = vpop.f32.mrb[0].mxu0
    %v449 = vadd.f32 0.0, %v448
    %v450 = vpop.f32.mrb[0].mxu0
    %v451 = vpop.f32.mrb[0].mxu0
    %v452 = vadd.f32 0.0, %v451
    %v453 = vpop.f32.mrb[0].mxu0
    %454 = vmatprep.mubr.bf16.mxu0 0
    %455 = vmatmul.mubr.bf16.gmra.mrb[0].mxu0 %v208
    %v456 = vpop.f32.mrb[0].mxu0
    %v457 = vadd.f32 0.0, %v456
    %v458 = vpop.f32.mrb[0].mxu0
    %v459 = vpop.f32.mrb[0].mxu0
    %v460 = vadd.f32 0.0, %v459
    %v461 = vpop.f32.mrb[0].mxu0
    %462 = vmatprep.mubr.bf16.mxu0 0
    %463 = vmatmul.mubr.bf16.gmra.mrb[0].mxu0 %v211
    %v464 = vpop.f32.mrb[0].mxu0
    %v465 = vadd.f32 0.0, %v464
    %v466 = vpop.f32.mrb[0].mxu0
    %v467 = vpop.f32.mrb[0].mxu0
    %v468 = vadd.f32 0.0, %v467
    %v469 = vpop.f32.mrb[0].mxu0
    %470 = vmatprep.mubr.bf16.mxu0 0
    %471 = vmatmul.mubr.bf16.gmra.mrb[0].mxu0 %v214
    %v472 = vpop.f32.mrb[0].mxu0
    %v473 = vadd.f32 0.0, %v472
    %v474 = vpop.f32.mrb[0].mxu0
    %v475 = vpop.f32.mrb[0].mxu0
    %v476 = vadd.f32 0.0, %v475
    %v477 = vpop.f32.mrb[0].mxu0
    %478 = vmatprep.mubr.bf16.mxu0 0
    %479 = vmatmul.mubr.bf16.gmra.mrb[0].mxu0 %v217
    %v480 = vpop.f32.mrb[0].mxu0
    %v481 = vadd.f32 0.0, %v480
    %v482 = vpop.f32.mrb[0].mxu0
    %v483 = vpop.f32.mrb[0].mxu0
    %v484 = vadd.f32 0.0, %v483
    %v485 = vpop.f32.mrb[0].mxu0
    %486 = vmatprep.mubr.bf16.mxu0 0
    %487 = vmatmul.mubr.bf16.gmra.mrb[0].mxu0 %v220
    %v488 = vpop.f32.mrb[0].mxu0
    %v489 = vadd.f32 0.0, %v488
    %v490 = vpop.f32.mrb[0].mxu0
    %v491 = vpop.f32.mrb[0].mxu0
    %v492 = vadd.f32 0.0, %v491
    %v493 = vpop.f32.mrb[0].mxu0
    %494 = vmatprep.mubr.bf16.mxu0 0
    %495 = vmatmul.mubr.bf16.gmra.mrb[0].mxu0 %v223
    %v496 = vpop.f32.mrb[0].mxu0
    %v497 = vadd.f32 0.0, %v496
    %v498 = vpop.f32.mrb[0].mxu0
    %v499 = vpop.f32.mrb[0].mxu0
    %v500 = vadd.f32 0.0, %v499
    %v501 = vpop.f32.mrb[0].mxu0
    %502 = vmatprep.mubr.bf16.mxu0 0
    %503 = vmatmul.mubr.bf16.gmra.mrb[0].mxu0 %v226
    %v504 = vpop.f32.mrb[0].mxu0
    %v505 = vadd.f32 0.0, %v504
    %v506 = vpop.f32.mrb[0].mxu0
    %v507 = vpop.f32.mrb[0].mxu0
    %v508 = vadd.f32 0.0, %v507
    %v509 = vpop.f32.mrb[0].mxu0
    %510 = vmatprep.mubr.bf16.mxu0 0
    %511 = vmatmul.mubr.bf16.gmra.mrb[0].mxu0 %v229
    %v512 = vpop.f32.mrb[0].mxu0
    %v513 = vadd.f32 0.0, %v512
    %v514 = vpop.f32.mrb[0].mxu0
    %v515 = vpop.f32.mrb[0].mxu0
    %v516 = vadd.f32 0.0, %v515
    %v517 = vpop.f32.mrb[0].mxu0
    %518 = vmatprep.mubr.bf16.mxu0 0
    %519 = vmatmul.mubr.bf16.gmra.mrb[0].mxu0 %v232
    %v520 = vpop.f32.mrb[0].mxu0
    %v521 = vadd.f32 0.0, %v520
    %v522 = vpop.f32.mrb[0].mxu0
    %v523 = vpop.f32.mrb[0].mxu0
    %v524 = vadd.f32 0.0, %v523
    %v525 = vpop.f32.mrb[0].mxu0
    %526 = vdwg.mxu0
    %v528 = vsel %vm137, %v100, 0
    %v531 = vsel %vm137, %v116, 0
    %v534 = vsel %vm234, %v132, 0
    %536 = vmatprep.subr.bf16.mxu0 0
    %537 = vmatpush1.bf16.msra.mxu0 %v534
    %538 = vmatprep.subr.bf16.mxu0 0
    %539 = vmatpush1.bf16.msra.mxu0 0
    %540 = vmatprep.subr.bf16.mxu0 0
    %541 = vmatpush1.bf16.msra.mxu0 0
    %542 = vmatprep.subr.bf16.mxu0 0
    %543 = vmatpush1.bf16.msra.mxu0 0
    %544 = vmatprep.subr.bf16.mxu0 0
    %545 = vmatpush1.bf16.msra.mxu0 0
    %546 = vmatprep.subr.bf16.mxu0 0
    %547 = vmatpush1.bf16.msra.mxu0 0
    %548 = vmatprep.subr.bf16.mxu0 0
    %549 = vmatpush1.bf16.msra.mxu0 0
    %550 = vmatprep.subr.bf16.mxu0 0
    %551 = vmatpush1.bf16.msra.mxu0 0
    %552 = vmatprep.subr.bf16.mxu0 0
    %553 = vmatpush1.bf16.msra.mxu0 0
    %554 = vmatprep.subr.bf16.mxu0 0
    %555 = vmatpush1.bf16.msra.mxu0 0
    %556 = vmatprep.subr.bf16.mxu0 0
    %557 = vmatpush1.bf16.msra.mxu0 0
    %558 = vmatprep.subr.bf16.mxu0 0
    %559 = vmatpush1.bf16.msra.mxu0 0
    %560 = vmatprep.subr.bf16.mxu0 0
    %561 = vmatpush1.bf16.msra.mxu0 0
    %562 = vmatprep.subr.bf16.mxu0 0
    %563 = vmatpush1.bf16.msra.mxu0 0
    %564 = vmatprep.subr.bf16.mxu0 0
    %565 = vmatpush1.bf16.msra.mxu0 0
    %566 = vmatprep.subr.bf16.mxu0 0
    %567 = vmatpush1.bf16.msra.mxu0 0
    %568 = vmatprep.mubr.bf16.mxu0 0
    %569 = vmatmul.mubr.bf16.gmra.mrb[0].mxu0 %v528
    %v570 = vpop.f32.mrb[0].mxu0
    %v571 = vadd.f32 %v273, %v570
    %v572 = vpop.f32.mrb[0].mxu0
    %v573 = vpop.f32.mrb[0].mxu0
    %v574 = vadd.f32 %v276, %v573
    %v575 = vpop.f32.mrb[0].mxu0
    %576 = vmatprep.mubr.bf16.mxu0 0
    %577 = vmatmul.mubr.bf16.gmra.mrb[0].mxu0 %v139
    %v578 = vpop.f32.mrb[0].mxu0
    %v579 = vadd.f32 %v281, %v578
    %v580 = vpop.f32.mrb[0].mxu0
    %v581 = vpop.f32.mrb[0].mxu0
    %v582 = vadd.f32 %v284, %v581
    %v583 = vpop.f32.mrb[0].mxu0
    %584 = vmatprep.mubr.bf16.mxu0 0
    %585 = vmatmul.mubr.bf16.gmra.mrb[0].mxu0 %v142
    %v586 = vpop.f32.mrb[0].mxu0
    %v587 = vadd.f32 %v289, %v586
    %v588 = vpop.f32.mrb[0].mxu0
    %v589 = vpop.f32.mrb[0].mxu0
    %v590 = vadd.f32 %v292, %v589
    %v591 = vpop.f32.mrb[0].mxu0
    %592 = vmatprep.mubr.bf16.mxu0 0
    %593 = vmatmul.mubr.bf16.gmra.mrb[0].mxu0 %v145
    %v594 = vpop.f32.mrb[0].mxu0
    %v595 = vadd.f32 %v297, %v594
    %v596 = vpop.f32.mrb[0].mxu0
    %v597 = vpop.f32.mrb[0].mxu0
    %v598 = vadd.f32 %v300, %v597
    %v599 = vpop.f32.mrb[0].mxu0
    %600 = vmatprep.mubr.bf16.mxu0 0
    %601 = vmatmul.mubr.bf16.gmra.mrb[0].mxu0 %v148
    %v602 = vpop.f32.mrb[0].mxu0
    %v603 = vadd.f32 %v305, %v602
    %v604 = vpop.f32.mrb[0].mxu0
    %v605 = vpop.f32.mrb[0].mxu0
    %v606 = vadd.f32 %v308, %v605
    %v607 = vpop.f32.mrb[0].mxu0
    %608 = vmatprep.mubr.bf16.mxu0 0
    %609 = vmatmul.mubr.bf16.gmra.mrb[0].mxu0 %v151
    %v610 = vpop.f32.mrb[0].mxu0
    %v611 = vadd.f32 %v313, %v610
    %v612 = vpop.f32.mrb[0].mxu0
    %v613 = vpop.f32.mrb[0].mxu0
    %v614 = vadd.f32 %v316, %v613
    %v615 = vpop.f32.mrb[0].mxu0
    %616 = vmatprep.mubr.bf16.mxu0 0
    %617 = vmatmul.mubr.bf16.gmra.mrb[0].mxu0 %v154
    %v618 = vpop.f32.mrb[0].mxu0
    %v619 = vadd.f32 %v321, %v618
    %v620 = vpop.f32.mrb[0].mxu0
    %v621 = vpop.f32.mrb[0].mxu0
    %v622 = vadd.f32 %v324, %v621
    %v623 = vpop.f32.mrb[0].mxu0
    %624 = vmatprep.mubr.bf16.mxu0 0
    %625 = vmatmul.mubr.bf16.gmra.mrb[0].mxu0 %v157
    %v626 = vpop.f32.mrb[0].mxu0
    %v627 = vadd.f32 %v329, %v626
    %v628 = vpop.f32.mrb[0].mxu0
    %v629 = vpop.f32.mrb[0].mxu0
    %v630 = vadd.f32 %v332, %v629
    %v631 = vpop.f32.mrb[0].mxu0
    %632 = vmatprep.mubr.bf16.mxu0 0
    %633 = vmatmul.mubr.bf16.gmra.mrb[0].mxu0 %v160
    %v634 = vpop.f32.mrb[0].mxu0
    %v635 = vadd.f32 %v337, %v634
    %v636 = vpop.f32.mrb[0].mxu0
    %v637 = vpop.f32.mrb[0].mxu0
    %v638 = vadd.f32 %v340, %v637
    %v639 = vpop.f32.mrb[0].mxu0
    %640 = vmatprep.mubr.bf16.mxu0 0
    %641 = vmatmul.mubr.bf16.gmra.mrb[0].mxu0 %v163
    %v642 = vpop.f32.mrb[0].mxu0
    %v643 = vadd.f32 %v345, %v642
    %v644 = vpop.f32.mrb[0].mxu0
    %v645 = vpop.f32.mrb[0].mxu0
    %v646 = vadd.f32 %v348, %v645
    %v647 = vpop.f32.mrb[0].mxu0
    %648 = vmatprep.mubr.bf16.mxu0 0
    %649 = vmatmul.mubr.bf16.gmra.mrb[0].mxu0 %v166
    %v650 = vpop.f32.mrb[0].mxu0
    %v651 = vadd.f32 %v353, %v650
    %v652 = vpop.f32.mrb[0].mxu0
    %v653 = vpop.f32.mrb[0].mxu0
    %v654 = vadd.f32 %v356, %v653
    %v655 = vpop.f32.mrb[0].mxu0
    %656 = vmatprep.mubr.bf16.mxu0 0
    %657 = vmatmul.mubr.bf16.gmra.mrb[0].mxu0 %v169
    %v658 = vpop.f32.mrb[0].mxu0
    %v659 = vadd.f32 %v361, %v658
    %v660 = vpop.f32.mrb[0].mxu0
    %v661 = vpop.f32.mrb[0].mxu0
    %v662 = vadd.f32 %v364, %v661
    %v663 = vpop.f32.mrb[0].mxu0
    %664 = vmatprep.mubr.bf16.mxu0 0
    %665 = vmatmul.mubr.bf16.gmra.mrb[0].mxu0 %v172
    %v666 = vpop.f32.mrb[0].mxu0
    %v667 = vadd.f32 %v369, %v666
    %v668 = vpop.f32.mrb[0].mxu0
    %v669 = vpop.f32.mrb[0].mxu0
    %v670 = vadd.f32 %v372, %v669
    %v671 = vpop.f32.mrb[0].mxu0
    %672 = vmatprep.mubr.bf16.mxu0 0
    %673 = vmatmul.mubr.bf16.gmra.mrb[0].mxu0 %v175
    %v674 = vpop.f32.mrb[0].mxu0
    %v675 = vadd.f32 %v377, %v674
    %v676 = vpop.f32.mrb[0].mxu0
    %v677 = vpop.f32.mrb[0].mxu0
    %v678 = vadd.f32 %v380, %v677
    %v679 = vpop.f32.mrb[0].mxu0
    %680 = vmatprep.mubr.bf16.mxu0 0
    %681 = vmatmul.mubr.bf16.gmra.mrb[0].mxu0 %v178
    %v682 = vpop.f32.mrb[0].mxu0
    %v683 = vadd.f32 %v385, %v682
    %v684 = vpop.f32.mrb[0].mxu0
    %v685 = vpop.f32.mrb[0].mxu0
    %v686 = vadd.f32 %v388, %v685
    %v687 = vpop.f32.mrb[0].mxu0
    %688 = vmatprep.mubr.bf16.mxu0 0
    %689 = vmatmul.mubr.bf16.gmra.mrb[0].mxu0 %v181
    %v690 = vpop.f32.mrb[0].mxu0
    %v691 = vadd.f32 %v393, %v690
    %v692 = vpop.f32.mrb[0].mxu0
    %v693 = vpop.f32.mrb[0].mxu0
    %v694 = vadd.f32 %v396, %v693
    %v695 = vpop.f32.mrb[0].mxu0
    %696 = vmatprep.mubr.bf16.mxu0 0
    %697 = vmatmul.mubr.bf16.gmra.mrb[0].mxu0 %v531
    %v698 = vpop.f32.mrb[0].mxu0
    %v699 = vadd.f32 %v401, %v698
    %v700 = vpop.f32.mrb[0].mxu0
    %v701 = vpop.f32.mrb[0].mxu0
    %v702 = vadd.f32 %v404, %v701
    %v703 = vpop.f32.mrb[0].mxu0
    %704 = vmatprep.mubr.bf16.mxu0 0
    %705 = vmatmul.mubr.bf16.gmra.mrb[0].mxu0 %v187
    %v706 = vpop.f32.mrb[0].mxu0
    %v707 = vadd.f32 %v409, %v706
    %v708 = vpop.f32.mrb[0].mxu0
    %v709 = vpop.f32.mrb[0].mxu0
    %v710 = vadd.f32 %v412, %v709
    %v711 = vpop.f32.mrb[0].mxu0
    %712 = vmatprep.mubr.bf16.mxu0 0
    %713 = vmatmul.mubr.bf16.gmra.mrb[0].mxu0 %v190
    %v714 = vpop.f32.mrb[0].mxu0
    %v715 = vadd.f32 %v417, %v714
    %v716 = vpop.f32.mrb[0].mxu0
    %v717 = vpop.f32.mrb[0].mxu0
    %v718 = vadd.f32 %v420, %v717
    %v719 = vpop.f32.mrb[0].mxu0
    %720 = vmatprep.mubr.bf16.mxu0 0
    %721 = vmatmul.mubr.bf16.gmra.mrb[0].mxu0 %v193
    %v722 = vpop.f32.mrb[0].mxu0
    %v723 = vadd.f32 %v425, %v722
    %v724 = vpop.f32.mrb[0].mxu0
    %v725 = vpop.f32.mrb[0].mxu0
    %v726 = vadd.f32 %v428, %v725
    %v727 = vpop.f32.mrb[0].mxu0
    %728 = vmatprep.mubr.bf16.mxu0 0
    %729 = vmatmul.mubr.bf16.gmra.mrb[0].mxu0 %v196
    %v730 = vpop.f32.mrb[0].mxu0
    %v731 = vadd.f32 %v433, %v730
    %v732 = vpop.f32.mrb[0].mxu0
    %v733 = vpop.f32.mrb[0].mxu0
    %v734 = vadd.f32 %v436, %v733
    %v735 = vpop.f32.mrb[0].mxu0
    %736 = vmatprep.mubr.bf16.mxu0 0
    %737 = vmatmul.mubr.bf16.gmra.mrb[0].mxu0 %v199
    %v738 = vpop.f32.mrb[0].mxu0
    %v739 = vadd.f32 %v441, %v738
    %v740 = vpop.f32.mrb[0].mxu0
    %v741 = vpop.f32.mrb[0].mxu0
    %v742 = vadd.f32 %v444, %v741
    %v743 = vpop.f32.mrb[0].mxu0
    %744 = vmatprep.mubr.bf16.mxu0 0
    %745 = vmatmul.mubr.bf16.gmra.mrb[0].mxu0 %v202
    %v746 = vpop.f32.mrb[0].mxu0
    %v747 = vadd.f32 %v449, %v746
    %v748 = vpop.f32.mrb[0].mxu0
    %v749 = vpop.f32.mrb[0].mxu0
    %v750 = vadd.f32 %v452, %v749
    %v751 = vpop.f32.mrb[0].mxu0
    %752 = vmatprep.mubr.bf16.mxu0 0
    %753 = vmatmul.mubr.bf16.gmra.mrb[0].mxu0 %v205
    %v754 = vpop.f32.mrb[0].mxu0
    %v755 = vadd.f32 %v457, %v754
    %v756 = vpop.f32.mrb[0].mxu0
    %v757 = vpop.f32.mrb[0].mxu0
    %v758 = vadd.f32 %v460, %v757
    %v759 = vpop.f32.mrb[0].mxu0
    %760 = vmatprep.mubr.bf16.mxu0 0
    %761 = vmatmul.mubr.bf16.gmra.mrb[0].mxu0 %v208
    %v762 = vpop.f32.mrb[0].mxu0
    %v763 = vadd.f32 %v465, %v762
    %v764 = vpop.f32.mrb[0].mxu0
    %v765 = vpop.f32.mrb[0].mxu0
    %v766 = vadd.f32 %v468, %v765
    %v767 = vpop.f32.mrb[0].mxu0
    %768 = vmatprep.mubr.bf16.mxu0 0
    %769 = vmatmul.mubr.bf16.gmra.mrb[0].mxu0 %v211
    %v770 = vpop.f32.mrb[0].mxu0
    %v771 = vadd.f32 %v473, %v770
    %v772 = vpop.f32.mrb[0].mxu0
    %v773 = vpop.f32.mrb[0].mxu0
    %v774 = vadd.f32 %v476, %v773
    %v775 = vpop.f32.mrb[0].mxu0
    %776 = vmatprep.mubr.bf16.mxu0 0
    %777 = vmatmul.mubr.bf16.gmra.mrb[0].mxu0 %v214
    %v778 = vpop.f32.mrb[0].mxu0
    %v779 = vadd.f32 %v481, %v778
    %v780 = vpop.f32.mrb[0].mxu0
    %v781 = vpop.f32.mrb[0].mxu0
    %v782 = vadd.f32 %v484, %v781
    %v783 = vpop.f32.mrb[0].mxu0
    %784 = vmatprep.mubr.bf16.mxu0 0
    %785 = vmatmul.mubr.bf16.gmra.mrb[0].mxu0 %v217
    %v786 = vpop.f32.mrb[0].mxu0
    %v787 = vadd.f32 %v489, %v786
    %v788 = vpop.f32.mrb[0].mxu0
    %v789 = vpop.f32.mrb[0].mxu0
    %v790 = vadd.f32 %v492, %v789
    %v791 = vpop.f32.mrb[0].mxu0
    %792 = vmatprep.mubr.bf16.mxu0 0
    %793 = vmatmul.mubr.bf16.gmra.mrb[0].mxu0 %v220
    %v794 = vpop.f32.mrb[0].mxu0
    %v795 = vadd.f32 %v497, %v794
    %v796 = vpop.f32.mrb[0].mxu0
    %v797 = vpop.f32.mrb[0].mxu0
    %v798 = vadd.f32 %v500, %v797
    %v799 = vpop.f32.mrb[0].mxu0
    %800 = vmatprep.mubr.bf16.mxu0 0
    %801 = vmatmul.mubr.bf16.gmra.mrb[0].mxu0 %v223
    %v802 = vpop.f32.mrb[0].mxu0
    %v803 = vadd.f32 %v505, %v802
    %v804 = vpop.f32.mrb[0].mxu0
    %v805 = vpop.f32.mrb[0].mxu0
    %v806 = vadd.f32 %v508, %v805
    %v807 = vpop.f32.mrb[0].mxu0
    %808 = vmatprep.mubr.bf16.mxu0 0
    %809 = vmatmul.mubr.bf16.gmra.mrb[0].mxu0 %v226
    %v810 = vpop.f32.mrb[0].mxu0
    %v811 = vadd.f32 %v513, %v810
    %v812 = vpop.f32.mrb[0].mxu0
    %v813 = vpop.f32.mrb[0].mxu0
    %v814 = vadd.f32 %v516, %v813
    %v815 = vpop.f32.mrb[0].mxu0
    %816 = vmatprep.mubr.bf16.mxu0 0
    %817 = vmatmul.mubr.bf16.gmra.mrb[0].mxu0 %v229
    %v818 = vpop.f32.mrb[0].mxu0
    %v819 = vadd.f32 %v521, %v818
    %v820 = vpop.f32.mrb[0].mxu0
    %v821 = vpop.f32.mrb[0].mxu0
    %v822 = vadd.f32 %v524, %v821
    %v823 = vpop.f32.mrb[0].mxu0
    %824 = vdwg.mxu0
    %v825 = vpack.c.bf16 %v63, %v62
    %v826 = vpack.c.bf16 %v99, %v98
    %s827 = scalar_lea.vmem %s1, 12
    %v828 = vld [vmem:[%s827] sm:$0x3]
    %v830 = vsel %vm137, %v825, 0
    %v833 = vsel %vm137, %v826, 0
    %v836 = vsel %vm234, %v828, 0
    %838 = vmatprep.subr.bf16.mxu0 0
    %839 = vmatpush1.bf16.msra.mxu0 %v836
    %840 = vmatprep.subr.bf16.mxu0 0
    %841 = vmatpush1.bf16.msra.mxu0 0
    %842 = vmatprep.subr.bf16.mxu0 0
    %843 = vmatpush1.bf16.msra.mxu0 0
    %844 = vmatprep.subr.bf16.mxu0 0
    %845 = vmatpush1.bf16.msra.mxu0 0
    %846 = vmatprep.subr.bf16.mxu0 0
    %847 = vmatpush1.bf16.msra.mxu0 0
    %848 = vmatprep.subr.bf16.mxu0 0
    %849 = vmatpush1.bf16.msra.mxu0 0
    %850 = vmatprep.subr.bf16.mxu0 0
    %851 = vmatpush1.bf16.msra.mxu0 0
    %852 = vmatprep.subr.bf16.mxu0 0
    %853 = vmatpush1.bf16.msra.mxu0 0
    %854 = vmatprep.subr.bf16.mxu0 0
    %855 = vmatpush1.bf16.msra.mxu0 0
    %856 = vmatprep.subr.bf16.mxu0 0
    %857 = vmatpush1.bf16.msra.mxu0 0
    %858 = vmatprep.subr.bf16.mxu0 0
    %859 = vmatpush1.bf16.msra.mxu0 0
    %860 = vmatprep.subr.bf16.mxu0 0
    %861 = vmatpush1.bf16.msra.mxu0 0
    %862 = vmatprep.subr.bf16.mxu0 0
    %863 = vmatpush1.bf16.msra.mxu0 0
    %864 = vmatprep.subr.bf16.mxu0 0
    %865 = vmatpush1.bf16.msra.mxu0 0
    %866 = vmatprep.subr.bf16.mxu0 0
    %867 = vmatpush1.bf16.msra.mxu0 0
    %868 = vmatprep.subr.bf16.mxu0 0
    %869 = vmatpush1.bf16.msra.mxu0 0
    %870 = vmatprep.mubr.bf16.mxu0 0
    %871 = vmatmul.mubr.bf16.gmra.mrb[0].mxu0 %v142
    %v872 = vpop.f32.mrb[0].mxu0
    %v873 = vadd.f32 0.0, %v872
    %v874 = vpop.f32.mrb[0].mxu0
    %v875 = vpop.f32.mrb[0].mxu0
    %v876 = vadd.f32 0.0, %v875
    %v877 = vpop.f32.mrb[0].mxu0
    %878 = vmatprep.mubr.bf16.mxu0 0
    %879 = vmatmul.mubr.bf16.gmra.mrb[0].mxu0 %v145
    %v880 = vpop.f32.mrb[0].mxu0
    %v881 = vadd.f32 0.0, %v880
    %v882 = vpop.f32.mrb[0].mxu0
    %v883 = vpop.f32.mrb[0].mxu0
    %v884 = vadd.f32 0.0, %v883
    %v885 = vpop.f32.mrb[0].mxu0
    %886 = vmatprep.mubr.bf16.mxu0 0
    %887 = vmatmul.mubr.bf16.gmra.mrb[0].mxu0 %v148
    %v888 = vpop.f32.mrb[0].mxu0
    %v889 = vadd.f32 0.0, %v888
    %v890 = vpop.f32.mrb[0].mxu0
    %v891 = vpop.f32.mrb[0].mxu0
    %v892 = vadd.f32 0.0, %v891
    %v893 = vpop.f32.mrb[0].mxu0
    %894 = vmatprep.mubr.bf16.mxu0 0
    %895 = vmatmul.mubr.bf16.gmra.mrb[0].mxu0 %v151
    %v896 = vpop.f32.mrb[0].mxu0
    %v897 = vadd.f32 0.0, %v896
    %v898 = vpop.f32.mrb[0].mxu0
    %v899 = vpop.f32.mrb[0].mxu0
    %v900 = vadd.f32 0.0, %v899
    %v901 = vpop.f32.mrb[0].mxu0
    %902 = vmatprep.mubr.bf16.mxu0 0
    %903 = vmatmul.mubr.bf16.gmra.mrb[0].mxu0 %v154
    %v904 = vpop.f32.mrb[0].mxu0
    %v905 = vadd.f32 0.0, %v904
    %v906 = vpop.f32.mrb[0].mxu0
    %v907 = vpop.f32.mrb[0].mxu0
    %v908 = vadd.f32 0.0, %v907
    %v909 = vpop.f32.mrb[0].mxu0
    %910 = vmatprep.mubr.bf16.mxu0 0
    %911 = vmatmul.mubr.bf16.gmra.mrb[0].mxu0 %v157
    %v912 = vpop.f32.mrb[0].mxu0
    %v913 = vadd.f32 0.0, %v912
    %v914 = vpop.f32.mrb[0].mxu0
    %v915 = vpop.f32.mrb[0].mxu0
    %v916 = vadd.f32 0.0, %v915
    %v917 = vpop.f32.mrb[0].mxu0
    %918 = vmatprep.mubr.bf16.mxu0 0
    %919 = vmatmul.mubr.bf16.gmra.mrb[0].mxu0 %v160
    %v920 = vpop.f32.mrb[0].mxu0
    %v921 = vadd.f32 0.0, %v920
    %v922 = vpop.f32.mrb[0].mxu0
    %v923 = vpop.f32.mrb[0].mxu0
    %v924 = vadd.f32 0.0, %v923
    %v925 = vpop.f32.mrb[0].mxu0
    %926 = vmatprep.mubr.bf16.mxu0 0
    %927 = vmatmul.mubr.bf16.gmra.mrb[0].mxu0 %v163
    %v928 = vpop.f32.mrb[0].mxu0
    %v929 = vadd.f32 0.0, %v928
    %v930 = vpop.f32.mrb[0].mxu0
    %v931 = vpop.f32.mrb[0].mxu0
    %v932 = vadd.f32 0.0, %v931
    %v933 = vpop.f32.mrb[0].mxu0
    %934 = vmatprep.mubr.bf16.mxu0 0
    %935 = vmatmul.mubr.bf16.gmra.mrb[0].mxu0 %v166
    %v936 = vpop.f32.mrb[0].mxu0
    %v937 = vadd.f32 0.0, %v936
    %v938 = vpop.f32.mrb[0].mxu0
    %v939 = vpop.f32.mrb[0].mxu0
    %v940 = vadd.f32 0.0, %v939
    %v941 = vpop.f32.mrb[0].mxu0
    %942 = vmatprep.mubr.bf16.mxu0 0
    %943 = vmatmul.mubr.bf16.gmra.mrb[0].mxu0 %v169
    %v944 = vpop.f32.mrb[0].mxu0
    %v945 = vadd.f32 0.0, %v944
    %v946 = vpop.f32.mrb[0].mxu0
    %v947 = vpop.f32.mrb[0].mxu0
    %v948 = vadd.f32 0.0, %v947
    %v949 = vpop.f32.mrb[0].mxu0
    %950 = vmatprep.mubr.bf16.mxu0 0
    %951 = vmatmul.mubr.bf16.gmra.mrb[0].mxu0 %v172
    %v952 = vpop.f32.mrb[0].mxu0
    %v953 = vadd.f32 0.0, %v952
    %v954 = vpop.f32.mrb[0].mxu0
    %v955 = vpop.f32.mrb[0].mxu0
    %v956 = vadd.f32 0.0, %v955
    %v957 = vpop.f32.mrb[0].mxu0
    %958 = vmatprep.mubr.bf16.mxu0 0
    %959 = vmatmul.mubr.bf16.gmra.mrb[0].mxu0 %v175
    %v960 = vpop.f32.mrb[0].mxu0
    %v961 = vadd.f32 0.0, %v960
    %v962 = vpop.f32.mrb[0].mxu0
    %v963 = vpop.f32.mrb[0].mxu0
    %v964 = vadd.f32 0.0, %v963
    %v965 = vpop.f32.mrb[0].mxu0
    %966 = vmatprep.mubr.bf16.mxu0 0
    %967 = vmatmul.mubr.bf16.gmra.mrb[0].mxu0 %v178
    %v968 = vpop.f32.mrb[0].mxu0
    %v969 = vadd.f32 0.0, %v968
    %v970 = vpop.f32.mrb[0].mxu0
    %v971 = vpop.f32.mrb[0].mxu0
    %v972 = vadd.f32 0.0, %v971
    %v973 = vpop.f32.mrb[0].mxu0
    %974 = vmatprep.mubr.bf16.mxu0 0
    %975 = vmatmul.mubr.bf16.gmra.mrb[0].mxu0 %v181
    %v976 = vpop.f32.mrb[0].mxu0
    %v977 = vadd.f32 0.0, %v976
    %v978 = vpop.f32.mrb[0].mxu0
    %v979 = vpop.f32.mrb[0].mxu0
    %v980 = vadd.f32 0.0, %v979
    %v981 = vpop.f32.mrb[0].mxu0
    %982 = vmatprep.mubr.bf16.mxu0 0
    %983 = vmatmul.mubr.bf16.gmra.mrb[0].mxu0 %v184
    %v984 = vpop.f32.mrb[0].mxu0
    %v985 = vadd.f32 0.0, %v984
    %v986 = vpop.f32.mrb[0].mxu0
    %v987 = vpop.f32.mrb[0].mxu0
    %v988 = vadd.f32 0.0, %v987
    %v989 = vpop.f32.mrb[0].mxu0
    %990 = vmatprep.mubr.bf16.mxu0 0
    %991 = vmatmul.mubr.bf16.gmra.mrb[0].mxu0 %v830
    %v992 = vpop.f32.mrb[0].mxu0
    %v993 = vadd.f32 0.0, %v992
    %v994 = vpop.f32.mrb[0].mxu0
    %v995 = vpop.f32.mrb[0].mxu0
    %v996 = vadd.f32 0.0, %v995
    %v997 = vpop.f32.mrb[0].mxu0
    %998 = vmatprep.mubr.bf16.mxu0 0
    %999 = vmatmul.mubr.bf16.gmra.mrb[0].mxu0 %v190
    %v1000 = vpop.f32.mrb[0].mxu0
    %v1001 = vadd.f32 0.0, %v1000
    %v1002 = vpop.f32.mrb[0].mxu0
    %v1003 = vpop.f32.mrb[0].mxu0
    %v1004 = vadd.f32 0.0, %v1003
    %v1005 = vpop.f32.mrb[0].mxu0
    %1006 = vmatprep.mubr.bf16.mxu0 0
    %1007 = vmatmul.mubr.bf16.gmra.mrb[0].mxu0 %v193
    %v1008 = vpop.f32.mrb[0].mxu0
    %v1009 = vadd.f32 0.0, %v1008
    %v1010 = vpop.f32.mrb[0].mxu0
    %v1011 = vpop.f32.mrb[0].mxu0
    %v1012 = vadd.f32 0.0, %v1011
    %v1013 = vpop.f32.mrb[0].mxu0
    %1014 = vmatprep.mubr.bf16.mxu0 0
    %1015 = vmatmul.mubr.bf16.gmra.mrb[0].mxu0 %v196
    %v1016 = vpop.f32.mrb[0].mxu0
    %v1017 = vadd.f32 0.0, %v1016
    %v1018 = vpop.f32.mrb[0].mxu0
    %v1019 = vpop.f32.mrb[0].mxu0
    %v1020 = vadd.f32 0.0, %v1019
    %v1021 = vpop.f32.mrb[0].mxu0
    %1022 = vmatprep.mubr.bf16.mxu0 0
    %1023 = vmatmul.mubr.bf16.gmra.mrb[0].mxu0 %v199
    %v1024 = vpop.f32.mrb[0].mxu0
    %v1025 = vadd.f32 0.0, %v1024
    %v1026 = vpop.f32.mrb[0].mxu0
    %v1027 = vpop.f32.mrb[0].mxu0
    %v1028 = vadd.f32 0.0, %v1027
    %v1029 = vpop.f32.mrb[0].mxu0
    %1030 = vmatprep.mubr.bf16.mxu0 0
    %1031 = vmatmul.mubr.bf16.gmra.mrb[0].mxu0 %v202
    %v1032 = vpop.f32.mrb[0].mxu0
    %v1033 = vadd.f32 0.0, %v1032
    %v1034 = vpop.f32.mrb[0].mxu0
    %v1035 = vpop.f32.mrb[0].mxu0
    %v1036 = vadd.f32 0.0, %v1035
    %v1037 = vpop.f32.mrb[0].mxu0
    %1038 = vmatprep.mubr.bf16.mxu0 0
    %1039 = vmatmul.mubr.bf16.gmra.mrb[0].mxu0 %v205
    %v1040 = vpop.f32.mrb[0].mxu0
    %v1041 = vadd.f32 0.0, %v1040
    %v1042 = vpop.f32.mrb[0].mxu0
    %v1043 = vpop.f32.mrb[0].mxu0
    %v1044 = vadd.f32 0.0, %v1043
    %v1045 = vpop.f32.mrb[0].mxu0
    %1046 = vmatprep.mubr.bf16.mxu0 0
    %1047 = vmatmul.mubr.bf16.gmra.mrb[0].mxu0 %v208
    %v1048 = vpop.f32.mrb[0].mxu0
    %v1049 = vadd.f32 0.0, %v1048
    %v1050 = vpop.f32.mrb[0].mxu0
    %v1051 = vpop.f32.mrb[0].mxu0
    %v1052 = vadd.f32 0.0, %v1051
    %v1053 = vpop.f32.mrb[0].mxu0
    %1054 = vmatprep.mubr.bf16.mxu0 0
    %1055 = vmatmul.mubr.bf16.gmra.mrb[0].mxu0 %v211
    %v1056 = vpop.f32.mrb[0].mxu0
    %v1057 = vadd.f32 0.0, %v1056
    %v1058 = vpop.f32.mrb[0].mxu0
    %v1059 = vpop.f32.mrb[0].mxu0
    %v1060 = vadd.f32 0.0, %v1059
    %v1061 = vpop.f32.mrb[0].mxu0
    %1062 = vmatprep.mubr.bf16.mxu0 0
    %1063 = vmatmul.mubr.bf16.gmra.mrb[0].mxu0 %v214
    %v1064 = vpop.f32.mrb[0].mxu0
    %v1065 = vadd.f32 0.0, %v1064
    %v1066 = vpop.f32.mrb[0].mxu0
    %v1067 = vpop.f32.mrb[0].mxu0
    %v1068 = vadd.f32 0.0, %v1067
    %v1069 = vpop.f32.mrb[0].mxu0
    %1070 = vmatprep.mubr.bf16.mxu0 0
    %1071 = vmatmul.mubr.bf16.gmra.mrb[0].mxu0 %v217
    %v1072 = vpop.f32.mrb[0].mxu0
    %v1073 = vadd.f32 0.0, %v1072
    %v1074 = vpop.f32.mrb[0].mxu0
    %v1075 = vpop.f32.mrb[0].mxu0
    %v1076 = vadd.f32 0.0, %v1075
    %v1077 = vpop.f32.mrb[0].mxu0
    %1078 = vmatprep.mubr.bf16.mxu0 0
    %1079 = vmatmul.mubr.bf16.gmra.mrb[0].mxu0 %v220
    %v1080 = vpop.f32.mrb[0].mxu0
    %v1081 = vadd.f32 0.0, %v1080
    %v1082 = vpop.f32.mrb[0].mxu0
    %v1083 = vpop.f32.mrb[0].mxu0
    %v1084 = vadd.f32 0.0, %v1083
    %v1085 = vpop.f32.mrb[0].mxu0
    %1086 = vmatprep.mubr.bf16.mxu0 0
    %1087 = vmatmul.mubr.bf16.gmra.mrb[0].mxu0 %v223
    %v1088 = vpop.f32.mrb[0].mxu0
    %v1089 = vadd.f32 0.0, %v1088
    %v1090 = vpop.f32.mrb[0].mxu0
    %v1091 = vpop.f32.mrb[0].mxu0
    %v1092 = vadd.f32 0.0, %v1091
    %v1093 = vpop.f32.mrb[0].mxu0
    %1094 = vmatprep.mubr.bf16.mxu0 0
    %1095 = vmatmul.mubr.bf16.gmra.mrb[0].mxu0 %v226
    %v1096 = vpop.f32.mrb[0].mxu0
    %v1097 = vadd.f32 0.0, %v1096
    %v1098 = vpop.f32.mrb[0].mxu0
    %v1099 = vpop.f32.mrb[0].mxu0
    %v1100 = vadd.f32 0.0, %v1099
    %v1101 = vpop.f32.mrb[0].mxu0
    %1102 = vmatprep.mubr.bf16.mxu0 0
    %1103 = vmatmul.mubr.bf16.gmra.mrb[0].mxu0 %v229
    %v1104 = vpop.f32.mrb[0].mxu0
    %v1105 = vadd.f32 0.0, %v1104
    %v1106 = vpop.f32.mrb[0].mxu0
    %v1107 = vpop.f32.mrb[0].mxu0
    %v1108 = vadd.f32 0.0, %v1107
    %v1109 = vpop.f32.mrb[0].mxu0
    %1110 = vmatprep.mubr.bf16.mxu0 0
    %1111 = vmatmul.mubr.bf16.gmra.mrb[0].mxu0 %v232
    %v1112 = vpop.f32.mrb[0].mxu0
    %v1113 = vadd.f32 0.0, %v1112
    %v1114 = vpop.f32.mrb[0].mxu0
    %v1115 = vpop.f32.mrb[0].mxu0
    %v1116 = vadd.f32 0.0, %v1115
    %v1117 = vpop.f32.mrb[0].mxu0
    %1118 = vmatprep.mubr.bf16.mxu0 0
    %1119 = vmatmul.mubr.bf16.gmra.mrb[0].mxu0 %v833
    %v1120 = vpop.f32.mrb[0].mxu0
    %v1121 = vadd.f32 0.0, %v1120
    %v1122 = vpop.f32.mrb[0].mxu0
    %v1123 = vpop.f32.mrb[0].mxu0
    %v1124 = vadd.f32 0.0, %v1123
    %v1125 = vpop.f32.mrb[0].mxu0
    %1126 = vdwg.mxu0
    %v1127 = vadd.f32 %v571, %v873
    %v1128 = vadd.f32 %v574, %v876
    %v1129 = vadd.f32 %v579, %v881
    %v1130 = vadd.f32 %v582, %v884
    %v1131 = vadd.f32 %v587, %v889
    %v1132 = vadd.f32 %v590, %v892
    %v1133 = vadd.f32 %v595, %v897
    %v1134 = vadd.f32 %v598, %v900
    %v1135 = vadd.f32 %v603, %v905
    %v1136 = vadd.f32 %v606, %v908
    %v1137 = vadd.f32 %v611, %v913
    %v1138 = vadd.f32 %v614, %v916
    %v1139 = vadd.f32 %v619, %v921
    %v1140 = vadd.f32 %v622, %v924
    %v1141 = vadd.f32 %v627, %v929
    %v1142 = vadd.f32 %v630, %v932
    %v1143 = vadd.f32 %v635, %v937
    %v1144 = vadd.f32 %v638, %v940
    %v1145 = vadd.f32 %v643, %v945
    %v1146 = vadd.f32 %v646, %v948
    %v1147 = vadd.f32 %v651, %v953
    %v1148 = vadd.f32 %v654, %v956
    %v1149 = vadd.f32 %v659, %v961
    %v1150 = vadd.f32 %v662, %v964
    %v1151 = vadd.f32 %v667, %v969
    %v1152 = vadd.f32 %v670, %v972
    %v1153 = vadd.f32 %v675, %v977
    %v1154 = vadd.f32 %v678, %v980
    %v1155 = vadd.f32 %v683, %v985
    %v1156 = vadd.f32 %v686, %v988
    %v1157 = vadd.f32 %v691, %v993
    %v1158 = vadd.f32 %v694, %v996
    %v1159 = vadd.f32 %v699, %v1001
    %v1160 = vadd.f32 %v702, %v1004
    %v1161 = vadd.f32 %v707, %v1009
    %v1162 = vadd.f32 %v710, %v1012
    %v1163 = vadd.f32 %v715, %v1017
    %v1164 = vadd.f32 %v718, %v1020
    %v1165 = vadd.f32 %v723, %v1025
    %v1166 = vadd.f32 %v726, %v1028
    %v1167 = vadd.f32 %v731, %v1033
    %v1168 = vadd.f32 %v734, %v1036
    %v1169 = vadd.f32 %v739, %v1041
    %v1170 = vadd.f32 %v742, %v1044
    %v1171 = vadd.f32 %v747, %v1049
    %v1172 = vadd.f32 %v750, %v1052
    %v1173 = vadd.f32 %v755, %v1057
    %v1174 = vadd.f32 %v758, %v1060
    %v1175 = vadd.f32 %v763, %v1065
    %v1176 = vadd.f32 %v766, %v1068
    %v1177 = vadd.f32 %v771, %v1073
    %v1178 = vadd.f32 %v774, %v1076
    %v1179 = vadd.f32 %v779, %v1081
    %v1180 = vadd.f32 %v782, %v1084
    %v1181 = vadd.f32 %v787, %v1089
    %v1182 = vadd.f32 %v790, %v1092
    %v1183 = vadd.f32 %v795, %v1097
    %v1184 = vadd.f32 %v798, %v1100
    %v1185 = vadd.f32 %v803, %v1105
    %v1186 = vadd.f32 %v806, %v1108
    %v1187 = vadd.f32 %v811, %v1113
    %v1188 = vadd.f32 %v814, %v1116
    %v1189 = vadd.f32 %v819, %v1121
    %v1190 = vadd.f32 %v822, %v1124
    %v1191 = vld [vmem:[%s0 + $0x1] sm:$0xff]
    %v1192 = vld [vmem:[%s0 + $0x9] sm:$0xff]
    %v1193 = vld [vmem:[%s0 + $0x19] sm:$0xff]
    %v1194 = vld [vmem:[%s0 + $0x21] sm:$0xff]
    %v1195 = vld [vmem:[%s0 + $0x31] sm:$0xff]
    %v1196 = vld [vmem:[%s0 + $0x39] sm:$0xff]
    %v1197 = vld [vmem:[%s0 + $0x49] sm:$0xff]
    %v1198 = vld [vmem:[%s0 + $0x51] sm:$0xff]
    %v1199 = vld [vmem:[%s0 + $0x61] sm:$0xff]
    %v1200 = vld [vmem:[%s0 + $0x69] sm:$0xff]
    %v1201 = vld [vmem:[%s0 + $0x79] sm:$0xff]
    %v1202 = vld [vmem:[%s0 + $0x81] sm:$0xff]
    %v1203 = vld [vmem:[%s0 + $0x91] sm:$0xff]
    %v1204 = vld [vmem:[%s0 + $0x99] sm:$0xff]
    %v1205 = vld [vmem:[%s0 + $0xa9] sm:$0xff]
    %v1206 = vld [vmem:[%s0 + $0xb1] sm:$0xff]
    %v1207 = vld [vmem:[%s0 + $0xc1] sm:$0xff]
    %v1208 = vld [vmem:[%s0 + $0xc9] sm:$0xff]
    %v1209 = vld [vmem:[%s0 + $0xd9] sm:$0xff]
    %v1210 = vld [vmem:[%s0 + $0xe1] sm:$0xff]
    %v1211 = vld [vmem:[%s0 + $0xf1] sm:$0xff]
    %v1212 = vld [vmem:[%s0 + $0xf9] sm:$0xff]
    %v1213 = vld [vmem:[%s0 + $0x109] sm:$0xff]
    %v1214 = vld [vmem:[%s0 + $0x111] sm:$0xff]
    %v1215 = vld [vmem:[%s0 + $0x121] sm:$0xff]
    %v1216 = vld [vmem:[%s0 + $0x129] sm:$0xff]
    %v1217 = vld [vmem:[%s0 + $0x139] sm:$0xff]
    %v1218 = vld [vmem:[%s0 + $0x141] sm:$0xff]
    %v1219 = vld [vmem:[%s0 + $0x151] sm:$0xff]
    %v1220 = vld [vmem:[%s0 + $0x159] sm:$0xff]
    %v1221 = vld [vmem:[%s0 + $0x169] sm:$0xff]
    %v1222 = vld [vmem:[%s0 + $0x171] sm:$0xff]
    %v1223 = vld [vmem:[%s0 + $0x181] sm:$0xff]
    %v1224 = vld [vmem:[%s0 + $0x189] sm:$0xff]
    %v1225 = vld [vmem:[%s0 + $0x199] sm:$0xff]
    %v1226 = vld [vmem:[%s0 + $0x1a1] sm:$0xff]
    %v1227 = vld [vmem:[%s0 + $0x1b1] sm:$0xff]
    %v1228 = vld [vmem:[%s0 + $0x1b9] sm:$0xff]
    %v1229 = vld [vmem:[%s0 + $0x1c9] sm:$0xff]
    %v1230 = vld [vmem:[%s0 + $0x1d1] sm:$0xff]
    %v1231 = vld [vmem:[%s0 + $0x1e1] sm:$0xff]
    %v1232 = vld [vmem:[%s0 + $0x1e9] sm:$0xff]
    %v1233 = vld [vmem:[%s0 + $0x1f9] sm:$0xff]
    %v1234 = vld [vmem:[%s0 + $0x201] sm:$0xff]
    %v1235 = vld [vmem:[%s0 + $0x211] sm:$0xff]
    %v1236 = vld [vmem:[%s0 + $0x219] sm:$0xff]
    %v1237 = vld [vmem:[%s0 + $0x229] sm:$0xff]
    %v1238 = vld [vmem:[%s0 + $0x231] sm:$0xff]
    %v1239 = vld [vmem:[%s0 + $0x241] sm:$0xff]
    %v1240 = vld [vmem:[%s0 + $0x249] sm:$0xff]
    %v1241 = vld [vmem:[%s0 + $0x259] sm:$0xff]
    %v1242 = vld [vmem:[%s0 + $0x261] sm:$0xff]
    %v1243 = vld [vmem:[%s0 + $0x271] sm:$0xff]
    %v1244 = vld [vmem:[%s0 + $0x279] sm:$0xff]
    %v1245 = vld [vmem:[%s0 + $0x289] sm:$0xff]
    %v1246 = vld [vmem:[%s0 + $0x291] sm:$0xff]
    %v1247 = vld [vmem:[%s0 + $0x2a1] sm:$0xff]
    %v1248 = vld [vmem:[%s0 + $0x2a9] sm:$0xff]
    %v1249 = vld [vmem:[%s0 + $0x2b9] sm:$0xff]
    %v1250 = vld [vmem:[%s0 + $0x2c1] sm:$0xff]
    %v1251 = vld [vmem:[%s0 + $0x2d1] sm:$0xff]
    %v1252 = vld [vmem:[%s0 + $0x2d9] sm:$0xff]
    %v1253 = vld [vmem:[%s0 + $0x2e9] sm:$0xff]
    %v1254 = vld [vmem:[%s0 + $0x2f1] sm:$0xff]
    %v1255 = vld [vmem:[%s0 + $0x301] sm:$0xff]
    %v1256 = vld [vmem:[%s0 + $0x309] sm:$0xff]
    %v1257 = vld [vmem:[%s0 + $0x319] sm:$0xff]
    %v1258 = vld [vmem:[%s0 + $0x321] sm:$0xff]
    %v1259 = vld [vmem:[%s0 + $0x331] sm:$0xff]
    %v1260 = vld [vmem:[%s0 + $0x339] sm:$0xff]
    %v1261 = vld [vmem:[%s0 + $0x349] sm:$0xff]
    %v1262 = vld [vmem:[%s0 + $0x351] sm:$0xff]
    %v1263 = vpack.c.bf16 %v1192, %v1191
    %v1264 = vpack.c.bf16 %v1194, %v1193
    %v1265 = vpack.c.bf16 %v1196, %v1195
    %v1266 = vpack.c.bf16 %v1198, %v1197
    %v1267 = vpack.c.bf16 %v1200, %v1199
    %v1268 = vpack.c.bf16 %v1202, %v1201
    %v1269 = vpack.c.bf16 %v1204, %v1203
    %v1270 = vpack.c.bf16 %v1206, %v1205
    %v1271 = vpack.c.bf16 %v1208, %v1207
    %v1272 = vpack.c.bf16 %v1210, %v1209
    %v1273 = vpack.c.bf16 %v1212, %v1211
    %v1274 = vpack.c.bf16 %v1214, %v1213
    %v1275 = vpack.c.bf16 %v1216, %v1215
    %v1276 = vpack.c.bf16 %v1218, %v1217
    %v1277 = vpack.c.bf16 %v1220, %v1219
    %v1278 = vpack.c.bf16 %v1222, %v1221
    %v1279 = vpack.c.bf16 %v1228, %v1227
    %v1280 = vpack.c.bf16 %v1230, %v1229
    %v1281 = vpack.c.bf16 %v1232, %v1231
    %v1282 = vpack.c.bf16 %v1234, %v1233
    %v1283 = vpack.c.bf16 %v1236, %v1235
    %v1284 = vpack.c.bf16 %v1238, %v1237
    %v1285 = vpack.c.bf16 %v1240, %v1239
    %v1286 = vpack.c.bf16 %v1242, %v1241
    %v1287 = vpack.c.bf16 %v1244, %v1243
    %v1288 = vpack.c.bf16 %v1246, %v1245
    %v1289 = vpack.c.bf16 %v1248, %v1247
    %v1290 = vpack.c.bf16 %v1250, %v1249
    %v1291 = vpack.c.bf16 %v1252, %v1251
    %v1292 = vpack.c.bf16 %v1254, %v1253
    %v1293 = vpack.c.bf16 %v1256, %v1255
    %v1294 = vpack.c.bf16 %v1258, %v1257
    %s1295 = scalar_lea.vmem %s1, 2
    %v1296 = vld [vmem:[%s1295] sm:$0x3]
    %v1298 = vsel %vm137, %v1263, 0
    %v1301 = vsel %vm137, %v1264, 0
    %v1304 = vsel %vm137, %v1265, 0
    %v1307 = vsel %vm137, %v1266, 0
    %v1310 = vsel %vm137, %v1267, 0
    %v1313 = vsel %vm137, %v1268, 0
    %v1316 = vsel %vm137, %v1269, 0
    %v1319 = vsel %vm137, %v1270, 0
    %v1322 = vsel %vm137, %v1271, 0
    %v1325 = vsel %vm137, %v1272, 0
    %v1328 = vsel %vm137, %v1273, 0
    %v1331 = vsel %vm137, %v1274, 0
    %v1334 = vsel %vm137, %v1275, 0
    %v1337 = vsel %vm137, %v1276, 0
    %v1340 = vsel %vm137, %v1277, 0
    %v1343 = vsel %vm137, %v1278, 0
    %v1346 = vsel %vm137, %v1279, 0
    %v1349 = vsel %vm137, %v1280, 0
    %v1352 = vsel %vm137, %v1281, 0
    %v1355 = vsel %vm137, %v1282, 0
    %v1358 = vsel %vm137, %v1283, 0
    %v1361 = vsel %vm137, %v1284, 0
    %v1364 = vsel %vm137, %v1285, 0
    %v1367 = vsel %vm137, %v1286, 0
    %v1370 = vsel %vm137, %v1287, 0
    %v1373 = vsel %vm137, %v1288, 0
    %v1376 = vsel %vm137, %v1289, 0
    %v1379 = vsel %vm137, %v1290, 0
    %v1382 = vsel %vm137, %v1291, 0
    %v1385 = vsel %vm137, %v1292, 0
    %v1388 = vsel %vm137, %v1293, 0
    %v1391 = vsel %vm137, %v1294, 0
    %v1394 = vsel %vm234, %v1296, 0
    %1396 = vmatprep.subr.bf16.mxu0 0
    %1397 = vmatpush1.bf16.msra.mxu0 %v1394
    %1398 = vmatprep.subr.bf16.mxu0 0
    %1399 = vmatpush1.bf16.msra.mxu0 0
    %1400 = vmatprep.subr.bf16.mxu0 0
    %1401 = vmatpush1.bf16.msra.mxu0 0
    %1402 = vmatprep.subr.bf16.mxu0 0
    %1403 = vmatpush1.bf16.msra.mxu0 0
    %1404 = vmatprep.subr.bf16.mxu0 0
    %1405 = vmatpush1.bf16.msra.mxu0 0
    %1406 = vmatprep.subr.bf16.mxu0 0
    %1407 = vmatpush1.bf16.msra.mxu0 0
    %1408 = vmatprep.subr.bf16.mxu0 0
    %1409 = vmatpush1.bf16.msra.mxu0 0
    %1410 = vmatprep.subr.bf16.mxu0 0
    %1411 = vmatpush1.bf16.msra.mxu0 0
    %1412 = vmatprep.subr.bf16.mxu0 0
    %1413 = vmatpush1.bf16.msra.mxu0 0
    %1414 = vmatprep.subr.bf16.mxu0 0
    %1415 = vmatpush1.bf16.msra.mxu0 0
    %1416 = vmatprep.subr.bf16.mxu0 0
    %1417 = vmatpush1.bf16.msra.mxu0 0
    %1418 = vmatprep.subr.bf16.mxu0 0
    %1419 = vmatpush1.bf16.msra.mxu0 0
    %1420 = vmatprep.subr.bf16.mxu0 0
    %1421 = vmatpush1.bf16.msra.mxu0 0
    %1422 = vmatprep.subr.bf16.mxu0 0
    %1423 = vmatpush1.bf16.msra.mxu0 0
    %1424 = vmatprep.subr.bf16.mxu0 0
    %1425 = vmatpush1.bf16.msra.mxu0 0
    %1426 = vmatprep.subr.bf16.mxu0 0
    %1427 = vmatpush1.bf16.msra.mxu0 0
    %1428 = vmatprep.mubr.bf16.mxu0 0
    %1429 = vmatmul.mubr.bf16.gmra.mrb[0].mxu0 %v1298
    %v1430 = vpop.f32.mrb[0].mxu0
    %v1431 = vadd.f32 0.0, %v1430
    %v1432 = vpop.f32.mrb[0].mxu0
    %v1433 = vpop.f32.mrb[0].mxu0
    %v1434 = vadd.f32 0.0, %v1433
    %v1435 = vpop.f32.mrb[0].mxu0
    %1436 = vmatprep.mubr.bf16.mxu0 0
    %1437 = vmatmul.mubr.bf16.gmra.mrb[0].mxu0 %v1301
    %v1438 = vpop.f32.mrb[0].mxu0
    %v1439 = vadd.f32 0.0, %v1438
    %v1440 = vpop.f32.mrb[0].mxu0
    %v1441 = vpop.f32.mrb[0].mxu0
    %v1442 = vadd.f32 0.0, %v1441
    %v1443 = vpop.f32.mrb[0].mxu0
    %1444 = vmatprep.mubr.bf16.mxu0 0
    %1445 = vmatmul.mubr.bf16.gmra.mrb[0].mxu0 %v1304
    %v1446 = vpop.f32.mrb[0].mxu0
    %v1447 = vadd.f32 0.0, %v1446
    %v1448 = vpop.f32.mrb[0].mxu0
    %v1449 = vpop.f32.mrb[0].mxu0
    %v1450 = vadd.f32 0.0, %v1449
    %v1451 = vpop.f32.mrb[0].mxu0
    %1452 = vmatprep.mubr.bf16.mxu0 0
    %1453 = vmatmul.mubr.bf16.gmra.mrb[0].mxu0 %v1307
    %v1454 = vpop.f32.mrb[0].mxu0
    %v1455 = vadd.f32 0.0, %v1454
    %v1456 = vpop.f32.mrb[0].mxu0
    %v1457 = vpop.f32.mrb[0].mxu0
    %v1458 = vadd.f32 0.0, %v1457
    %v1459 = vpop.f32.mrb[0].mxu0
    %1460 = vmatprep.mubr.bf16.mxu0 0
    %1461 = vmatmul.mubr.bf16.gmra.mrb[0].mxu0 %v1310
    %v1462 = vpop.f32.mrb[0].mxu0
    %v1463 = vadd.f32 0.0, %v1462
    %v1464 = vpop.f32.mrb[0].mxu0
    %v1465 = vpop.f32.mrb[0].mxu0
    %v1466 = vadd.f32 0.0, %v1465
    %v1467 = vpop.f32.mrb[0].mxu0
    %1468 = vmatprep.mubr.bf16.mxu0 0
    %1469 = vmatmul.mubr.bf16.gmra.mrb[0].mxu0 %v1313
    %v1470 = vpop.f32.mrb[0].mxu0
    %v1471 = vadd.f32 0.0, %v1470
    %v1472 = vpop.f32.mrb[0].mxu0
    %v1473 = vpop.f32.mrb[0].mxu0
    %v1474 = vadd.f32 0.0, %v1473
    %v1475 = vpop.f32.mrb[0].mxu0
    %1476 = vmatprep.mubr.bf16.mxu0 0
    %1477 = vmatmul.mubr.bf16.gmra.mrb[0].mxu0 %v1316
    %v1478 = vpop.f32.mrb[0].mxu0
    %v1479 = vadd.f32 0.0, %v1478
    %v1480 = vpop.f32.mrb[0].mxu0
    %v1481 = vpop.f32.mrb[0].mxu0
    %v1482 = vadd.f32 0.0, %v1481
    %v1483 = vpop.f32.mrb[0].mxu0
    %1484 = vmatprep.mubr.bf16.mxu0 0
    %1485 = vmatmul.mubr.bf16.gmra.mrb[0].mxu0 %v1319
    %v1486 = vpop.f32.mrb[0].mxu0
    %v1487 = vadd.f32 0.0, %v1486
    %v1488 = vpop.f32.mrb[0].mxu0
    %v1489 = vpop.f32.mrb[0].mxu0
    %v1490 = vadd.f32 0.0, %v1489
    %v1491 = vpop.f32.mrb[0].mxu0
    %1492 = vmatprep.mubr.bf16.mxu0 0
    %1493 = vmatmul.mubr.bf16.gmra.mrb[0].mxu0 %v1322
    %v1494 = vpop.f32.mrb[0].mxu0
    %v1495 = vadd.f32 0.0, %v1494
    %v1496 = vpop.f32.mrb[0].mxu0
    %v1497 = vpop.f32.mrb[0].mxu0
    %v1498 = vadd.f32 0.0, %v1497
    %v1499 = vpop.f32.mrb[0].mxu0
    %1500 = vmatprep.mubr.bf16.mxu0 0
    %1501 = vmatmul.mubr.bf16.gmra.mrb[0].mxu0 %v1325
    %v1502 = vpop.f32.mrb[0].mxu0
    %v1503 = vadd.f32 0.0, %v1502
    %v1504 = vpop.f32.mrb[0].mxu0
    %v1505 = vpop.f32.mrb[0].mxu0
    %v1506 = vadd.f32 0.0, %v1505
    %v1507 = vpop.f32.mrb[0].mxu0
    %1508 = vmatprep.mubr.bf16.mxu0 0
    %1509 = vmatmul.mubr.bf16.gmra.mrb[0].mxu0 %v1328
    %v1510 = vpop.f32.mrb[0].mxu0
    %v1511 = vadd.f32 0.0, %v1510
    %v1512 = vpop.f32.mrb[0].mxu0
    %v1513 = vpop.f32.mrb[0].mxu0
    %v1514 = vadd.f32 0.0, %v1513
    %v1515 = vpop.f32.mrb[0].mxu0
    %1516 = vmatprep.mubr.bf16.mxu0 0
    %1517 = vmatmul.mubr.bf16.gmra.mrb[0].mxu0 %v1331
    %v1518 = vpop.f32.mrb[0].mxu0
    %v1519 = vadd.f32 0.0, %v1518
    %v1520 = vpop.f32.mrb[0].mxu0
    %v1521 = vpop.f32.mrb[0].mxu0
    %v1522 = vadd.f32 0.0, %v1521
    %v1523 = vpop.f32.mrb[0].mxu0
    %1524 = vmatprep.mubr.bf16.mxu0 0
    %1525 = vmatmul.mubr.bf16.gmra.mrb[0].mxu0 %v1334
    %v1526 = vpop.f32.mrb[0].mxu0
    %v1527 = vadd.f32 0.0, %v1526
    %v1528 = vpop.f32.mrb[0].mxu0
    %v1529 = vpop.f32.mrb[0].mxu0
    %v1530 = vadd.f32 0.0, %v1529
    %v1531 = vpop.f32.mrb[0].mxu0
    %1532 = vmatprep.mubr.bf16.mxu0 0
    %1533 = vmatmul.mubr.bf16.gmra.mrb[0].mxu0 %v1337
    %v1534 = vpop.f32.mrb[0].mxu0
    %v1535 = vadd.f32 0.0, %v1534
    %v1536 = vpop.f32.mrb[0].mxu0
    %v1537 = vpop.f32.mrb[0].mxu0
    %v1538 = vadd.f32 0.0, %v1537
    %v1539 = vpop.f32.mrb[0].mxu0
    %1540 = vmatprep.mubr.bf16.mxu0 0
    %1541 = vmatmul.mubr.bf16.gmra.mrb[0].mxu0 %v1340
    %v1542 = vpop.f32.mrb[0].mxu0
    %v1543 = vadd.f32 0.0, %v1542
    %v1544 = vpop.f32.mrb[0].mxu0
    %v1545 = vpop.f32.mrb[0].mxu0
    %v1546 = vadd.f32 0.0, %v1545
    %v1547 = vpop.f32.mrb[0].mxu0
    %1548 = vmatprep.mubr.bf16.mxu0 0
    %1549 = vmatmul.mubr.bf16.gmra.mrb[0].mxu0 %v1343
    %v1550 = vpop.f32.mrb[0].mxu0
    %v1551 = vadd.f32 0.0, %v1550
    %v1552 = vpop.f32.mrb[0].mxu0
    %v1553 = vpop.f32.mrb[0].mxu0
    %v1554 = vadd.f32 0.0, %v1553
    %v1555 = vpop.f32.mrb[0].mxu0
    %1556 = vmatprep.mubr.bf16.mxu0 0
    %1557 = vmatmul.mubr.bf16.gmra.mrb[0].mxu0 %v1346
    %v1558 = vpop.f32.mrb[0].mxu0
    %v1559 = vadd.f32 0.0, %v1558
    %v1560 = vpop.f32.mrb[0].mxu0
    %v1561 = vpop.f32.mrb[0].mxu0
    %v1562 = vadd.f32 0.0, %v1561
    %v1563 = vpop.f32.mrb[0].mxu0
    %1564 = vmatprep.mubr.bf16.mxu0 0
    %1565 = vmatmul.mubr.bf16.gmra.mrb[0].mxu0 %v1349
    %v1566 = vpop.f32.mrb[0].mxu0
    %v1567 = vadd.f32 0.0, %v1566
    %v1568 = vpop.f32.mrb[0].mxu0
    %v1569 = vpop.f32.mrb[0].mxu0
    %v1570 = vadd.f32 0.0, %v1569
    %v1571 = vpop.f32.mrb[0].mxu0
    %1572 = vmatprep.mubr.bf16.mxu0 0
    %1573 = vmatmul.mubr.bf16.gmra.mrb[0].mxu0 %v1352
    %v1574 = vpop.f32.mrb[0].mxu0
    %v1575 = vadd.f32 0.0, %v1574
    %v1576 = vpop.f32.mrb[0].mxu0
    %v1577 = vpop.f32.mrb[0].mxu0
    %v1578 = vadd.f32 0.0, %v1577
    %v1579 = vpop.f32.mrb[0].mxu0
    %1580 = vmatprep.mubr.bf16.mxu0 0
    %1581 = vmatmul.mubr.bf16.gmra.mrb[0].mxu0 %v1355
    %v1582 = vpop.f32.mrb[0].mxu0
    %v1583 = vadd.f32 0.0, %v1582
    %v1584 = vpop.f32.mrb[0].mxu0
    %v1585 = vpop.f32.mrb[0].mxu0
    %v1586 = vadd.f32 0.0, %v1585
    %v1587 = vpop.f32.mrb[0].mxu0
    %1588 = vmatprep.mubr.bf16.mxu0 0
    %1589 = vmatmul.mubr.bf16.gmra.mrb[0].mxu0 %v1358
    %v1590 = vpop.f32.mrb[0].mxu0
    %v1591 = vadd.f32 0.0, %v1590
    %v1592 = vpop.f32.mrb[0].mxu0
    %v1593 = vpop.f32.mrb[0].mxu0
    %v1594 = vadd.f32 0.0, %v1593
    %v1595 = vpop.f32.mrb[0].mxu0
    %1596 = vmatprep.mubr.bf16.mxu0 0
    %1597 = vmatmul.mubr.bf16.gmra.mrb[0].mxu0 %v1361
    %v1598 = vpop.f32.mrb[0].mxu0
    %v1599 = vadd.f32 0.0, %v1598
    %v1600 = vpop.f32.mrb[0].mxu0
    %v1601 = vpop.f32.mrb[0].mxu0
    %v1602 = vadd.f32 0.0, %v1601
    %v1603 = vpop.f32.mrb[0].mxu0
    %1604 = vmatprep.mubr.bf16.mxu0 0
    %1605 = vmatmul.mubr.bf16.gmra.mrb[0].mxu0 %v1364
    %v1606 = vpop.f32.mrb[0].mxu0
    %v1607 = vadd.f32 0.0, %v1606
    %v1608 = vpop.f32.mrb[0].mxu0
    %v1609 = vpop.f32.mrb[0].mxu0
    %v1610 = vadd.f32 0.0, %v1609
    %v1611 = vpop.f32.mrb[0].mxu0
    %1612 = vmatprep.mubr.bf16.mxu0 0
    %1613 = vmatmul.mubr.bf16.gmra.mrb[0].mxu0 %v1367
    %v1614 = vpop.f32.mrb[0].mxu0
    %v1615 = vadd.f32 0.0, %v1614
    %v1616 = vpop.f32.mrb[0].mxu0
    %v1617 = vpop.f32.mrb[0].mxu0
    %v1618 = vadd.f32 0.0, %v1617
    %v1619 = vpop.f32.mrb[0].mxu0
    %1620 = vmatprep.mubr.bf16.mxu0 0
    %1621 = vmatmul.mubr.bf16.gmra.mrb[0].mxu0 %v1370
    %v1622 = vpop.f32.mrb[0].mxu0
    %v1623 = vadd.f32 0.0, %v1622
    %v1624 = vpop.f32.mrb[0].mxu0
    %v1625 = vpop.f32.mrb[0].mxu0
    %v1626 = vadd.f32 0.0, %v1625
    %v1627 = vpop.f32.mrb[0].mxu0
    %1628 = vmatprep.mubr.bf16.mxu0 0
    %1629 = vmatmul.mubr.bf16.gmra.mrb[0].mxu0 %v1373
    %v1630 = vpop.f32.mrb[0].mxu0
    %v1631 = vadd.f32 0.0, %v1630
    %v1632 = vpop.f32.mrb[0].mxu0
    %v1633 = vpop.f32.mrb[0].mxu0
    %v1634 = vadd.f32 0.0, %v1633
    %v1635 = vpop.f32.mrb[0].mxu0
    %1636 = vmatprep.mubr.bf16.mxu0 0
    %1637 = vmatmul.mubr.bf16.gmra.mrb[0].mxu0 %v1376
    %v1638 = vpop.f32.mrb[0].mxu0
    %v1639 = vadd.f32 0.0, %v1638
    %v1640 = vpop.f32.mrb[0].mxu0
    %v1641 = vpop.f32.mrb[0].mxu0
    %v1642 = vadd.f32 0.0, %v1641
    %v1643 = vpop.f32.mrb[0].mxu0
    %1644 = vmatprep.mubr.bf16.mxu0 0
    %1645 = vmatmul.mubr.bf16.gmra.mrb[0].mxu0 %v1379
    %v1646 = vpop.f32.mrb[0].mxu0
    %v1647 = vadd.f32 0.0, %v1646
    %v1648 = vpop.f32.mrb[0].mxu0
    %v1649 = vpop.f32.mrb[0].mxu0
    %v1650 = vadd.f32 0.0, %v1649
    %v1651 = vpop.f32.mrb[0].mxu0
    %1652 = vmatprep.mubr.bf16.mxu0 0
    %1653 = vmatmul.mubr.bf16.gmra.mrb[0].mxu0 %v1382
    %v1654 = vpop.f32.mrb[0].mxu0
    %v1655 = vadd.f32 0.0, %v1654
    %v1656 = vpop.f32.mrb[0].mxu0
    %v1657 = vpop.f32.mrb[0].mxu0
    %v1658 = vadd.f32 0.0, %v1657
    %v1659 = vpop.f32.mrb[0].mxu0
    %1660 = vmatprep.mubr.bf16.mxu0 0
    %1661 = vmatmul.mubr.bf16.gmra.mrb[0].mxu0 %v1385
    %v1662 = vpop.f32.mrb[0].mxu0
    %v1663 = vadd.f32 0.0, %v1662
    %v1664 = vpop.f32.mrb[0].mxu0
    %v1665 = vpop.f32.mrb[0].mxu0
    %v1666 = vadd.f32 0.0, %v1665
    %v1667 = vpop.f32.mrb[0].mxu0
    %1668 = vmatprep.mubr.bf16.mxu0 0
    %1669 = vmatmul.mubr.bf16.gmra.mrb[0].mxu0 %v1388
    %v1670 = vpop.f32.mrb[0].mxu0
    %v1671 = vadd.f32 0.0, %v1670
    %v1672 = vpop.f32.mrb[0].mxu0
    %v1673 = vpop.f32.mrb[0].mxu0
    %v1674 = vadd.f32 0.0, %v1673
    %v1675 = vpop.f32.mrb[0].mxu0
    %1676 = vmatprep.mubr.bf16.mxu0 0
    %1677 = vmatmul.mubr.bf16.gmra.mrb[0].mxu0 %v1391
    %v1678 = vpop.f32.mrb[0].mxu0
    %v1679 = vadd.f32 0.0, %v1678
    %v1680 = vpop.f32.mrb[0].mxu0
    %v1681 = vpop.f32.mrb[0].mxu0
    %v1682 = vadd.f32 0.0, %v1681
    %v1683 = vpop.f32.mrb[0].mxu0
    %1684 = vdwg.mxu0
    %v1685 = vadd.f32 %v1127, %v1431
    %v1686 = vadd.f32 %v1128, %v1434
    %v1687 = vadd.f32 %v1129, %v1439
    %v1688 = vadd.f32 %v1130, %v1442
    %v1689 = vadd.f32 %v1131, %v1447
    %v1690 = vadd.f32 %v1132, %v1450
    %v1691 = vadd.f32 %v1133, %v1455
    %v1692 = vadd.f32 %v1134, %v1458
    %v1693 = vadd.f32 %v1135, %v1463
    %v1694 = vadd.f32 %v1136, %v1466
    %v1695 = vadd.f32 %v1137, %v1471
    %v1696 = vadd.f32 %v1138, %v1474
    %v1697 = vadd.f32 %v1139, %v1479
    %v1698 = vadd.f32 %v1140, %v1482
    %v1699 = vadd.f32 %v1141, %v1487
    %v1700 = vadd.f32 %v1142, %v1490
    %v1701 = vadd.f32 %v1143, %v1495
    %v1702 = vadd.f32 %v1144, %v1498
    %v1703 = vadd.f32 %v1145, %v1503
    %v1704 = vadd.f32 %v1146, %v1506
    %v1705 = vadd.f32 %v1147, %v1511
    %v1706 = vadd.f32 %v1148, %v1514
    %v1707 = vadd.f32 %v1149, %v1519
    %v1708 = vadd.f32 %v1150, %v1522
    %v1709 = vadd.f32 %v1151, %v1527
    %v1710 = vadd.f32 %v1152, %v1530
    %v1711 = vadd.f32 %v1153, %v1535
    %v1712 = vadd.f32 %v1154, %v1538
    %v1713 = vadd.f32 %v1155, %v1543
    %v1714 = vadd.f32 %v1156, %v1546
    %v1715 = vadd.f32 %v1157, %v1551
    %v1716 = vadd.f32 %v1158, %v1554
    %v1717 = vadd.f32 %v1159, %v1559
    %v1718 = vadd.f32 %v1160, %v1562
    %v1719 = vadd.f32 %v1161, %v1567
    %v1720 = vadd.f32 %v1162, %v1570
    %v1721 = vadd.f32 %v1163, %v1575
    %v1722 = vadd.f32 %v1164, %v1578
    %v1723 = vadd.f32 %v1165, %v1583
    %v1724 = vadd.f32 %v1166, %v1586
    %v1725 = vadd.f32 %v1167, %v1591
    %v1726 = vadd.f32 %v1168, %v1594
    %v1727 = vadd.f32 %v1169, %v1599
    %v1728 = vadd.f32 %v1170, %v1602
    %v1729 = vadd.f32 %v1171, %v1607
    %v1730 = vadd.f32 %v1172, %v1610
    %v1731 = vadd.f32 %v1173, %v1615
    %v1732 = vadd.f32 %v1174, %v1618
    %v1733 = vadd.f32 %v1175, %v1623
    %v1734 = vadd.f32 %v1176, %v1626
    %v1735 = vadd.f32 %v1177, %v1631
    %v1736 = vadd.f32 %v1178, %v1634
    %v1737 = vadd.f32 %v1179, %v1639
    %v1738 = vadd.f32 %v1180, %v1642
    %v1739 = vadd.f32 %v1181, %v1647
    %v1740 = vadd.f32 %v1182, %v1650
    %v1741 = vadd.f32 %v1183, %v1655
    %v1742 = vadd.f32 %v1184, %v1658
    %v1743 = vadd.f32 %v1185, %v1663
    %v1744 = vadd.f32 %v1186, %v1666
    %v1745 = vadd.f32 %v1187, %v1671
    %v1746 = vadd.f32 %v1188, %v1674
    %v1747 = vadd.f32 %v1189, %v1679
    %v1748 = vadd.f32 %v1190, %v1682
    %v1749 = vpack.c.bf16 %v1224, %v1223
    %v1750 = vpack.c.bf16 %v1260, %v1259
    %s1751 = scalar_lea.vmem %s1, 8
    %v1752 = vld [vmem:[%s1751] sm:$0x3]
    %v1754 = vsel %vm137, %v1749, 0
    %v1757 = vsel %vm137, %v1750, 0
    %v1760 = vsel %vm234, %v1752, 0
    %1762 = vmatprep.subr.bf16.mxu0 0
    %1763 = vmatpush1.bf16.msra.mxu0 %v1760
    %1764 = vmatprep.subr.bf16.mxu0 0
    %1765 = vmatpush1.bf16.msra.mxu0 0
    %1766 = vmatprep.subr.bf16.mxu0 0
    %1767 = vmatpush1.bf16.msra.mxu0 0
    %1768 = vmatprep.subr.bf16.mxu0 0
    %1769 = vmatpush1.bf16.msra.mxu0 0
    %1770 = vmatprep.subr.bf16.mxu0 0
    %1771 = vmatpush1.bf16.msra.mxu0 0
    %1772 = vmatprep.subr.bf16.mxu0 0
    %1773 = vmatpush1.bf16.msra.mxu0 0
    %1774 = vmatprep.subr.bf16.mxu0 0
    %1775 = vmatpush1.bf16.msra.mxu0 0
    %1776 = vmatprep.subr.bf16.mxu0 0
    %1777 = vmatpush1.bf16.msra.mxu0 0
    %1778 = vmatprep.subr.bf16.mxu0 0
    %1779 = vmatpush1.bf16.msra.mxu0 0
    %1780 = vmatprep.subr.bf16.mxu0 0
    %1781 = vmatpush1.bf16.msra.mxu0 0
    %1782 = vmatprep.subr.bf16.mxu0 0
    %1783 = vmatpush1.bf16.msra.mxu0 0
    %1784 = vmatprep.subr.bf16.mxu0 0
    %1785 = vmatpush1.bf16.msra.mxu0 0
    %1786 = vmatprep.subr.bf16.mxu0 0
    %1787 = vmatpush1.bf16.msra.mxu0 0
    %1788 = vmatprep.subr.bf16.mxu0 0
    %1789 = vmatpush1.bf16.msra.mxu0 0
    %1790 = vmatprep.subr.bf16.mxu0 0
    %1791 = vmatpush1.bf16.msra.mxu0 0
    %1792 = vmatprep.subr.bf16.mxu0 0
    %1793 = vmatpush1.bf16.msra.mxu0 0
    %1794 = vmatprep.mubr.bf16.mxu0 0
    %1795 = vmatmul.mubr.bf16.gmra.mrb[0].mxu0 %v1301
    %v1796 = vpop.f32.mrb[0].mxu0
    %v1797 = vadd.f32 0.0, %v1796
    %v1798 = vpop.f32.mrb[0].mxu0
    %v1799 = vpop.f32.mrb[0].mxu0
    %v1800 = vadd.f32 0.0, %v1799
    %v1801 = vpop.f32.mrb[0].mxu0
    %1802 = vmatprep.mubr.bf16.mxu0 0
    %1803 = vmatmul.mubr.bf16.gmra.mrb[0].mxu0 %v1304
    %v1804 = vpop.f32.mrb[0].mxu0
    %v1805 = vadd.f32 0.0, %v1804
    %v1806 = vpop.f32.mrb[0].mxu0
    %v1807 = vpop.f32.mrb[0].mxu0
    %v1808 = vadd.f32 0.0, %v1807
    %v1809 = vpop.f32.mrb[0].mxu0
    %1810 = vmatprep.mubr.bf16.mxu0 0
    %1811 = vmatmul.mubr.bf16.gmra.mrb[0].mxu0 %v1307
    %v1812 = vpop.f32.mrb[0].mxu0
    %v1813 = vadd.f32 0.0, %v1812
    %v1814 = vpop.f32.mrb[0].mxu0
    %v1815 = vpop.f32.mrb[0].mxu0
    %v1816 = vadd.f32 0.0, %v1815
    %v1817 = vpop.f32.mrb[0].mxu0
    %1818 = vmatprep.mubr.bf16.mxu0 0
    %1819 = vmatmul.mubr.bf16.gmra.mrb[0].mxu0 %v1310
    %v1820 = vpop.f32.mrb[0].mxu0
    %v1821 = vadd.f32 0.0, %v1820
    %v1822 = vpop.f32.mrb[0].mxu0
    %v1823 = vpop.f32.mrb[0].mxu0
    %v1824 = vadd.f32 0.0, %v1823
    %v1825 = vpop.f32.mrb[0].mxu0
    %1826 = vmatprep.mubr.bf16.mxu0 0
    %1827 = vmatmul.mubr.bf16.gmra.mrb[0].mxu0 %v1313
    %v1828 = vpop.f32.mrb[0].mxu0
    %v1829 = vadd.f32 0.0, %v1828
    %v1830 = vpop.f32.mrb[0].mxu0
    %v1831 = vpop.f32.mrb[0].mxu0
    %v1832 = vadd.f32 0.0, %v1831
    %v1833 = vpop.f32.mrb[0].mxu0
    %1834 = vmatprep.mubr.bf16.mxu0 0
    %1835 = vmatmul.mubr.bf16.gmra.mrb[0].mxu0 %v1316
    %v1836 = vpop.f32.mrb[0].mxu0
    %v1837 = vadd.f32 0.0, %v1836
    %v1838 = vpop.f32.mrb[0].mxu0
    %v1839 = vpop.f32.mrb[0].mxu0
    %v1840 = vadd.f32 0.0, %v1839
    %v1841 = vpop.f32.mrb[0].mxu0
    %1842 = vmatprep.mubr.bf16.mxu0 0
    %1843 = vmatmul.mubr.bf16.gmra.mrb[0].mxu0 %v1319
    %v1844 = vpop.f32.mrb[0].mxu0
    %v1845 = vadd.f32 0.0, %v1844
    %v1846 = vpop.f32.mrb[0].mxu0
    %v1847 = vpop.f32.mrb[0].mxu0
    %v1848 = vadd.f32 0.0, %v1847
    %v1849 = vpop.f32.mrb[0].mxu0
    %1850 = vmatprep.mubr.bf16.mxu0 0
    %1851 = vmatmul.mubr.bf16.gmra.mrb[0].mxu0 %v1322
    %v1852 = vpop.f32.mrb[0].mxu0
    %v1853 = vadd.f32 0.0, %v1852
    %v1854 = vpop.f32.mrb[0].mxu0
    %v1855 = vpop.f32.mrb[0].mxu0
    %v1856 = vadd.f32 0.0, %v1855
    %v1857 = vpop.f32.mrb[0].mxu0
    %1858 = vmatprep.mubr.bf16.mxu0 0
    %1859 = vmatmul.mubr.bf16.gmra.mrb[0].mxu0 %v1325
    %v1860 = vpop.f32.mrb[0].mxu0
    %v1861 = vadd.f32 0.0, %v1860
    %v1862 = vpop.f32.mrb[0].mxu0
    %v1863 = vpop.f32.mrb[0].mxu0
    %v1864 = vadd.f32 0.0, %v1863
    %v1865 = vpop.f32.mrb[0].mxu0
    %1866 = vmatprep.mubr.bf16.mxu0 0
    %1867 = vmatmul.mubr.bf16.gmra.mrb[0].mxu0 %v1328
    %v1868 = vpop.f32.mrb[0].mxu0
    %v1869 = vadd.f32 0.0, %v1868
    %v1870 = vpop.f32.mrb[0].mxu0
    %v1871 = vpop.f32.mrb[0].mxu0
    %v1872 = vadd.f32 0.0, %v1871
    %v1873 = vpop.f32.mrb[0].mxu0
    %1874 = vmatprep.mubr.bf16.mxu0 0
    %1875 = vmatmul.mubr.bf16.gmra.mrb[0].mxu0 %v1331
    %v1876 = vpop.f32.mrb[0].mxu0
    %v1877 = vadd.f32 0.0, %v1876
    %v1878 = vpop.f32.mrb[0].mxu0
    %v1879 = vpop.f32.mrb[0].mxu0
    %v1880 = vadd.f32 0.0, %v1879
    %v1881 = vpop.f32.mrb[0].mxu0
    %1882 = vmatprep.mubr.bf16.mxu0 0
    %1883 = vmatmul.mubr.bf16.gmra.mrb[0].mxu0 %v1334
    %v1884 = vpop.f32.mrb[0].mxu0
    %v1885 = vadd.f32 0.0, %v1884
    %v1886 = vpop.f32.mrb[0].mxu0
    %v1887 = vpop.f32.mrb[0].mxu0
    %v1888 = vadd.f32 0.0, %v1887
    %v1889 = vpop.f32.mrb[0].mxu0
    %1890 = vmatprep.mubr.bf16.mxu0 0
    %1891 = vmatmul.mubr.bf16.gmra.mrb[0].mxu0 %v1337
    %v1892 = vpop.f32.mrb[0].mxu0
    %v1893 = vadd.f32 0.0, %v1892
    %v1894 = vpop.f32.mrb[0].mxu0
    %v1895 = vpop.f32.mrb[0].mxu0
    %v1896 = vadd.f32 0.0, %v1895
    %v1897 = vpop.f32.mrb[0].mxu0
    %1898 = vmatprep.mubr.bf16.mxu0 0
    %1899 = vmatmul.mubr.bf16.gmra.mrb[0].mxu0 %v1340
    %v1900 = vpop.f32.mrb[0].mxu0
    %v1901 = vadd.f32 0.0, %v1900
    %v1902 = vpop.f32.mrb[0].mxu0
    %v1903 = vpop.f32.mrb[0].mxu0
    %v1904 = vadd.f32 0.0, %v1903
    %v1905 = vpop.f32.mrb[0].mxu0
    %1906 = vmatprep.mubr.bf16.mxu0 0
    %1907 = vmatmul.mubr.bf16.gmra.mrb[0].mxu0 %v1343
    %v1908 = vpop.f32.mrb[0].mxu0
    %v1909 = vadd.f32 0.0, %v1908
    %v1910 = vpop.f32.mrb[0].mxu0
    %v1911 = vpop.f32.mrb[0].mxu0
    %v1912 = vadd.f32 0.0, %v1911
    %v1913 = vpop.f32.mrb[0].mxu0
    %1914 = vmatprep.mubr.bf16.mxu0 0
    %1915 = vmatmul.mubr.bf16.gmra.mrb[0].mxu0 %v1754
    %v1916 = vpop.f32.mrb[0].mxu0
    %v1917 = vadd.f32 0.0, %v1916
    %v1918 = vpop.f32.mrb[0].mxu0
    %v1919 = vpop.f32.mrb[0].mxu0
    %v1920 = vadd.f32 0.0, %v1919
    %v1921 = vpop.f32.mrb[0].mxu0
    %1922 = vmatprep.mubr.bf16.mxu0 0
    %1923 = vmatmul.mubr.bf16.gmra.mrb[0].mxu0 %v1349
    %v1924 = vpop.f32.mrb[0].mxu0
    %v1925 = vadd.f32 0.0, %v1924
    %v1926 = vpop.f32.mrb[0].mxu0
    %v1927 = vpop.f32.mrb[0].mxu0
    %v1928 = vadd.f32 0.0, %v1927
    %v1929 = vpop.f32.mrb[0].mxu0
    %1930 = vmatprep.mubr.bf16.mxu0 0
    %1931 = vmatmul.mubr.bf16.gmra.mrb[0].mxu0 %v1352
    %v1932 = vpop.f32.mrb[0].mxu0
    %v1933 = vadd.f32 0.0, %v1932
    %v1934 = vpop.f32.mrb[0].mxu0
    %v1935 = vpop.f32.mrb[0].mxu0
    %v1936 = vadd.f32 0.0, %v1935
    %v1937 = vpop.f32.mrb[0].mxu0
    %1938 = vmatprep.mubr.bf16.mxu0 0
    %1939 = vmatmul.mubr.bf16.gmra.mrb[0].mxu0 %v1355
    %v1940 = vpop.f32.mrb[0].mxu0
    %v1941 = vadd.f32 0.0, %v1940
    %v1942 = vpop.f32.mrb[0].mxu0
    %v1943 = vpop.f32.mrb[0].mxu0
    %v1944 = vadd.f32 0.0, %v1943
    %v1945 = vpop.f32.mrb[0].mxu0
    %1946 = vmatprep.mubr.bf16.mxu0 0
    %1947 = vmatmul.mubr.bf16.gmra.mrb[0].mxu0 %v1358
    %v1948 = vpop.f32.mrb[0].mxu0
    %v1949 = vadd.f32 0.0, %v1948
    %v1950 = vpop.f32.mrb[0].mxu0
    %v1951 = vpop.f32.mrb[0].mxu0
    %v1952 = vadd.f32 0.0, %v1951
    %v1953 = vpop.f32.mrb[0].mxu0
    %1954 = vmatprep.mubr.bf16.mxu0 0
    %1955 = vmatmul.mubr.bf16.gmra.mrb[0].mxu0 %v1361
    %v1956 = vpop.f32.mrb[0].mxu0
    %v1957 = vadd.f32 0.0, %v1956
    %v1958 = vpop.f32.mrb[0].mxu0
    %v1959 = vpop.f32.mrb[0].mxu0
    %v1960 = vadd.f32 0.0, %v1959
    %v1961 = vpop.f32.mrb[0].mxu0
    %1962 = vmatprep.mubr.bf16.mxu0 0
    %1963 = vmatmul.mubr.bf16.gmra.mrb[0].mxu0 %v1364
    %v1964 = vpop.f32.mrb[0].mxu0
    %v1965 = vadd.f32 0.0, %v1964
    %v1966 = vpop.f32.mrb[0].mxu0
    %v1967 = vpop.f32.mrb[0].mxu0
    %v1968 = vadd.f32 0.0, %v1967
    %v1969 = vpop.f32.mrb[0].mxu0
    %1970 = vmatprep.mubr.bf16.mxu0 0
    %1971 = vmatmul.mubr.bf16.gmra.mrb[0].mxu0 %v1367
    %v1972 = vpop.f32.mrb[0].mxu0
    %v1973 = vadd.f32 0.0, %v1972
    %v1974 = vpop.f32.mrb[0].mxu0
    %v1975 = vpop.f32.mrb[0].mxu0
    %v1976 = vadd.f32 0.0, %v1975
    %v1977 = vpop.f32.mrb[0].mxu0
    %1978 = vmatprep.mubr.bf16.mxu0 0
    %1979 = vmatmul.mubr.bf16.gmra.mrb[0].mxu0 %v1370
    %v1980 = vpop.f32.mrb[0].mxu0
    %v1981 = vadd.f32 0.0, %v1980
    %v1982 = vpop.f32.mrb[0].mxu0
    %v1983 = vpop.f32.mrb[0].mxu0
    %v1984 = vadd.f32 0.0, %v1983
    %v1985 = vpop.f32.mrb[0].mxu0
    %1986 = vmatprep.mubr.bf16.mxu0 0
    %1987 = vmatmul.mubr.bf16.gmra.mrb[0].mxu0 %v1373
    %v1988 = vpop.f32.mrb[0].mxu0
    %v1989 = vadd.f32 0.0, %v1988
    %v1990 = vpop.f32.mrb[0].mxu0
    %v1991 = vpop.f32.mrb[0].mxu0
    %v1992 = vadd.f32 0.0, %v1991
    %v1993 = vpop.f32.mrb[0].mxu0
    %1994 = vmatprep.mubr.bf16.mxu0 0
    %1995 = vmatmul.mubr.bf16.gmra.mrb[0].mxu0 %v1376
    %v1996 = vpop.f32.mrb[0].mxu0
    %v1997 = vadd.f32 0.0, %v1996
    %v1998 = vpop.f32.mrb[0].mxu0
    %v1999 = vpop.f32.mrb[0].mxu0
    %v2000 = vadd.f32 0.0, %v1999
    %v2001 = vpop.f32.mrb[0].mxu0
    %2002 = vmatprep.mubr.bf16.mxu0 0
    %2003 = vmatmul.mubr.bf16.gmra.mrb[0].mxu0 %v1379
    %v2004 = vpop.f32.mrb[0].mxu0
    %v2005 = vadd.f32 0.0, %v2004
    %v2006 = vpop.f32.mrb[0].mxu0
    %v2007 = vpop.f32.mrb[0].mxu0
    %v2008 = vadd.f32 0.0, %v2007
    %v2009 = vpop.f32.mrb[0].mxu0
    %2010 = vmatprep.mubr.bf16.mxu0 0
    %2011 = vmatmul.mubr.bf16.gmra.mrb[0].mxu0 %v1382
    %v2012 = vpop.f32.mrb[0].mxu0
    %v2013 = vadd.f32 0.0, %v2012
    %v2014 = vpop.f32.mrb[0].mxu0
    %v2015 = vpop.f32.mrb[0].mxu0
    %v2016 = vadd.f32 0.0, %v2015
    %v2017 = vpop.f32.mrb[0].mxu0
    %2018 = vmatprep.mubr.bf16.mxu0 0
    %2019 = vmatmul.mubr.bf16.gmra.mrb[0].mxu0 %v1385
    %v2020 = vpop.f32.mrb[0].mxu0
    %v2021 = vadd.f32 0.0, %v2020
    %v2022 = vpop.f32.mrb[0].mxu0
    %v2023 = vpop.f32.mrb[0].mxu0
    %v2024 = vadd.f32 0.0, %v2023
    %v2025 = vpop.f32.mrb[0].mxu0
    %2026 = vmatprep.mubr.bf16.mxu0 0
    %2027 = vmatmul.mubr.bf16.gmra.mrb[0].mxu0 %v1388
    %v2028 = vpop.f32.mrb[0].mxu0
    %v2029 = vadd.f32 0.0, %v2028
    %v2030 = vpop.f32.mrb[0].mxu0
    %v2031 = vpop.f32.mrb[0].mxu0
    %v2032 = vadd.f32 0.0, %v2031
    %v2033 = vpop.f32.mrb[0].mxu0
    %2034 = vmatprep.mubr.bf16.mxu0 0
    %2035 = vmatmul.mubr.bf16.gmra.mrb[0].mxu0 %v1391
    %v2036 = vpop.f32.mrb[0].mxu0
    %v2037 = vadd.f32 0.0, %v2036
    %v2038 = vpop.f32.mrb[0].mxu0
    %v2039 = vpop.f32.mrb[0].mxu0
    %v2040 = vadd.f32 0.0, %v2039
    %v2041 = vpop.f32.mrb[0].mxu0
    %2042 = vmatprep.mubr.bf16.mxu0 0
    %2043 = vmatmul.mubr.bf16.gmra.mrb[0].mxu0 %v1757
    %v2044 = vpop.f32.mrb[0].mxu0
    %v2045 = vadd.f32 0.0, %v2044
    %v2046 = vpop.f32.mrb[0].mxu0
    %v2047 = vpop.f32.mrb[0].mxu0
    %v2048 = vadd.f32 0.0, %v2047
    %v2049 = vpop.f32.mrb[0].mxu0
    %2050 = vdwg.mxu0
    %v2051 = vadd.f32 %v1685, %v1797
    %v2052 = vadd.f32 %v1686, %v1800
    %v2053 = vadd.f32 %v1687, %v1805
    %v2054 = vadd.f32 %v1688, %v1808
    %v2055 = vadd.f32 %v1689, %v1813
    %v2056 = vadd.f32 %v1690, %v1816
    %v2057 = vadd.f32 %v1691, %v1821
    %v2058 = vadd.f32 %v1692, %v1824
    %v2059 = vadd.f32 %v1693, %v1829
    %v2060 = vadd.f32 %v1694, %v1832
    %v2061 = vadd.f32 %v1695, %v1837
    %v2062 = vadd.f32 %v1696, %v1840
    %v2063 = vadd.f32 %v1697, %v1845
    %v2064 = vadd.f32 %v1698, %v1848
    %v2065 = vadd.f32 %v1699, %v1853
    %v2066 = vadd.f32 %v1700, %v1856
    %v2067 = vadd.f32 %v1701, %v1861
    %v2068 = vadd.f32 %v1702, %v1864
    %v2069 = vadd.f32 %v1703, %v1869
    %v2070 = vadd.f32 %v1704, %v1872
    %v2071 = vadd.f32 %v1705, %v1877
    %v2072 = vadd.f32 %v1706, %v1880
    %v2073 = vadd.f32 %v1707, %v1885
    %v2074 = vadd.f32 %v1708, %v1888
    %v2075 = vadd.f32 %v1709, %v1893
    %v2076 = vadd.f32 %v1710, %v1896
    %v2077 = vadd.f32 %v1711, %v1901
    %v2078 = vadd.f32 %v1712, %v1904
    %v2079 = vadd.f32 %v1713, %v1909
    %v2080 = vadd.f32 %v1714, %v1912
    %v2081 = vadd.f32 %v1715, %v1917
    %v2082 = vadd.f32 %v1716, %v1920
    %v2083 = vadd.f32 %v1717, %v1925
    %v2084 = vadd.f32 %v1718, %v1928
    %v2085 = vadd.f32 %v1719, %v1933
    %v2086 = vadd.f32 %v1720, %v1936
    %v2087 = vadd.f32 %v1721, %v1941
    %v2088 = vadd.f32 %v1722, %v1944
    %v2089 = vadd.f32 %v1723, %v1949
    %v2090 = vadd.f32 %v1724, %v1952
    %v2091 = vadd.f32 %v1725, %v1957
    %v2092 = vadd.f32 %v1726, %v1960
    %v2093 = vadd.f32 %v1727, %v1965
    %v2094 = vadd.f32 %v1728, %v1968
    %v2095 = vadd.f32 %v1729, %v1973
    %v2096 = vadd.f32 %v1730, %v1976
    %v2097 = vadd.f32 %v1731, %v1981
    %v2098 = vadd.f32 %v1732, %v1984
    %v2099 = vadd.f32 %v1733, %v1989
    %v2100 = vadd.f32 %v1734, %v1992
    %v2101 = vadd.f32 %v1735, %v1997
    %v2102 = vadd.f32 %v1736, %v2000
    %v2103 = vadd.f32 %v1737, %v2005
    %v2104 = vadd.f32 %v1738, %v2008
    %v2105 = vadd.f32 %v1739, %v2013
    %v2106 = vadd.f32 %v1740, %v2016
    %v2107 = vadd.f32 %v1741, %v2021
    %v2108 = vadd.f32 %v1742, %v2024
    %v2109 = vadd.f32 %v1743, %v2029
    %v2110 = vadd.f32 %v1744, %v2032
    %v2111 = vadd.f32 %v1745, %v2037
    %v2112 = vadd.f32 %v1746, %v2040
    %v2113 = vadd.f32 %v1747, %v2045
    %v2114 = vadd.f32 %v1748, %v2048
    %v2115 = vpack.c.bf16 %v1226, %v1225
    %v2116 = vpack.c.bf16 %v1262, %v1261
    %s2117 = scalar_lea.vmem %s1, 14
    %v2118 = vld [vmem:[%s2117] sm:$0x3]
    %v2120 = vsel %vm137, %v2115, 0
    %v2123 = vsel %vm137, %v2116, 0
    %v2126 = vsel %vm234, %v2118, 0
    %2128 = vmatprep.subr.bf16.mxu0 0
    %2129 = vmatpush1.bf16.msra.mxu0 %v2126
    %2130 = vmatprep.subr.bf16.mxu0 0
    %2131 = vmatpush1.bf16.msra.mxu0 0
    %2132 = vmatprep.subr.bf16.mxu0 0
    %2133 = vmatpush1.bf16.msra.mxu0 0
    %2134 = vmatprep.subr.bf16.mxu0 0
    %2135 = vmatpush1.bf16.msra.mxu0 0
    %2136 = vmatprep.subr.bf16.mxu0 0
    %2137 = vmatpush1.bf16.msra.mxu0 0
    %2138 = vmatprep.subr.bf16.mxu0 0
    %2139 = vmatpush1.bf16.msra.mxu0 0
    %2140 = vmatprep.subr.bf16.mxu0 0
    %2141 = vmatpush1.bf16.msra.mxu0 0
    %2142 = vmatprep.subr.bf16.mxu0 0
    %2143 = vmatpush1.bf16.msra.mxu0 0
    %2144 = vmatprep.subr.bf16.mxu0 0
    %2145 = vmatpush1.bf16.msra.mxu0 0
    %2146 = vmatprep.subr.bf16.mxu0 0
    %2147 = vmatpush1.bf16.msra.mxu0 0
    %2148 = vmatprep.subr.bf16.mxu0 0
    %2149 = vmatpush1.bf16.msra.mxu0 0
    %2150 = vmatprep.subr.bf16.mxu0 0
    %2151 = vmatpush1.bf16.msra.mxu0 0
    %2152 = vmatprep.subr.bf16.mxu0 0
    %2153 = vmatpush1.bf16.msra.mxu0 0
    %2154 = vmatprep.subr.bf16.mxu0 0
    %2155 = vmatpush1.bf16.msra.mxu0 0
    %2156 = vmatprep.subr.bf16.mxu0 0
    %2157 = vmatpush1.bf16.msra.mxu0 0
    %2158 = vmatprep.subr.bf16.mxu0 0
    %2159 = vmatpush1.bf16.msra.mxu0 0
    %2160 = vmatprep.mubr.bf16.mxu0 0
    %2161 = vmatmul.mubr.bf16.gmra.mrb[0].mxu0 %v1304
    %v2162 = vpop.f32.mrb[0].mxu0
    %v2163 = vadd.f32 0.0, %v2162
    %v2164 = vpop.f32.mrb[0].mxu0
    %v2165 = vpop.f32.mrb[0].mxu0
    %v2166 = vadd.f32 0.0, %v2165
    %v2167 = vpop.f32.mrb[0].mxu0
    %2168 = vmatprep.mubr.bf16.mxu0 0
    %2169 = vmatmul.mubr.bf16.gmra.mrb[0].mxu0 %v1307
    %v2170 = vpop.f32.mrb[0].mxu0
    %v2171 = vadd.f32 0.0, %v2170
    %v2172 = vpop.f32.mrb[0].mxu0
    %v2173 = vpop.f32.mrb[0].mxu0
    %v2174 = vadd.f32 0.0, %v2173
    %v2175 = vpop.f32.mrb[0].mxu0
    %2176 = vmatprep.mubr.bf16.mxu0 0
    %2177 = vmatmul.mubr.bf16.gmra.mrb[0].mxu0 %v1310
    %v2178 = vpop.f32.mrb[0].mxu0
    %v2179 = vadd.f32 0.0, %v2178
    %v2180 = vpop.f32.mrb[0].mxu0
    %v2181 = vpop.f32.mrb[0].mxu0
    %v2182 = vadd.f32 0.0, %v2181
    %v2183 = vpop.f32.mrb[0].mxu0
    %2184 = vmatprep.mubr.bf16.mxu0 0
    %2185 = vmatmul.mubr.bf16.gmra.mrb[0].mxu0 %v1313
    %v2186 = vpop.f32.mrb[0].mxu0
    %v2187 = vadd.f32 0.0, %v2186
    %v2188 = vpop.f32.mrb[0].mxu0
    %v2189 = vpop.f32.mrb[0].mxu0
    %v2190 = vadd.f32 0.0, %v2189
    %v2191 = vpop.f32.mrb[0].mxu0
    %2192 = vmatprep.mubr.bf16.mxu0 0
    %2193 = vmatmul.mubr.bf16.gmra.mrb[0].mxu0 %v1316
    %v2194 = vpop.f32.mrb[0].mxu0
    %v2195 = vadd.f32 0.0, %v2194
    %v2196 = vpop.f32.mrb[0].mxu0
    %v2197 = vpop.f32.mrb[0].mxu0
    %v2198 = vadd.f32 0.0, %v2197
    %v2199 = vpop.f32.mrb[0].mxu0
    %2200 = vmatprep.mubr.bf16.mxu0 0
    %2201 = vmatmul.mubr.bf16.gmra.mrb[0].mxu0 %v1319
    %v2202 = vpop.f32.mrb[0].mxu0
    %v2203 = vadd.f32 0.0, %v2202
    %v2204 = vpop.f32.mrb[0].mxu0
    %v2205 = vpop.f32.mrb[0].mxu0
    %v2206 = vadd.f32 0.0, %v2205
    %v2207 = vpop.f32.mrb[0].mxu0
    %2208 = vmatprep.mubr.bf16.mxu0 0
    %2209 = vmatmul.mubr.bf16.gmra.mrb[0].mxu0 %v1322
    %v2210 = vpop.f32.mrb[0].mxu0
    %v2211 = vadd.f32 0.0, %v2210
    %v2212 = vpop.f32.mrb[0].mxu0
    %v2213 = vpop.f32.mrb[0].mxu0
    %v2214 = vadd.f32 0.0, %v2213
    %v2215 = vpop.f32.mrb[0].mxu0
    %2216 = vmatprep.mubr.bf16.mxu0 0
    %2217 = vmatmul.mubr.bf16.gmra.mrb[0].mxu0 %v1325
    %v2218 = vpop.f32.mrb[0].mxu0
    %v2219 = vadd.f32 0.0, %v2218
    %v2220 = vpop.f32.mrb[0].mxu0
    %v2221 = vpop.f32.mrb[0].mxu0
    %v2222 = vadd.f32 0.0, %v2221
    %v2223 = vpop.f32.mrb[0].mxu0
    %2224 = vmatprep.mubr.bf16.mxu0 0
    %2225 = vmatmul.mubr.bf16.gmra.mrb[0].mxu0 %v1328
    %v2226 = vpop.f32.mrb[0].mxu0
    %v2227 = vadd.f32 0.0, %v2226
    %v2228 = vpop.f32.mrb[0].mxu0
    %v2229 = vpop.f32.mrb[0].mxu0
    %v2230 = vadd.f32 0.0, %v2229
    %v2231 = vpop.f32.mrb[0].mxu0
    %2232 = vmatprep.mubr.bf16.mxu0 0
    %2233 = vmatmul.mubr.bf16.gmra.mrb[0].mxu0 %v1331
    %v2234 = vpop.f32.mrb[0].mxu0
    %v2235 = vadd.f32 0.0, %v2234
    %v2236 = vpop.f32.mrb[0].mxu0
    %v2237 = vpop.f32.mrb[0].mxu0
    %v2238 = vadd.f32 0.0, %v2237
    %v2239 = vpop.f32.mrb[0].mxu0
    %2240 = vmatprep.mubr.bf16.mxu0 0
    %2241 = vmatmul.mubr.bf16.gmra.mrb[0].mxu0 %v1334
    %v2242 = vpop.f32.mrb[0].mxu0
    %v2243 = vadd.f32 0.0, %v2242
    %v2244 = vpop.f32.mrb[0].mxu0
    %v2245 = vpop.f32.mrb[0].mxu0
    %v2246 = vadd.f32 0.0, %v2245
    %v2247 = vpop.f32.mrb[0].mxu0
    %2248 = vmatprep.mubr.bf16.mxu0 0
    %2249 = vmatmul.mubr.bf16.gmra.mrb[0].mxu0 %v1337
    %v2250 = vpop.f32.mrb[0].mxu0
    %v2251 = vadd.f32 0.0, %v2250
    %v2252 = vpop.f32.mrb[0].mxu0
    %v2253 = vpop.f32.mrb[0].mxu0
    %v2254 = vadd.f32 0.0, %v2253
    %v2255 = vpop.f32.mrb[0].mxu0
    %2256 = vmatprep.mubr.bf16.mxu0 0
    %2257 = vmatmul.mubr.bf16.gmra.mrb[0].mxu0 %v1340
    %v2258 = vpop.f32.mrb[0].mxu0
    %v2259 = vadd.f32 0.0, %v2258
    %v2260 = vpop.f32.mrb[0].mxu0
    %v2261 = vpop.f32.mrb[0].mxu0
    %v2262 = vadd.f32 0.0, %v2261
    %v2263 = vpop.f32.mrb[0].mxu0
    %2264 = vmatprep.mubr.bf16.mxu0 0
    %2265 = vmatmul.mubr.bf16.gmra.mrb[0].mxu0 %v1343
    %v2266 = vpop.f32.mrb[0].mxu0
    %v2267 = vadd.f32 0.0, %v2266
    %v2268 = vpop.f32.mrb[0].mxu0
    %v2269 = vpop.f32.mrb[0].mxu0
    %v2270 = vadd.f32 0.0, %v2269
    %v2271 = vpop.f32.mrb[0].mxu0
    %2272 = vmatprep.mubr.bf16.mxu0 0
    %2273 = vmatmul.mubr.bf16.gmra.mrb[0].mxu0 %v1754
    %v2274 = vpop.f32.mrb[0].mxu0
    %v2275 = vadd.f32 0.0, %v2274
    %v2276 = vpop.f32.mrb[0].mxu0
    %v2277 = vpop.f32.mrb[0].mxu0
    %v2278 = vadd.f32 0.0, %v2277
    %v2279 = vpop.f32.mrb[0].mxu0
    %2280 = vmatprep.mubr.bf16.mxu0 0
    %2281 = vmatmul.mubr.bf16.gmra.mrb[0].mxu0 %v2120
    %v2282 = vpop.f32.mrb[0].mxu0
    %v2283 = vadd.f32 0.0, %v2282
    %v2284 = vpop.f32.mrb[0].mxu0
    %v2285 = vpop.f32.mrb[0].mxu0
    %v2286 = vadd.f32 0.0, %v2285
    %v2287 = vpop.f32.mrb[0].mxu0
    %2288 = vmatprep.mubr.bf16.mxu0 0
    %2289 = vmatmul.mubr.bf16.gmra.mrb[0].mxu0 %v1352
    %v2290 = vpop.f32.mrb[0].mxu0
    %v2291 = vadd.f32 0.0, %v2290
    %v2292 = vpop.f32.mrb[0].mxu0
    %v2293 = vpop.f32.mrb[0].mxu0
    %v2294 = vadd.f32 0.0, %v2293
    %v2295 = vpop.f32.mrb[0].mxu0
    %2296 = vmatprep.mubr.bf16.mxu0 0
    %2297 = vmatmul.mubr.bf16.gmra.mrb[0].mxu0 %v1355
    %v2298 = vpop.f32.mrb[0].mxu0
    %v2299 = vadd.f32 0.0, %v2298
    %v2300 = vpop.f32.mrb[0].mxu0
    %v2301 = vpop.f32.mrb[0].mxu0
    %v2302 = vadd.f32 0.0, %v2301
    %v2303 = vpop.f32.mrb[0].mxu0
    %2304 = vmatprep.mubr.bf16.mxu0 0
    %2305 = vmatmul.mubr.bf16.gmra.mrb[0].mxu0 %v1358
    %v2306 = vpop.f32.mrb[0].mxu0
    %v2307 = vadd.f32 0.0, %v2306
    %v2308 = vpop.f32.mrb[0].mxu0
    %v2309 = vpop.f32.mrb[0].mxu0
    %v2310 = vadd.f32 0.0, %v2309
    %v2311 = vpop.f32.mrb[0].mxu0
    %2312 = vmatprep.mubr.bf16.mxu0 0
    %2313 = vmatmul.mubr.bf16.gmra.mrb[0].mxu0 %v1361
    %v2314 = vpop.f32.mrb[0].mxu0
    %v2315 = vadd.f32 0.0, %v2314
    %v2316 = vpop.f32.mrb[0].mxu0
    %v2317 = vpop.f32.mrb[0].mxu0
    %v2318 = vadd.f32 0.0, %v2317
    %v2319 = vpop.f32.mrb[0].mxu0
    %2320 = vmatprep.mubr.bf16.mxu0 0
    %2321 = vmatmul.mubr.bf16.gmra.mrb[0].mxu0 %v1364
    %v2322 = vpop.f32.mrb[0].mxu0
    %v2323 = vadd.f32 0.0, %v2322
    %v2324 = vpop.f32.mrb[0].mxu0
    %v2325 = vpop.f32.mrb[0].mxu0
    %v2326 = vadd.f32 0.0, %v2325
    %v2327 = vpop.f32.mrb[0].mxu0
    %2328 = vmatprep.mubr.bf16.mxu0 0
    %2329 = vmatmul.mubr.bf16.gmra.mrb[0].mxu0 %v1367
    %v2330 = vpop.f32.mrb[0].mxu0
    %v2331 = vadd.f32 0.0, %v2330
    %v2332 = vpop.f32.mrb[0].mxu0
    %v2333 = vpop.f32.mrb[0].mxu0
    %v2334 = vadd.f32 0.0, %v2333
    %v2335 = vpop.f32.mrb[0].mxu0
    %2336 = vmatprep.mubr.bf16.mxu0 0
    %2337 = vmatmul.mubr.bf16.gmra.mrb[0].mxu0 %v1370
    %v2338 = vpop.f32.mrb[0].mxu0
    %v2339 = vadd.f32 0.0, %v2338
    %v2340 = vpop.f32.mrb[0].mxu0
    %v2341 = vpop.f32.mrb[0].mxu0
    %v2342 = vadd.f32 0.0, %v2341
    %v2343 = vpop.f32.mrb[0].mxu0
    %2344 = vmatprep.mubr.bf16.mxu0 0
    %2345 = vmatmul.mubr.bf16.gmra.mrb[0].mxu0 %v1373
    %v2346 = vpop.f32.mrb[0].mxu0
    %v2347 = vadd.f32 0.0, %v2346
    %v2348 = vpop.f32.mrb[0].mxu0
    %v2349 = vpop.f32.mrb[0].mxu0
    %v2350 = vadd.f32 0.0, %v2349
    %v2351 = vpop.f32.mrb[0].mxu0
    %2352 = vmatprep.mubr.bf16.mxu0 0
    %2353 = vmatmul.mubr.bf16.gmra.mrb[0].mxu0 %v1376
    %v2354 = vpop.f32.mrb[0].mxu0
    %v2355 = vadd.f32 0.0, %v2354
    %v2356 = vpop.f32.mrb[0].mxu0
    %v2357 = vpop.f32.mrb[0].mxu0
    %v2358 = vadd.f32 0.0, %v2357
    %v2359 = vpop.f32.mrb[0].mxu0
    %2360 = vmatprep.mubr.bf16.mxu0 0
    %2361 = vmatmul.mubr.bf16.gmra.mrb[0].mxu0 %v1379
    %v2362 = vpop.f32.mrb[0].mxu0
    %v2363 = vadd.f32 0.0, %v2362
    %v2364 = vpop.f32.mrb[0].mxu0
    %v2365 = vpop.f32.mrb[0].mxu0
    %v2366 = vadd.f32 0.0, %v2365
    %v2367 = vpop.f32.mrb[0].mxu0
    %2368 = vmatprep.mubr.bf16.mxu0 0
    %2369 = vmatmul.mubr.bf16.gmra.mrb[0].mxu0 %v1382
    %v2370 = vpop.f32.mrb[0].mxu0
    %v2371 = vadd.f32 0.0, %v2370
    %v2372 = vpop.f32.mrb[0].mxu0
    %v2373 = vpop.f32.mrb[0].mxu0
    %v2374 = vadd.f32 0.0, %v2373
    %v2375 = vpop.f32.mrb[0].mxu0
    %2376 = vmatprep.mubr.bf16.mxu0 0
    %2377 = vmatmul.mubr.bf16.gmra.mrb[0].mxu0 %v1385
    %v2378 = vpop.f32.mrb[0].mxu0
    %v2379 = vadd.f32 0.0, %v2378
    %v2380 = vpop.f32.mrb[0].mxu0
    %v2381 = vpop.f32.mrb[0].mxu0
    %v2382 = vadd.f32 0.0, %v2381
    %v2383 = vpop.f32.mrb[0].mxu0
    %2384 = vmatprep.mubr.bf16.mxu0 0
    %2385 = vmatmul.mubr.bf16.gmra.mrb[0].mxu0 %v1388
    %v2386 = vpop.f32.mrb[0].mxu0
    %v2387 = vadd.f32 0.0, %v2386
    %v2388 = vpop.f32.mrb[0].mxu0
    %v2389 = vpop.f32.mrb[0].mxu0
    %v2390 = vadd.f32 0.0, %v2389
    %v2391 = vpop.f32.mrb[0].mxu0
    %2392 = vmatprep.mubr.bf16.mxu0 0
    %2393 = vmatmul.mubr.bf16.gmra.mrb[0].mxu0 %v1391
    %v2394 = vpop.f32.mrb[0].mxu0
    %v2395 = vadd.f32 0.0, %v2394
    %v2396 = vpop.f32.mrb[0].mxu0
    %v2397 = vpop.f32.mrb[0].mxu0
    %v2398 = vadd.f32 0.0, %v2397
    %v2399 = vpop.f32.mrb[0].mxu0
    %2400 = vmatprep.mubr.bf16.mxu0 0
    %2401 = vmatmul.mubr.bf16.gmra.mrb[0].mxu0 %v1757
    %v2402 = vpop.f32.mrb[0].mxu0
    %v2403 = vadd.f32 0.0, %v2402
    %v2404 = vpop.f32.mrb[0].mxu0
    %v2405 = vpop.f32.mrb[0].mxu0
    %v2406 = vadd.f32 0.0, %v2405
    %v2407 = vpop.f32.mrb[0].mxu0
    %2408 = vmatprep.mubr.bf16.mxu0 0
    %2409 = vmatmul.mubr.bf16.gmra.mrb[0].mxu0 %v2123
    %v2410 = vpop.f32.mrb[0].mxu0
    %v2411 = vadd.f32 0.0, %v2410
    %v2412 = vpop.f32.mrb[0].mxu0
    %v2413 = vpop.f32.mrb[0].mxu0
    %v2414 = vadd.f32 0.0, %v2413
    %v2415 = vpop.f32.mrb[0].mxu0
    %2416 = vdwg.mxu0
    %v2417 = vadd.f32 %v2051, %v2163
    %v2418 = vadd.f32 %v2052, %v2166
    %v2419 = vadd.f32 %v2053, %v2171
    %v2420 = vadd.f32 %v2054, %v2174
    %v2421 = vadd.f32 %v2055, %v2179
    %v2422 = vadd.f32 %v2056, %v2182
    %v2423 = vadd.f32 %v2057, %v2187
    %v2424 = vadd.f32 %v2058, %v2190
    %v2425 = vadd.f32 %v2059, %v2195
    %v2426 = vadd.f32 %v2060, %v2198
    %v2427 = vadd.f32 %v2061, %v2203
    %v2428 = vadd.f32 %v2062, %v2206
    %v2429 = vadd.f32 %v2063, %v2211
    %v2430 = vadd.f32 %v2064, %v2214
    %v2431 = vadd.f32 %v2065, %v2219
    %v2432 = vadd.f32 %v2066, %v2222
    %v2433 = vadd.f32 %v2067, %v2227
    %v2434 = vadd.f32 %v2068, %v2230
    %v2435 = vadd.f32 %v2069, %v2235
    %v2436 = vadd.f32 %v2070, %v2238
    %v2437 = vadd.f32 %v2071, %v2243
    %v2438 = vadd.f32 %v2072, %v2246
    %v2439 = vadd.f32 %v2073, %v2251
    %v2440 = vadd.f32 %v2074, %v2254
    %v2441 = vadd.f32 %v2075, %v2259
    %v2442 = vadd.f32 %v2076, %v2262
    %v2443 = vadd.f32 %v2077, %v2267
    %v2444 = vadd.f32 %v2078, %v2270
    %v2445 = vadd.f32 %v2079, %v2275
    %v2446 = vadd.f32 %v2080, %v2278
    %v2447 = vadd.f32 %v2081, %v2283
    %v2448 = vadd.f32 %v2082, %v2286
    %v2449 = vadd.f32 %v2083, %v2291
    %v2450 = vadd.f32 %v2084, %v2294
    %v2451 = vadd.f32 %v2085, %v2299
    %v2452 = vadd.f32 %v2086, %v2302
    %v2453 = vadd.f32 %v2087, %v2307
    %v2454 = vadd.f32 %v2088, %v2310
    %v2455 = vadd.f32 %v2089, %v2315
    %v2456 = vadd.f32 %v2090, %v2318
    %v2457 = vadd.f32 %v2091, %v2323
    %v2458 = vadd.f32 %v2092, %v2326
    %v2459 = vadd.f32 %v2093, %v2331
    %v2460 = vadd.f32 %v2094, %v2334
    %v2461 = vadd.f32 %v2095, %v2339
    %v2462 = vadd.f32 %v2096, %v2342
    %v2463 = vadd.f32 %v2097, %v2347
    %v2464 = vadd.f32 %v2098, %v2350
    %v2465 = vadd.f32 %v2099, %v2355
    %v2466 = vadd.f32 %v2100, %v2358
    %v2467 = vadd.f32 %v2101, %v2363
    %v2468 = vadd.f32 %v2102, %v2366
    %v2469 = vadd.f32 %v2103, %v2371
    %v2470 = vadd.f32 %v2104, %v2374
    %v2471 = vadd.f32 %v2105, %v2379
    %v2472 = vadd.f32 %v2106, %v2382
    %v2473 = vadd.f32 %v2107, %v2387
    %v2474 = vadd.f32 %v2108, %v2390
    %v2475 = vadd.f32 %v2109, %v2395
    %v2476 = vadd.f32 %v2110, %v2398
    %v2477 = vadd.f32 %v2111, %v2403
    %v2478 = vadd.f32 %v2112, %v2406
    %v2479 = vadd.f32 %v2113, %v2411
    %v2480 = vadd.f32 %v2114, %v2414
    %v2481 = vld [vmem:[%s0 + $0x2] sm:$0xff]
    %v2482 = vld [vmem:[%s0 + $0xa] sm:$0xff]
    %v2483 = vld [vmem:[%s0 + $0x1a] sm:$0xff]
    %v2484 = vld [vmem:[%s0 + $0x22] sm:$0xff]
    %v2485 = vld [vmem:[%s0 + $0x32] sm:$0xff]
    %v2486 = vld [vmem:[%s0 + $0x3a] sm:$0xff]
    %v2487 = vld [vmem:[%s0 + $0x4a] sm:$0xff]
    %v2488 = vld [vmem:[%s0 + $0x52] sm:$0xff]
    %v2489 = vld [vmem:[%s0 + $0x62] sm:$0xff]
    %v2490 = vld [vmem:[%s0 + $0x6a] sm:$0xff]
    %v2491 = vld [vmem:[%s0 + $0x7a] sm:$0xff]
    %v2492 = vld [vmem:[%s0 + $0x82] sm:$0xff]
    %v2493 = vld [vmem:[%s0 + $0x92] sm:$0xff]
    %v2494 = vld [vmem:[%s0 + $0x9a] sm:$0xff]
    %v2495 = vld [vmem:[%s0 + $0xaa] sm:$0xff]
    %v2496 = vld [vmem:[%s0 + $0xb2] sm:$0xff]
    %v2497 = vld [vmem:[%s0 + $0xc2] sm:$0xff]
    %v2498 = vld [vmem:[%s0 + $0xca] sm:$0xff]
    %v2499 = vld [vmem:[%s0 + $0xda] sm:$0xff]
    %v2500 = vld [vmem:[%s0 + $0xe2] sm:$0xff]
    %v2501 = vld [vmem:[%s0 + $0xf2] sm:$0xff]
    %v2502 = vld [vmem:[%s0 + $0xfa] sm:$0xff]
    %v2503 = vld [vmem:[%s0 + $0x10a] sm:$0xff]
    %v2504 = vld [vmem:[%s0 + $0x112] sm:$0xff]
    %v2505 = vld [vmem:[%s0 + $0x122] sm:$0xff]
    %v2506 = vld [vmem:[%s0 + $0x12a] sm:$0xff]
    %v2507 = vld [vmem:[%s0 + $0x13a] sm:$0xff]
    %v2508 = vld [vmem:[%s0 + $0x142] sm:$0xff]
    %v2509 = vld [vmem:[%s0 + $0x152] sm:$0xff]
    %v2510 = vld [vmem:[%s0 + $0x15a] sm:$0xff]
    %v2511 = vld [vmem:[%s0 + $0x16a] sm:$0xff]
    %v2512 = vld [vmem:[%s0 + $0x172] sm:$0xff]
    %v2513 = vld [vmem:[%s0 + $0x182] sm:$0xff]
    %v2514 = vld [vmem:[%s0 + $0x18a] sm:$0xff]
    %v2515 = vld [vmem:[%s0 + $0x19a] sm:$0xff]
    %v2516 = vld [vmem:[%s0 + $0x1a2] sm:$0xff]
    %v2517 = vld [vmem:[%s0 + $0x1b2] sm:$0xff]
    %v2518 = vld [vmem:[%s0 + $0x1ba] sm:$0xff]
    %v2519 = vld [vmem:[%s0 + $0x1ca] sm:$0xff]
    %v2520 = vld [vmem:[%s0 + $0x1d2] sm:$0xff]
    %v2521 = vld [vmem:[%s0 + $0x1e2] sm:$0xff]
    %v2522 = vld [vmem:[%s0 + $0x1ea] sm:$0xff]
    %v2523 = vld [vmem:[%s0 + $0x1fa] sm:$0xff]
    %v2524 = vld [vmem:[%s0 + $0x202] sm:$0xff]
    %v2525 = vld [vmem:[%s0 + $0x212] sm:$0xff]
    %v2526 = vld [vmem:[%s0 + $0x21a] sm:$0xff]
    %v2527 = vld [vmem:[%s0 + $0x22a] sm:$0xff]
    %v2528 = vld [vmem:[%s0 + $0x232] sm:$0xff]
    %v2529 = vld [vmem:[%s0 + $0x242] sm:$0xff]
    %v2530 = vld [vmem:[%s0 + $0x24a] sm:$0xff]
    %v2531 = vld [vmem:[%s0 + $0x25a] sm:$0xff]
    %v2532 = vld [vmem:[%s0 + $0x262] sm:$0xff]
    %v2533 = vld [vmem:[%s0 + $0x272] sm:$0xff]
    %v2534 = vld [vmem:[%s0 + $0x27a] sm:$0xff]
    %v2535 = vld [vmem:[%s0 + $0x28a] sm:$0xff]
    %v2536 = vld [vmem:[%s0 + $0x292] sm:$0xff]
    %v2537 = vld [vmem:[%s0 + $0x2a2] sm:$0xff]
    %v2538 = vld [vmem:[%s0 + $0x2aa] sm:$0xff]
    %v2539 = vld [vmem:[%s0 + $0x2ba] sm:$0xff]
    %v2540 = vld [vmem:[%s0 + $0x2c2] sm:$0xff]
    %v2541 = vld [vmem:[%s0 + $0x2d2] sm:$0xff]
    %v2542 = vld [vmem:[%s0 + $0x2da] sm:$0xff]
    %v2543 = vld [vmem:[%s0 + $0x2ea] sm:$0xff]
    %v2544 = vld [vmem:[%s0 + $0x2f2] sm:$0xff]
    %v2545 = vld [vmem:[%s0 + $0x302] sm:$0xff]
    %v2546 = vld [vmem:[%s0 + $0x30a] sm:$0xff]
    %v2547 = vld [vmem:[%s0 + $0x31a] sm:$0xff]
    %v2548 = vld [vmem:[%s0 + $0x322] sm:$0xff]
    %v2549 = vld [vmem:[%s0 + $0x332] sm:$0xff]
    %v2550 = vld [vmem:[%s0 + $0x33a] sm:$0xff]
    %v2551 = vld [vmem:[%s0 + $0x34a] sm:$0xff]
    %v2552 = vld [vmem:[%s0 + $0x352] sm:$0xff]
    %v2553 = vpack.c.bf16 %v2482, %v2481
    %v2554 = vpack.c.bf16 %v2484, %v2483
    %v2555 = vpack.c.bf16 %v2486, %v2485
    %v2556 = vpack.c.bf16 %v2488, %v2487
    %v2557 = vpack.c.bf16 %v2490, %v2489
    %v2558 = vpack.c.bf16 %v2492, %v2491
    %v2559 = vpack.c.bf16 %v2494, %v2493
    %v2560 = vpack.c.bf16 %v2496, %v2495
    %v2561 = vpack.c.bf16 %v2498, %v2497
    %v2562 = vpack.c.bf16 %v2500, %v2499
    %v2563 = vpack.c.bf16 %v2502, %v2501
    %v2564 = vpack.c.bf16 %v2504, %v2503
    %v2565 = vpack.c.bf16 %v2506, %v2505
    %v2566 = vpack.c.bf16 %v2508, %v2507
    %v2567 = vpack.c.bf16 %v2510, %v2509
    %v2568 = vpack.c.bf16 %v2512, %v2511
    %v2569 = vpack.c.bf16 %v2518, %v2517
    %v2570 = vpack.c.bf16 %v2520, %v2519
    %v2571 = vpack.c.bf16 %v2522, %v2521
    %v2572 = vpack.c.bf16 %v2524, %v2523
    %v2573 = vpack.c.bf16 %v2526, %v2525
    %v2574 = vpack.c.bf16 %v2528, %v2527
    %v2575 = vpack.c.bf16 %v2530, %v2529
    %v2576 = vpack.c.bf16 %v2532, %v2531
    %v2577 = vpack.c.bf16 %v2534, %v2533
    %v2578 = vpack.c.bf16 %v2536, %v2535
    %v2579 = vpack.c.bf16 %v2538, %v2537
    %v2580 = vpack.c.bf16 %v2540, %v2539
    %v2581 = vpack.c.bf16 %v2542, %v2541
    %v2582 = vpack.c.bf16 %v2544, %v2543
    %v2583 = vpack.c.bf16 %v2546, %v2545
    %v2584 = vpack.c.bf16 %v2548, %v2547
    %s2585 = scalar_lea.vmem %s1, 4
    %v2586 = vld [vmem:[%s2585] sm:$0x3]
    %v2588 = vsel %vm137, %v2553, 0
    %v2591 = vsel %vm137, %v2554, 0
    %v2594 = vsel %vm137, %v2555, 0
    %v2597 = vsel %vm137, %v2556, 0
    %v2600 = vsel %vm137, %v2557, 0
    %v2603 = vsel %vm137, %v2558, 0
    %v2606 = vsel %vm137, %v2559, 0
    %v2609 = vsel %vm137, %v2560, 0
    %v2612 = vsel %vm137, %v2561, 0
    %v2615 = vsel %vm137, %v2562, 0
    %v2618 = vsel %vm137, %v2563, 0
    %v2621 = vsel %vm137, %v2564, 0
    %v2624 = vsel %vm137, %v2565, 0
    %v2627 = vsel %vm137, %v2566, 0
    %v2630 = vsel %vm137, %v2567, 0
    %v2633 = vsel %vm137, %v2568, 0
    %v2636 = vsel %vm137, %v2569, 0
    %v2639 = vsel %vm137, %v2570, 0
    %v2642 = vsel %vm137, %v2571, 0
    %v2645 = vsel %vm137, %v2572, 0
    %v2648 = vsel %vm137, %v2573, 0
    %v2651 = vsel %vm137, %v2574, 0
    %v2654 = vsel %vm137, %v2575, 0
    %v2657 = vsel %vm137, %v2576, 0
    %v2660 = vsel %vm137, %v2577, 0
    %v2663 = vsel %vm137, %v2578, 0
    %v2666 = vsel %vm137, %v2579, 0
    %v2669 = vsel %vm137, %v2580, 0
    %v2672 = vsel %vm137, %v2581, 0
    %v2675 = vsel %vm137, %v2582, 0
    %v2678 = vsel %vm137, %v2583, 0
    %v2681 = vsel %vm137, %v2584, 0
    %v2684 = vsel %vm234, %v2586, 0
    %2686 = vmatprep.subr.bf16.mxu0 0
    %2687 = vmatpush1.bf16.msra.mxu0 %v2684
    %2688 = vmatprep.subr.bf16.mxu0 0
    %2689 = vmatpush1.bf16.msra.mxu0 0
    %2690 = vmatprep.subr.bf16.mxu0 0
    %2691 = vmatpush1.bf16.msra.mxu0 0
    %2692 = vmatprep.subr.bf16.mxu0 0
    %2693 = vmatpush1.bf16.msra.mxu0 0
    %2694 = vmatprep.subr.bf16.mxu0 0
    %2695 = vmatpush1.bf16.msra.mxu0 0
    %2696 = vmatprep.subr.bf16.mxu0 0
    %2697 = vmatpush1.bf16.msra.mxu0 0
    %2698 = vmatprep.subr.bf16.mxu0 0
    %2699 = vmatpush1.bf16.msra.mxu0 0
    %2700 = vmatprep.subr.bf16.mxu0 0
    %2701 = vmatpush1.bf16.msra.mxu0 0
    %2702 = vmatprep.subr.bf16.mxu0 0
    %2703 = vmatpush1.bf16.msra.mxu0 0
    %2704 = vmatprep.subr.bf16.mxu0 0
    %2705 = vmatpush1.bf16.msra.mxu0 0
    %2706 = vmatprep.subr.bf16.mxu0 0
    %2707 = vmatpush1.bf16.msra.mxu0 0
    %2708 = vmatprep.subr.bf16.mxu0 0
    %2709 = vmatpush1.bf16.msra.mxu0 0
    %2710 = vmatprep.subr.bf16.mxu0 0
    %2711 = vmatpush1.bf16.msra.mxu0 0
    %2712 = vmatprep.subr.bf16.mxu0 0
    %2713 = vmatpush1.bf16.msra.mxu0 0
    %2714 = vmatprep.subr.bf16.mxu0 0
    %2715 = vmatpush1.bf16.msra.mxu0 0
    %2716 = vmatprep.subr.bf16.mxu0 0
    %2717 = vmatpush1.bf16.msra.mxu0 0
    %2718 = vmatprep.mubr.bf16.mxu0 0
    %2719 = vmatmul.mubr.bf16.gmra.mrb[0].mxu0 %v2588
    %v2720 = vpop.f32.mrb[0].mxu0
    %v2721 = vadd.f32 0.0, %v2720
    %v2722 = vpop.f32.mrb[0].mxu0
    %v2723 = vpop.f32.mrb[0].mxu0
    %v2724 = vadd.f32 0.0, %v2723
    %v2725 = vpop.f32.mrb[0].mxu0
    %2726 = vmatprep.mubr.bf16.mxu0 0
    %2727 = vmatmul.mubr.bf16.gmra.mrb[0].mxu0 %v2591
    %v2728 = vpop.f32.mrb[0].mxu0
    %v2729 = vadd.f32 0.0, %v2728
    %v2730 = vpop.f32.mrb[0].mxu0
    %v2731 = vpop.f32.mrb[0].mxu0
    %v2732 = vadd.f32 0.0, %v2731
    %v2733 = vpop.f32.mrb[0].mxu0
    %2734 = vmatprep.mubr.bf16.mxu0 0
    %2735 = vmatmul.mubr.bf16.gmra.mrb[0].mxu0 %v2594
    %v2736 = vpop.f32.mrb[0].mxu0
    %v2737 = vadd.f32 0.0, %v2736
    %v2738 = vpop.f32.mrb[0].mxu0
    %v2739 = vpop.f32.mrb[0].mxu0
    %v2740 = vadd.f32 0.0, %v2739
    %v2741 = vpop.f32.mrb[0].mxu0
    %2742 = vmatprep.mubr.bf16.mxu0 0
    %2743 = vmatmul.mubr.bf16.gmra.mrb[0].mxu0 %v2597
    %v2744 = vpop.f32.mrb[0].mxu0
    %v2745 = vadd.f32 0.0, %v2744
    %v2746 = vpop.f32.mrb[0].mxu0
    %v2747 = vpop.f32.mrb[0].mxu0
    %v2748 = vadd.f32 0.0, %v2747
    %v2749 = vpop.f32.mrb[0].mxu0
    %2750 = vmatprep.mubr.bf16.mxu0 0
    %2751 = vmatmul.mubr.bf16.gmra.mrb[0].mxu0 %v2600
    %v2752 = vpop.f32.mrb[0].mxu0
    %v2753 = vadd.f32 0.0, %v2752
    %v2754 = vpop.f32.mrb[0].mxu0
    %v2755 = vpop.f32.mrb[0].mxu0
    %v2756 = vadd.f32 0.0, %v2755
    %v2757 = vpop.f32.mrb[0].mxu0
    %2758 = vmatprep.mubr.bf16.mxu0 0
    %2759 = vmatmul.mubr.bf16.gmra.mrb[0].mxu0 %v2603
    %v2760 = vpop.f32.mrb[0].mxu0
    %v2761 = vadd.f32 0.0, %v2760
    %v2762 = vpop.f32.mrb[0].mxu0
    %v2763 = vpop.f32.mrb[0].mxu0
    %v2764 = vadd.f32 0.0, %v2763
    %v2765 = vpop.f32.mrb[0].mxu0
    %2766 = vmatprep.mubr.bf16.mxu0 0
    %2767 = vmatmul.mubr.bf16.gmra.mrb[0].mxu0 %v2606
    %v2768 = vpop.f32.mrb[0].mxu0
    %v2769 = vadd.f32 0.0, %v2768
    %v2770 = vpop.f32.mrb[0].mxu0
    %v2771 = vpop.f32.mrb[0].mxu0
    %v2772 = vadd.f32 0.0, %v2771
    %v2773 = vpop.f32.mrb[0].mxu0
    %2774 = vmatprep.mubr.bf16.mxu0 0
    %2775 = vmatmul.mubr.bf16.gmra.mrb[0].mxu0 %v2609
    %v2776 = vpop.f32.mrb[0].mxu0
    %v2777 = vadd.f32 0.0, %v2776
    %v2778 = vpop.f32.mrb[0].mxu0
    %v2779 = vpop.f32.mrb[0].mxu0
    %v2780 = vadd.f32 0.0, %v2779
    %v2781 = vpop.f32.mrb[0].mxu0
    %2782 = vmatprep.mubr.bf16.mxu0 0
    %2783 = vmatmul.mubr.bf16.gmra.mrb[0].mxu0 %v2612
    %v2784 = vpop.f32.mrb[0].mxu0
    %v2785 = vadd.f32 0.0, %v2784
    %v2786 = vpop.f32.mrb[0].mxu0
    %v2787 = vpop.f32.mrb[0].mxu0
    %v2788 = vadd.f32 0.0, %v2787
    %v2789 = vpop.f32.mrb[0].mxu0
    %2790 = vmatprep.mubr.bf16.mxu0 0
    %2791 = vmatmul.mubr.bf16.gmra.mrb[0].mxu0 %v2615
    %v2792 = vpop.f32.mrb[0].mxu0
    %v2793 = vadd.f32 0.0, %v2792
    %v2794 = vpop.f32.mrb[0].mxu0
    %v2795 = vpop.f32.mrb[0].mxu0
    %v2796 = vadd.f32 0.0, %v2795
    %v2797 = vpop.f32.mrb[0].mxu0
    %2798 = vmatprep.mubr.bf16.mxu0 0
    %2799 = vmatmul.mubr.bf16.gmra.mrb[0].mxu0 %v2618
    %v2800 = vpop.f32.mrb[0].mxu0
    %v2801 = vadd.f32 0.0, %v2800
    %v2802 = vpop.f32.mrb[0].mxu0
    %v2803 = vpop.f32.mrb[0].mxu0
    %v2804 = vadd.f32 0.0, %v2803
    %v2805 = vpop.f32.mrb[0].mxu0
    %2806 = vmatprep.mubr.bf16.mxu0 0
    %2807 = vmatmul.mubr.bf16.gmra.mrb[0].mxu0 %v2621
    %v2808 = vpop.f32.mrb[0].mxu0
    %v2809 = vadd.f32 0.0, %v2808
    %v2810 = vpop.f32.mrb[0].mxu0
    %v2811 = vpop.f32.mrb[0].mxu0
    %v2812 = vadd.f32 0.0, %v2811
    %v2813 = vpop.f32.mrb[0].mxu0
    %2814 = vmatprep.mubr.bf16.mxu0 0
    %2815 = vmatmul.mubr.bf16.gmra.mrb[0].mxu0 %v2624
    %v2816 = vpop.f32.mrb[0].mxu0
    %v2817 = vadd.f32 0.0, %v2816
    %v2818 = vpop.f32.mrb[0].mxu0
    %v2819 = vpop.f32.mrb[0].mxu0
    %v2820 = vadd.f32 0.0, %v2819
    %v2821 = vpop.f32.mrb[0].mxu0
    %2822 = vmatprep.mubr.bf16.mxu0 0
    %2823 = vmatmul.mubr.bf16.gmra.mrb[0].mxu0 %v2627
    %v2824 = vpop.f32.mrb[0].mxu0
    %v2825 = vadd.f32 0.0, %v2824
    %v2826 = vpop.f32.mrb[0].mxu0
    %v2827 = vpop.f32.mrb[0].mxu0
    %v2828 = vadd.f32 0.0, %v2827
    %v2829 = vpop.f32.mrb[0].mxu0
    %2830 = vmatprep.mubr.bf16.mxu0 0
    %2831 = vmatmul.mubr.bf16.gmra.mrb[0].mxu0 %v2630
    %v2832 = vpop.f32.mrb[0].mxu0
    %v2833 = vadd.f32 0.0, %v2832
    %v2834 = vpop.f32.mrb[0].mxu0
    %v2835 = vpop.f32.mrb[0].mxu0
    %v2836 = vadd.f32 0.0, %v2835
    %v2837 = vpop.f32.mrb[0].mxu0
    %2838 = vmatprep.mubr.bf16.mxu0 0
    %2839 = vmatmul.mubr.bf16.gmra.mrb[0].mxu0 %v2633
    %v2840 = vpop.f32.mrb[0].mxu0
    %v2841 = vadd.f32 0.0, %v2840
    %v2842 = vpop.f32.mrb[0].mxu0
    %v2843 = vpop.f32.mrb[0].mxu0
    %v2844 = vadd.f32 0.0, %v2843
    %v2845 = vpop.f32.mrb[0].mxu0
    %2846 = vmatprep.mubr.bf16.mxu0 0
    %2847 = vmatmul.mubr.bf16.gmra.mrb[0].mxu0 %v2636
    %v2848 = vpop.f32.mrb[0].mxu0
    %v2849 = vadd.f32 0.0, %v2848
    %v2850 = vpop.f32.mrb[0].mxu0
    %v2851 = vpop.f32.mrb[0].mxu0
    %v2852 = vadd.f32 0.0, %v2851
    %v2853 = vpop.f32.mrb[0].mxu0
    %2854 = vmatprep.mubr.bf16.mxu0 0
    %2855 = vmatmul.mubr.bf16.gmra.mrb[0].mxu0 %v2639
    %v2856 = vpop.f32.mrb[0].mxu0
    %v2857 = vadd.f32 0.0, %v2856
    %v2858 = vpop.f32.mrb[0].mxu0
    %v2859 = vpop.f32.mrb[0].mxu0
    %v2860 = vadd.f32 0.0, %v2859
    %v2861 = vpop.f32.mrb[0].mxu0
    %2862 = vmatprep.mubr.bf16.mxu0 0
    %2863 = vmatmul.mubr.bf16.gmra.mrb[0].mxu0 %v2642
    %v2864 = vpop.f32.mrb[0].mxu0
    %v2865 = vadd.f32 0.0, %v2864
    %v2866 = vpop.f32.mrb[0].mxu0
    %v2867 = vpop.f32.mrb[0].mxu0
    %v2868 = vadd.f32 0.0, %v2867
    %v2869 = vpop.f32.mrb[0].mxu0
    %2870 = vmatprep.mubr.bf16.mxu0 0
    %2871 = vmatmul.mubr.bf16.gmra.mrb[0].mxu0 %v2645
    %v2872 = vpop.f32.mrb[0].mxu0
    %v2873 = vadd.f32 0.0, %v2872
    %v2874 = vpop.f32.mrb[0].mxu0
    %v2875 = vpop.f32.mrb[0].mxu0
    %v2876 = vadd.f32 0.0, %v2875
    %v2877 = vpop.f32.mrb[0].mxu0
    %2878 = vmatprep.mubr.bf16.mxu0 0
    %2879 = vmatmul.mubr.bf16.gmra.mrb[0].mxu0 %v2648
    %v2880 = vpop.f32.mrb[0].mxu0
    %v2881 = vadd.f32 0.0, %v2880
    %v2882 = vpop.f32.mrb[0].mxu0
    %v2883 = vpop.f32.mrb[0].mxu0
    %v2884 = vadd.f32 0.0, %v2883
    %v2885 = vpop.f32.mrb[0].mxu0
    %2886 = vmatprep.mubr.bf16.mxu0 0
    %2887 = vmatmul.mubr.bf16.gmra.mrb[0].mxu0 %v2651
    %v2888 = vpop.f32.mrb[0].mxu0
    %v2889 = vadd.f32 0.0, %v2888
    %v2890 = vpop.f32.mrb[0].mxu0
    %v2891 = vpop.f32.mrb[0].mxu0
    %v2892 = vadd.f32 0.0, %v2891
    %v2893 = vpop.f32.mrb[0].mxu0
    %2894 = vmatprep.mubr.bf16.mxu0 0
    %2895 = vmatmul.mubr.bf16.gmra.mrb[0].mxu0 %v2654
    %v2896 = vpop.f32.mrb[0].mxu0
    %v2897 = vadd.f32 0.0, %v2896
    %v2898 = vpop.f32.mrb[0].mxu0
    %v2899 = vpop.f32.mrb[0].mxu0
    %v2900 = vadd.f32 0.0, %v2899
    %v2901 = vpop.f32.mrb[0].mxu0
    %2902 = vmatprep.mubr.bf16.mxu0 0
    %2903 = vmatmul.mubr.bf16.gmra.mrb[0].mxu0 %v2657
    %v2904 = vpop.f32.mrb[0].mxu0
    %v2905 = vadd.f32 0.0, %v2904
    %v2906 = vpop.f32.mrb[0].mxu0
    %v2907 = vpop.f32.mrb[0].mxu0
    %v2908 = vadd.f32 0.0, %v2907
    %v2909 = vpop.f32.mrb[0].mxu0
    %2910 = vmatprep.mubr.bf16.mxu0 0
    %2911 = vmatmul.mubr.bf16.gmra.mrb[0].mxu0 %v2660
    %v2912 = vpop.f32.mrb[0].mxu0
    %v2913 = vadd.f32 0.0, %v2912
    %v2914 = vpop.f32.mrb[0].mxu0
    %v2915 = vpop.f32.mrb[0].mxu0
    %v2916 = vadd.f32 0.0, %v2915
    %v2917 = vpop.f32.mrb[0].mxu0
    %2918 = vmatprep.mubr.bf16.mxu0 0
    %2919 = vmatmul.mubr.bf16.gmra.mrb[0].mxu0 %v2663
    %v2920 = vpop.f32.mrb[0].mxu0
    %v2921 = vadd.f32 0.0, %v2920
    %v2922 = vpop.f32.mrb[0].mxu0
    %v2923 = vpop.f32.mrb[0].mxu0
    %v2924 = vadd.f32 0.0, %v2923
    %v2925 = vpop.f32.mrb[0].mxu0
    %2926 = vmatprep.mubr.bf16.mxu0 0
    %2927 = vmatmul.mubr.bf16.gmra.mrb[0].mxu0 %v2666
    %v2928 = vpop.f32.mrb[0].mxu0
    %v2929 = vadd.f32 0.0, %v2928
    %v2930 = vpop.f32.mrb[0].mxu0
    %v2931 = vpop.f32.mrb[0].mxu0
    %v2932 = vadd.f32 0.0, %v2931
    %v2933 = vpop.f32.mrb[0].mxu0
    %2934 = vmatprep.mubr.bf16.mxu0 0
    %2935 = vmatmul.mubr.bf16.gmra.mrb[0].mxu0 %v2669
    %v2936 = vpop.f32.mrb[0].mxu0
    %v2937 = vadd.f32 0.0, %v2936
    %v2938 = vpop.f32.mrb[0].mxu0
    %v2939 = vpop.f32.mrb[0].mxu0
    %v2940 = vadd.f32 0.0, %v2939
    %v2941 = vpop.f32.mrb[0].mxu0
    %2942 = vmatprep.mubr.bf16.mxu0 0
    %2943 = vmatmul.mubr.bf16.gmra.mrb[0].mxu0 %v2672
    %v2944 = vpop.f32.mrb[0].mxu0
    %v2945 = vadd.f32 0.0, %v2944
    %v2946 = vpop.f32.mrb[0].mxu0
    %v2947 = vpop.f32.mrb[0].mxu0
    %v2948 = vadd.f32 0.0, %v2947
    %v2949 = vpop.f32.mrb[0].mxu0
    %2950 = vmatprep.mubr.bf16.mxu0 0
    %2951 = vmatmul.mubr.bf16.gmra.mrb[0].mxu0 %v2675
    %v2952 = vpop.f32.mrb[0].mxu0
    %v2953 = vadd.f32 0.0, %v2952
    %v2954 = vpop.f32.mrb[0].mxu0
    %v2955 = vpop.f32.mrb[0].mxu0
    %v2956 = vadd.f32 0.0, %v2955
    %v2957 = vpop.f32.mrb[0].mxu0
    %2958 = vmatprep.mubr.bf16.mxu0 0
    %2959 = vmatmul.mubr.bf16.gmra.mrb[0].mxu0 %v2678
    %v2960 = vpop.f32.mrb[0].mxu0
    %v2961 = vadd.f32 0.0, %v2960
    %v2962 = vpop.f32.mrb[0].mxu0
    %v2963 = vpop.f32.mrb[0].mxu0
    %v2964 = vadd.f32 0.0, %v2963
    %v2965 = vpop.f32.mrb[0].mxu0
    %2966 = vmatprep.mubr.bf16.mxu0 0
    %2967 = vmatmul.mubr.bf16.gmra.mrb[0].mxu0 %v2681
    %v2968 = vpop.f32.mrb[0].mxu0
    %v2969 = vadd.f32 0.0, %v2968
    %v2970 = vpop.f32.mrb[0].mxu0
    %v2971 = vpop.f32.mrb[0].mxu0
    %v2972 = vadd.f32 0.0, %v2971
    %v2973 = vpop.f32.mrb[0].mxu0
    %2974 = vdwg.mxu0
    %v2975 = vadd.f32 %v2417, %v2721
    %v2976 = vadd.f32 %v2418, %v2724
    %v2977 = vadd.f32 %v2419, %v2729
    %v2978 = vadd.f32 %v2420, %v2732
    %v2979 = vadd.f32 %v2421, %v2737
    %v2980 = vadd.f32 %v2422, %v2740
    %v2981 = vadd.f32 %v2423, %v2745
    %v2982 = vadd.f32 %v2424, %v2748
    %v2983 = vadd.f32 %v2425, %v2753
    %v2984 = vadd.f32 %v2426, %v2756
    %v2985 = vadd.f32 %v2427, %v2761
    %v2986 = vadd.f32 %v2428, %v2764
    %v2987 = vadd.f32 %v2429, %v2769
    %v2988 = vadd.f32 %v2430, %v2772
    %v2989 = vadd.f32 %v2431, %v2777
    %v2990 = vadd.f32 %v2432, %v2780
    %v2991 = vadd.f32 %v2433, %v2785
    %v2992 = vadd.f32 %v2434, %v2788
    %v2993 = vadd.f32 %v2435, %v2793
    %v2994 = vadd.f32 %v2436, %v2796
    %v2995 = vadd.f32 %v2437, %v2801
    %v2996 = vadd.f32 %v2438, %v2804
    %v2997 = vadd.f32 %v2439, %v2809
    %v2998 = vadd.f32 %v2440, %v2812
    %v2999 = vadd.f32 %v2441, %v2817
    %v3000 = vadd.f32 %v2442, %v2820
    %v3001 = vadd.f32 %v2443, %v2825
    %v3002 = vadd.f32 %v2444, %v2828
    %v3003 = vadd.f32 %v2445, %v2833
    %v3004 = vadd.f32 %v2446, %v2836
    %v3005 = vadd.f32 %v2447, %v2841
    %v3006 = vadd.f32 %v2448, %v2844
    %v3007 = vadd.f32 %v2449, %v2849
    %v3008 = vadd.f32 %v2450, %v2852
    %v3009 = vadd.f32 %v2451, %v2857
    %v3010 = vadd.f32 %v2452, %v2860
    %v3011 = vadd.f32 %v2453, %v2865
    %v3012 = vadd.f32 %v2454, %v2868
    %v3013 = vadd.f32 %v2455, %v2873
    %v3014 = vadd.f32 %v2456, %v2876
    %v3015 = vadd.f32 %v2457, %v2881
    %v3016 = vadd.f32 %v2458, %v2884
    %v3017 = vadd.f32 %v2459, %v2889
    %v3018 = vadd.f32 %v2460, %v2892
    %v3019 = vadd.f32 %v2461, %v2897
    %v3020 = vadd.f32 %v2462, %v2900
    %v3021 = vadd.f32 %v2463, %v2905
    %v3022 = vadd.f32 %v2464, %v2908
    %v3023 = vadd.f32 %v2465, %v2913
    %v3024 = vadd.f32 %v2466, %v2916
    %v3025 = vadd.f32 %v2467, %v2921
    %v3026 = vadd.f32 %v2468, %v2924
    %v3027 = vadd.f32 %v2469, %v2929
    %v3028 = vadd.f32 %v2470, %v2932
    %v3029 = vadd.f32 %v2471, %v2937
    %v3030 = vadd.f32 %v2472, %v2940
    %v3031 = vadd.f32 %v2473, %v2945
    %v3032 = vadd.f32 %v2474, %v2948
    %v3033 = vadd.f32 %v2475, %v2953
    %v3034 = vadd.f32 %v2476, %v2956
    %v3035 = vadd.f32 %v2477, %v2961
    %v3036 = vadd.f32 %v2478, %v2964
    %v3037 = vadd.f32 %v2479, %v2969
    %v3038 = vadd.f32 %v2480, %v2972
    %v3039 = vpack.c.bf16 %v2514, %v2513
    %v3040 = vpack.c.bf16 %v2550, %v2549
    %s3041 = scalar_lea.vmem %s1, 10
    %v3042 = vld [vmem:[%s3041] sm:$0x3]
    %v3044 = vsel %vm137, %v3039, 0
    %v3047 = vsel %vm137, %v3040, 0
    %v3050 = vsel %vm234, %v3042, 0
    %3052 = vmatprep.subr.bf16.mxu0 0
    %3053 = vmatpush1.bf16.msra.mxu0 %v3050
    %3054 = vmatprep.subr.bf16.mxu0 0
    %3055 = vmatpush1.bf16.msra.mxu0 0
    %3056 = vmatprep.subr.bf16.mxu0 0
    %3057 = vmatpush1.bf16.msra.mxu0 0
    %3058 = vmatprep.subr.bf16.mxu0 0
    %3059 = vmatpush1.bf16.msra.mxu0 0
    %3060 = vmatprep.subr.bf16.mxu0 0
    %3061 = vmatpush1.bf16.msra.mxu0 0
    %3062 = vmatprep.subr.bf16.mxu0 0
    %3063 = vmatpush1.bf16.msra.mxu0 0
    %3064 = vmatprep.subr.bf16.mxu0 0
    %3065 = vmatpush1.bf16.msra.mxu0 0
    %3066 = vmatprep.subr.bf16.mxu0 0
    %3067 = vmatpush1.bf16.msra.mxu0 0
    %3068 = vmatprep.subr.bf16.mxu0 0
    %3069 = vmatpush1.bf16.msra.mxu0 0
    %3070 = vmatprep.subr.bf16.mxu0 0
    %3071 = vmatpush1.bf16.msra.mxu0 0
    %3072 = vmatprep.subr.bf16.mxu0 0
    %3073 = vmatpush1.bf16.msra.mxu0 0
    %3074 = vmatprep.subr.bf16.mxu0 0
    %3075 = vmatpush1.bf16.msra.mxu0 0
    %3076 = vmatprep.subr.bf16.mxu0 0
    %3077 = vmatpush1.bf16.msra.mxu0 0
    %3078 = vmatprep.subr.bf16.mxu0 0
    %3079 = vmatpush1.bf16.msra.mxu0 0
    %3080 = vmatprep.subr.bf16.mxu0 0
    %3081 = vmatpush1.bf16.msra.mxu0 0
    %3082 = vmatprep.subr.bf16.mxu0 0
    %3083 = vmatpush1.bf16.msra.mxu0 0
    %3084 = vmatprep.mubr.bf16.mxu0 0
    %3085 = vmatmul.mubr.bf16.gmra.mrb[0].mxu0 %v2591
    %v3086 = vpop.f32.mrb[0].mxu0
    %v3087 = vadd.f32 0.0, %v3086
    %v3088 = vpop.f32.mrb[0].mxu0
    %v3089 = vpop.f32.mrb[0].mxu0
    %v3090 = vadd.f32 0.0, %v3089
    %v3091 = vpop.f32.mrb[0].mxu0
    %3092 = vmatprep.mubr.bf16.mxu0 0
    %3093 = vmatmul.mubr.bf16.gmra.mrb[0].mxu0 %v2594
    %v3094 = vpop.f32.mrb[0].mxu0
    %v3095 = vadd.f32 0.0, %v3094
    %v3096 = vpop.f32.mrb[0].mxu0
    %v3097 = vpop.f32.mrb[0].mxu0
    %v3098 = vadd.f32 0.0, %v3097
    %v3099 = vpop.f32.mrb[0].mxu0
    %3100 = vmatprep.mubr.bf16.mxu0 0
    %3101 = vmatmul.mubr.bf16.gmra.mrb[0].mxu0 %v2597
    %v3102 = vpop.f32.mrb[0].mxu0
    %v3103 = vadd.f32 0.0, %v3102
    %v3104 = vpop.f32.mrb[0].mxu0
    %v3105 = vpop.f32.mrb[0].mxu0
    %v3106 = vadd.f32 0.0, %v3105
    %v3107 = vpop.f32.mrb[0].mxu0
    %3108 = vmatprep.mubr.bf16.mxu0 0
    %3109 = vmatmul.mubr.bf16.gmra.mrb[0].mxu0 %v2600
    %v3110 = vpop.f32.mrb[0].mxu0
    %v3111 = vadd.f32 0.0, %v3110
    %v3112 = vpop.f32.mrb[0].mxu0
    %v3113 = vpop.f32.mrb[0].mxu0
    %v3114 = vadd.f32 0.0, %v3113
    %v3115 = vpop.f32.mrb[0].mxu0
    %3116 = vmatprep.mubr.bf16.mxu0 0
    %3117 = vmatmul.mubr.bf16.gmra.mrb[0].mxu0 %v2603
    %v3118 = vpop.f32.mrb[0].mxu0
    %v3119 = vadd.f32 0.0, %v3118
    %v3120 = vpop.f32.mrb[0].mxu0
    %v3121 = vpop.f32.mrb[0].mxu0
    %v3122 = vadd.f32 0.0, %v3121
    %v3123 = vpop.f32.mrb[0].mxu0
    %3124 = vmatprep.mubr.bf16.mxu0 0
    %3125 = vmatmul.mubr.bf16.gmra.mrb[0].mxu0 %v2606
    %v3126 = vpop.f32.mrb[0].mxu0
    %v3127 = vadd.f32 0.0, %v3126
    %v3128 = vpop.f32.mrb[0].mxu0
    %v3129 = vpop.f32.mrb[0].mxu0
    %v3130 = vadd.f32 0.0, %v3129
    %v3131 = vpop.f32.mrb[0].mxu0
    %3132 = vmatprep.mubr.bf16.mxu0 0
    %3133 = vmatmul.mubr.bf16.gmra.mrb[0].mxu0 %v2609
    %v3134 = vpop.f32.mrb[0].mxu0
    %v3135 = vadd.f32 0.0, %v3134
    %v3136 = vpop.f32.mrb[0].mxu0
    %v3137 = vpop.f32.mrb[0].mxu0
    %v3138 = vadd.f32 0.0, %v3137
    %v3139 = vpop.f32.mrb[0].mxu0
    %3140 = vmatprep.mubr.bf16.mxu0 0
    %3141 = vmatmul.mubr.bf16.gmra.mrb[0].mxu0 %v2612
    %v3142 = vpop.f32.mrb[0].mxu0
    %v3143 = vadd.f32 0.0, %v3142
    %v3144 = vpop.f32.mrb[0].mxu0
    %v3145 = vpop.f32.mrb[0].mxu0
    %v3146 = vadd.f32 0.0, %v3145
    %v3147 = vpop.f32.mrb[0].mxu0
    %3148 = vmatprep.mubr.bf16.mxu0 0
    %3149 = vmatmul.mubr.bf16.gmra.mrb[0].mxu0 %v2615
    %v3150 = vpop.f32.mrb[0].mxu0
    %v3151 = vadd.f32 0.0, %v3150
    %v3152 = vpop.f32.mrb[0].mxu0
    %v3153 = vpop.f32.mrb[0].mxu0
    %v3154 = vadd.f32 0.0, %v3153
    %v3155 = vpop.f32.mrb[0].mxu0
    %3156 = vmatprep.mubr.bf16.mxu0 0
    %3157 = vmatmul.mubr.bf16.gmra.mrb[0].mxu0 %v2618
    %v3158 = vpop.f32.mrb[0].mxu0
    %v3159 = vadd.f32 0.0, %v3158
    %v3160 = vpop.f32.mrb[0].mxu0
    %v3161 = vpop.f32.mrb[0].mxu0
    %v3162 = vadd.f32 0.0, %v3161
    %v3163 = vpop.f32.mrb[0].mxu0
    %3164 = vmatprep.mubr.bf16.mxu0 0
    %3165 = vmatmul.mubr.bf16.gmra.mrb[0].mxu0 %v2621
    %v3166 = vpop.f32.mrb[0].mxu0
    %v3167 = vadd.f32 0.0, %v3166
    %v3168 = vpop.f32.mrb[0].mxu0
    %v3169 = vpop.f32.mrb[0].mxu0
    %v3170 = vadd.f32 0.0, %v3169
    %v3171 = vpop.f32.mrb[0].mxu0
    %3172 = vmatprep.mubr.bf16.mxu0 0
    %3173 = vmatmul.mubr.bf16.gmra.mrb[0].mxu0 %v2624
    %v3174 = vpop.f32.mrb[0].mxu0
    %v3175 = vadd.f32 0.0, %v3174
    %v3176 = vpop.f32.mrb[0].mxu0
    %v3177 = vpop.f32.mrb[0].mxu0
    %v3178 = vadd.f32 0.0, %v3177
    %v3179 = vpop.f32.mrb[0].mxu0
    %3180 = vmatprep.mubr.bf16.mxu0 0
    %3181 = vmatmul.mubr.bf16.gmra.mrb[0].mxu0 %v2627
    %v3182 = vpop.f32.mrb[0].mxu0
    %v3183 = vadd.f32 0.0, %v3182
    %v3184 = vpop.f32.mrb[0].mxu0
    %v3185 = vpop.f32.mrb[0].mxu0
    %v3186 = vadd.f32 0.0, %v3185
    %v3187 = vpop.f32.mrb[0].mxu0
    %3188 = vmatprep.mubr.bf16.mxu0 0
    %3189 = vmatmul.mubr.bf16.gmra.mrb[0].mxu0 %v2630
    %v3190 = vpop.f32.mrb[0].mxu0
    %v3191 = vadd.f32 0.0, %v3190
    %v3192 = vpop.f32.mrb[0].mxu0
    %v3193 = vpop.f32.mrb[0].mxu0
    %v3194 = vadd.f32 0.0, %v3193
    %v3195 = vpop.f32.mrb[0].mxu0
    %3196 = vmatprep.mubr.bf16.mxu0 0
    %3197 = vmatmul.mubr.bf16.gmra.mrb[0].mxu0 %v2633
    %v3198 = vpop.f32.mrb[0].mxu0
    %v3199 = vadd.f32 0.0, %v3198
    %v3200 = vpop.f32.mrb[0].mxu0
    %v3201 = vpop.f32.mrb[0].mxu0
    %v3202 = vadd.f32 0.0, %v3201
    %v3203 = vpop.f32.mrb[0].mxu0
    %3204 = vmatprep.mubr.bf16.mxu0 0
    %3205 = vmatmul.mubr.bf16.gmra.mrb[0].mxu0 %v3044
    %v3206 = vpop.f32.mrb[0].mxu0
    %v3207 = vadd.f32 0.0, %v3206
    %v3208 = vpop.f32.mrb[0].mxu0
    %v3209 = vpop.f32.mrb[0].mxu0
    %v3210 = vadd.f32 0.0, %v3209
    %v3211 = vpop.f32.mrb[0].mxu0
    %3212 = vmatprep.mubr.bf16.mxu0 0
    %3213 = vmatmul.mubr.bf16.gmra.mrb[0].mxu0 %v2639
    %v3214 = vpop.f32.mrb[0].mxu0
    %v3215 = vadd.f32 0.0, %v3214
    %v3216 = vpop.f32.mrb[0].mxu0
    %v3217 = vpop.f32.mrb[0].mxu0
    %v3218 = vadd.f32 0.0, %v3217
    %v3219 = vpop.f32.mrb[0].mxu0
    %3220 = vmatprep.mubr.bf16.mxu0 0
    %3221 = vmatmul.mubr.bf16.gmra.mrb[0].mxu0 %v2642
    %v3222 = vpop.f32.mrb[0].mxu0
    %v3223 = vadd.f32 0.0, %v3222
    %v3224 = vpop.f32.mrb[0].mxu0
    %v3225 = vpop.f32.mrb[0].mxu0
    %v3226 = vadd.f32 0.0, %v3225
    %v3227 = vpop.f32.mrb[0].mxu0
    %3228 = vmatprep.mubr.bf16.mxu0 0
    %3229 = vmatmul.mubr.bf16.gmra.mrb[0].mxu0 %v2645
    %v3230 = vpop.f32.mrb[0].mxu0
    %v3231 = vadd.f32 0.0, %v3230
    %v3232 = vpop.f32.mrb[0].mxu0
    %v3233 = vpop.f32.mrb[0].mxu0
    %v3234 = vadd.f32 0.0, %v3233
    %v3235 = vpop.f32.mrb[0].mxu0
    %3236 = vmatprep.mubr.bf16.mxu0 0
    %3237 = vmatmul.mubr.bf16.gmra.mrb[0].mxu0 %v2648
    %v3238 = vpop.f32.mrb[0].mxu0
    %v3239 = vadd.f32 0.0, %v3238
    %v3240 = vpop.f32.mrb[0].mxu0
    %v3241 = vpop.f32.mrb[0].mxu0
    %v3242 = vadd.f32 0.0, %v3241
    %v3243 = vpop.f32.mrb[0].mxu0
    %3244 = vmatprep.mubr.bf16.mxu0 0
    %3245 = vmatmul.mubr.bf16.gmra.mrb[0].mxu0 %v2651
    %v3246 = vpop.f32.mrb[0].mxu0
    %v3247 = vadd.f32 0.0, %v3246
    %v3248 = vpop.f32.mrb[0].mxu0
    %v3249 = vpop.f32.mrb[0].mxu0
    %v3250 = vadd.f32 0.0, %v3249
    %v3251 = vpop.f32.mrb[0].mxu0
    %3252 = vmatprep.mubr.bf16.mxu0 0
    %3253 = vmatmul.mubr.bf16.gmra.mrb[0].mxu0 %v2654
    %v3254 = vpop.f32.mrb[0].mxu0
    %v3255 = vadd.f32 0.0, %v3254
    %v3256 = vpop.f32.mrb[0].mxu0
    %v3257 = vpop.f32.mrb[0].mxu0
    %v3258 = vadd.f32 0.0, %v3257
    %v3259 = vpop.f32.mrb[0].mxu0
    %3260 = vmatprep.mubr.bf16.mxu0 0
    %3261 = vmatmul.mubr.bf16.gmra.mrb[0].mxu0 %v2657
    %v3262 = vpop.f32.mrb[0].mxu0
    %v3263 = vadd.f32 0.0, %v3262
    %v3264 = vpop.f32.mrb[0].mxu0
    %v3265 = vpop.f32.mrb[0].mxu0
    %v3266 = vadd.f32 0.0, %v3265
    %v3267 = vpop.f32.mrb[0].mxu0
    %3268 = vmatprep.mubr.bf16.mxu0 0
    %3269 = vmatmul.mubr.bf16.gmra.mrb[0].mxu0 %v2660
    %v3270 = vpop.f32.mrb[0].mxu0
    %v3271 = vadd.f32 0.0, %v3270
    %v3272 = vpop.f32.mrb[0].mxu0
    %v3273 = vpop.f32.mrb[0].mxu0
    %v3274 = vadd.f32 0.0, %v3273
    %v3275 = vpop.f32.mrb[0].mxu0
    %3276 = vmatprep.mubr.bf16.mxu0 0
    %3277 = vmatmul.mubr.bf16.gmra.mrb[0].mxu0 %v2663
    %v3278 = vpop.f32.mrb[0].mxu0
    %v3279 = vadd.f32 0.0, %v3278
    %v3280 = vpop.f32.mrb[0].mxu0
    %v3281 = vpop.f32.mrb[0].mxu0
    %v3282 = vadd.f32 0.0, %v3281
    %v3283 = vpop.f32.mrb[0].mxu0
    %3284 = vmatprep.mubr.bf16.mxu0 0
    %3285 = vmatmul.mubr.bf16.gmra.mrb[0].mxu0 %v2666
    %v3286 = vpop.f32.mrb[0].mxu0
    %v3287 = vadd.f32 0.0, %v3286
    %v3288 = vpop.f32.mrb[0].mxu0
    %v3289 = vpop.f32.mrb[0].mxu0
    %v3290 = vadd.f32 0.0, %v3289
    %v3291 = vpop.f32.mrb[0].mxu0
    %3292 = vmatprep.mubr.bf16.mxu0 0
    %3293 = vmatmul.mubr.bf16.gmra.mrb[0].mxu0 %v2669
    %v3294 = vpop.f32.mrb[0].mxu0
    %v3295 = vadd.f32 0.0, %v3294
    %v3296 = vpop.f32.mrb[0].mxu0
    %v3297 = vpop.f32.mrb[0].mxu0
    %v3298 = vadd.f32 0.0, %v3297
    %v3299 = vpop.f32.mrb[0].mxu0
    %3300 = vmatprep.mubr.bf16.mxu0 0
    %3301 = vmatmul.mubr.bf16.gmra.mrb[0].mxu0 %v2672
    %v3302 = vpop.f32.mrb[0].mxu0
    %v3303 = vadd.f32 0.0, %v3302
    %v3304 = vpop.f32.mrb[0].mxu0
    %v3305 = vpop.f32.mrb[0].mxu0
    %v3306 = vadd.f32 0.0, %v3305
    %v3307 = vpop.f32.mrb[0].mxu0
    %3308 = vmatprep.mubr.bf16.mxu0 0
    %3309 = vmatmul.mubr.bf16.gmra.mrb[0].mxu0 %v2675
    %v3310 = vpop.f32.mrb[0].mxu0
    %v3311 = vadd.f32 0.0, %v3310
    %v3312 = vpop.f32.mrb[0].mxu0
    %v3313 = vpop.f32.mrb[0].mxu0
    %v3314 = vadd.f32 0.0, %v3313
    %v3315 = vpop.f32.mrb[0].mxu0
    %3316 = vmatprep.mubr.bf16.mxu0 0
    %3317 = vmatmul.mubr.bf16.gmra.mrb[0].mxu0 %v2678
    %v3318 = vpop.f32.mrb[0].mxu0
    %v3319 = vadd.f32 0.0, %v3318
    %v3320 = vpop.f32.mrb[0].mxu0
    %v3321 = vpop.f32.mrb[0].mxu0
    %v3322 = vadd.f32 0.0, %v3321
    %v3323 = vpop.f32.mrb[0].mxu0
    %3324 = vmatprep.mubr.bf16.mxu0 0
    %3325 = vmatmul.mubr.bf16.gmra.mrb[0].mxu0 %v2681
    %v3326 = vpop.f32.mrb[0].mxu0
    %v3327 = vadd.f32 0.0, %v3326
    %v3328 = vpop.f32.mrb[0].mxu0
    %v3329 = vpop.f32.mrb[0].mxu0
    %v3330 = vadd.f32 0.0, %v3329
    %v3331 = vpop.f32.mrb[0].mxu0
    %3332 = vmatprep.mubr.bf16.mxu0 0
    %3333 = vmatmul.mubr.bf16.gmra.mrb[0].mxu0 %v3047
    %v3334 = vpop.f32.mrb[0].mxu0
    %v3335 = vadd.f32 0.0, %v3334
    %v3336 = vpop.f32.mrb[0].mxu0
    %v3337 = vpop.f32.mrb[0].mxu0
    %v3338 = vadd.f32 0.0, %v3337
    %v3339 = vpop.f32.mrb[0].mxu0
    %3340 = vdwg.mxu0
    %v3341 = vadd.f32 %v2975, %v3087
    %v3342 = vadd.f32 %v2976, %v3090
    %v3343 = vadd.f32 %v2977, %v3095
    %v3344 = vadd.f32 %v2978, %v3098
    %v3345 = vadd.f32 %v2979, %v3103
    %v3346 = vadd.f32 %v2980, %v3106
    %v3347 = vadd.f32 %v2981, %v3111
    %v3348 = vadd.f32 %v2982, %v3114
    %v3349 = vadd.f32 %v2983, %v3119
    %v3350 = vadd.f32 %v2984, %v3122
    %v3351 = vadd.f32 %v2985, %v3127
    %v3352 = vadd.f32 %v2986, %v3130
    %v3353 = vadd.f32 %v2987, %v3135
    %v3354 = vadd.f32 %v2988, %v3138
    %v3355 = vadd.f32 %v2989, %v3143
    %v3356 = vadd.f32 %v2990, %v3146
    %v3357 = vadd.f32 %v2991, %v3151
    %v3358 = vadd.f32 %v2992, %v3154
    %v3359 = vadd.f32 %v2993, %v3159
    %v3360 = vadd.f32 %v2994, %v3162
    %v3361 = vadd.f32 %v2995, %v3167
    %v3362 = vadd.f32 %v2996, %v3170
    %v3363 = vadd.f32 %v2997, %v3175
    %v3364 = vadd.f32 %v2998, %v3178
    %v3365 = vadd.f32 %v2999, %v3183
    %v3366 = vadd.f32 %v3000, %v3186
    %v3367 = vadd.f32 %v3001, %v3191
    %v3368 = vadd.f32 %v3002, %v3194
    %v3369 = vadd.f32 %v3003, %v3199
    %v3370 = vadd.f32 %v3004, %v3202
    %v3371 = vadd.f32 %v3005, %v3207
    %v3372 = vadd.f32 %v3006, %v3210
    %v3373 = vadd.f32 %v3007, %v3215
    %v3374 = vadd.f32 %v3008, %v3218
    %v3375 = vadd.f32 %v3009, %v3223
    %v3376 = vadd.f32 %v3010, %v3226
    %v3377 = vadd.f32 %v3011, %v3231
    %v3378 = vadd.f32 %v3012, %v3234
    %v3379 = vadd.f32 %v3013, %v3239
    %v3380 = vadd.f32 %v3014, %v3242
    %v3381 = vadd.f32 %v3015, %v3247
    %v3382 = vadd.f32 %v3016, %v3250
    %v3383 = vadd.f32 %v3017, %v3255
    %v3384 = vadd.f32 %v3018, %v3258
    %v3385 = vadd.f32 %v3019, %v3263
    %v3386 = vadd.f32 %v3020, %v3266
    %v3387 = vadd.f32 %v3021, %v3271
    %v3388 = vadd.f32 %v3022, %v3274
    %v3389 = vadd.f32 %v3023, %v3279
    %v3390 = vadd.f32 %v3024, %v3282
    %v3391 = vadd.f32 %v3025, %v3287
    %v3392 = vadd.f32 %v3026, %v3290
    %v3393 = vadd.f32 %v3027, %v3295
    %v3394 = vadd.f32 %v3028, %v3298
    %v3395 = vadd.f32 %v3029, %v3303
    %v3396 = vadd.f32 %v3030, %v3306
    %v3397 = vadd.f32 %v3031, %v3311
    %v3398 = vadd.f32 %v3032, %v3314
    %v3399 = vadd.f32 %v3033, %v3319
    %v3400 = vadd.f32 %v3034, %v3322
    %v3401 = vadd.f32 %v3035, %v3327
    %v3402 = vadd.f32 %v3036, %v3330
    %v3403 = vadd.f32 %v3037, %v3335
    %v3404 = vadd.f32 %v3038, %v3338
    %v3405 = vpack.c.bf16 %v2516, %v2515
    %v3406 = vpack.c.bf16 %v2552, %v2551
    %s3407 = scalar_lea.vmem %s1, 16
    %v3408 = vld [vmem:[%s3407] sm:$0x3]
    %v3410 = vsel %vm137, %v3405, 0
    %v3413 = vsel %vm137, %v3406, 0
    %v3416 = vsel %vm234, %v3408, 0
    %3418 = vmatprep.subr.bf16.mxu0 0
    %3419 = vmatpush1.bf16.msra.mxu0 %v3416
    %3420 = vmatprep.subr.bf16.mxu0 0
    %3421 = vmatpush1.bf16.msra.mxu0 0
    %3422 = vmatprep.subr.bf16.mxu0 0
    %3423 = vmatpush1.bf16.msra.mxu0 0
    %3424 = vmatprep.subr.bf16.mxu0 0
    %3425 = vmatpush1.bf16.msra.mxu0 0
    %3426 = vmatprep.subr.bf16.mxu0 0
    %3427 = vmatpush1.bf16.msra.mxu0 0
    %3428 = vmatprep.subr.bf16.mxu0 0
    %3429 = vmatpush1.bf16.msra.mxu0 0
    %3430 = vmatprep.subr.bf16.mxu0 0
    %3431 = vmatpush1.bf16.msra.mxu0 0
    %3432 = vmatprep.subr.bf16.mxu0 0
    %3433 = vmatpush1.bf16.msra.mxu0 0
    %3434 = vmatprep.subr.bf16.mxu0 0
    %3435 = vmatpush1.bf16.msra.mxu0 0
    %3436 = vmatprep.subr.bf16.mxu0 0
    %3437 = vmatpush1.bf16.msra.mxu0 0
    %3438 = vmatprep.subr.bf16.mxu0 0
    %3439 = vmatpush1.bf16.msra.mxu0 0
    %3440 = vmatprep.subr.bf16.mxu0 0
    %3441 = vmatpush1.bf16.msra.mxu0 0
    %3442 = vmatprep.subr.bf16.mxu0 0
    %3443 = vmatpush1.bf16.msra.mxu0 0
    %3444 = vmatprep.subr.bf16.mxu0 0
    %3445 = vmatpush1.bf16.msra.mxu0 0
    %3446 = vmatprep.subr.bf16.mxu0 0
    %3447 = vmatpush1.bf16.msra.mxu0 0
    %3448 = vmatprep.subr.bf16.mxu0 0
    %3449 = vmatpush1.bf16.msra.mxu0 0
    %3450 = vmatprep.mubr.bf16.mxu0 0
    %3451 = vmatmul.mubr.bf16.gmra.mrb[0].mxu0 %v2594
    %v3452 = vpop.f32.mrb[0].mxu0
    %v3453 = vadd.f32 0.0, %v3452
    %v3454 = vpop.f32.mrb[0].mxu0
    %v3455 = vpop.f32.mrb[0].mxu0
    %v3456 = vadd.f32 0.0, %v3455
    %v3457 = vpop.f32.mrb[0].mxu0
    %3458 = vmatprep.mubr.bf16.mxu0 0
    %3459 = vmatmul.mubr.bf16.gmra.mrb[0].mxu0 %v2597
    %v3460 = vpop.f32.mrb[0].mxu0
    %v3461 = vadd.f32 0.0, %v3460
    %v3462 = vpop.f32.mrb[0].mxu0
    %v3463 = vpop.f32.mrb[0].mxu0
    %v3464 = vadd.f32 0.0, %v3463
    %v3465 = vpop.f32.mrb[0].mxu0
    %3466 = vmatprep.mubr.bf16.mxu0 0
    %3467 = vmatmul.mubr.bf16.gmra.mrb[0].mxu0 %v2600
    %v3468 = vpop.f32.mrb[0].mxu0
    %v3469 = vadd.f32 0.0, %v3468
    %v3470 = vpop.f32.mrb[0].mxu0
    %v3471 = vpop.f32.mrb[0].mxu0
    %v3472 = vadd.f32 0.0, %v3471
    %v3473 = vpop.f32.mrb[0].mxu0
    %3474 = vmatprep.mubr.bf16.mxu0 0
    %3475 = vmatmul.mubr.bf16.gmra.mrb[0].mxu0 %v2603
    %v3476 = vpop.f32.mrb[0].mxu0
    %v3477 = vadd.f32 0.0, %v3476
    %v3478 = vpop.f32.mrb[0].mxu0
    %v3479 = vpop.f32.mrb[0].mxu0
    %v3480 = vadd.f32 0.0, %v3479
    %v3481 = vpop.f32.mrb[0].mxu0
    %3482 = vmatprep.mubr.bf16.mxu0 0
    %3483 = vmatmul.mubr.bf16.gmra.mrb[0].mxu0 %v2606
    %v3484 = vpop.f32.mrb[0].mxu0
    %v3485 = vadd.f32 0.0, %v3484
    %v3486 = vpop.f32.mrb[0].mxu0
    %v3487 = vpop.f32.mrb[0].mxu0
    %v3488 = vadd.f32 0.0, %v3487
    %v3489 = vpop.f32.mrb[0].mxu0
    %3490 = vmatprep.mubr.bf16.mxu0 0
    %3491 = vmatmul.mubr.bf16.gmra.mrb[0].mxu0 %v2609
    %v3492 = vpop.f32.mrb[0].mxu0
    %v3493 = vadd.f32 0.0, %v3492
    %v3494 = vpop.f32.mrb[0].mxu0
    %v3495 = vpop.f32.mrb[0].mxu0
    %v3496 = vadd.f32 0.0, %v3495
    %v3497 = vpop.f32.mrb[0].mxu0
    %3498 = vmatprep.mubr.bf16.mxu0 0
    %3499 = vmatmul.mubr.bf16.gmra.mrb[0].mxu0 %v2612
    %v3500 = vpop.f32.mrb[0].mxu0
    %v3501 = vadd.f32 0.0, %v3500
    %v3502 = vpop.f32.mrb[0].mxu0
    %v3503 = vpop.f32.mrb[0].mxu0
    %v3504 = vadd.f32 0.0, %v3503
    %v3505 = vpop.f32.mrb[0].mxu0
    %3506 = vmatprep.mubr.bf16.mxu0 0
    %3507 = vmatmul.mubr.bf16.gmra.mrb[0].mxu0 %v2615
    %v3508 = vpop.f32.mrb[0].mxu0
    %v3509 = vadd.f32 0.0, %v3508
    %v3510 = vpop.f32.mrb[0].mxu0
    %v3511 = vpop.f32.mrb[0].mxu0
    %v3512 = vadd.f32 0.0, %v3511
    %v3513 = vpop.f32.mrb[0].mxu0
    %3514 = vmatprep.mubr.bf16.mxu0 0
    %3515 = vmatmul.mubr.bf16.gmra.mrb[0].mxu0 %v2618
    %v3516 = vpop.f32.mrb[0].mxu0
    %v3517 = vadd.f32 0.0, %v3516
    %v3518 = vpop.f32.mrb[0].mxu0
    %v3519 = vpop.f32.mrb[0].mxu0
    %v3520 = vadd.f32 0.0, %v3519
    %v3521 = vpop.f32.mrb[0].mxu0
    %3522 = vmatprep.mubr.bf16.mxu0 0
    %3523 = vmatmul.mubr.bf16.gmra.mrb[0].mxu0 %v2621
    %v3524 = vpop.f32.mrb[0].mxu0
    %v3525 = vadd.f32 0.0, %v3524
    %v3526 = vpop.f32.mrb[0].mxu0
    %v3527 = vpop.f32.mrb[0].mxu0
    %v3528 = vadd.f32 0.0, %v3527
    %v3529 = vpop.f32.mrb[0].mxu0
    %3530 = vmatprep.mubr.bf16.mxu0 0
    %3531 = vmatmul.mubr.bf16.gmra.mrb[0].mxu0 %v2624
    %v3532 = vpop.f32.mrb[0].mxu0
    %v3533 = vadd.f32 0.0, %v3532
    %v3534 = vpop.f32.mrb[0].mxu0
    %v3535 = vpop.f32.mrb[0].mxu0
    %v3536 = vadd.f32 0.0, %v3535
    %v3537 = vpop.f32.mrb[0].mxu0
    %3538 = vmatprep.mubr.bf16.mxu0 0
    %3539 = vmatmul.mubr.bf16.gmra.mrb[0].mxu0 %v2627
    %v3540 = vpop.f32.mrb[0].mxu0
    %v3541 = vadd.f32 0.0, %v3540
    %v3542 = vpop.f32.mrb[0].mxu0
    %v3543 = vpop.f32.mrb[0].mxu0
    %v3544 = vadd.f32 0.0, %v3543
    %v3545 = vpop.f32.mrb[0].mxu0
    %3546 = vmatprep.mubr.bf16.mxu0 0
    %3547 = vmatmul.mubr.bf16.gmra.mrb[0].mxu0 %v2630
    %v3548 = vpop.f32.mrb[0].mxu0
    %v3549 = vadd.f32 0.0, %v3548
    %v3550 = vpop.f32.mrb[0].mxu0
    %v3551 = vpop.f32.mrb[0].mxu0
    %v3552 = vadd.f32 0.0, %v3551
    %v3553 = vpop.f32.mrb[0].mxu0
    %3554 = vmatprep.mubr.bf16.mxu0 0
    %3555 = vmatmul.mubr.bf16.gmra.mrb[0].mxu0 %v2633
    %v3556 = vpop.f32.mrb[0].mxu0
    %v3557 = vadd.f32 0.0, %v3556
    %v3558 = vpop.f32.mrb[0].mxu0
    %v3559 = vpop.f32.mrb[0].mxu0
    %v3560 = vadd.f32 0.0, %v3559
    %v3561 = vpop.f32.mrb[0].mxu0
    %3562 = vmatprep.mubr.bf16.mxu0 0
    %3563 = vmatmul.mubr.bf16.gmra.mrb[0].mxu0 %v3044
    %v3564 = vpop.f32.mrb[0].mxu0
    %v3565 = vadd.f32 0.0, %v3564
    %v3566 = vpop.f32.mrb[0].mxu0
    %v3567 = vpop.f32.mrb[0].mxu0
    %v3568 = vadd.f32 0.0, %v3567
    %v3569 = vpop.f32.mrb[0].mxu0
    %3570 = vmatprep.mubr.bf16.mxu0 0
    %3571 = vmatmul.mubr.bf16.gmra.mrb[0].mxu0 %v3410
    %v3572 = vpop.f32.mrb[0].mxu0
    %v3573 = vadd.f32 0.0, %v3572
    %v3574 = vpop.f32.mrb[0].mxu0
    %v3575 = vpop.f32.mrb[0].mxu0
    %v3576 = vadd.f32 0.0, %v3575
    %v3577 = vpop.f32.mrb[0].mxu0
    %3578 = vmatprep.mubr.bf16.mxu0 0
    %3579 = vmatmul.mubr.bf16.gmra.mrb[0].mxu0 %v2642
    %v3580 = vpop.f32.mrb[0].mxu0
    %v3581 = vadd.f32 0.0, %v3580
    %v3582 = vpop.f32.mrb[0].mxu0
    %v3583 = vpop.f32.mrb[0].mxu0
    %v3584 = vadd.f32 0.0, %v3583
    %v3585 = vpop.f32.mrb[0].mxu0
    %3586 = vmatprep.mubr.bf16.mxu0 0
    %3587 = vmatmul.mubr.bf16.gmra.mrb[0].mxu0 %v2645
    %v3588 = vpop.f32.mrb[0].mxu0
    %v3589 = vadd.f32 0.0, %v3588
    %v3590 = vpop.f32.mrb[0].mxu0
    %v3591 = vpop.f32.mrb[0].mxu0
    %v3592 = vadd.f32 0.0, %v3591
    %v3593 = vpop.f32.mrb[0].mxu0
    %3594 = vmatprep.mubr.bf16.mxu0 0
    %3595 = vmatmul.mubr.bf16.gmra.mrb[0].mxu0 %v2648
    %v3596 = vpop.f32.mrb[0].mxu0
    %v3597 = vadd.f32 0.0, %v3596
    %v3598 = vpop.f32.mrb[0].mxu0
    %v3599 = vpop.f32.mrb[0].mxu0
    %v3600 = vadd.f32 0.0, %v3599
    %v3601 = vpop.f32.mrb[0].mxu0
    %3602 = vmatprep.mubr.bf16.mxu0 0
    %3603 = vmatmul.mubr.bf16.gmra.mrb[0].mxu0 %v2651
    %v3604 = vpop.f32.mrb[0].mxu0
    %v3605 = vadd.f32 0.0, %v3604
    %v3606 = vpop.f32.mrb[0].mxu0
    %v3607 = vpop.f32.mrb[0].mxu0
    %v3608 = vadd.f32 0.0, %v3607
    %v3609 = vpop.f32.mrb[0].mxu0
    %3610 = vmatprep.mubr.bf16.mxu0 0
    %3611 = vmatmul.mubr.bf16.gmra.mrb[0].mxu0 %v2654
    %v3612 = vpop.f32.mrb[0].mxu0
    %v3613 = vadd.f32 0.0, %v3612
    %v3614 = vpop.f32.mrb[0].mxu0
    %v3615 = vpop.f32.mrb[0].mxu0
    %v3616 = vadd.f32 0.0, %v3615
    %v3617 = vpop.f32.mrb[0].mxu0
    %3618 = vmatprep.mubr.bf16.mxu0 0
    %3619 = vmatmul.mubr.bf16.gmra.mrb[0].mxu0 %v2657
    %v3620 = vpop.f32.mrb[0].mxu0
    %v3621 = vadd.f32 0.0, %v3620
    %v3622 = vpop.f32.mrb[0].mxu0
    %v3623 = vpop.f32.mrb[0].mxu0
    %v3624 = vadd.f32 0.0, %v3623
    %v3625 = vpop.f32.mrb[0].mxu0
    %3626 = vmatprep.mubr.bf16.mxu0 0
    %3627 = vmatmul.mubr.bf16.gmra.mrb[0].mxu0 %v2660
    %v3628 = vpop.f32.mrb[0].mxu0
    %v3629 = vadd.f32 0.0, %v3628
    %v3630 = vpop.f32.mrb[0].mxu0
    %v3631 = vpop.f32.mrb[0].mxu0
    %v3632 = vadd.f32 0.0, %v3631
    %v3633 = vpop.f32.mrb[0].mxu0
    %3634 = vmatprep.mubr.bf16.mxu0 0
    %3635 = vmatmul.mubr.bf16.gmra.mrb[0].mxu0 %v2663
    %v3636 = vpop.f32.mrb[0].mxu0
    %v3637 = vadd.f32 0.0, %v3636
    %v3638 = vpop.f32.mrb[0].mxu0
    %v3639 = vpop.f32.mrb[0].mxu0
    %v3640 = vadd.f32 0.0, %v3639
    %v3641 = vpop.f32.mrb[0].mxu0
    %3642 = vmatprep.mubr.bf16.mxu0 0
    %3643 = vmatmul.mubr.bf16.gmra.mrb[0].mxu0 %v2666
    %v3644 = vpop.f32.mrb[0].mxu0
    %v3645 = vadd.f32 0.0, %v3644
    %v3646 = vpop.f32.mrb[0].mxu0
    %v3647 = vpop.f32.mrb[0].mxu0
    %v3648 = vadd.f32 0.0, %v3647
    %v3649 = vpop.f32.mrb[0].mxu0
    %3650 = vmatprep.mubr.bf16.mxu0 0
    %3651 = vmatmul.mubr.bf16.gmra.mrb[0].mxu0 %v2669
    %v3652 = vpop.f32.mrb[0].mxu0
    %v3653 = vadd.f32 0.0, %v3652
    %v3654 = vpop.f32.mrb[0].mxu0
    %v3655 = vpop.f32.mrb[0].mxu0
    %v3656 = vadd.f32 0.0, %v3655
    %v3657 = vpop.f32.mrb[0].mxu0
    %3658 = vmatprep.mubr.bf16.mxu0 0
    %3659 = vmatmul.mubr.bf16.gmra.mrb[0].mxu0 %v2672
    %v3660 = vpop.f32.mrb[0].mxu0
    %v3661 = vadd.f32 0.0, %v3660
    %v3662 = vpop.f32.mrb[0].mxu0
    %v3663 = vpop.f32.mrb[0].mxu0
    %v3664 = vadd.f32 0.0, %v3663
    %v3665 = vpop.f32.mrb[0].mxu0
    %3666 = vmatprep.mubr.bf16.mxu0 0
    %3667 = vmatmul.mubr.bf16.gmra.mrb[0].mxu0 %v2675
    %v3668 = vpop.f32.mrb[0].mxu0
    %v3669 = vadd.f32 0.0, %v3668
    %v3670 = vpop.f32.mrb[0].mxu0
    %v3671 = vpop.f32.mrb[0].mxu0
    %v3672 = vadd.f32 0.0, %v3671
    %v3673 = vpop.f32.mrb[0].mxu0
    %3674 = vmatprep.mubr.bf16.mxu0 0
    %3675 = vmatmul.mubr.bf16.gmra.mrb[0].mxu0 %v2678
    %v3676 = vpop.f32.mrb[0].mxu0
    %v3677 = vadd.f32 0.0, %v3676
    %v3678 = vpop.f32.mrb[0].mxu0
    %v3679 = vpop.f32.mrb[0].mxu0
    %v3680 = vadd.f32 0.0, %v3679
    %v3681 = vpop.f32.mrb[0].mxu0
    %3682 = vmatprep.mubr.bf16.mxu0 0
    %3683 = vmatmul.mubr.bf16.gmra.mrb[0].mxu0 %v2681
    %v3684 = vpop.f32.mrb[0].mxu0
    %v3685 = vadd.f32 0.0, %v3684
    %v3686 = vpop.f32.mrb[0].mxu0
    %v3687 = vpop.f32.mrb[0].mxu0
    %v3688 = vadd.f32 0.0, %v3687
    %v3689 = vpop.f32.mrb[0].mxu0
    %3690 = vmatprep.mubr.bf16.mxu0 0
    %3691 = vmatmul.mubr.bf16.gmra.mrb[0].mxu0 %v3047
    %v3692 = vpop.f32.mrb[0].mxu0
    %v3693 = vadd.f32 0.0, %v3692
    %v3694 = vpop.f32.mrb[0].mxu0
    %v3695 = vpop.f32.mrb[0].mxu0
    %v3696 = vadd.f32 0.0, %v3695
    %v3697 = vpop.f32.mrb[0].mxu0
    %3698 = vmatprep.mubr.bf16.mxu0 0
    %3699 = vmatmul.mubr.bf16.gmra.mrb[0].mxu0 %v3413
    %v3700 = vpop.f32.mrb[0].mxu0
    %v3701 = vadd.f32 0.0, %v3700
    %v3702 = vpop.f32.mrb[0].mxu0
    %v3703 = vpop.f32.mrb[0].mxu0
    %v3704 = vadd.f32 0.0, %v3703
    %v3705 = vpop.f32.mrb[0].mxu0
    %3706 = vdwg.mxu0
    %v3707 = vadd.f32 %v3341, %v3453
    %v3708 = vadd.f32 %v3342, %v3456
    %v3709 = vadd.f32 %v3343, %v3461
    %v3710 = vadd.f32 %v3344, %v3464
    %v3711 = vadd.f32 %v3345, %v3469
    %v3712 = vadd.f32 %v3346, %v3472
    %v3713 = vadd.f32 %v3347, %v3477
    %v3714 = vadd.f32 %v3348, %v3480
    %v3715 = vadd.f32 %v3349, %v3485
    %v3716 = vadd.f32 %v3350, %v3488
    %v3717 = vadd.f32 %v3351, %v3493
    %v3718 = vadd.f32 %v3352, %v3496
    %v3719 = vadd.f32 %v3353, %v3501
    %v3720 = vadd.f32 %v3354, %v3504
    %v3721 = vadd.f32 %v3355, %v3509
    %v3722 = vadd.f32 %v3356, %v3512
    %v3723 = vadd.f32 %v3357, %v3517
    %v3724 = vadd.f32 %v3358, %v3520
    %v3725 = vadd.f32 %v3359, %v3525
    %v3726 = vadd.f32 %v3360, %v3528
    %v3727 = vadd.f32 %v3361, %v3533
    %v3728 = vadd.f32 %v3362, %v3536
    %v3729 = vadd.f32 %v3363, %v3541
    %v3730 = vadd.f32 %v3364, %v3544
    %v3731 = vadd.f32 %v3365, %v3549
    %v3732 = vadd.f32 %v3366, %v3552
    %v3733 = vadd.f32 %v3367, %v3557
    %v3734 = vadd.f32 %v3368, %v3560
    %v3735 = vadd.f32 %v3369, %v3565
    %v3736 = vadd.f32 %v3370, %v3568
    %v3737 = vadd.f32 %v3371, %v3573
    %v3738 = vadd.f32 %v3372, %v3576
    %v3739 = vadd.f32 %v3373, %v3581
    %v3740 = vadd.f32 %v3374, %v3584
    %v3741 = vadd.f32 %v3375, %v3589
    %v3742 = vadd.f32 %v3376, %v3592
    %v3743 = vadd.f32 %v3377, %v3597
    %v3744 = vadd.f32 %v3378, %v3600
    %v3745 = vadd.f32 %v3379, %v3605
    %v3746 = vadd.f32 %v3380, %v3608
    %v3747 = vadd.f32 %v3381, %v3613
    %v3748 = vadd.f32 %v3382, %v3616
    %v3749 = vadd.f32 %v3383, %v3621
    %v3750 = vadd.f32 %v3384, %v3624
    %v3751 = vadd.f32 %v3385, %v3629
    %v3752 = vadd.f32 %v3386, %v3632
    %v3753 = vadd.f32 %v3387, %v3637
    %v3754 = vadd.f32 %v3388, %v3640
    %v3755 = vadd.f32 %v3389, %v3645
    %v3756 = vadd.f32 %v3390, %v3648
    %v3757 = vadd.f32 %v3391, %v3653
    %v3758 = vadd.f32 %v3392, %v3656
    %v3759 = vadd.f32 %v3393, %v3661
    %v3760 = vadd.f32 %v3394, %v3664
    %v3761 = vadd.f32 %v3395, %v3669
    %v3762 = vadd.f32 %v3396, %v3672
    %v3763 = vadd.f32 %v3397, %v3677
    %v3764 = vadd.f32 %v3398, %v3680
    %v3765 = vadd.f32 %v3399, %v3685
    %v3766 = vadd.f32 %v3400, %v3688
    %v3767 = vadd.f32 %v3401, %v3693
    %v3768 = vadd.f32 %v3402, %v3696
    %v3769 = vadd.f32 %v3403, %v3701
    %v3770 = vadd.f32 %v3404, %v3704
    %v3771 = vld [vmem:[%s2] sm:$0x1]
    %v3772 = vld [vmem:[%s3] sm:$0x1]
    %v3773 = vadd.f32 %v3707, %v3708
    %v3774 = vadd.f32 %v3773, %v3709
    %v3775 = vadd.f32 %v3774, %v3710
    %v3776 = vadd.f32 %v3775, %v3711
    %v3777 = vadd.f32 %v3776, %v3712
    %v3778 = vadd.f32 %v3777, %v3713
    %v3779 = vadd.f32 %v3778, %v3714
    %v3780 = vadd.f32 %v3779, %v3715
    %v3781 = vadd.f32 %v3780, %v3716
    %v3782 = vadd.f32 %v3781, %v3717
    %v3783 = vadd.f32 %v3782, %v3718
    %v3784 = vadd.f32 %v3783, %v3719
    %v3785 = vadd.f32 %v3784, %v3720
    %v3786 = vadd.f32 %v3785, %v3721
    %v3787 = vadd.f32 %v3786, %v3722
    %v3788 = vadd.f32 %v3787, %v3723
    %v3789 = vadd.f32 %v3788, %v3724
    %v3790 = vadd.f32 %v3789, %v3725
    %v3791 = vadd.f32 %v3790, %v3726
    %v3792 = vadd.f32 %v3791, %v3727
    %v3793 = vadd.f32 %v3792, %v3728
    %v3794 = vadd.f32 %v3793, %v3729
    %v3795 = vadd.f32 %v3794, %v3730
    %v3796 = vadd.f32 %v3795, %v3731
    %v3797 = vadd.f32 %v3796, %v3732
    %v3798 = vadd.f32 %v3797, %v3733
    %v3799 = vadd.f32 %v3798, %v3734
    %v3800 = vadd.f32 %v3799, %v3735
    %v3801 = vadd.f32 %v3800, %v3736
    %v3802 = vadd.f32 %v3801, %v3737
    %v3803 = vadd.f32 %v3802, %v3738
    %v3804 = vadd.f32 %v3803, %v3739
    %v3805 = vadd.f32 %v3804, %v3740
    %v3806 = vadd.f32 %v3805, %v3741
    %v3807 = vadd.f32 %v3806, %v3742
    %v3808 = vadd.f32 %v3807, %v3743
    %v3809 = vadd.f32 %v3808, %v3744
    %v3810 = vadd.f32 %v3809, %v3745
    %v3811 = vadd.f32 %v3810, %v3746
    %v3812 = vadd.f32 %v3811, %v3747
    %v3813 = vadd.f32 %v3812, %v3748
    %v3814 = vadd.f32 %v3813, %v3749
    %v3815 = vadd.f32 %v3814, %v3750
    %v3816 = vadd.f32 %v3815, %v3751
    %v3817 = vadd.f32 %v3816, %v3752
    %v3818 = vadd.f32 %v3817, %v3753
    %v3819 = vadd.f32 %v3818, %v3754
    %v3820 = vadd.f32 %v3819, %v3755
    %v3821 = vadd.f32 %v3820, %v3756
    %v3822 = vadd.f32 %v3821, %v3757
    %v3823 = vadd.f32 %v3822, %v3758
    %v3824 = vadd.f32 %v3823, %v3759
    %v3825 = vadd.f32 %v3824, %v3760
    %v3826 = vadd.f32 %v3825, %v3761
    %v3827 = vadd.f32 %v3826, %v3762
    %v3828 = vadd.f32 %v3827, %v3763
    %v3829 = vadd.f32 %v3828, %v3764
    %v3830 = vadd.f32 %v3829, %v3765
    %v3831 = vadd.f32 %v3830, %v3766
    %v3832 = vadd.f32 %v3831, %v3767
    %v3833 = vadd.f32 %v3832, %v3768
    %v3834 = vadd.f32 %v3833, %v3769
    %v3835 = vadd.f32 %v3834, %v3770
    %v3836 = vrot.slane %v3835, 4
    %v3837 = vadd.f32 %v3835, %v3836
    %v3838 = vrot.slane %v3837, 2
    %v3839 = vadd.f32 %v3837, %v3838
    %v3840 = vrot.slane %v3839, 1
    %v3841 = vadd.f32 %v3839, %v3840
    %v3842 = vmul.f32 %v3841, 0.001953125
    %v3843 = vmul.f32 %v3707, %v3707
    %v3844 = vmul.f32 %v3708, %v3708
    %v3845 = vmul.f32 %v3709, %v3709
    %v3846 = vmul.f32 %v3710, %v3710
    %v3847 = vmul.f32 %v3711, %v3711
    %v3848 = vmul.f32 %v3712, %v3712
    %v3849 = vmul.f32 %v3713, %v3713
    %v3850 = vmul.f32 %v3714, %v3714
    %v3851 = vmul.f32 %v3715, %v3715
    %v3852 = vmul.f32 %v3716, %v3716
    %v3853 = vmul.f32 %v3717, %v3717
    %v3854 = vmul.f32 %v3718, %v3718
    %v3855 = vmul.f32 %v3719, %v3719
    %v3856 = vmul.f32 %v3720, %v3720
    %v3857 = vmul.f32 %v3721, %v3721
    %v3858 = vmul.f32 %v3722, %v3722
    %v3859 = vmul.f32 %v3723, %v3723
    %v3860 = vmul.f32 %v3724, %v3724
    %v3861 = vmul.f32 %v3725, %v3725
    %v3862 = vmul.f32 %v3726, %v3726
    %v3863 = vmul.f32 %v3727, %v3727
    %v3864 = vmul.f32 %v3728, %v3728
    %v3865 = vmul.f32 %v3729, %v3729
    %v3866 = vmul.f32 %v3730, %v3730
    %v3867 = vmul.f32 %v3731, %v3731
    %v3868 = vmul.f32 %v3732, %v3732
    %v3869 = vmul.f32 %v3733, %v3733
    %v3870 = vmul.f32 %v3734, %v3734
    %v3871 = vmul.f32 %v3735, %v3735
    %v3872 = vmul.f32 %v3736, %v3736
    %v3873 = vmul.f32 %v3737, %v3737
    %v3874 = vmul.f32 %v3738, %v3738
    %v3875 = vmul.f32 %v3739, %v3739
    %v3876 = vmul.f32 %v3740, %v3740
    %v3877 = vmul.f32 %v3741, %v3741
    %v3878 = vmul.f32 %v3742, %v3742
    %v3879 = vmul.f32 %v3743, %v3743
    %v3880 = vmul.f32 %v3744, %v3744
    %v3881 = vmul.f32 %v3745, %v3745
    %v3882 = vmul.f32 %v3746, %v3746
    %v3883 = vmul.f32 %v3747, %v3747
    %v3884 = vmul.f32 %v3748, %v3748
    %v3885 = vmul.f32 %v3749, %v3749
    %v3886 = vmul.f32 %v3750, %v3750
    %v3887 = vmul.f32 %v3751, %v3751
    %v3888 = vmul.f32 %v3752, %v3752
    %v3889 = vmul.f32 %v3753, %v3753
    %v3890 = vmul.f32 %v3754, %v3754
    %v3891 = vmul.f32 %v3755, %v3755
    %v3892 = vmul.f32 %v3756, %v3756
    %v3893 = vmul.f32 %v3757, %v3757
    %v3894 = vmul.f32 %v3758, %v3758
    %v3895 = vmul.f32 %v3759, %v3759
    %v3896 = vmul.f32 %v3760, %v3760
    %v3897 = vmul.f32 %v3761, %v3761
    %v3898 = vmul.f32 %v3762, %v3762
    %v3899 = vmul.f32 %v3763, %v3763
    %v3900 = vmul.f32 %v3764, %v3764
    %v3901 = vmul.f32 %v3765, %v3765
    %v3902 = vmul.f32 %v3766, %v3766
    %v3903 = vmul.f32 %v3767, %v3767
    %v3904 = vmul.f32 %v3768, %v3768
    %v3905 = vmul.f32 %v3769, %v3769
    %v3906 = vmul.f32 %v3770, %v3770
    %v3907 = vadd.f32 %v3843, %v3844
    %v3908 = vadd.f32 %v3907, %v3845
    %v3909 = vadd.f32 %v3908, %v3846
    %v3910 = vadd.f32 %v3909, %v3847
    %v3911 = vadd.f32 %v3910, %v3848
    %v3912 = vadd.f32 %v3911, %v3849
    %v3913 = vadd.f32 %v3912, %v3850
    %v3914 = vadd.f32 %v3913, %v3851
    %v3915 = vadd.f32 %v3914, %v3852
    %v3916 = vadd.f32 %v3915, %v3853
    %v3917 = vadd.f32 %v3916, %v3854
    %v3918 = vadd.f32 %v3917, %v3855
    %v3919 = vadd.f32 %v3918, %v3856
    %v3920 = vadd.f32 %v3919, %v3857
    %v3921 = vadd.f32 %v3920, %v3858
    %v3922 = vadd.f32 %v3921, %v3859
    %v3923 = vadd.f32 %v3922, %v3860
    %v3924 = vadd.f32 %v3923, %v3861
    %v3925 = vadd.f32 %v3924, %v3862
    %v3926 = vadd.f32 %v3925, %v3863
    %v3927 = vadd.f32 %v3926, %v3864
    %v3928 = vadd.f32 %v3927, %v3865
    %v3929 = vadd.f32 %v3928, %v3866
    %v3930 = vadd.f32 %v3929, %v3867
    %v3931 = vadd.f32 %v3930, %v3868
    %v3932 = vadd.f32 %v3931, %v3869
    %v3933 = vadd.f32 %v3932, %v3870
    %v3934 = vadd.f32 %v3933, %v3871
    %v3935 = vadd.f32 %v3934, %v3872
    %v3936 = vadd.f32 %v3935, %v3873
    %v3937 = vadd.f32 %v3936, %v3874
    %v3938 = vadd.f32 %v3937, %v3875
    %v3939 = vadd.f32 %v3938, %v3876
    %v3940 = vadd.f32 %v3939, %v3877
    %v3941 = vadd.f32 %v3940, %v3878
    %v3942 = vadd.f32 %v3941, %v3879
    %v3943 = vadd.f32 %v3942, %v3880
    %v3944 = vadd.f32 %v3943, %v3881
    %v3945 = vadd.f32 %v3944, %v3882
    %v3946 = vadd.f32 %v3945, %v3883
    %v3947 = vadd.f32 %v3946, %v3884
    %v3948 = vadd.f32 %v3947, %v3885
    %v3949 = vadd.f32 %v3948, %v3886
    %v3950 = vadd.f32 %v3949, %v3887
    %v3951 = vadd.f32 %v3950, %v3888
    %v3952 = vadd.f32 %v3951, %v3889
    %v3953 = vadd.f32 %v3952, %v3890
    %v3954 = vadd.f32 %v3953, %v3891
    %v3955 = vadd.f32 %v3954, %v3892
    %v3956 = vadd.f32 %v3955, %v3893
    %v3957 = vadd.f32 %v3956, %v3894
    %v3958 = vadd.f32 %v3957, %v3895
    %v3959 = vadd.f32 %v3958, %v3896
    %v3960 = vadd.f32 %v3959, %v3897
    %v3961 = vadd.f32 %v3960, %v3898
    %v3962 = vadd.f32 %v3961, %v3899
    %v3963 = vadd.f32 %v3962, %v3900
    %v3964 = vadd.f32 %v3963, %v3901
    %v3965 = vadd.f32 %v3964, %v3902
    %v3966 = vadd.f32 %v3965, %v3903
    %v3967 = vadd.f32 %v3966, %v3904
    %v3968 = vadd.f32 %v3967, %v3905
    %v3969 = vadd.f32 %v3968, %v3906
    %v3970 = vrot.slane %v3969, 4
    %v3971 = vadd.f32 %v3969, %v3970
    %v3972 = vrot.slane %v3971, 2
    %v3973 = vadd.f32 %v3971, %v3972
    %v3974 = vrot.slane %v3973, 1
    %v3975 = vadd.f32 %v3973, %v3974
    %v3976 = vmul.f32 %v3975, 0.001953125
    %v3977 = vmul.f32 %v3842, %v3842
    %v3978 = vsub.f32 %v3976, %v3977
    %v3979 = vmax.f32 %v3978, 0.0
    %v3980 = vadd.f32 %v3979, 1e-05
    %v3981 = vrsqrt.pop %v3980
    %v3982 = vmul.f32 %v3981, %v3771
    %v3983 = vmul.f32 %v3842, %v3982
    %v3984 = vsub.f32 %v3772, %v3983
    %v3985 = vlaneseq
    %v3986 = vshrl.u32 %v3985, 7
    %v3987 = vsub.s32 0, %v3986
    %v3988 = vrot.slane %v3982, %v3987
    %v3989 = vmul.f32 %v3707, %v3988
    %v3990 = vmul.f32 %v3708, %v3988
    %v3991 = vmul.f32 %v3709, %v3988
    %v3992 = vmul.f32 %v3710, %v3988
    %v3993 = vmul.f32 %v3711, %v3988
    %v3994 = vmul.f32 %v3712, %v3988
    %v3995 = vmul.f32 %v3713, %v3988
    %v3996 = vmul.f32 %v3714, %v3988
    %v3997 = vmul.f32 %v3715, %v3988
    %v3998 = vmul.f32 %v3716, %v3988
    %v3999 = vmul.f32 %v3717, %v3988
    %v4000 = vmul.f32 %v3718, %v3988
    %v4001 = vmul.f32 %v3719, %v3988
    %v4002 = vmul.f32 %v3720, %v3988
    %v4003 = vmul.f32 %v3721, %v3988
    %v4004 = vmul.f32 %v3722, %v3988
    %v4005 = vmul.f32 %v3723, %v3988
    %v4006 = vmul.f32 %v3724, %v3988
    %v4007 = vmul.f32 %v3725, %v3988
    %v4008 = vmul.f32 %v3726, %v3988
    %v4009 = vmul.f32 %v3727, %v3988
    %v4010 = vmul.f32 %v3728, %v3988
    %v4011 = vmul.f32 %v3729, %v3988
    %v4012 = vmul.f32 %v3730, %v3988
    %v4013 = vmul.f32 %v3731, %v3988
    %v4014 = vmul.f32 %v3732, %v3988
    %v4015 = vmul.f32 %v3733, %v3988
    %v4016 = vmul.f32 %v3734, %v3988
    %v4017 = vmul.f32 %v3735, %v3988
    %v4018 = vmul.f32 %v3736, %v3988
    %v4019 = vmul.f32 %v3737, %v3988
    %v4020 = vmul.f32 %v3738, %v3988
    %v4021 = vmul.f32 %v3739, %v3988
    %v4022 = vmul.f32 %v3740, %v3988
    %v4023 = vmul.f32 %v3741, %v3988
    %v4024 = vmul.f32 %v3742, %v3988
    %v4025 = vmul.f32 %v3743, %v3988
    %v4026 = vmul.f32 %v3744, %v3988
    %v4027 = vmul.f32 %v3745, %v3988
    %v4028 = vmul.f32 %v3746, %v3988
    %v4029 = vmul.f32 %v3747, %v3988
    %v4030 = vmul.f32 %v3748, %v3988
    %v4031 = vmul.f32 %v3749, %v3988
    %v4032 = vmul.f32 %v3750, %v3988
    %v4033 = vmul.f32 %v3751, %v3988
    %v4034 = vmul.f32 %v3752, %v3988
    %v4035 = vmul.f32 %v3753, %v3988
    %v4036 = vmul.f32 %v3754, %v3988
    %v4037 = vmul.f32 %v3755, %v3988
    %v4038 = vmul.f32 %v3756, %v3988
    %v4039 = vmul.f32 %v3757, %v3988
    %v4040 = vmul.f32 %v3758, %v3988
    %v4041 = vmul.f32 %v3759, %v3988
    %v4042 = vmul.f32 %v3760, %v3988
    %v4043 = vmul.f32 %v3761, %v3988
    %v4044 = vmul.f32 %v3762, %v3988
    %v4045 = vmul.f32 %v3763, %v3988
    %v4046 = vmul.f32 %v3764, %v3988
    %v4047 = vmul.f32 %v3765, %v3988
    %v4048 = vmul.f32 %v3766, %v3988
    %v4049 = vmul.f32 %v3767, %v3988
    %v4050 = vmul.f32 %v3768, %v3988
    %v4051 = vmul.f32 %v3769, %v3988
    %v4052 = vmul.f32 %v3770, %v3988
    %v4054 = vlaneseq
    %v4055 = vshrl.u32 %v4054, 7
    %v4056 = vsub.s32 0, %v4055
    %v4057 = vrot.slane %v3984, %v4056
    %v4059 = vadd.f32 %v3989, %v4057
    %v4060 = vadd.f32 %v3990, %v4057
    %v4061 = vadd.f32 %v3991, %v4057
    %v4062 = vadd.f32 %v3992, %v4057
    %v4063 = vadd.f32 %v3993, %v4057
    %v4064 = vadd.f32 %v3994, %v4057
    %v4065 = vadd.f32 %v3995, %v4057
    %v4066 = vadd.f32 %v3996, %v4057
    %v4067 = vadd.f32 %v3997, %v4057
    %v4068 = vadd.f32 %v3998, %v4057
    %v4069 = vadd.f32 %v3999, %v4057
    %v4070 = vadd.f32 %v4000, %v4057
    %v4071 = vadd.f32 %v4001, %v4057
    %v4072 = vadd.f32 %v4002, %v4057
    %v4073 = vadd.f32 %v4003, %v4057
    %v4074 = vadd.f32 %v4004, %v4057
    %v4075 = vadd.f32 %v4005, %v4057
    %v4076 = vadd.f32 %v4006, %v4057
    %v4077 = vadd.f32 %v4007, %v4057
    %v4078 = vadd.f32 %v4008, %v4057
    %v4079 = vadd.f32 %v4009, %v4057
    %v4080 = vadd.f32 %v4010, %v4057
    %v4081 = vadd.f32 %v4011, %v4057
    %v4082 = vadd.f32 %v4012, %v4057
    %v4083 = vadd.f32 %v4013, %v4057
    %v4084 = vadd.f32 %v4014, %v4057
    %v4085 = vadd.f32 %v4015, %v4057
    %v4086 = vadd.f32 %v4016, %v4057
    %v4087 = vadd.f32 %v4017, %v4057
    %v4088 = vadd.f32 %v4018, %v4057
    %v4089 = vadd.f32 %v4019, %v4057
    %v4090 = vadd.f32 %v4020, %v4057
    %v4091 = vadd.f32 %v4021, %v4057
    %v4092 = vadd.f32 %v4022, %v4057
    %v4093 = vadd.f32 %v4023, %v4057
    %v4094 = vadd.f32 %v4024, %v4057
    %v4095 = vadd.f32 %v4025, %v4057
    %v4096 = vadd.f32 %v4026, %v4057
    %v4097 = vadd.f32 %v4027, %v4057
    %v4098 = vadd.f32 %v4028, %v4057
    %v4099 = vadd.f32 %v4029, %v4057
    %v4100 = vadd.f32 %v4030, %v4057
    %v4101 = vadd.f32 %v4031, %v4057
    %v4102 = vadd.f32 %v4032, %v4057
    %v4103 = vadd.f32 %v4033, %v4057
    %v4104 = vadd.f32 %v4034, %v4057
    %v4105 = vadd.f32 %v4035, %v4057
    %v4106 = vadd.f32 %v4036, %v4057
    %v4107 = vadd.f32 %v4037, %v4057
    %v4108 = vadd.f32 %v4038, %v4057
    %v4109 = vadd.f32 %v4039, %v4057
    %v4110 = vadd.f32 %v4040, %v4057
    %v4111 = vadd.f32 %v4041, %v4057
    %v4112 = vadd.f32 %v4042, %v4057
    %v4113 = vadd.f32 %v4043, %v4057
    %v4114 = vadd.f32 %v4044, %v4057
    %v4115 = vadd.f32 %v4045, %v4057
    %v4116 = vadd.f32 %v4046, %v4057
    %v4117 = vadd.f32 %v4047, %v4057
    %v4118 = vadd.f32 %v4048, %v4057
    %v4119 = vadd.f32 %v4049, %v4057
    %v4120 = vadd.f32 %v4050, %v4057
    %v4121 = vadd.f32 %v4051, %v4057
    %v4122 = vadd.f32 %v4052, %v4057
    %v4123 = vmax.f32 %v4059, 0.0
    %v4124 = vmax.f32 %v4060, 0.0
    %v4125 = vmax.f32 %v4061, 0.0
    %v4126 = vmax.f32 %v4062, 0.0
    %v4127 = vmax.f32 %v4063, 0.0
    %v4128 = vmax.f32 %v4064, 0.0
    %v4129 = vmax.f32 %v4065, 0.0
    %v4130 = vmax.f32 %v4066, 0.0
    %v4131 = vmax.f32 %v4067, 0.0
    %v4132 = vmax.f32 %v4068, 0.0
    %v4133 = vmax.f32 %v4069, 0.0
    %v4134 = vmax.f32 %v4070, 0.0
    %v4135 = vmax.f32 %v4071, 0.0
    %v4136 = vmax.f32 %v4072, 0.0
    %v4137 = vmax.f32 %v4073, 0.0
    %v4138 = vmax.f32 %v4074, 0.0
    %v4139 = vmax.f32 %v4075, 0.0
    %v4140 = vmax.f32 %v4076, 0.0
    %v4141 = vmax.f32 %v4077, 0.0
    %v4142 = vmax.f32 %v4078, 0.0
    %v4143 = vmax.f32 %v4079, 0.0
    %v4144 = vmax.f32 %v4080, 0.0
    %v4145 = vmax.f32 %v4081, 0.0
    %v4146 = vmax.f32 %v4082, 0.0
    %v4147 = vmax.f32 %v4083, 0.0
    %v4148 = vmax.f32 %v4084, 0.0
    %v4149 = vmax.f32 %v4085, 0.0
    %v4150 = vmax.f32 %v4086, 0.0
    %v4151 = vmax.f32 %v4087, 0.0
    %v4152 = vmax.f32 %v4088, 0.0
    %v4153 = vmax.f32 %v4089, 0.0
    %v4154 = vmax.f32 %v4090, 0.0
    %v4155 = vmax.f32 %v4091, 0.0
    %v4156 = vmax.f32 %v4092, 0.0
    %v4157 = vmax.f32 %v4093, 0.0
    %v4158 = vmax.f32 %v4094, 0.0
    %v4159 = vmax.f32 %v4095, 0.0
    %v4160 = vmax.f32 %v4096, 0.0
    %v4161 = vmax.f32 %v4097, 0.0
    %v4162 = vmax.f32 %v4098, 0.0
    %v4163 = vmax.f32 %v4099, 0.0
    %v4164 = vmax.f32 %v4100, 0.0
    %v4165 = vmax.f32 %v4101, 0.0
    %v4166 = vmax.f32 %v4102, 0.0
    %v4167 = vmax.f32 %v4103, 0.0
    %v4168 = vmax.f32 %v4104, 0.0
    %v4169 = vmax.f32 %v4105, 0.0
    %v4170 = vmax.f32 %v4106, 0.0
    %v4171 = vmax.f32 %v4107, 0.0
    %v4172 = vmax.f32 %v4108, 0.0
    %v4173 = vmax.f32 %v4109, 0.0
    %v4174 = vmax.f32 %v4110, 0.0
    %v4175 = vmax.f32 %v4111, 0.0
    %v4176 = vmax.f32 %v4112, 0.0
    %v4177 = vmax.f32 %v4113, 0.0
    %v4178 = vmax.f32 %v4114, 0.0
    %v4179 = vmax.f32 %v4115, 0.0
    %v4180 = vmax.f32 %v4116, 0.0
    %v4181 = vmax.f32 %v4117, 0.0
    %v4182 = vmax.f32 %v4118, 0.0
    %v4183 = vmax.f32 %v4119, 0.0
    %v4184 = vmax.f32 %v4120, 0.0
    %v4185 = vmax.f32 %v4121, 0.0
    %v4186 = vmax.f32 %v4122, 0.0
    %4187 = vst [vmem:[#allocation2] sm:$0xff] 0.0
    %4188 = vst [vmem:[#allocation2 + $0x8] sm:$0xff] 0.0
    %4189 = vst [vmem:[#allocation2 + $0x10] sm:$0x3] 0.0
    %4190 = vst [vmem:[#allocation2 + $0x1b0] sm:$0xff] 0.0
    %4191 = vst [vmem:[#allocation2 + $0x1b8] sm:$0xff] 0.0
    %4192 = vst [vmem:[#allocation2 + $0x1c0] sm:$0x3] 0.0
    %s4193 = scalar_lea.vmem [#allocation2], 408
    %4194 = vst [vmem:[%s4193] sm:$0xff] 0.0
    %4195 = vst [vmem:[%s4193 + $0x8] sm:$0xff] 0.0
    %4196 = vst [vmem:[%s4193 + $0x10] sm:$0x3] 0.0
    %4197 = vst [vmem:[%s4193 + $0x1b0] sm:$0xff] 0.0
    %4198 = vst [vmem:[%s4193 + $0x1b8] sm:$0xff] 0.0
    %4199 = vst [vmem:[%s4193 + $0x1c0] sm:$0x3] 0.0
    %s4200 = scalar_lea.vmem [#allocation2], 24
    %4201 = vst [vmem:[%s4200] sm:$0x1] 0.0
    %4202 = vst [vmem:[%s4200 + $0x18] sm:$0x1] 0.0
    %4203 = vst [vmem:[%s4200 + $0x30] sm:$0x1] 0.0
    %4204 = vst [vmem:[%s4200 + $0x48] sm:$0x1] 0.0
    %4205 = vst [vmem:[%s4200 + $0x60] sm:$0x1] 0.0
    %4206 = vst [vmem:[%s4200 + $0x78] sm:$0x1] 0.0
    %4207 = vst [vmem:[%s4200 + $0x90] sm:$0x1] 0.0
    %4208 = vst [vmem:[%s4200 + $0xa8] sm:$0x1] 0.0
    %4209 = vst [vmem:[%s4200 + $0xc0] sm:$0x1] 0.0
    %4210 = vst [vmem:[%s4200 + $0xd8] sm:$0x1] 0.0
    %4211 = vst [vmem:[%s4200 + $0xf0] sm:$0x1] 0.0
    %4212 = vst [vmem:[%s4200 + $0x108] sm:$0x1] 0.0
    %4213 = vst [vmem:[%s4200 + $0x120] sm:$0x1] 0.0
    %4214 = vst [vmem:[%s4200 + $0x138] sm:$0x1] 0.0
    %4215 = vst [vmem:[%s4200 + $0x150] sm:$0x1] 0.0
    %4216 = vst [vmem:[%s4200 + $0x168] sm:$0x1] 0.0
    %4217 = vst [vmem:[%s4200 + $0x1b0] sm:$0x1] 0.0
    %4218 = vst [vmem:[%s4200 + $0x1c8] sm:$0x1] 0.0
    %4219 = vst [vmem:[%s4200 + $0x1e0] sm:$0x1] 0.0
    %4220 = vst [vmem:[%s4200 + $0x1f8] sm:$0x1] 0.0
    %4221 = vst [vmem:[%s4200 + $0x210] sm:$0x1] 0.0
    %4222 = vst [vmem:[%s4200 + $0x228] sm:$0x1] 0.0
    %4223 = vst [vmem:[%s4200 + $0x240] sm:$0x1] 0.0
    %4224 = vst [vmem:[%s4200 + $0x258] sm:$0x1] 0.0
    %4225 = vst [vmem:[%s4200 + $0x270] sm:$0x1] 0.0
    %4226 = vst [vmem:[%s4200 + $0x288] sm:$0x1] 0.0
    %4227 = vst [vmem:[%s4200 + $0x2a0] sm:$0x1] 0.0
    %4228 = vst [vmem:[%s4200 + $0x2b8] sm:$0x1] 0.0
    %4229 = vst [vmem:[%s4200 + $0x2d0] sm:$0x1] 0.0
    %4230 = vst [vmem:[%s4200 + $0x2e8] sm:$0x1] 0.0
    %4231 = vst [vmem:[%s4200 + $0x300] sm:$0x1] 0.0
    %4232 = vst [vmem:[%s4200 + $0x318] sm:$0x1] 0.0
    %4233 = vst [vmem:[%s4200 + $0x11] sm:$0x1] 0.0
    %4234 = vst [vmem:[%s4200 + $0x29] sm:$0x1] 0.0
    %4235 = vst [vmem:[%s4200 + $0x41] sm:$0x1] 0.0
    %4236 = vst [vmem:[%s4200 + $0x59] sm:$0x1] 0.0
    %4237 = vst [vmem:[%s4200 + $0x71] sm:$0x1] 0.0
    %4238 = vst [vmem:[%s4200 + $0x89] sm:$0x1] 0.0
    %4239 = vst [vmem:[%s4200 + $0xa1] sm:$0x1] 0.0
    %4240 = vst [vmem:[%s4200 + $0xb9] sm:$0x1] 0.0
    %4241 = vst [vmem:[%s4200 + $0xd1] sm:$0x1] 0.0
    %4242 = vst [vmem:[%s4200 + $0xe9] sm:$0x1] 0.0
    %4243 = vst [vmem:[%s4200 + $0x101] sm:$0x1] 0.0
    %4244 = vst [vmem:[%s4200 + $0x119] sm:$0x1] 0.0
    %4245 = vst [vmem:[%s4200 + $0x131] sm:$0x1] 0.0
    %4246 = vst [vmem:[%s4200 + $0x149] sm:$0x1] 0.0
    %4247 = vst [vmem:[%s4200 + $0x161] sm:$0x1] 0.0
    %4248 = vst [vmem:[%s4200 + $0x179] sm:$0x1] 0.0
    %4249 = vst [vmem:[%s4200 + $0x1c1] sm:$0x1] 0.0
    %4250 = vst [vmem:[%s4200 + $0x1d9] sm:$0x1] 0.0
    %4251 = vst [vmem:[%s4200 + $0x1f1] sm:$0x1] 0.0
    %4252 = vst [vmem:[%s4200 + $0x209] sm:$0x1] 0.0
    %4253 = vst [vmem:[%s4200 + $0x221] sm:$0x1] 0.0
    %4254 = vst [vmem:[%s4200 + $0x239] sm:$0x1] 0.0
    %4255 = vst [vmem:[%s4200 + $0x251] sm:$0x1] 0.0
    %4256 = vst [vmem:[%s4200 + $0x269] sm:$0x1] 0.0
    %4257 = vst [vmem:[%s4200 + $0x281] sm:$0x1] 0.0
    %4258 = vst [vmem:[%s4200 + $0x299] sm:$0x1] 0.0
    %4259 = vst [vmem:[%s4200 + $0x2b1] sm:$0x1] 0.0
    %4260 = vst [vmem:[%s4200 + $0x2c9] sm:$0x1] 0.0
    %4261 = vst [vmem:[%s4200 + $0x2e1] sm:$0x1] 0.0
    %4262 = vst [vmem:[%s4200 + $0x2f9] sm:$0x1] 0.0
    %4263 = vst [vmem:[%s4200 + $0x311] sm:$0x1] 0.0
    %4264 = vst [vmem:[%s4200 + $0x329] sm:$0x1] 0.0
    %4265 = vst [vmem:[%s4200 + $0x1] sm:$0xff] %v4123
    %4266 = vst [vmem:[%s4200 + $0x9] sm:$0xff] %v4124
    %4267 = vst [vmem:[%s4200 + $0x19] sm:$0xff] %v4125
    %4268 = vst [vmem:[%s4200 + $0x21] sm:$0xff] %v4126
    %4269 = vst [vmem:[%s4200 + $0x31] sm:$0xff] %v4127
    %4270 = vst [vmem:[%s4200 + $0x39] sm:$0xff] %v4128
    %4271 = vst [vmem:[%s4200 + $0x49] sm:$0xff] %v4129
    %4272 = vst [vmem:[%s4200 + $0x51] sm:$0xff] %v4130
    %4273 = vst [vmem:[%s4200 + $0x61] sm:$0xff] %v4131
    %4274 = vst [vmem:[%s4200 + $0x69] sm:$0xff] %v4132
    %4275 = vst [vmem:[%s4200 + $0x79] sm:$0xff] %v4133
    %4276 = vst [vmem:[%s4200 + $0x81] sm:$0xff] %v4134
    %4277 = vst [vmem:[%s4200 + $0x91] sm:$0xff] %v4135
    %4278 = vst [vmem:[%s4200 + $0x99] sm:$0xff] %v4136
    %4279 = vst [vmem:[%s4200 + $0xa9] sm:$0xff] %v4137
    %4280 = vst [vmem:[%s4200 + $0xb1] sm:$0xff] %v4138
    %4281 = vst [vmem:[%s4200 + $0xc1] sm:$0xff] %v4139
    %4282 = vst [vmem:[%s4200 + $0xc9] sm:$0xff] %v4140
    %4283 = vst [vmem:[%s4200 + $0xd9] sm:$0xff] %v4141
    %4284 = vst [vmem:[%s4200 + $0xe1] sm:$0xff] %v4142
    %4285 = vst [vmem:[%s4200 + $0xf1] sm:$0xff] %v4143
    %4286 = vst [vmem:[%s4200 + $0xf9] sm:$0xff] %v4144
    %4287 = vst [vmem:[%s4200 + $0x109] sm:$0xff] %v4145
    %4288 = vst [vmem:[%s4200 + $0x111] sm:$0xff] %v4146
    %4289 = vst [vmem:[%s4200 + $0x121] sm:$0xff] %v4147
    %4290 = vst [vmem:[%s4200 + $0x129] sm:$0xff] %v4148
    %4291 = vst [vmem:[%s4200 + $0x139] sm:$0xff] %v4149
    %4292 = vst [vmem:[%s4200 + $0x141] sm:$0xff] %v4150
    %4293 = vst [vmem:[%s4200 + $0x151] sm:$0xff] %v4151
    %4294 = vst [vmem:[%s4200 + $0x159] sm:$0xff] %v4152
    %4295 = vst [vmem:[%s4200 + $0x169] sm:$0xff] %v4153
    %4296 = vst [vmem:[%s4200 + $0x171] sm:$0xff] %v4154
    %4297 = vst [vmem:[%s4200 + $0x1b1] sm:$0xff] %v4155
    %4298 = vst [vmem:[%s4200 + $0x1b9] sm:$0xff] %v4156
    %4299 = vst [vmem:[%s4200 + $0x1c9] sm:$0xff] %v4157
    %4300 = vst [vmem:[%s4200 + $0x1d1] sm:$0xff] %v4158
    %4301 = vst [vmem:[%s4200 + $0x1e1] sm:$0xff] %v4159
    %4302 = vst [vmem:[%s4200 + $0x1e9] sm:$0xff] %v4160
    %4303 = vst [vmem:[%s4200 + $0x1f9] sm:$0xff] %v4161
    %4304 = vst [vmem:[%s4200 + $0x201] sm:$0xff] %v4162
    %4305 = vst [vmem:[%s4200 + $0x211] sm:$0xff] %v4163
    %4306 = vst [vmem:[%s4200 + $0x219] sm:$0xff] %v4164
    %4307 = vst [vmem:[%s4200 + $0x229] sm:$0xff] %v4165
    %4308 = vst [vmem:[%s4200 + $0x231] sm:$0xff] %v4166
    %4309 = vst [vmem:[%s4200 + $0x241] sm:$0xff] %v4167
    %4310 = vst [vmem:[%s4200 + $0x249] sm:$0xff] %v4168
    %4311 = vst [vmem:[%s4200 + $0x259] sm:$0xff] %v4169
    %4312 = vst [vmem:[%s4200 + $0x261] sm:$0xff] %v4170
    %4313 = vst [vmem:[%s4200 + $0x271] sm:$0xff] %v4171
    %4314 = vst [vmem:[%s4200 + $0x279] sm:$0xff] %v4172
    %4315 = vst [vmem:[%s4200 + $0x289] sm:$0xff] %v4173
    %4316 = vst [vmem:[%s4200 + $0x291] sm:$0xff] %v4174
    %4317 = vst [vmem:[%s4200 + $0x2a1] sm:$0xff] %v4175
    %4318 = vst [vmem:[%s4200 + $0x2a9] sm:$0xff] %v4176
    %4319 = vst [vmem:[%s4200 + $0x2b9] sm:$0xff] %v4177
    %4320 = vst [vmem:[%s4200 + $0x2c1] sm:$0xff] %v4178
    %4321 = vst [vmem:[%s4200 + $0x2d1] sm:$0xff] %v4179
    %4322 = vst [vmem:[%s4200 + $0x2d9] sm:$0xff] %v4180
    %4323 = vst [vmem:[%s4200 + $0x2e9] sm:$0xff] %v4181
    %4324 = vst [vmem:[%s4200 + $0x2f1] sm:$0xff] %v4182
    %4325 = vst [vmem:[%s4200 + $0x301] sm:$0xff] %v4183
    %4326 = vst [vmem:[%s4200 + $0x309] sm:$0xff] %v4184
    %4327 = vst [vmem:[%s4200 + $0x319] sm:$0xff] %v4185
    %4328 = vst [vmem:[%s4200 + $0x321] sm:$0xff] %v4186
    %v4329 = vld [vmem:[#allocation2] sm:$0xff]
    %v4330 = vld [vmem:[#allocation2 + $0x8] sm:$0xff]
    %v4331 = vld [vmem:[#allocation2 + $0x18] sm:$0xff]
    %v4332 = vld [vmem:[#allocation2 + $0x20] sm:$0xff]
    %v4333 = vld [vmem:[#allocation2 + $0x30] sm:$0xff]
    %v4334 = vld [vmem:[#allocation2 + $0x38] sm:$0xff]
    %v4335 = vld [vmem:[#allocation2 + $0x48] sm:$0xff]
    %v4336 = vld [vmem:[#allocation2 + $0x50] sm:$0xff]
    %v4337 = vld [vmem:[#allocation2 + $0x60] sm:$0xff]
    %v4338 = vld [vmem:[#allocation2 + $0x68] sm:$0xff]
    %v4339 = vld [vmem:[#allocation2 + $0x78] sm:$0xff]
    %v4340 = vld [vmem:[#allocation2 + $0x80] sm:$0xff]
    %v4341 = vld [vmem:[#allocation2 + $0x90] sm:$0xff]
    %v4342 = vld [vmem:[#allocation2 + $0x98] sm:$0xff]
    %v4343 = vld [vmem:[#allocation2 + $0xa8] sm:$0xff]
    %v4344 = vld [vmem:[#allocation2 + $0xb0] sm:$0xff]
    %v4345 = vld [vmem:[#allocation2 + $0xc0] sm:$0xff]
    %v4346 = vld [vmem:[#allocation2 + $0xc8] sm:$0xff]
    %v4347 = vld [vmem:[#allocation2 + $0xd8] sm:$0xff]
    %v4348 = vld [vmem:[#allocation2 + $0xe0] sm:$0xff]
    %v4349 = vld [vmem:[#allocation2 + $0xf0] sm:$0xff]
    %v4350 = vld [vmem:[#allocation2 + $0xf8] sm:$0xff]
    %v4351 = vld [vmem:[#allocation2 + $0x108] sm:$0xff]
    %v4352 = vld [vmem:[#allocation2 + $0x110] sm:$0xff]
    %v4353 = vld [vmem:[#allocation2 + $0x120] sm:$0xff]
    %v4354 = vld [vmem:[#allocation2 + $0x128] sm:$0xff]
    %v4355 = vld [vmem:[#allocation2 + $0x138] sm:$0xff]
    %v4356 = vld [vmem:[#allocation2 + $0x140] sm:$0xff]
    %v4357 = vld [vmem:[#allocation2 + $0x150] sm:$0xff]
    %v4358 = vld [vmem:[#allocation2 + $0x158] sm:$0xff]
    %v4359 = vld [vmem:[#allocation2 + $0x168] sm:$0xff]
    %v4360 = vld [vmem:[#allocation2 + $0x170] sm:$0xff]
    %v4361 = vld [vmem:[#allocation2 + $0x180] sm:$0xff]
    %v4362 = vld [vmem:[#allocation2 + $0x188] sm:$0xff]
    %v4363 = vld [vmem:[#allocation2 + $0x198] sm:$0xff]
    %v4364 = vld [vmem:[#allocation2 + $0x1a0] sm:$0xff]
    %v4365 = vld [vmem:[#allocation2 + $0x1b0] sm:$0xff]
    %v4366 = vld [vmem:[#allocation2 + $0x1b8] sm:$0xff]
    %v4367 = vld [vmem:[#allocation2 + $0x1c8] sm:$0xff]
    %v4368 = vld [vmem:[#allocation2 + $0x1d0] sm:$0xff]
    %v4369 = vld [vmem:[#allocation2 + $0x1e0] sm:$0xff]
    %v4370 = vld [vmem:[#allocation2 + $0x1e8] sm:$0xff]
    %v4371 = vld [vmem:[#allocation2 + $0x1f8] sm:$0xff]
    %v4372 = vld [vmem:[#allocation2 + $0x200] sm:$0xff]
    %v4373 = vld [vmem:[#allocation2 + $0x210] sm:$0xff]
    %v4374 = vld [vmem:[#allocation2 + $0x218] sm:$0xff]
    %v4375 = vld [vmem:[#allocation2 + $0x228] sm:$0xff]
    %v4376 = vld [vmem:[#allocation2 + $0x230] sm:$0xff]
    %v4377 = vld [vmem:[#allocation2 + $0x240] sm:$0xff]
    %v4378 = vld [vmem:[#allocation2 + $0x248] sm:$0xff]
    %v4379 = vld [vmem:[#allocation2 + $0x258] sm:$0xff]
    %v4380 = vld [vmem:[#allocation2 + $0x260] sm:$0xff]
    %v4381 = vld [vmem:[#allocation2 + $0x270] sm:$0xff]
    %v4382 = vld [vmem:[#allocation2 + $0x278] sm:$0xff]
    %v4383 = vld [vmem:[#allocation2 + $0x288] sm:$0xff]
    %v4384 = vld [vmem:[#allocation2 + $0x290] sm:$0xff]
    %v4385 = vld [vmem:[#allocation2 + $0x2a0] sm:$0xff]
    %v4386 = vld [vmem:[#allocation2 + $0x2a8] sm:$0xff]
    %v4387 = vld [vmem:[#allocation2 + $0x2b8] sm:$0xff]
    %v4388 = vld [vmem:[#allocation2 + $0x2c0] sm:$0xff]
    %v4389 = vld [vmem:[#allocation2 + $0x2d0] sm:$0xff]
    %v4390 = vld [vmem:[#allocation2 + $0x2d8] sm:$0xff]
    %v4391 = vld [vmem:[#allocation2 + $0x2e8] sm:$0xff]
    %v4392 = vld [vmem:[#allocation2 + $0x2f0] sm:$0xff]
    %v4393 = vld [vmem:[#allocation2 + $0x300] sm:$0xff]
    %v4394 = vld [vmem:[#allocation2 + $0x308] sm:$0xff]
    %v4395 = vld [vmem:[#allocation2 + $0x318] sm:$0xff]
    %v4396 = vld [vmem:[#allocation2 + $0x320] sm:$0xff]
    %v4397 = vld [vmem:[#allocation2 + $0x330] sm:$0xff]
    %v4398 = vld [vmem:[#allocation2 + $0x338] sm:$0xff]
    %v4399 = vld [vmem:[#allocation2 + $0x348] sm:$0xff]
    %v4400 = vld [vmem:[#allocation2 + $0x350] sm:$0xff]
    %v4401 = vpack.c.bf16 %v4330, %v4329
    %v4402 = vpack.c.bf16 %v4332, %v4331
    %v4403 = vpack.c.bf16 %v4334, %v4333
    %v4404 = vpack.c.bf16 %v4336, %v4335
    %v4405 = vpack.c.bf16 %v4338, %v4337
    %v4406 = vpack.c.bf16 %v4340, %v4339
    %v4407 = vpack.c.bf16 %v4342, %v4341
    %v4408 = vpack.c.bf16 %v4344, %v4343
    %v4409 = vpack.c.bf16 %v4346, %v4345
    %v4410 = vpack.c.bf16 %v4348, %v4347
    %v4411 = vpack.c.bf16 %v4350, %v4349
    %v4412 = vpack.c.bf16 %v4352, %v4351
    %v4413 = vpack.c.bf16 %v4354, %v4353
    %v4414 = vpack.c.bf16 %v4356, %v4355
    %v4415 = vpack.c.bf16 %v4358, %v4357
    %v4416 = vpack.c.bf16 %v4360, %v4359
    %v4417 = vpack.c.bf16 %v4366, %v4365
    %v4418 = vpack.c.bf16 %v4368, %v4367
    %v4419 = vpack.c.bf16 %v4370, %v4369
    %v4420 = vpack.c.bf16 %v4372, %v4371
    %v4421 = vpack.c.bf16 %v4374, %v4373
    %v4422 = vpack.c.bf16 %v4376, %v4375
    %v4423 = vpack.c.bf16 %v4378, %v4377
    %v4424 = vpack.c.bf16 %v4380, %v4379
    %v4425 = vpack.c.bf16 %v4382, %v4381
    %v4426 = vpack.c.bf16 %v4384, %v4383
    %v4427 = vpack.c.bf16 %v4386, %v4385
    %v4428 = vpack.c.bf16 %v4388, %v4387
    %v4429 = vpack.c.bf16 %v4390, %v4389
    %v4430 = vpack.c.bf16 %v4392, %v4391
    %v4431 = vpack.c.bf16 %v4394, %v4393
    %v4432 = vpack.c.bf16 %v4396, %v4395
    %v4433 = vld [vmem:[%s4] sm:$0xf]
    %v4434 = vld [vmem:[%s4 + $0x4] sm:$0xf]
    %v4435 = vld [vmem:[%s4 + $0x8] sm:$0xf]
    %v4436 = vld [vmem:[%s4 + $0xc] sm:$0xf]
    %v4437 = vld [vmem:[%s4 + $0x10] sm:$0xf]
    %v4438 = vld [vmem:[%s4 + $0x14] sm:$0xf]
    %v4439 = vld [vmem:[%s4 + $0x18] sm:$0xf]
    %v4440 = vld [vmem:[%s4 + $0x1c] sm:$0xf]
    %v4441 = vld [vmem:[%s4 + $0x20] sm:$0xf]
    %v4442 = vld [vmem:[%s4 + $0x24] sm:$0xf]
    %v4443 = vld [vmem:[%s4 + $0x28] sm:$0xf]
    %v4444 = vld [vmem:[%s4 + $0x2c] sm:$0xf]
    %v4445 = vld [vmem:[%s4 + $0x30] sm:$0xf]
    %v4446 = vld [vmem:[%s4 + $0x34] sm:$0xf]
    %v4447 = vld [vmem:[%s4 + $0x38] sm:$0xf]
    %v4448 = vld [vmem:[%s4 + $0x3c] sm:$0xf]
    %v4449 = vpack.c.bf16 %v4362, %v4361
    %v4450 = vpack.c.bf16 %v4398, %v4397
    %s4451 = scalar_lea.vmem %s4, 192
    %v4452 = vld [vmem:[%s4451] sm:$0xf]
    %v4453 = vld [vmem:[%s4451 + $0x4] sm:$0xf]
    %v4454 = vld [vmem:[%s4451 + $0x8] sm:$0xf]
    %v4455 = vld [vmem:[%s4451 + $0xc] sm:$0xf]
    %v4456 = vld [vmem:[%s4451 + $0x10] sm:$0xf]
    %v4457 = vld [vmem:[%s4451 + $0x14] sm:$0xf]
    %v4458 = vld [vmem:[%s4451 + $0x18] sm:$0xf]
    %v4459 = vld [vmem:[%s4451 + $0x1c] sm:$0xf]
    %v4460 = vld [vmem:[%s4451 + $0x20] sm:$0xf]
    %v4461 = vld [vmem:[%s4451 + $0x24] sm:$0xf]
    %v4462 = vld [vmem:[%s4451 + $0x28] sm:$0xf]
    %v4463 = vld [vmem:[%s4451 + $0x2c] sm:$0xf]
    %v4464 = vld [vmem:[%s4451 + $0x30] sm:$0xf]
    %v4465 = vld [vmem:[%s4451 + $0x34] sm:$0xf]
    %v4466 = vld [vmem:[%s4451 + $0x38] sm:$0xf]
    %v4467 = vld [vmem:[%s4451 + $0x3c] sm:$0xf]
    %v4484 = vunpack.c.l.b16 %v4452
    %v4485 = vunpack.c.l.b16 %v4453
    %v4486 = vunpack.c.l.b16 %v4454
    %v4487 = vunpack.c.l.b16 %v4455
    %v4488 = vunpack.c.l.b16 %v4456
    %v4489 = vunpack.c.l.b16 %v4457
    %v4490 = vunpack.c.l.b16 %v4458
    %v4491 = vunpack.c.l.b16 %v4459
    %v4492 = vunpack.c.l.b16 %v4460
    %v4493 = vunpack.c.l.b16 %v4461
    %v4494 = vunpack.c.l.b16 %v4462
    %v4495 = vunpack.c.l.b16 %v4463
    %v4496 = vunpack.c.l.b16 %v4464
    %v4497 = vunpack.c.l.b16 %v4465
    %v4498 = vunpack.c.l.b16 %v4466
    %v4499 = vunpack.c.l.b16 %v4467
    %v4500 = vpack.c.b16 %v4485, %v4484
    %v4501 = vpack.c.b16 %v4487, %v4486
    %v4502 = vpack.c.b16 %v4489, %v4488
    %v4503 = vpack.c.b16 %v4491, %v4490
    %v4504 = vpack.c.b16 %v4493, %v4492
    %v4505 = vpack.c.b16 %v4495, %v4494
    %v4506 = vpack.c.b16 %v4497, %v4496
    %v4507 = vpack.c.b16 %v4499, %v4498
    %4516 = vmatprep.subr.bf16.mxu0 0
    %4517 = vmatpush1.bf16.msra.mxu0 %v4500
    %4518 = vmatprep.subr.bf16.mxu0 0
    %4519 = vmatpush1.bf16.msra.mxu0 %v4501
    %4520 = vmatprep.subr.bf16.mxu0 0
    %4521 = vmatpush1.bf16.msra.mxu0 %v4502
    %4522 = vmatprep.subr.bf16.mxu0 0
    %4523 = vmatpush1.bf16.msra.mxu0 %v4503
    %4524 = vmatprep.subr.bf16.mxu0 0
    %4525 = vmatpush1.bf16.msra.mxu0 %v4504
    %4526 = vmatprep.subr.bf16.mxu0 0
    %4527 = vmatpush1.bf16.msra.mxu0 %v4505
    %4528 = vmatprep.subr.bf16.mxu0 0
    %4529 = vmatpush1.bf16.msra.mxu0 %v4506
    %4530 = vmatprep.subr.bf16.mxu0 0
    %4531 = vmatpush1.bf16.msra.mxu0 %v4507
    %4532 = vmatprep.subr.bf16.mxu0 0
    %4533 = vmatpush1.bf16.msra.mxu0 0
    %4534 = vmatprep.subr.bf16.mxu0 0
    %4535 = vmatpush1.bf16.msra.mxu0 0
    %4536 = vmatprep.subr.bf16.mxu0 0
    %4537 = vmatpush1.bf16.msra.mxu0 0
    %4538 = vmatprep.subr.bf16.mxu0 0
    %4539 = vmatpush1.bf16.msra.mxu0 0
    %4540 = vmatprep.subr.bf16.mxu0 0
    %4541 = vmatpush1.bf16.msra.mxu0 0
    %4542 = vmatprep.subr.bf16.mxu0 0
    %4543 = vmatpush1.bf16.msra.mxu0 0
    %4544 = vmatprep.subr.bf16.mxu0 0
    %4545 = vmatpush1.bf16.msra.mxu0 0
    %4546 = vmatprep.subr.bf16.mxu0 0
    %4547 = vmatpush1.bf16.msra.mxu0 0
    %4548 = vmatprep.mubr.bf16.mxu0 0
    %4549 = vmatmul.mubr.bf16.gmra.mrb[0].mxu0 %v4402
    %v4550 = vpop.f32.mrb[0].mxu0
    %v4551 = vadd.f32 0.0, %v4550
    %v4552 = vpop.f32.mrb[0].mxu0
    %v4553 = vpop.f32.mrb[0].mxu0
    %v4554 = vadd.f32 0.0, %v4553
    %v4555 = vpop.f32.mrb[0].mxu0
    %4556 = vmatprep.mubr.bf16.mxu0 0
    %4557 = vmatmul.mubr.bf16.gmra.mrb[0].mxu0 %v4403
    %v4558 = vpop.f32.mrb[0].mxu0
    %v4559 = vadd.f32 0.0, %v4558
    %v4560 = vpop.f32.mrb[0].mxu0
    %v4561 = vpop.f32.mrb[0].mxu0
    %v4562 = vadd.f32 0.0, %v4561
    %v4563 = vpop.f32.mrb[0].mxu0
    %4564 = vmatprep.mubr.bf16.mxu0 0
    %4565 = vmatmul.mubr.bf16.gmra.mrb[0].mxu0 %v4404
    %v4566 = vpop.f32.mrb[0].mxu0
    %v4567 = vadd.f32 0.0, %v4566
    %v4568 = vpop.f32.mrb[0].mxu0
    %v4569 = vpop.f32.mrb[0].mxu0
    %v4570 = vadd.f32 0.0, %v4569
    %v4571 = vpop.f32.mrb[0].mxu0
    %4572 = vmatprep.mubr.bf16.mxu0 0
    %4573 = vmatmul.mubr.bf16.gmra.mrb[0].mxu0 %v4405
    %v4574 = vpop.f32.mrb[0].mxu0
    %v4575 = vadd.f32 0.0, %v4574
    %v4576 = vpop.f32.mrb[0].mxu0
    %v4577 = vpop.f32.mrb[0].mxu0
    %v4578 = vadd.f32 0.0, %v4577
    %v4579 = vpop.f32.mrb[0].mxu0
    %4580 = vmatprep.mubr.bf16.mxu0 0
    %4581 = vmatmul.mubr.bf16.gmra.mrb[0].mxu0 %v4406
    %v4582 = vpop.f32.mrb[0].mxu0
    %v4583 = vadd.f32 0.0, %v4582
    %v4584 = vpop.f32.mrb[0].mxu0
    %v4585 = vpop.f32.mrb[0].mxu0
    %v4586 = vadd.f32 0.0, %v4585
    %v4587 = vpop.f32.mrb[0].mxu0
    %4588 = vmatprep.mubr.bf16.mxu0 0
    %4589 = vmatmul.mubr.bf16.gmra.mrb[0].mxu0 %v4407
    %v4590 = vpop.f32.mrb[0].mxu0
    %v4591 = vadd.f32 0.0, %v4590
    %v4592 = vpop.f32.mrb[0].mxu0
    %v4593 = vpop.f32.mrb[0].mxu0
    %v4594 = vadd.f32 0.0, %v4593
    %v4595 = vpop.f32.mrb[0].mxu0
    %4596 = vmatprep.mubr.bf16.mxu0 0
    %4597 = vmatmul.mubr.bf16.gmra.mrb[0].mxu0 %v4408
    %v4598 = vpop.f32.mrb[0].mxu0
    %v4599 = vadd.f32 0.0, %v4598
    %v4600 = vpop.f32.mrb[0].mxu0
    %v4601 = vpop.f32.mrb[0].mxu0
    %v4602 = vadd.f32 0.0, %v4601
    %v4603 = vpop.f32.mrb[0].mxu0
    %4604 = vmatprep.mubr.bf16.mxu0 0
    %4605 = vmatmul.mubr.bf16.gmra.mrb[0].mxu0 %v4409
    %v4606 = vpop.f32.mrb[0].mxu0
    %v4607 = vadd.f32 0.0, %v4606
    %v4608 = vpop.f32.mrb[0].mxu0
    %v4609 = vpop.f32.mrb[0].mxu0
    %v4610 = vadd.f32 0.0, %v4609
    %v4611 = vpop.f32.mrb[0].mxu0
    %4612 = vmatprep.mubr.bf16.mxu0 0
    %4613 = vmatmul.mubr.bf16.gmra.mrb[0].mxu0 %v4410
    %v4614 = vpop.f32.mrb[0].mxu0
    %v4615 = vadd.f32 0.0, %v4614
    %v4616 = vpop.f32.mrb[0].mxu0
    %v4617 = vpop.f32.mrb[0].mxu0
    %v4618 = vadd.f32 0.0, %v4617
    %v4619 = vpop.f32.mrb[0].mxu0
    %4620 = vmatprep.mubr.bf16.mxu0 0
    %4621 = vmatmul.mubr.bf16.gmra.mrb[0].mxu0 %v4411
    %v4622 = vpop.f32.mrb[0].mxu0
    %v4623 = vadd.f32 0.0, %v4622
    %v4624 = vpop.f32.mrb[0].mxu0
    %v4625 = vpop.f32.mrb[0].mxu0
    %v4626 = vadd.f32 0.0, %v4625
    %v4627 = vpop.f32.mrb[0].mxu0
    %4628 = vmatprep.mubr.bf16.mxu0 0
    %4629 = vmatmul.mubr.bf16.gmra.mrb[0].mxu0 %v4412
    %v4630 = vpop.f32.mrb[0].mxu0
    %v4631 = vadd.f32 0.0, %v4630
    %v4632 = vpop.f32.mrb[0].mxu0
    %v4633 = vpop.f32.mrb[0].mxu0
    %v4634 = vadd.f32 0.0, %v4633
    %v4635 = vpop.f32.mrb[0].mxu0
    %4636 = vmatprep.mubr.bf16.mxu0 0
    %4637 = vmatmul.mubr.bf16.gmra.mrb[0].mxu0 %v4413
    %v4638 = vpop.f32.mrb[0].mxu0
    %v4639 = vadd.f32 0.0, %v4638
    %v4640 = vpop.f32.mrb[0].mxu0
    %v4641 = vpop.f32.mrb[0].mxu0
    %v4642 = vadd.f32 0.0, %v4641
    %v4643 = vpop.f32.mrb[0].mxu0
    %4644 = vmatprep.mubr.bf16.mxu0 0
    %4645 = vmatmul.mubr.bf16.gmra.mrb[0].mxu0 %v4414
    %v4646 = vpop.f32.mrb[0].mxu0
    %v4647 = vadd.f32 0.0, %v4646
    %v4648 = vpop.f32.mrb[0].mxu0
    %v4649 = vpop.f32.mrb[0].mxu0
    %v4650 = vadd.f32 0.0, %v4649
    %v4651 = vpop.f32.mrb[0].mxu0
    %4652 = vmatprep.mubr.bf16.mxu0 0
    %4653 = vmatmul.mubr.bf16.gmra.mrb[0].mxu0 %v4415
    %v4654 = vpop.f32.mrb[0].mxu0
    %v4655 = vadd.f32 0.0, %v4654
    %v4656 = vpop.f32.mrb[0].mxu0
    %v4657 = vpop.f32.mrb[0].mxu0
    %v4658 = vadd.f32 0.0, %v4657
    %v4659 = vpop.f32.mrb[0].mxu0
    %4660 = vmatprep.mubr.bf16.mxu0 0
    %4661 = vmatmul.mubr.bf16.gmra.mrb[0].mxu0 %v4416
    %v4662 = vpop.f32.mrb[0].mxu0
    %v4663 = vadd.f32 0.0, %v4662
    %v4664 = vpop.f32.mrb[0].mxu0
    %v4665 = vpop.f32.mrb[0].mxu0
    %v4666 = vadd.f32 0.0, %v4665
    %v4667 = vpop.f32.mrb[0].mxu0
    %4668 = vmatprep.mubr.bf16.mxu0 0
    %4669 = vmatmul.mubr.bf16.gmra.mrb[0].mxu0 %v4449
    %v4670 = vpop.f32.mrb[0].mxu0
    %v4671 = vadd.f32 0.0, %v4670
    %v4672 = vpop.f32.mrb[0].mxu0
    %v4673 = vpop.f32.mrb[0].mxu0
    %v4674 = vadd.f32 0.0, %v4673
    %v4675 = vpop.f32.mrb[0].mxu0
    %4676 = vmatprep.mubr.bf16.mxu0 0
    %4677 = vmatmul.mubr.bf16.gmra.mrb[0].mxu0 %v4418
    %v4678 = vpop.f32.mrb[0].mxu0
    %v4679 = vadd.f32 0.0, %v4678
    %v4680 = vpop.f32.mrb[0].mxu0
    %v4681 = vpop.f32.mrb[0].mxu0
    %v4682 = vadd.f32 0.0, %v4681
    %v4683 = vpop.f32.mrb[0].mxu0
    %4684 = vmatprep.mubr.bf16.mxu0 0
    %4685 = vmatmul.mubr.bf16.gmra.mrb[0].mxu0 %v4419
    %v4686 = vpop.f32.mrb[0].mxu0
    %v4687 = vadd.f32 0.0, %v4686
    %v4688 = vpop.f32.mrb[0].mxu0
    %v4689 = vpop.f32.mrb[0].mxu0
    %v4690 = vadd.f32 0.0, %v4689
    %v4691 = vpop.f32.mrb[0].mxu0
    %4692 = vmatprep.mubr.bf16.mxu0 0
    %4693 = vmatmul.mubr.bf16.gmra.mrb[0].mxu0 %v4420
    %v4694 = vpop.f32.mrb[0].mxu0
    %v4695 = vadd.f32 0.0, %v4694
    %v4696 = vpop.f32.mrb[0].mxu0
    %v4697 = vpop.f32.mrb[0].mxu0
    %v4698 = vadd.f32 0.0, %v4697
    %v4699 = vpop.f32.mrb[0].mxu0
    %4700 = vmatprep.mubr.bf16.mxu0 0
    %4701 = vmatmul.mubr.bf16.gmra.mrb[0].mxu0 %v4421
    %v4702 = vpop.f32.mrb[0].mxu0
    %v4703 = vadd.f32 0.0, %v4702
    %v4704 = vpop.f32.mrb[0].mxu0
    %v4705 = vpop.f32.mrb[0].mxu0
    %v4706 = vadd.f32 0.0, %v4705
    %v4707 = vpop.f32.mrb[0].mxu0
    %4708 = vmatprep.mubr.bf16.mxu0 0
    %4709 = vmatmul.mubr.bf16.gmra.mrb[0].mxu0 %v4422
    %v4710 = vpop.f32.mrb[0].mxu0
    %v4711 = vadd.f32 0.0, %v4710
    %v4712 = vpop.f32.mrb[0].mxu0
    %v4713 = vpop.f32.mrb[0].mxu0
    %v4714 = vadd.f32 0.0, %v4713
    %v4715 = vpop.f32.mrb[0].mxu0
    %4716 = vmatprep.mubr.bf16.mxu0 0
    %4717 = vmatmul.mubr.bf16.gmra.mrb[0].mxu0 %v4423
    %v4718 = vpop.f32.mrb[0].mxu0
    %v4719 = vadd.f32 0.0, %v4718
    %v4720 = vpop.f32.mrb[0].mxu0
    %v4721 = vpop.f32.mrb[0].mxu0
    %v4722 = vadd.f32 0.0, %v4721
    %v4723 = vpop.f32.mrb[0].mxu0
    %4724 = vmatprep.mubr.bf16.mxu0 0
    %4725 = vmatmul.mubr.bf16.gmra.mrb[0].mxu0 %v4424
    %v4726 = vpop.f32.mrb[0].mxu0
    %v4727 = vadd.f32 0.0, %v4726
    %v4728 = vpop.f32.mrb[0].mxu0
    %v4729 = vpop.f32.mrb[0].mxu0
    %v4730 = vadd.f32 0.0, %v4729
    %v4731 = vpop.f32.mrb[0].mxu0
    %4732 = vmatprep.mubr.bf16.mxu0 0
    %4733 = vmatmul.mubr.bf16.gmra.mrb[0].mxu0 %v4425
    %v4734 = vpop.f32.mrb[0].mxu0
    %v4735 = vadd.f32 0.0, %v4734
    %v4736 = vpop.f32.mrb[0].mxu0
    %v4737 = vpop.f32.mrb[0].mxu0
    %v4738 = vadd.f32 0.0, %v4737
    %v4739 = vpop.f32.mrb[0].mxu0
    %4740 = vmatprep.mubr.bf16.mxu0 0
    %4741 = vmatmul.mubr.bf16.gmra.mrb[0].mxu0 %v4426
    %v4742 = vpop.f32.mrb[0].mxu0
    %v4743 = vadd.f32 0.0, %v4742
    %v4744 = vpop.f32.mrb[0].mxu0
    %v4745 = vpop.f32.mrb[0].mxu0
    %v4746 = vadd.f32 0.0, %v4745
    %v4747 = vpop.f32.mrb[0].mxu0
    %4748 = vmatprep.mubr.bf16.mxu0 0
    %4749 = vmatmul.mubr.bf16.gmra.mrb[0].mxu0 %v4427
    %v4750 = vpop.f32.mrb[0].mxu0
    %v4751 = vadd.f32 0.0, %v4750
    %v4752 = vpop.f32.mrb[0].mxu0
    %v4753 = vpop.f32.mrb[0].mxu0
    %v4754 = vadd.f32 0.0, %v4753
    %v4755 = vpop.f32.mrb[0].mxu0
    %4756 = vmatprep.mubr.bf16.mxu0 0
    %4757 = vmatmul.mubr.bf16.gmra.mrb[0].mxu0 %v4428
    %v4758 = vpop.f32.mrb[0].mxu0
    %v4759 = vadd.f32 0.0, %v4758
    %v4760 = vpop.f32.mrb[0].mxu0
    %v4761 = vpop.f32.mrb[0].mxu0
    %v4762 = vadd.f32 0.0, %v4761
    %v4763 = vpop.f32.mrb[0].mxu0
    %4764 = vmatprep.mubr.bf16.mxu0 0
    %4765 = vmatmul.mubr.bf16.gmra.mrb[0].mxu0 %v4429
    %v4766 = vpop.f32.mrb[0].mxu0
    %v4767 = vadd.f32 0.0, %v4766
    %v4768 = vpop.f32.mrb[0].mxu0
    %v4769 = vpop.f32.mrb[0].mxu0
    %v4770 = vadd.f32 0.0, %v4769
    %v4771 = vpop.f32.mrb[0].mxu0
    %4772 = vmatprep.mubr.bf16.mxu0 0
    %4773 = vmatmul.mubr.bf16.gmra.mrb[0].mxu0 %v4430
    %v4774 = vpop.f32.mrb[0].mxu0
    %v4775 = vadd.f32 0.0, %v4774
    %v4776 = vpop.f32.mrb[0].mxu0
    %v4777 = vpop.f32.mrb[0].mxu0
    %v4778 = vadd.f32 0.0, %v4777
    %v4779 = vpop.f32.mrb[0].mxu0
    %4780 = vmatprep.mubr.bf16.mxu0 0
    %4781 = vmatmul.mubr.bf16.gmra.mrb[0].mxu0 %v4431
    %v4782 = vpop.f32.mrb[0].mxu0
    %v4783 = vadd.f32 0.0, %v4782
    %v4784 = vpop.f32.mrb[0].mxu0
    %v4785 = vpop.f32.mrb[0].mxu0
    %v4786 = vadd.f32 0.0, %v4785
    %v4787 = vpop.f32.mrb[0].mxu0
    %4788 = vmatprep.mubr.bf16.mxu0 0
    %4789 = vmatmul.mubr.bf16.gmra.mrb[0].mxu0 %v4432
    %v4790 = vpop.f32.mrb[0].mxu0
    %v4791 = vadd.f32 0.0, %v4790
    %v4792 = vpop.f32.mrb[0].mxu0
    %v4793 = vpop.f32.mrb[0].mxu0
    %v4794 = vadd.f32 0.0, %v4793
    %v4795 = vpop.f32.mrb[0].mxu0
    %4796 = vmatprep.mubr.bf16.mxu0 0
    %4797 = vmatmul.mubr.bf16.gmra.mrb[0].mxu0 %v4450
    %v4798 = vpop.f32.mrb[0].mxu0
    %v4799 = vadd.f32 0.0, %v4798
    %v4800 = vpop.f32.mrb[0].mxu0
    %v4801 = vpop.f32.mrb[0].mxu0
    %v4802 = vadd.f32 0.0, %v4801
    %v4803 = vpop.f32.mrb[0].mxu0
    %4804 = vdwg.mxu0
    %v4821 = vunpack.c.l.b16 %v4433
    %v4822 = vunpack.c.l.b16 %v4434
    %v4823 = vunpack.c.l.b16 %v4435
    %v4824 = vunpack.c.l.b16 %v4436
    %v4825 = vunpack.c.l.b16 %v4437
    %v4826 = vunpack.c.l.b16 %v4438
    %v4827 = vunpack.c.l.b16 %v4439
    %v4828 = vunpack.c.l.b16 %v4440
    %v4829 = vunpack.c.l.b16 %v4441
    %v4830 = vunpack.c.l.b16 %v4442
    %v4831 = vunpack.c.l.b16 %v4443
    %v4832 = vunpack.c.l.b16 %v4444
    %v4833 = vunpack.c.l.b16 %v4445
    %v4834 = vunpack.c.l.b16 %v4446
    %v4835 = vunpack.c.l.b16 %v4447
    %v4836 = vunpack.c.l.b16 %v4448
    %v4837 = vpack.c.b16 %v4822, %v4821
    %v4838 = vpack.c.b16 %v4824, %v4823
    %v4839 = vpack.c.b16 %v4826, %v4825
    %v4840 = vpack.c.b16 %v4828, %v4827
    %v4841 = vpack.c.b16 %v4830, %v4829
    %v4842 = vpack.c.b16 %v4832, %v4831
    %v4843 = vpack.c.b16 %v4834, %v4833
    %v4844 = vpack.c.b16 %v4836, %v4835
    %4853 = vmatprep.subr.bf16.mxu0 0
    %4854 = vmatpush1.bf16.msra.mxu0 %v4837
    %4855 = vmatprep.subr.bf16.mxu0 0
    %4856 = vmatpush1.bf16.msra.mxu0 %v4838
    %4857 = vmatprep.subr.bf16.mxu0 0
    %4858 = vmatpush1.bf16.msra.mxu0 %v4839
    %4859 = vmatprep.subr.bf16.mxu0 0
    %4860 = vmatpush1.bf16.msra.mxu0 %v4840
    %4861 = vmatprep.subr.bf16.mxu0 0
    %4862 = vmatpush1.bf16.msra.mxu0 %v4841
    %4863 = vmatprep.subr.bf16.mxu0 0
    %4864 = vmatpush1.bf16.msra.mxu0 %v4842
    %4865 = vmatprep.subr.bf16.mxu0 0
    %4866 = vmatpush1.bf16.msra.mxu0 %v4843
    %4867 = vmatprep.subr.bf16.mxu0 0
    %4868 = vmatpush1.bf16.msra.mxu0 %v4844
    %4869 = vmatprep.subr.bf16.mxu0 0
    %4870 = vmatpush1.bf16.msra.mxu0 0
    %4871 = vmatprep.subr.bf16.mxu0 0
    %4872 = vmatpush1.bf16.msra.mxu0 0
    %4873 = vmatprep.subr.bf16.mxu0 0
    %4874 = vmatpush1.bf16.msra.mxu0 0
    %4875 = vmatprep.subr.bf16.mxu0 0
    %4876 = vmatpush1.bf16.msra.mxu0 0
    %4877 = vmatprep.subr.bf16.mxu0 0
    %4878 = vmatpush1.bf16.msra.mxu0 0
    %4879 = vmatprep.subr.bf16.mxu0 0
    %4880 = vmatpush1.bf16.msra.mxu0 0
    %4881 = vmatprep.subr.bf16.mxu0 0
    %4882 = vmatpush1.bf16.msra.mxu0 0
    %4883 = vmatprep.subr.bf16.mxu0 0
    %4884 = vmatpush1.bf16.msra.mxu0 0
    %4885 = vmatprep.mubr.bf16.mxu0 0
    %4886 = vmatmul.mubr.bf16.gmra.mrb[0].mxu0 %v4401
    %v4887 = vpop.f32.mrb[0].mxu0
    %v4888 = vadd.f32 %v4551, %v4887
    %v4889 = vpop.f32.mrb[0].mxu0
    %v4890 = vpop.f32.mrb[0].mxu0
    %v4891 = vadd.f32 %v4554, %v4890
    %v4892 = vpop.f32.mrb[0].mxu0
    %4893 = vmatprep.mubr.bf16.mxu0 0
    %4894 = vmatmul.mubr.bf16.gmra.mrb[0].mxu0 %v4402
    %v4895 = vpop.f32.mrb[0].mxu0
    %v4896 = vadd.f32 %v4559, %v4895
    %v4897 = vpop.f32.mrb[0].mxu0
    %v4898 = vpop.f32.mrb[0].mxu0
    %v4899 = vadd.f32 %v4562, %v4898
    %v4900 = vpop.f32.mrb[0].mxu0
    %4901 = vmatprep.mubr.bf16.mxu0 0
    %4902 = vmatmul.mubr.bf16.gmra.mrb[0].mxu0 %v4403
    %v4903 = vpop.f32.mrb[0].mxu0
    %v4904 = vadd.f32 %v4567, %v4903
    %v4905 = vpop.f32.mrb[0].mxu0
    %v4906 = vpop.f32.mrb[0].mxu0
    %v4907 = vadd.f32 %v4570, %v4906
    %v4908 = vpop.f32.mrb[0].mxu0
    %4909 = vmatprep.mubr.bf16.mxu0 0
    %4910 = vmatmul.mubr.bf16.gmra.mrb[0].mxu0 %v4404
    %v4911 = vpop.f32.mrb[0].mxu0
    %v4912 = vadd.f32 %v4575, %v4911
    %v4913 = vpop.f32.mrb[0].mxu0
    %v4914 = vpop.f32.mrb[0].mxu0
    %v4915 = vadd.f32 %v4578, %v4914
    %v4916 = vpop.f32.mrb[0].mxu0
    %4917 = vmatprep.mubr.bf16.mxu0 0
    %4918 = vmatmul.mubr.bf16.gmra.mrb[0].mxu0 %v4405
    %v4919 = vpop.f32.mrb[0].mxu0
    %v4920 = vadd.f32 %v4583, %v4919
    %v4921 = vpop.f32.mrb[0].mxu0
    %v4922 = vpop.f32.mrb[0].mxu0
    %v4923 = vadd.f32 %v4586, %v4922
    %v4924 = vpop.f32.mrb[0].mxu0
    %4925 = vmatprep.mubr.bf16.mxu0 0
    %4926 = vmatmul.mubr.bf16.gmra.mrb[0].mxu0 %v4406
    %v4927 = vpop.f32.mrb[0].mxu0
    %v4928 = vadd.f32 %v4591, %v4927
    %v4929 = vpop.f32.mrb[0].mxu0
    %v4930 = vpop.f32.mrb[0].mxu0
    %v4931 = vadd.f32 %v4594, %v4930
    %v4932 = vpop.f32.mrb[0].mxu0
    %4933 = vmatprep.mubr.bf16.mxu0 0
    %4934 = vmatmul.mubr.bf16.gmra.mrb[0].mxu0 %v4407
    %v4935 = vpop.f32.mrb[0].mxu0
    %v4936 = vadd.f32 %v4599, %v4935
    %v4937 = vpop.f32.mrb[0].mxu0
    %v4938 = vpop.f32.mrb[0].mxu0
    %v4939 = vadd.f32 %v4602, %v4938
    %v4940 = vpop.f32.mrb[0].mxu0
    %4941 = vmatprep.mubr.bf16.mxu0 0
    %4942 = vmatmul.mubr.bf16.gmra.mrb[0].mxu0 %v4408
    %v4943 = vpop.f32.mrb[0].mxu0
    %v4944 = vadd.f32 %v4607, %v4943
    %v4945 = vpop.f32.mrb[0].mxu0
    %v4946 = vpop.f32.mrb[0].mxu0
    %v4947 = vadd.f32 %v4610, %v4946
    %v4948 = vpop.f32.mrb[0].mxu0
    %4949 = vmatprep.mubr.bf16.mxu0 0
    %4950 = vmatmul.mubr.bf16.gmra.mrb[0].mxu0 %v4409
    %v4951 = vpop.f32.mrb[0].mxu0
    %v4952 = vadd.f32 %v4615, %v4951
    %v4953 = vpop.f32.mrb[0].mxu0
    %v4954 = vpop.f32.mrb[0].mxu0
    %v4955 = vadd.f32 %v4618, %v4954
    %v4956 = vpop.f32.mrb[0].mxu0
    %4957 = vmatprep.mubr.bf16.mxu0 0
    %4958 = vmatmul.mubr.bf16.gmra.mrb[0].mxu0 %v4410
    %v4959 = vpop.f32.mrb[0].mxu0
    %v4960 = vadd.f32 %v4623, %v4959
    %v4961 = vpop.f32.mrb[0].mxu0
    %v4962 = vpop.f32.mrb[0].mxu0
    %v4963 = vadd.f32 %v4626, %v4962
    %v4964 = vpop.f32.mrb[0].mxu0
    %4965 = vmatprep.mubr.bf16.mxu0 0
    %4966 = vmatmul.mubr.bf16.gmra.mrb[0].mxu0 %v4411
    %v4967 = vpop.f32.mrb[0].mxu0
    %v4968 = vadd.f32 %v4631, %v4967
    %v4969 = vpop.f32.mrb[0].mxu0
    %v4970 = vpop.f32.mrb[0].mxu0
    %v4971 = vadd.f32 %v4634, %v4970
    %v4972 = vpop.f32.mrb[0].mxu0
    %4973 = vmatprep.mubr.bf16.mxu0 0
    %4974 = vmatmul.mubr.bf16.gmra.mrb[0].mxu0 %v4412
    %v4975 = vpop.f32.mrb[0].mxu0
    %v4976 = vadd.f32 %v4639, %v4975
    %v4977 = vpop.f32.mrb[0].mxu0
    %v4978 = vpop.f32.mrb[0].mxu0
    %v4979 = vadd.f32 %v4642, %v4978
    %v4980 = vpop.f32.mrb[0].mxu0
    %4981 = vmatprep.mubr.bf16.mxu0 0
    %4982 = vmatmul.mubr.bf16.gmra.mrb[0].mxu0 %v4413
    %v4983 = vpop.f32.mrb[0].mxu0
    %v4984 = vadd.f32 %v4647, %v4983
    %v4985 = vpop.f32.mrb[0].mxu0
    %v4986 = vpop.f32.mrb[0].mxu0
    %v4987 = vadd.f32 %v4650, %v4986
    %v4988 = vpop.f32.mrb[0].mxu0
    %4989 = vmatprep.mubr.bf16.mxu0 0
    %4990 = vmatmul.mubr.bf16.gmra.mrb[0].mxu0 %v4414
    %v4991 = vpop.f32.mrb[0].mxu0
    %v4992 = vadd.f32 %v4655, %v4991
    %v4993 = vpop.f32.mrb[0].mxu0
    %v4994 = vpop.f32.mrb[0].mxu0
    %v4995 = vadd.f32 %v4658, %v4994
    %v4996 = vpop.f32.mrb[0].mxu0
    %4997 = vmatprep.mubr.bf16.mxu0 0
    %4998 = vmatmul.mubr.bf16.gmra.mrb[0].mxu0 %v4415
    %v4999 = vpop.f32.mrb[0].mxu0
    %v5000 = vadd.f32 %v4663, %v4999
    %v5001 = vpop.f32.mrb[0].mxu0
    %v5002 = vpop.f32.mrb[0].mxu0
    %v5003 = vadd.f32 %v4666, %v5002
    %v5004 = vpop.f32.mrb[0].mxu0
    %5005 = vmatprep.mubr.bf16.mxu0 0
    %5006 = vmatmul.mubr.bf16.gmra.mrb[0].mxu0 %v4416
    %v5007 = vpop.f32.mrb[0].mxu0
    %v5008 = vadd.f32 %v4671, %v5007
    %v5009 = vpop.f32.mrb[0].mxu0
    %v5010 = vpop.f32.mrb[0].mxu0
    %v5011 = vadd.f32 %v4674, %v5010
    %v5012 = vpop.f32.mrb[0].mxu0
    %5013 = vmatprep.mubr.bf16.mxu0 0
    %5014 = vmatmul.mubr.bf16.gmra.mrb[0].mxu0 %v4417
    %v5015 = vpop.f32.mrb[0].mxu0
    %v5016 = vadd.f32 %v4679, %v5015
    %v5017 = vpop.f32.mrb[0].mxu0
    %v5018 = vpop.f32.mrb[0].mxu0
    %v5019 = vadd.f32 %v4682, %v5018
    %v5020 = vpop.f32.mrb[0].mxu0
    %5021 = vmatprep.mubr.bf16.mxu0 0
    %5022 = vmatmul.mubr.bf16.gmra.mrb[0].mxu0 %v4418
    %v5023 = vpop.f32.mrb[0].mxu0
    %v5024 = vadd.f32 %v4687, %v5023
    %v5025 = vpop.f32.mrb[0].mxu0
    %v5026 = vpop.f32.mrb[0].mxu0
    %v5027 = vadd.f32 %v4690, %v5026
    %v5028 = vpop.f32.mrb[0].mxu0
    %5029 = vmatprep.mubr.bf16.mxu0 0
    %5030 = vmatmul.mubr.bf16.gmra.mrb[0].mxu0 %v4419
    %v5031 = vpop.f32.mrb[0].mxu0
    %v5032 = vadd.f32 %v4695, %v5031
    %v5033 = vpop.f32.mrb[0].mxu0
    %v5034 = vpop.f32.mrb[0].mxu0
    %v5035 = vadd.f32 %v4698, %v5034
    %v5036 = vpop.f32.mrb[0].mxu0
    %5037 = vmatprep.mubr.bf16.mxu0 0
    %5038 = vmatmul.mubr.bf16.gmra.mrb[0].mxu0 %v4420
    %v5039 = vpop.f32.mrb[0].mxu0
    %v5040 = vadd.f32 %v4703, %v5039
    %v5041 = vpop.f32.mrb[0].mxu0
    %v5042 = vpop.f32.mrb[0].mxu0
    %v5043 = vadd.f32 %v4706, %v5042
    %v5044 = vpop.f32.mrb[0].mxu0
    %5045 = vmatprep.mubr.bf16.mxu0 0
    %5046 = vmatmul.mubr.bf16.gmra.mrb[0].mxu0 %v4421
    %v5047 = vpop.f32.mrb[0].mxu0
    %v5048 = vadd.f32 %v4711, %v5047
    %v5049 = vpop.f32.mrb[0].mxu0
    %v5050 = vpop.f32.mrb[0].mxu0
    %v5051 = vadd.f32 %v4714, %v5050
    %v5052 = vpop.f32.mrb[0].mxu0
    %5053 = vmatprep.mubr.bf16.mxu0 0
    %5054 = vmatmul.mubr.bf16.gmra.mrb[0].mxu0 %v4422
    %v5055 = vpop.f32.mrb[0].mxu0
    %v5056 = vadd.f32 %v4719, %v5055
    %v5057 = vpop.f32.mrb[0].mxu0
    %v5058 = vpop.f32.mrb[0].mxu0
    %v5059 = vadd.f32 %v4722, %v5058
    %v5060 = vpop.f32.mrb[0].mxu0
    %5061 = vmatprep.mubr.bf16.mxu0 0
    %5062 = vmatmul.mubr.bf16.gmra.mrb[0].mxu0 %v4423
    %v5063 = vpop.f32.mrb[0].mxu0
    %v5064 = vadd.f32 %v4727, %v5063
    %v5065 = vpop.f32.mrb[0].mxu0
    %v5066 = vpop.f32.mrb[0].mxu0
    %v5067 = vadd.f32 %v4730, %v5066
    %v5068 = vpop.f32.mrb[0].mxu0
    %5069 = vmatprep.mubr.bf16.mxu0 0
    %5070 = vmatmul.mubr.bf16.gmra.mrb[0].mxu0 %v4424
    %v5071 = vpop.f32.mrb[0].mxu0
    %v5072 = vadd.f32 %v4735, %v5071
    %v5073 = vpop.f32.mrb[0].mxu0
    %v5074 = vpop.f32.mrb[0].mxu0
    %v5075 = vadd.f32 %v4738, %v5074
    %v5076 = vpop.f32.mrb[0].mxu0
    %5077 = vmatprep.mubr.bf16.mxu0 0
    %5078 = vmatmul.mubr.bf16.gmra.mrb[0].mxu0 %v4425
    %v5079 = vpop.f32.mrb[0].mxu0
    %v5080 = vadd.f32 %v4743, %v5079
    %v5081 = vpop.f32.mrb[0].mxu0
    %v5082 = vpop.f32.mrb[0].mxu0
    %v5083 = vadd.f32 %v4746, %v5082
    %v5084 = vpop.f32.mrb[0].mxu0
    %5085 = vmatprep.mubr.bf16.mxu0 0
    %5086 = vmatmul.mubr.bf16.gmra.mrb[0].mxu0 %v4426
    %v5087 = vpop.f32.mrb[0].mxu0
    %v5088 = vadd.f32 %v4751, %v5087
    %v5089 = vpop.f32.mrb[0].mxu0
    %v5090 = vpop.f32.mrb[0].mxu0
    %v5091 = vadd.f32 %v4754, %v5090
    %v5092 = vpop.f32.mrb[0].mxu0
    %5093 = vmatprep.mubr.bf16.mxu0 0
    %5094 = vmatmul.mubr.bf16.gmra.mrb[0].mxu0 %v4427
    %v5095 = vpop.f32.mrb[0].mxu0
    %v5096 = vadd.f32 %v4759, %v5095
    %v5097 = vpop.f32.mrb[0].mxu0
    %v5098 = vpop.f32.mrb[0].mxu0
    %v5099 = vadd.f32 %v4762, %v5098
    %v5100 = vpop.f32.mrb[0].mxu0
    %5101 = vmatprep.mubr.bf16.mxu0 0
    %5102 = vmatmul.mubr.bf16.gmra.mrb[0].mxu0 %v4428
    %v5103 = vpop.f32.mrb[0].mxu0
    %v5104 = vadd.f32 %v4767, %v5103
    %v5105 = vpop.f32.mrb[0].mxu0
    %v5106 = vpop.f32.mrb[0].mxu0
    %v5107 = vadd.f32 %v4770, %v5106
    %v5108 = vpop.f32.mrb[0].mxu0
    %5109 = vmatprep.mubr.bf16.mxu0 0
    %5110 = vmatmul.mubr.bf16.gmra.mrb[0].mxu0 %v4429
    %v5111 = vpop.f32.mrb[0].mxu0
    %v5112 = vadd.f32 %v4775, %v5111
    %v5113 = vpop.f32.mrb[0].mxu0
    %v5114 = vpop.f32.mrb[0].mxu0
    %v5115 = vadd.f32 %v4778, %v5114
    %v5116 = vpop.f32.mrb[0].mxu0
    %5117 = vmatprep.mubr.bf16.mxu0 0
    %5118 = vmatmul.mubr.bf16.gmra.mrb[0].mxu0 %v4430
    %v5119 = vpop.f32.mrb[0].mxu0
    %v5120 = vadd.f32 %v4783, %v5119
    %v5121 = vpop.f32.mrb[0].mxu0
    %v5122 = vpop.f32.mrb[0].mxu0
    %v5123 = vadd.f32 %v4786, %v5122
    %v5124 = vpop.f32.mrb[0].mxu0
    %5125 = vmatprep.mubr.bf16.mxu0 0
    %5126 = vmatmul.mubr.bf16.gmra.mrb[0].mxu0 %v4431
    %v5127 = vpop.f32.mrb[0].mxu0
    %v5128 = vadd.f32 %v4791, %v5127
    %v5129 = vpop.f32.mrb[0].mxu0
    %v5130 = vpop.f32.mrb[0].mxu0
    %v5131 = vadd.f32 %v4794, %v5130
    %v5132 = vpop.f32.mrb[0].mxu0
    %5133 = vmatprep.mubr.bf16.mxu0 0
    %5134 = vmatmul.mubr.bf16.gmra.mrb[0].mxu0 %v4432
    %v5135 = vpop.f32.mrb[0].mxu0
    %v5136 = vadd.f32 %v4799, %v5135
    %v5137 = vpop.f32.mrb[0].mxu0
    %v5138 = vpop.f32.mrb[0].mxu0
    %v5139 = vadd.f32 %v4802, %v5138
    %v5140 = vpop.f32.mrb[0].mxu0
    %5141 = vdwg.mxu0
    %v5142 = vpack.c.bf16 %v4364, %v4363
    %v5143 = vpack.c.bf16 %v4400, %v4399
    %s5144 = scalar_lea.vmem %s4, 384
    %v5145 = vld [vmem:[%s5144] sm:$0xf]
    %v5146 = vld [vmem:[%s5144 + $0x4] sm:$0xf]
    %v5147 = vld [vmem:[%s5144 + $0x8] sm:$0xf]
    %v5148 = vld [vmem:[%s5144 + $0xc] sm:$0xf]
    %v5149 = vld [vmem:[%s5144 + $0x10] sm:$0xf]
    %v5150 = vld [vmem:[%s5144 + $0x14] sm:$0xf]
    %v5151 = vld [vmem:[%s5144 + $0x18] sm:$0xf]
    %v5152 = vld [vmem:[%s5144 + $0x1c] sm:$0xf]
    %v5153 = vld [vmem:[%s5144 + $0x20] sm:$0xf]
    %v5154 = vld [vmem:[%s5144 + $0x24] sm:$0xf]
    %v5155 = vld [vmem:[%s5144 + $0x28] sm:$0xf]
    %v5156 = vld [vmem:[%s5144 + $0x2c] sm:$0xf]
    %v5157 = vld [vmem:[%s5144 + $0x30] sm:$0xf]
    %v5158 = vld [vmem:[%s5144 + $0x34] sm:$0xf]
    %v5159 = vld [vmem:[%s5144 + $0x38] sm:$0xf]
    %v5160 = vld [vmem:[%s5144 + $0x3c] sm:$0xf]
    %v5177 = vunpack.c.l.b16 %v5145
    %v5178 = vunpack.c.l.b16 %v5146
    %v5179 = vunpack.c.l.b16 %v5147
    %v5180 = vunpack.c.l.b16 %v5148
    %v5181 = vunpack.c.l.b16 %v5149
    %v5182 = vunpack.c.l.b16 %v5150
    %v5183 = vunpack.c.l.b16 %v5151
    %v5184 = vunpack.c.l.b16 %v5152
    %v5185 = vunpack.c.l.b16 %v5153
    %v5186 = vunpack.c.l.b16 %v5154
    %v5187 = vunpack.c.l.b16 %v5155
    %v5188 = vunpack.c.l.b16 %v5156
    %v5189 = vunpack.c.l.b16 %v5157
    %v5190 = vunpack.c.l.b16 %v5158
    %v5191 = vunpack.c.l.b16 %v5159
    %v5192 = vunpack.c.l.b16 %v5160
    %v5193 = vpack.c.b16 %v5178, %v5177
    %v5194 = vpack.c.b16 %v5180, %v5179
    %v5195 = vpack.c.b16 %v5182, %v5181
    %v5196 = vpack.c.b16 %v5184, %v5183
    %v5197 = vpack.c.b16 %v5186, %v5185
    %v5198 = vpack.c.b16 %v5188, %v5187
    %v5199 = vpack.c.b16 %v5190, %v5189
    %v5200 = vpack.c.b16 %v5192, %v5191
    %5209 = vmatprep.subr.bf16.mxu0 0
    %5210 = vmatpush1.bf16.msra.mxu0 %v5193
    %5211 = vmatprep.subr.bf16.mxu0 0
    %5212 = vmatpush1.bf16.msra.mxu0 %v5194
    %5213 = vmatprep.subr.bf16.mxu0 0
    %5214 = vmatpush1.bf16.msra.mxu0 %v5195
    %5215 = vmatprep.subr.bf16.mxu0 0
    %5216 = vmatpush1.bf16.msra.mxu0 %v5196
    %5217 = vmatprep.subr.bf16.mxu0 0
    %5218 = vmatpush1.bf16.msra.mxu0 %v5197
    %5219 = vmatprep.subr.bf16.mxu0 0
    %5220 = vmatpush1.bf16.msra.mxu0 %v5198
    %5221 = vmatprep.subr.bf16.mxu0 0
    %5222 = vmatpush1.bf16.msra.mxu0 %v5199
    %5223 = vmatprep.subr.bf16.mxu0 0
    %5224 = vmatpush1.bf16.msra.mxu0 %v5200
    %5225 = vmatprep.subr.bf16.mxu0 0
    %5226 = vmatpush1.bf16.msra.mxu0 0
    %5227 = vmatprep.subr.bf16.mxu0 0
    %5228 = vmatpush1.bf16.msra.mxu0 0
    %5229 = vmatprep.subr.bf16.mxu0 0
    %5230 = vmatpush1.bf16.msra.mxu0 0
    %5231 = vmatprep.subr.bf16.mxu0 0
    %5232 = vmatpush1.bf16.msra.mxu0 0
    %5233 = vmatprep.subr.bf16.mxu0 0
    %5234 = vmatpush1.bf16.msra.mxu0 0
    %5235 = vmatprep.subr.bf16.mxu0 0
    %5236 = vmatpush1.bf16.msra.mxu0 0
    %5237 = vmatprep.subr.bf16.mxu0 0
    %5238 = vmatpush1.bf16.msra.mxu0 0
    %5239 = vmatprep.subr.bf16.mxu0 0
    %5240 = vmatpush1.bf16.msra.mxu0 0
    %5241 = vmatprep.mubr.bf16.mxu0 0
    %5242 = vmatmul.mubr.bf16.gmra.mrb[0].mxu0 %v4403
    %v5243 = vpop.f32.mrb[0].mxu0
    %v5244 = vadd.f32 0.0, %v5243
    %v5245 = vpop.f32.mrb[0].mxu0
    %v5246 = vpop.f32.mrb[0].mxu0
    %v5247 = vadd.f32 0.0, %v5246
    %v5248 = vpop.f32.mrb[0].mxu0
    %5249 = vmatprep.mubr.bf16.mxu0 0
    %5250 = vmatmul.mubr.bf16.gmra.mrb[0].mxu0 %v4404
    %v5251 = vpop.f32.mrb[0].mxu0
    %v5252 = vadd.f32 0.0, %v5251
    %v5253 = vpop.f32.mrb[0].mxu0
    %v5254 = vpop.f32.mrb[0].mxu0
    %v5255 = vadd.f32 0.0, %v5254
    %v5256 = vpop.f32.mrb[0].mxu0
    %5257 = vmatprep.mubr.bf16.mxu0 0
    %5258 = vmatmul.mubr.bf16.gmra.mrb[0].mxu0 %v4405
    %v5259 = vpop.f32.mrb[0].mxu0
    %v5260 = vadd.f32 0.0, %v5259
    %v5261 = vpop.f32.mrb[0].mxu0
    %v5262 = vpop.f32.mrb[0].mxu0
    %v5263 = vadd.f32 0.0, %v5262
    %v5264 = vpop.f32.mrb[0].mxu0
    %5265 = vmatprep.mubr.bf16.mxu0 0
    %5266 = vmatmul.mubr.bf16.gmra.mrb[0].mxu0 %v4406
    %v5267 = vpop.f32.mrb[0].mxu0
    %v5268 = vadd.f32 0.0, %v5267
    %v5269 = vpop.f32.mrb[0].mxu0
    %v5270 = vpop.f32.mrb[0].mxu0
    %v5271 = vadd.f32 0.0, %v5270
    %v5272 = vpop.f32.mrb[0].mxu0
    %5273 = vmatprep.mubr.bf16.mxu0 0
    %5274 = vmatmul.mubr.bf16.gmra.mrb[0].mxu0 %v4407
    %v5275 = vpop.f32.mrb[0].mxu0
    %v5276 = vadd.f32 0.0, %v5275
    %v5277 = vpop.f32.mrb[0].mxu0
    %v5278 = vpop.f32.mrb[0].mxu0
    %v5279 = vadd.f32 0.0, %v5278
    %v5280 = vpop.f32.mrb[0].mxu0
    %5281 = vmatprep.mubr.bf16.mxu0 0
    %5282 = vmatmul.mubr.bf16.gmra.mrb[0].mxu0 %v4408
    %v5283 = vpop.f32.mrb[0].mxu0
    %v5284 = vadd.f32 0.0, %v5283
    %v5285 = vpop.f32.mrb[0].mxu0
    %v5286 = vpop.f32.mrb[0].mxu0
    %v5287 = vadd.f32 0.0, %v5286
    %v5288 = vpop.f32.mrb[0].mxu0
    %5289 = vmatprep.mubr.bf16.mxu0 0
    %5290 = vmatmul.mubr.bf16.gmra.mrb[0].mxu0 %v4409
    %v5291 = vpop.f32.mrb[0].mxu0
    %v5292 = vadd.f32 0.0, %v5291
    %v5293 = vpop.f32.mrb[0].mxu0
    %v5294 = vpop.f32.mrb[0].mxu0
    %v5295 = vadd.f32 0.0, %v5294
    %v5296 = vpop.f32.mrb[0].mxu0
    %5297 = vmatprep.mubr.bf16.mxu0 0
    %5298 = vmatmul.mubr.bf16.gmra.mrb[0].mxu0 %v4410
    %v5299 = vpop.f32.mrb[0].mxu0
    %v5300 = vadd.f32 0.0, %v5299
    %v5301 = vpop.f32.mrb[0].mxu0
    %v5302 = vpop.f32.mrb[0].mxu0
    %v5303 = vadd.f32 0.0, %v5302
    %v5304 = vpop.f32.mrb[0].mxu0
    %5305 = vmatprep.mubr.bf16.mxu0 0
    %5306 = vmatmul.mubr.bf16.gmra.mrb[0].mxu0 %v4411
    %v5307 = vpop.f32.mrb[0].mxu0
    %v5308 = vadd.f32 0.0, %v5307
    %v5309 = vpop.f32.mrb[0].mxu0
    %v5310 = vpop.f32.mrb[0].mxu0
    %v5311 = vadd.f32 0.0, %v5310
    %v5312 = vpop.f32.mrb[0].mxu0
    %5313 = vmatprep.mubr.bf16.mxu0 0
    %5314 = vmatmul.mubr.bf16.gmra.mrb[0].mxu0 %v4412
    %v5315 = vpop.f32.mrb[0].mxu0
    %v5316 = vadd.f32 0.0, %v5315
    %v5317 = vpop.f32.mrb[0].mxu0
    %v5318 = vpop.f32.mrb[0].mxu0
    %v5319 = vadd.f32 0.0, %v5318
    %v5320 = vpop.f32.mrb[0].mxu0
    %5321 = vmatprep.mubr.bf16.mxu0 0
    %5322 = vmatmul.mubr.bf16.gmra.mrb[0].mxu0 %v4413
    %v5323 = vpop.f32.mrb[0].mxu0
    %v5324 = vadd.f32 0.0, %v5323
    %v5325 = vpop.f32.mrb[0].mxu0
    %v5326 = vpop.f32.mrb[0].mxu0
    %v5327 = vadd.f32 0.0, %v5326
    %v5328 = vpop.f32.mrb[0].mxu0
    %5329 = vmatprep.mubr.bf16.mxu0 0
    %5330 = vmatmul.mubr.bf16.gmra.mrb[0].mxu0 %v4414
    %v5331 = vpop.f32.mrb[0].mxu0
    %v5332 = vadd.f32 0.0, %v5331
    %v5333 = vpop.f32.mrb[0].mxu0
    %v5334 = vpop.f32.mrb[0].mxu0
    %v5335 = vadd.f32 0.0, %v5334
    %v5336 = vpop.f32.mrb[0].mxu0
    %5337 = vmatprep.mubr.bf16.mxu0 0
    %5338 = vmatmul.mubr.bf16.gmra.mrb[0].mxu0 %v4415
    %v5339 = vpop.f32.mrb[0].mxu0
    %v5340 = vadd.f32 0.0, %v5339
    %v5341 = vpop.f32.mrb[0].mxu0
    %v5342 = vpop.f32.mrb[0].mxu0
    %v5343 = vadd.f32 0.0, %v5342
    %v5344 = vpop.f32.mrb[0].mxu0
    %5345 = vmatprep.mubr.bf16.mxu0 0
    %5346 = vmatmul.mubr.bf16.gmra.mrb[0].mxu0 %v4416
    %v5347 = vpop.f32.mrb[0].mxu0
    %v5348 = vadd.f32 0.0, %v5347
    %v5349 = vpop.f32.mrb[0].mxu0
    %v5350 = vpop.f32.mrb[0].mxu0
    %v5351 = vadd.f32 0.0, %v5350
    %v5352 = vpop.f32.mrb[0].mxu0
    %5353 = vmatprep.mubr.bf16.mxu0 0
    %5354 = vmatmul.mubr.bf16.gmra.mrb[0].mxu0 %v4449
    %v5355 = vpop.f32.mrb[0].mxu0
    %v5356 = vadd.f32 0.0, %v5355
    %v5357 = vpop.f32.mrb[0].mxu0
    %v5358 = vpop.f32.mrb[0].mxu0
    %v5359 = vadd.f32 0.0, %v5358
    %v5360 = vpop.f32.mrb[0].mxu0
    %5361 = vmatprep.mubr.bf16.mxu0 0
    %5362 = vmatmul.mubr.bf16.gmra.mrb[0].mxu0 %v5142
    %v5363 = vpop.f32.mrb[0].mxu0
    %v5364 = vadd.f32 0.0, %v5363
    %v5365 = vpop.f32.mrb[0].mxu0
    %v5366 = vpop.f32.mrb[0].mxu0
    %v5367 = vadd.f32 0.0, %v5366
    %v5368 = vpop.f32.mrb[0].mxu0
    %5369 = vmatprep.mubr.bf16.mxu0 0
    %5370 = vmatmul.mubr.bf16.gmra.mrb[0].mxu0 %v4419
    %v5371 = vpop.f32.mrb[0].mxu0
    %v5372 = vadd.f32 0.0, %v5371
    %v5373 = vpop.f32.mrb[0].mxu0
    %v5374 = vpop.f32.mrb[0].mxu0
    %v5375 = vadd.f32 0.0, %v5374
    %v5376 = vpop.f32.mrb[0].mxu0
    %5377 = vmatprep.mubr.bf16.mxu0 0
    %5378 = vmatmul.mubr.bf16.gmra.mrb[0].mxu0 %v4420
    %v5379 = vpop.f32.mrb[0].mxu0
    %v5380 = vadd.f32 0.0, %v5379
    %v5381 = vpop.f32.mrb[0].mxu0
    %v5382 = vpop.f32.mrb[0].mxu0
    %v5383 = vadd.f32 0.0, %v5382
    %v5384 = vpop.f32.mrb[0].mxu0
    %5385 = vmatprep.mubr.bf16.mxu0 0
    %5386 = vmatmul.mubr.bf16.gmra.mrb[0].mxu0 %v4421
    %v5387 = vpop.f32.mrb[0].mxu0
    %v5388 = vadd.f32 0.0, %v5387
    %v5389 = vpop.f32.mrb[0].mxu0
    %v5390 = vpop.f32.mrb[0].mxu0
    %v5391 = vadd.f32 0.0, %v5390
    %v5392 = vpop.f32.mrb[0].mxu0
    %5393 = vmatprep.mubr.bf16.mxu0 0
    %5394 = vmatmul.mubr.bf16.gmra.mrb[0].mxu0 %v4422
    %v5395 = vpop.f32.mrb[0].mxu0
    %v5396 = vadd.f32 0.0, %v5395
    %v5397 = vpop.f32.mrb[0].mxu0
    %v5398 = vpop.f32.mrb[0].mxu0
    %v5399 = vadd.f32 0.0, %v5398
    %v5400 = vpop.f32.mrb[0].mxu0
    %5401 = vmatprep.mubr.bf16.mxu0 0
    %5402 = vmatmul.mubr.bf16.gmra.mrb[0].mxu0 %v4423
    %v5403 = vpop.f32.mrb[0].mxu0
    %v5404 = vadd.f32 0.0, %v5403
    %v5405 = vpop.f32.mrb[0].mxu0
    %v5406 = vpop.f32.mrb[0].mxu0
    %v5407 = vadd.f32 0.0, %v5406
    %v5408 = vpop.f32.mrb[0].mxu0
    %5409 = vmatprep.mubr.bf16.mxu0 0
    %5410 = vmatmul.mubr.bf16.gmra.mrb[0].mxu0 %v4424
    %v5411 = vpop.f32.mrb[0].mxu0
    %v5412 = vadd.f32 0.0, %v5411
    %v5413 = vpop.f32.mrb[0].mxu0
    %v5414 = vpop.f32.mrb[0].mxu0
    %v5415 = vadd.f32 0.0, %v5414
    %v5416 = vpop.f32.mrb[0].mxu0
    %5417 = vmatprep.mubr.bf16.mxu0 0
    %5418 = vmatmul.mubr.bf16.gmra.mrb[0].mxu0 %v4425
    %v5419 = vpop.f32.mrb[0].mxu0
    %v5420 = vadd.f32 0.0, %v5419
    %v5421 = vpop.f32.mrb[0].mxu0
    %v5422 = vpop.f32.mrb[0].mxu0
    %v5423 = vadd.f32 0.0, %v5422
    %v5424 = vpop.f32.mrb[0].mxu0
    %5425 = vmatprep.mubr.bf16.mxu0 0
    %5426 = vmatmul.mubr.bf16.gmra.mrb[0].mxu0 %v4426
    %v5427 = vpop.f32.mrb[0].mxu0
    %v5428 = vadd.f32 0.0, %v5427
    %v5429 = vpop.f32.mrb[0].mxu0
    %v5430 = vpop.f32.mrb[0].mxu0
    %v5431 = vadd.f32 0.0, %v5430
    %v5432 = vpop.f32.mrb[0].mxu0
    %5433 = vmatprep.mubr.bf16.mxu0 0
    %5434 = vmatmul.mubr.bf16.gmra.mrb[0].mxu0 %v4427
    %v5435 = vpop.f32.mrb[0].mxu0
    %v5436 = vadd.f32 0.0, %v5435
    %v5437 = vpop.f32.mrb[0].mxu0
    %v5438 = vpop.f32.mrb[0].mxu0
    %v5439 = vadd.f32 0.0, %v5438
    %v5440 = vpop.f32.mrb[0].mxu0
    %5441 = vmatprep.mubr.bf16.mxu0 0
    %5442 = vmatmul.mubr.bf16.gmra.mrb[0].mxu0 %v4428
    %v5443 = vpop.f32.mrb[0].mxu0
    %v5444 = vadd.f32 0.0, %v5443
    %v5445 = vpop.f32.mrb[0].mxu0
    %v5446 = vpop.f32.mrb[0].mxu0
    %v5447 = vadd.f32 0.0, %v5446
    %v5448 = vpop.f32.mrb[0].mxu0
    %5449 = vmatprep.mubr.bf16.mxu0 0
    %5450 = vmatmul.mubr.bf16.gmra.mrb[0].mxu0 %v4429
    %v5451 = vpop.f32.mrb[0].mxu0
    %v5452 = vadd.f32 0.0, %v5451
    %v5453 = vpop.f32.mrb[0].mxu0
    %v5454 = vpop.f32.mrb[0].mxu0
    %v5455 = vadd.f32 0.0, %v5454
    %v5456 = vpop.f32.mrb[0].mxu0
    %5457 = vmatprep.mubr.bf16.mxu0 0
    %5458 = vmatmul.mubr.bf16.gmra.mrb[0].mxu0 %v4430
    %v5459 = vpop.f32.mrb[0].mxu0
    %v5460 = vadd.f32 0.0, %v5459
    %v5461 = vpop.f32.mrb[0].mxu0
    %v5462 = vpop.f32.mrb[0].mxu0
    %v5463 = vadd.f32 0.0, %v5462
    %v5464 = vpop.f32.mrb[0].mxu0
    %5465 = vmatprep.mubr.bf16.mxu0 0
    %5466 = vmatmul.mubr.bf16.gmra.mrb[0].mxu0 %v4431
    %v5467 = vpop.f32.mrb[0].mxu0
    %v5468 = vadd.f32 0.0, %v5467
    %v5469 = vpop.f32.mrb[0].mxu0
    %v5470 = vpop.f32.mrb[0].mxu0
    %v5471 = vadd.f32 0.0, %v5470
    %v5472 = vpop.f32.mrb[0].mxu0
    %5473 = vmatprep.mubr.bf16.mxu0 0
    %5474 = vmatmul.mubr.bf16.gmra.mrb[0].mxu0 %v4432
    %v5475 = vpop.f32.mrb[0].mxu0
    %v5476 = vadd.f32 0.0, %v5475
    %v5477 = vpop.f32.mrb[0].mxu0
    %v5478 = vpop.f32.mrb[0].mxu0
    %v5479 = vadd.f32 0.0, %v5478
    %v5480 = vpop.f32.mrb[0].mxu0
    %5481 = vmatprep.mubr.bf16.mxu0 0
    %5482 = vmatmul.mubr.bf16.gmra.mrb[0].mxu0 %v4450
    %v5483 = vpop.f32.mrb[0].mxu0
    %v5484 = vadd.f32 0.0, %v5483
    %v5485 = vpop.f32.mrb[0].mxu0
    %v5486 = vpop.f32.mrb[0].mxu0
    %v5487 = vadd.f32 0.0, %v5486
    %v5488 = vpop.f32.mrb[0].mxu0
    %5489 = vmatprep.mubr.bf16.mxu0 0
    %5490 = vmatmul.mubr.bf16.gmra.mrb[0].mxu0 %v5143
    %v5491 = vpop.f32.mrb[0].mxu0
    %v5492 = vadd.f32 0.0, %v5491
    %v5493 = vpop.f32.mrb[0].mxu0
    %v5494 = vpop.f32.mrb[0].mxu0
    %v5495 = vadd.f32 0.0, %v5494
    %v5496 = vpop.f32.mrb[0].mxu0
    %5497 = vdwg.mxu0
    %v5498 = vadd.f32 %v4888, %v5244
    %v5499 = vadd.f32 %v4891, %v5247
    %v5500 = vadd.f32 %v4896, %v5252
    %v5501 = vadd.f32 %v4899, %v5255
    %v5502 = vadd.f32 %v4904, %v5260
    %v5503 = vadd.f32 %v4907, %v5263
    %v5504 = vadd.f32 %v4912, %v5268
    %v5505 = vadd.f32 %v4915, %v5271
    %v5506 = vadd.f32 %v4920, %v5276
    %v5507 = vadd.f32 %v4923, %v5279
    %v5508 = vadd.f32 %v4928, %v5284
    %v5509 = vadd.f32 %v4931, %v5287
    %v5510 = vadd.f32 %v4936, %v5292
    %v5511 = vadd.f32 %v4939, %v5295
    %v5512 = vadd.f32 %v4944, %v5300
    %v5513 = vadd.f32 %v4947, %v5303
    %v5514 = vadd.f32 %v4952, %v5308
    %v5515 = vadd.f32 %v4955, %v5311
    %v5516 = vadd.f32 %v4960, %v5316
    %v5517 = vadd.f32 %v4963, %v5319
    %v5518 = vadd.f32 %v4968, %v5324
    %v5519 = vadd.f32 %v4971, %v5327
    %v5520 = vadd.f32 %v4976, %v5332
    %v5521 = vadd.f32 %v4979, %v5335
    %v5522 = vadd.f32 %v4984, %v5340
    %v5523 = vadd.f32 %v4987, %v5343
    %v5524 = vadd.f32 %v4992, %v5348
    %v5525 = vadd.f32 %v4995, %v5351
    %v5526 = vadd.f32 %v5000, %v5356
    %v5527 = vadd.f32 %v5003, %v5359
    %v5528 = vadd.f32 %v5008, %v5364
    %v5529 = vadd.f32 %v5011, %v5367
    %v5530 = vadd.f32 %v5016, %v5372
    %v5531 = vadd.f32 %v5019, %v5375
    %v5532 = vadd.f32 %v5024, %v5380
    %v5533 = vadd.f32 %v5027, %v5383
    %v5534 = vadd.f32 %v5032, %v5388
    %v5535 = vadd.f32 %v5035, %v5391
    %v5536 = vadd.f32 %v5040, %v5396
    %v5537 = vadd.f32 %v5043, %v5399
    %v5538 = vadd.f32 %v5048, %v5404
    %v5539 = vadd.f32 %v5051, %v5407
    %v5540 = vadd.f32 %v5056, %v5412
    %v5541 = vadd.f32 %v5059, %v5415
    %v5542 = vadd.f32 %v5064, %v5420
    %v5543 = vadd.f32 %v5067, %v5423
    %v5544 = vadd.f32 %v5072, %v5428
    %v5545 = vadd.f32 %v5075, %v5431
    %v5546 = vadd.f32 %v5080, %v5436
    %v5547 = vadd.f32 %v5083, %v5439
    %v5548 = vadd.f32 %v5088, %v5444
    %v5549 = vadd.f32 %v5091, %v5447
    %v5550 = vadd.f32 %v5096, %v5452
    %v5551 = vadd.f32 %v5099, %v5455
    %v5552 = vadd.f32 %v5104, %v5460
    %v5553 = vadd.f32 %v5107, %v5463
    %v5554 = vadd.f32 %v5112, %v5468
    %v5555 = vadd.f32 %v5115, %v5471
    %v5556 = vadd.f32 %v5120, %v5476
    %v5557 = vadd.f32 %v5123, %v5479
    %v5558 = vadd.f32 %v5128, %v5484
    %v5559 = vadd.f32 %v5131, %v5487
    %v5560 = vadd.f32 %v5136, %v5492
    %v5561 = vadd.f32 %v5139, %v5495
    %v5562 = vld [vmem:[#allocation2 + $0x1] sm:$0xff]
    %v5563 = vld [vmem:[#allocation2 + $0x9] sm:$0xff]
    %v5564 = vld [vmem:[#allocation2 + $0x19] sm:$0xff]
    %v5565 = vld [vmem:[#allocation2 + $0x21] sm:$0xff]
    %v5566 = vld [vmem:[#allocation2 + $0x31] sm:$0xff]
    %v5567 = vld [vmem:[#allocation2 + $0x39] sm:$0xff]
    %v5568 = vld [vmem:[#allocation2 + $0x49] sm:$0xff]
    %v5569 = vld [vmem:[#allocation2 + $0x51] sm:$0xff]
    %v5570 = vld [vmem:[#allocation2 + $0x61] sm:$0xff]
    %v5571 = vld [vmem:[#allocation2 + $0x69] sm:$0xff]
    %v5572 = vld [vmem:[#allocation2 + $0x79] sm:$0xff]
    %v5573 = vld [vmem:[#allocation2 + $0x81] sm:$0xff]
    %v5574 = vld [vmem:[#allocation2 + $0x91] sm:$0xff]
    %v5575 = vld [vmem:[#allocation2 + $0x99] sm:$0xff]
    %v5576 = vld [vmem:[#allocation2 + $0xa9] sm:$0xff]
    %v5577 = vld [vmem:[#allocation2 + $0xb1] sm:$0xff]
    %v5578 = vld [vmem:[#allocation2 + $0xc1] sm:$0xff]
    %v5579 = vld [vmem:[#allocation2 + $0xc9] sm:$0xff]
    %v5580 = vld [vmem:[#allocation2 + $0xd9] sm:$0xff]
    %v5581 = vld [vmem:[#allocation2 + $0xe1] sm:$0xff]
    %v5582 = vld [vmem:[#allocation2 + $0xf1] sm:$0xff]
    %v5583 = vld [vmem:[#allocation2 + $0xf9] sm:$0xff]
    %v5584 = vld [vmem:[#allocation2 + $0x109] sm:$0xff]
    %v5585 = vld [vmem:[#allocation2 + $0x111] sm:$0xff]
    %v5586 = vld [vmem:[#allocation2 + $0x121] sm:$0xff]
    %v5587 = vld [vmem:[#allocation2 + $0x129] sm:$0xff]
    %v5588 = vld [vmem:[#allocation2 + $0x139] sm:$0xff]
    %v5589 = vld [vmem:[#allocation2 + $0x141] sm:$0xff]
    %v5590 = vld [vmem:[#allocation2 + $0x151] sm:$0xff]
    %v5591 = vld [vmem:[#allocation2 + $0x159] sm:$0xff]
    %v5592 = vld [vmem:[#allocation2 + $0x169] sm:$0xff]
    %v5593 = vld [vmem:[#allocation2 + $0x171] sm:$0xff]
    %v5594 = vld [vmem:[#allocation2 + $0x181] sm:$0xff]
    %v5595 = vld [vmem:[#allocation2 + $0x189] sm:$0xff]
    %v5596 = vld [vmem:[#allocation2 + $0x199] sm:$0xff]
    %v5597 = vld [vmem:[#allocation2 + $0x1a1] sm:$0xff]
    %v5598 = vld [vmem:[#allocation2 + $0x1b1] sm:$0xff]
    %v5599 = vld [vmem:[#allocation2 + $0x1b9] sm:$0xff]
    %v5600 = vld [vmem:[#allocation2 + $0x1c9] sm:$0xff]
    %v5601 = vld [vmem:[#allocation2 + $0x1d1] sm:$0xff]
    %v5602 = vld [vmem:[#allocation2 + $0x1e1] sm:$0xff]
    %v5603 = vld [vmem:[#allocation2 + $0x1e9] sm:$0xff]
    %v5604 = vld [vmem:[#allocation2 + $0x1f9] sm:$0xff]
    %v5605 = vld [vmem:[#allocation2 + $0x201] sm:$0xff]
    %v5606 = vld [vmem:[#allocation2 + $0x211] sm:$0xff]
    %v5607 = vld [vmem:[#allocation2 + $0x219] sm:$0xff]
    %v5608 = vld [vmem:[#allocation2 + $0x229] sm:$0xff]
    %v5609 = vld [vmem:[#allocation2 + $0x231] sm:$0xff]
    %v5610 = vld [vmem:[#allocation2 + $0x241] sm:$0xff]
    %v5611 = vld [vmem:[#allocation2 + $0x249] sm:$0xff]
    %v5612 = vld [vmem:[#allocation2 + $0x259] sm:$0xff]
    %v5613 = vld [vmem:[#allocation2 + $0x261] sm:$0xff]
    %v5614 = vld [vmem:[#allocation2 + $0x271] sm:$0xff]
    %v5615 = vld [vmem:[#allocation2 + $0x279] sm:$0xff]
    %v5616 = vld [vmem:[#allocation2 + $0x289] sm:$0xff]
    %v5617 = vld [vmem:[#allocation2 + $0x291] sm:$0xff]
    %v5618 = vld [vmem:[#allocation2 + $0x2a1] sm:$0xff]
    %v5619 = vld [vmem:[#allocation2 + $0x2a9] sm:$0xff]
    %v5620 = vld [vmem:[#allocation2 + $0x2b9] sm:$0xff]
    %v5621 = vld [vmem:[#allocation2 + $0x2c1] sm:$0xff]
    %v5622 = vld [vmem:[#allocation2 + $0x2d1] sm:$0xff]
    %v5623 = vld [vmem:[#allocation2 + $0x2d9] sm:$0xff]
    %v5624 = vld [vmem:[#allocation2 + $0x2e9] sm:$0xff]
    %v5625 = vld [vmem:[#allocation2 + $0x2f1] sm:$0xff]
    %v5626 = vld [vmem:[#allocation2 + $0x301] sm:$0xff]
    %v5627 = vld [vmem:[#allocation2 + $0x309] sm:$0xff]
    %v5628 = vld [vmem:[#allocation2 + $0x319] sm:$0xff]
    %v5629 = vld [vmem:[#allocation2 + $0x321] sm:$0xff]
    %v5630 = vld [vmem:[#allocation2 + $0x331] sm:$0xff]
    %v5631 = vld [vmem:[#allocation2 + $0x339] sm:$0xff]
    %v5632 = vld [vmem:[#allocation2 + $0x349] sm:$0xff]
    %v5633 = vld [vmem:[#allocation2 + $0x351] sm:$0xff]
    %v5634 = vpack.c.bf16 %v5563, %v5562
    %v5635 = vpack.c.bf16 %v5565, %v5564
    %v5636 = vpack.c.bf16 %v5567, %v5566
    %v5637 = vpack.c.bf16 %v5569, %v5568
    %v5638 = vpack.c.bf16 %v5571, %v5570
    %v5639 = vpack.c.bf16 %v5573, %v5572
    %v5640 = vpack.c.bf16 %v5575, %v5574
    %v5641 = vpack.c.bf16 %v5577, %v5576
    %v5642 = vpack.c.bf16 %v5579, %v5578
    %v5643 = vpack.c.bf16 %v5581, %v5580
    %v5644 = vpack.c.bf16 %v5583, %v5582
    %v5645 = vpack.c.bf16 %v5585, %v5584
    %v5646 = vpack.c.bf16 %v5587, %v5586
    %v5647 = vpack.c.bf16 %v5589, %v5588
    %v5648 = vpack.c.bf16 %v5591, %v5590
    %v5649 = vpack.c.bf16 %v5593, %v5592
    %v5650 = vpack.c.bf16 %v5599, %v5598
    %v5651 = vpack.c.bf16 %v5601, %v5600
    %v5652 = vpack.c.bf16 %v5603, %v5602
    %v5653 = vpack.c.bf16 %v5605, %v5604
    %v5654 = vpack.c.bf16 %v5607, %v5606
    %v5655 = vpack.c.bf16 %v5609, %v5608
    %v5656 = vpack.c.bf16 %v5611, %v5610
    %v5657 = vpack.c.bf16 %v5613, %v5612
    %v5658 = vpack.c.bf16 %v5615, %v5614
    %v5659 = vpack.c.bf16 %v5617, %v5616
    %v5660 = vpack.c.bf16 %v5619, %v5618
    %v5661 = vpack.c.bf16 %v5621, %v5620
    %v5662 = vpack.c.bf16 %v5623, %v5622
    %v5663 = vpack.c.bf16 %v5625, %v5624
    %v5664 = vpack.c.bf16 %v5627, %v5626
    %v5665 = vpack.c.bf16 %v5629, %v5628
    %s5666 = scalar_lea.vmem %s4, 64
    %v5667 = vld [vmem:[%s5666] sm:$0xf]
    %v5668 = vld [vmem:[%s5666 + $0x4] sm:$0xf]
    %v5669 = vld [vmem:[%s5666 + $0x8] sm:$0xf]
    %v5670 = vld [vmem:[%s5666 + $0xc] sm:$0xf]
    %v5671 = vld [vmem:[%s5666 + $0x10] sm:$0xf]
    %v5672 = vld [vmem:[%s5666 + $0x14] sm:$0xf]
    %v5673 = vld [vmem:[%s5666 + $0x18] sm:$0xf]
    %v5674 = vld [vmem:[%s5666 + $0x1c] sm:$0xf]
    %v5675 = vld [vmem:[%s5666 + $0x20] sm:$0xf]
    %v5676 = vld [vmem:[%s5666 + $0x24] sm:$0xf]
    %v5677 = vld [vmem:[%s5666 + $0x28] sm:$0xf]
    %v5678 = vld [vmem:[%s5666 + $0x2c] sm:$0xf]
    %v5679 = vld [vmem:[%s5666 + $0x30] sm:$0xf]
    %v5680 = vld [vmem:[%s5666 + $0x34] sm:$0xf]
    %v5681 = vld [vmem:[%s5666 + $0x38] sm:$0xf]
    %v5682 = vld [vmem:[%s5666 + $0x3c] sm:$0xf]
    %v5699 = vunpack.c.l.b16 %v5667
    %v5700 = vunpack.c.l.b16 %v5668
    %v5701 = vunpack.c.l.b16 %v5669
    %v5702 = vunpack.c.l.b16 %v5670
    %v5703 = vunpack.c.l.b16 %v5671
    %v5704 = vunpack.c.l.b16 %v5672
    %v5705 = vunpack.c.l.b16 %v5673
    %v5706 = vunpack.c.l.b16 %v5674
    %v5707 = vunpack.c.l.b16 %v5675
    %v5708 = vunpack.c.l.b16 %v5676
    %v5709 = vunpack.c.l.b16 %v5677
    %v5710 = vunpack.c.l.b16 %v5678
    %v5711 = vunpack.c.l.b16 %v5679
    %v5712 = vunpack.c.l.b16 %v5680
    %v5713 = vunpack.c.l.b16 %v5681
    %v5714 = vunpack.c.l.b16 %v5682
    %v5715 = vpack.c.b16 %v5700, %v5699
    %v5716 = vpack.c.b16 %v5702, %v5701
    %v5717 = vpack.c.b16 %v5704, %v5703
    %v5718 = vpack.c.b16 %v5706, %v5705
    %v5719 = vpack.c.b16 %v5708, %v5707
    %v5720 = vpack.c.b16 %v5710, %v5709
    %v5721 = vpack.c.b16 %v5712, %v5711
    %v5722 = vpack.c.b16 %v5714, %v5713
    %5731 = vmatprep.subr.bf16.mxu0 0
    %5732 = vmatpush1.bf16.msra.mxu0 %v5715
    %5733 = vmatprep.subr.bf16.mxu0 0
    %5734 = vmatpush1.bf16.msra.mxu0 %v5716
    %5735 = vmatprep.subr.bf16.mxu0 0
    %5736 = vmatpush1.bf16.msra.mxu0 %v5717
    %5737 = vmatprep.subr.bf16.mxu0 0
    %5738 = vmatpush1.bf16.msra.mxu0 %v5718
    %5739 = vmatprep.subr.bf16.mxu0 0
    %5740 = vmatpush1.bf16.msra.mxu0 %v5719
    %5741 = vmatprep.subr.bf16.mxu0 0
    %5742 = vmatpush1.bf16.msra.mxu0 %v5720
    %5743 = vmatprep.subr.bf16.mxu0 0
    %5744 = vmatpush1.bf16.msra.mxu0 %v5721
    %5745 = vmatprep.subr.bf16.mxu0 0
    %5746 = vmatpush1.bf16.msra.mxu0 %v5722
    %5747 = vmatprep.subr.bf16.mxu0 0
    %5748 = vmatpush1.bf16.msra.mxu0 0
    %5749 = vmatprep.subr.bf16.mxu0 0
    %5750 = vmatpush1.bf16.msra.mxu0 0
    %5751 = vmatprep.subr.bf16.mxu0 0
    %5752 = vmatpush1.bf16.msra.mxu0 0
    %5753 = vmatprep.subr.bf16.mxu0 0
    %5754 = vmatpush1.bf16.msra.mxu0 0
    %5755 = vmatprep.subr.bf16.mxu0 0
    %5756 = vmatpush1.bf16.msra.mxu0 0
    %5757 = vmatprep.subr.bf16.mxu0 0
    %5758 = vmatpush1.bf16.msra.mxu0 0
    %5759 = vmatprep.subr.bf16.mxu0 0
    %5760 = vmatpush1.bf16.msra.mxu0 0
    %5761 = vmatprep.subr.bf16.mxu0 0
    %5762 = vmatpush1.bf16.msra.mxu0 0
    %5763 = vmatprep.mubr.bf16.mxu0 0
    %5764 = vmatmul.mubr.bf16.gmra.mrb[0].mxu0 %v5634
    %v5765 = vpop.f32.mrb[0].mxu0
    %v5766 = vadd.f32 0.0, %v5765
    %v5767 = vpop.f32.mrb[0].mxu0
    %v5768 = vpop.f32.mrb[0].mxu0
    %v5769 = vadd.f32 0.0, %v5768
    %v5770 = vpop.f32.mrb[0].mxu0
    %5771 = vmatprep.mubr.bf16.mxu0 0
    %5772 = vmatmul.mubr.bf16.gmra.mrb[0].mxu0 %v5635
    %v5773 = vpop.f32.mrb[0].mxu0
    %v5774 = vadd.f32 0.0, %v5773
    %v5775 = vpop.f32.mrb[0].mxu0
    %v5776 = vpop.f32.mrb[0].mxu0
    %v5777 = vadd.f32 0.0, %v5776
    %v5778 = vpop.f32.mrb[0].mxu0
    %5779 = vmatprep.mubr.bf16.mxu0 0
    %5780 = vmatmul.mubr.bf16.gmra.mrb[0].mxu0 %v5636
    %v5781 = vpop.f32.mrb[0].mxu0
    %v5782 = vadd.f32 0.0, %v5781
    %v5783 = vpop.f32.mrb[0].mxu0
    %v5784 = vpop.f32.mrb[0].mxu0
    %v5785 = vadd.f32 0.0, %v5784
    %v5786 = vpop.f32.mrb[0].mxu0
    %5787 = vmatprep.mubr.bf16.mxu0 0
    %5788 = vmatmul.mubr.bf16.gmra.mrb[0].mxu0 %v5637
    %v5789 = vpop.f32.mrb[0].mxu0
    %v5790 = vadd.f32 0.0, %v5789
    %v5791 = vpop.f32.mrb[0].mxu0
    %v5792 = vpop.f32.mrb[0].mxu0
    %v5793 = vadd.f32 0.0, %v5792
    %v5794 = vpop.f32.mrb[0].mxu0
    %5795 = vmatprep.mubr.bf16.mxu0 0
    %5796 = vmatmul.mubr.bf16.gmra.mrb[0].mxu0 %v5638
    %v5797 = vpop.f32.mrb[0].mxu0
    %v5798 = vadd.f32 0.0, %v5797
    %v5799 = vpop.f32.mrb[0].mxu0
    %v5800 = vpop.f32.mrb[0].mxu0
    %v5801 = vadd.f32 0.0, %v5800
    %v5802 = vpop.f32.mrb[0].mxu0
    %5803 = vmatprep.mubr.bf16.mxu0 0
    %5804 = vmatmul.mubr.bf16.gmra.mrb[0].mxu0 %v5639
    %v5805 = vpop.f32.mrb[0].mxu0
    %v5806 = vadd.f32 0.0, %v5805
    %v5807 = vpop.f32.mrb[0].mxu0
    %v5808 = vpop.f32.mrb[0].mxu0
    %v5809 = vadd.f32 0.0, %v5808
    %v5810 = vpop.f32.mrb[0].mxu0
    %5811 = vmatprep.mubr.bf16.mxu0 0
    %5812 = vmatmul.mubr.bf16.gmra.mrb[0].mxu0 %v5640
    %v5813 = vpop.f32.mrb[0].mxu0
    %v5814 = vadd.f32 0.0, %v5813
    %v5815 = vpop.f32.mrb[0].mxu0
    %v5816 = vpop.f32.mrb[0].mxu0
    %v5817 = vadd.f32 0.0, %v5816
    %v5818 = vpop.f32.mrb[0].mxu0
    %5819 = vmatprep.mubr.bf16.mxu0 0
    %5820 = vmatmul.mubr.bf16.gmra.mrb[0].mxu0 %v5641
    %v5821 = vpop.f32.mrb[0].mxu0
    %v5822 = vadd.f32 0.0, %v5821
    %v5823 = vpop.f32.mrb[0].mxu0
    %v5824 = vpop.f32.mrb[0].mxu0
    %v5825 = vadd.f32 0.0, %v5824
    %v5826 = vpop.f32.mrb[0].mxu0
    %5827 = vmatprep.mubr.bf16.mxu0 0
    %5828 = vmatmul.mubr.bf16.gmra.mrb[0].mxu0 %v5642
    %v5829 = vpop.f32.mrb[0].mxu0
    %v5830 = vadd.f32 0.0, %v5829
    %v5831 = vpop.f32.mrb[0].mxu0
    %v5832 = vpop.f32.mrb[0].mxu0
    %v5833 = vadd.f32 0.0, %v5832
    %v5834 = vpop.f32.mrb[0].mxu0
    %5835 = vmatprep.mubr.bf16.mxu0 0
    %5836 = vmatmul.mubr.bf16.gmra.mrb[0].mxu0 %v5643
    %v5837 = vpop.f32.mrb[0].mxu0
    %v5838 = vadd.f32 0.0, %v5837
    %v5839 = vpop.f32.mrb[0].mxu0
    %v5840 = vpop.f32.mrb[0].mxu0
    %v5841 = vadd.f32 0.0, %v5840
    %v5842 = vpop.f32.mrb[0].mxu0
    %5843 = vmatprep.mubr.bf16.mxu0 0
    %5844 = vmatmul.mubr.bf16.gmra.mrb[0].mxu0 %v5644
    %v5845 = vpop.f32.mrb[0].mxu0
    %v5846 = vadd.f32 0.0, %v5845
    %v5847 = vpop.f32.mrb[0].mxu0
    %v5848 = vpop.f32.mrb[0].mxu0
    %v5849 = vadd.f32 0.0, %v5848
    %v5850 = vpop.f32.mrb[0].mxu0
    %5851 = vmatprep.mubr.bf16.mxu0 0
    %5852 = vmatmul.mubr.bf16.gmra.mrb[0].mxu0 %v5645
    %v5853 = vpop.f32.mrb[0].mxu0
    %v5854 = vadd.f32 0.0, %v5853
    %v5855 = vpop.f32.mrb[0].mxu0
    %v5856 = vpop.f32.mrb[0].mxu0
    %v5857 = vadd.f32 0.0, %v5856
    %v5858 = vpop.f32.mrb[0].mxu0
    %5859 = vmatprep.mubr.bf16.mxu0 0
    %5860 = vmatmul.mubr.bf16.gmra.mrb[0].mxu0 %v5646
    %v5861 = vpop.f32.mrb[0].mxu0
    %v5862 = vadd.f32 0.0, %v5861
    %v5863 = vpop.f32.mrb[0].mxu0
    %v5864 = vpop.f32.mrb[0].mxu0
    %v5865 = vadd.f32 0.0, %v5864
    %v5866 = vpop.f32.mrb[0].mxu0
    %5867 = vmatprep.mubr.bf16.mxu0 0
    %5868 = vmatmul.mubr.bf16.gmra.mrb[0].mxu0 %v5647
    %v5869 = vpop.f32.mrb[0].mxu0
    %v5870 = vadd.f32 0.0, %v5869
    %v5871 = vpop.f32.mrb[0].mxu0
    %v5872 = vpop.f32.mrb[0].mxu0
    %v5873 = vadd.f32 0.0, %v5872
    %v5874 = vpop.f32.mrb[0].mxu0
    %5875 = vmatprep.mubr.bf16.mxu0 0
    %5876 = vmatmul.mubr.bf16.gmra.mrb[0].mxu0 %v5648
    %v5877 = vpop.f32.mrb[0].mxu0
    %v5878 = vadd.f32 0.0, %v5877
    %v5879 = vpop.f32.mrb[0].mxu0
    %v5880 = vpop.f32.mrb[0].mxu0
    %v5881 = vadd.f32 0.0, %v5880
    %v5882 = vpop.f32.mrb[0].mxu0
    %5883 = vmatprep.mubr.bf16.mxu0 0
    %5884 = vmatmul.mubr.bf16.gmra.mrb[0].mxu0 %v5649
    %v5885 = vpop.f32.mrb[0].mxu0
    %v5886 = vadd.f32 0.0, %v5885
    %v5887 = vpop.f32.mrb[0].mxu0
    %v5888 = vpop.f32.mrb[0].mxu0
    %v5889 = vadd.f32 0.0, %v5888
    %v5890 = vpop.f32.mrb[0].mxu0
    %5891 = vmatprep.mubr.bf16.mxu0 0
    %5892 = vmatmul.mubr.bf16.gmra.mrb[0].mxu0 %v5650
    %v5893 = vpop.f32.mrb[0].mxu0
    %v5894 = vadd.f32 0.0, %v5893
    %v5895 = vpop.f32.mrb[0].mxu0
    %v5896 = vpop.f32.mrb[0].mxu0
    %v5897 = vadd.f32 0.0, %v5896
    %v5898 = vpop.f32.mrb[0].mxu0
    %5899 = vmatprep.mubr.bf16.mxu0 0
    %5900 = vmatmul.mubr.bf16.gmra.mrb[0].mxu0 %v5651
    %v5901 = vpop.f32.mrb[0].mxu0
    %v5902 = vadd.f32 0.0, %v5901
    %v5903 = vpop.f32.mrb[0].mxu0
    %v5904 = vpop.f32.mrb[0].mxu0
    %v5905 = vadd.f32 0.0, %v5904
    %v5906 = vpop.f32.mrb[0].mxu0
    %5907 = vmatprep.mubr.bf16.mxu0 0
    %5908 = vmatmul.mubr.bf16.gmra.mrb[0].mxu0 %v5652
    %v5909 = vpop.f32.mrb[0].mxu0
    %v5910 = vadd.f32 0.0, %v5909
    %v5911 = vpop.f32.mrb[0].mxu0
    %v5912 = vpop.f32.mrb[0].mxu0
    %v5913 = vadd.f32 0.0, %v5912
    %v5914 = vpop.f32.mrb[0].mxu0
    %5915 = vmatprep.mubr.bf16.mxu0 0
    %5916 = vmatmul.mubr.bf16.gmra.mrb[0].mxu0 %v5653
    %v5917 = vpop.f32.mrb[0].mxu0
    %v5918 = vadd.f32 0.0, %v5917
    %v5919 = vpop.f32.mrb[0].mxu0
    %v5920 = vpop.f32.mrb[0].mxu0
    %v5921 = vadd.f32 0.0, %v5920
    %v5922 = vpop.f32.mrb[0].mxu0
    %5923 = vmatprep.mubr.bf16.mxu0 0
    %5924 = vmatmul.mubr.bf16.gmra.mrb[0].mxu0 %v5654
    %v5925 = vpop.f32.mrb[0].mxu0
    %v5926 = vadd.f32 0.0, %v5925
    %v5927 = vpop.f32.mrb[0].mxu0
    %v5928 = vpop.f32.mrb[0].mxu0
    %v5929 = vadd.f32 0.0, %v5928
    %v5930 = vpop.f32.mrb[0].mxu0
    %5931 = vmatprep.mubr.bf16.mxu0 0
    %5932 = vmatmul.mubr.bf16.gmra.mrb[0].mxu0 %v5655
    %v5933 = vpop.f32.mrb[0].mxu0
    %v5934 = vadd.f32 0.0, %v5933
    %v5935 = vpop.f32.mrb[0].mxu0
    %v5936 = vpop.f32.mrb[0].mxu0
    %v5937 = vadd.f32 0.0, %v5936
    %v5938 = vpop.f32.mrb[0].mxu0
    %5939 = vmatprep.mubr.bf16.mxu0 0
    %5940 = vmatmul.mubr.bf16.gmra.mrb[0].mxu0 %v5656
    %v5941 = vpop.f32.mrb[0].mxu0
    %v5942 = vadd.f32 0.0, %v5941
    %v5943 = vpop.f32.mrb[0].mxu0
    %v5944 = vpop.f32.mrb[0].mxu0
    %v5945 = vadd.f32 0.0, %v5944
    %v5946 = vpop.f32.mrb[0].mxu0
    %5947 = vmatprep.mubr.bf16.mxu0 0
    %5948 = vmatmul.mubr.bf16.gmra.mrb[0].mxu0 %v5657
    %v5949 = vpop.f32.mrb[0].mxu0
    %v5950 = vadd.f32 0.0, %v5949
    %v5951 = vpop.f32.mrb[0].mxu0
    %v5952 = vpop.f32.mrb[0].mxu0
    %v5953 = vadd.f32 0.0, %v5952
    %v5954 = vpop.f32.mrb[0].mxu0
    %5955 = vmatprep.mubr.bf16.mxu0 0
    %5956 = vmatmul.mubr.bf16.gmra.mrb[0].mxu0 %v5658
    %v5957 = vpop.f32.mrb[0].mxu0
    %v5958 = vadd.f32 0.0, %v5957
    %v5959 = vpop.f32.mrb[0].mxu0
    %v5960 = vpop.f32.mrb[0].mxu0
    %v5961 = vadd.f32 0.0, %v5960
    %v5962 = vpop.f32.mrb[0].mxu0
    %5963 = vmatprep.mubr.bf16.mxu0 0
    %5964 = vmatmul.mubr.bf16.gmra.mrb[0].mxu0 %v5659
    %v5965 = vpop.f32.mrb[0].mxu0
    %v5966 = vadd.f32 0.0, %v5965
    %v5967 = vpop.f32.mrb[0].mxu0
    %v5968 = vpop.f32.mrb[0].mxu0
    %v5969 = vadd.f32 0.0, %v5968
    %v5970 = vpop.f32.mrb[0].mxu0
    %5971 = vmatprep.mubr.bf16.mxu0 0
    %5972 = vmatmul.mubr.bf16.gmra.mrb[0].mxu0 %v5660
    %v5973 = vpop.f32.mrb[0].mxu0
    %v5974 = vadd.f32 0.0, %v5973
    %v5975 = vpop.f32.mrb[0].mxu0
    %v5976 = vpop.f32.mrb[0].mxu0
    %v5977 = vadd.f32 0.0, %v5976
    %v5978 = vpop.f32.mrb[0].mxu0
    %5979 = vmatprep.mubr.bf16.mxu0 0
    %5980 = vmatmul.mubr.bf16.gmra.mrb[0].mxu0 %v5661
    %v5981 = vpop.f32.mrb[0].mxu0
    %v5982 = vadd.f32 0.0, %v5981
    %v5983 = vpop.f32.mrb[0].mxu0
    %v5984 = vpop.f32.mrb[0].mxu0
    %v5985 = vadd.f32 0.0, %v5984
    %v5986 = vpop.f32.mrb[0].mxu0
    %5987 = vmatprep.mubr.bf16.mxu0 0
    %5988 = vmatmul.mubr.bf16.gmra.mrb[0].mxu0 %v5662
    %v5989 = vpop.f32.mrb[0].mxu0
    %v5990 = vadd.f32 0.0, %v5989
    %v5991 = vpop.f32.mrb[0].mxu0
    %v5992 = vpop.f32.mrb[0].mxu0
    %v5993 = vadd.f32 0.0, %v5992
    %v5994 = vpop.f32.mrb[0].mxu0
    %5995 = vmatprep.mubr.bf16.mxu0 0
    %5996 = vmatmul.mubr.bf16.gmra.mrb[0].mxu0 %v5663
    %v5997 = vpop.f32.mrb[0].mxu0
    %v5998 = vadd.f32 0.0, %v5997
    %v5999 = vpop.f32.mrb[0].mxu0
    %v6000 = vpop.f32.mrb[0].mxu0
    %v6001 = vadd.f32 0.0, %v6000
    %v6002 = vpop.f32.mrb[0].mxu0
    %6003 = vmatprep.mubr.bf16.mxu0 0
    %6004 = vmatmul.mubr.bf16.gmra.mrb[0].mxu0 %v5664
    %v6005 = vpop.f32.mrb[0].mxu0
    %v6006 = vadd.f32 0.0, %v6005
    %v6007 = vpop.f32.mrb[0].mxu0
    %v6008 = vpop.f32.mrb[0].mxu0
    %v6009 = vadd.f32 0.0, %v6008
    %v6010 = vpop.f32.mrb[0].mxu0
    %6011 = vmatprep.mubr.bf16.mxu0 0
    %6012 = vmatmul.mubr.bf16.gmra.mrb[0].mxu0 %v5665
    %v6013 = vpop.f32.mrb[0].mxu0
    %v6014 = vadd.f32 0.0, %v6013
    %v6015 = vpop.f32.mrb[0].mxu0
    %v6016 = vpop.f32.mrb[0].mxu0
    %v6017 = vadd.f32 0.0, %v6016
    %v6018 = vpop.f32.mrb[0].mxu0
    %6019 = vdwg.mxu0
    %v6020 = vadd.f32 %v5498, %v5766
    %v6021 = vadd.f32 %v5499, %v5769
    %v6022 = vadd.f32 %v5500, %v5774
    %v6023 = vadd.f32 %v5501, %v5777
    %v6024 = vadd.f32 %v5502, %v5782
    %v6025 = vadd.f32 %v5503, %v5785
    %v6026 = vadd.f32 %v5504, %v5790
    %v6027 = vadd.f32 %v5505, %v5793
    %v6028 = vadd.f32 %v5506, %v5798
    %v6029 = vadd.f32 %v5507, %v5801
    %v6030 = vadd.f32 %v5508, %v5806
    %v6031 = vadd.f32 %v5509, %v5809
    %v6032 = vadd.f32 %v5510, %v5814
    %v6033 = vadd.f32 %v5511, %v5817
    %v6034 = vadd.f32 %v5512, %v5822
    %v6035 = vadd.f32 %v5513, %v5825
    %v6036 = vadd.f32 %v5514, %v5830
    %v6037 = vadd.f32 %v5515, %v5833
    %v6038 = vadd.f32 %v5516, %v5838
    %v6039 = vadd.f32 %v5517, %v5841
    %v6040 = vadd.f32 %v5518, %v5846
    %v6041 = vadd.f32 %v5519, %v5849
    %v6042 = vadd.f32 %v5520, %v5854
    %v6043 = vadd.f32 %v5521, %v5857
    %v6044 = vadd.f32 %v5522, %v5862
    %v6045 = vadd.f32 %v5523, %v5865
    %v6046 = vadd.f32 %v5524, %v5870
    %v6047 = vadd.f32 %v5525, %v5873
    %v6048 = vadd.f32 %v5526, %v5878
    %v6049 = vadd.f32 %v5527, %v5881
    %v6050 = vadd.f32 %v5528, %v5886
    %v6051 = vadd.f32 %v5529, %v5889
    %v6052 = vadd.f32 %v5530, %v5894
    %v6053 = vadd.f32 %v5531, %v5897
    %v6054 = vadd.f32 %v5532, %v5902
    %v6055 = vadd.f32 %v5533, %v5905
    %v6056 = vadd.f32 %v5534, %v5910
    %v6057 = vadd.f32 %v5535, %v5913
    %v6058 = vadd.f32 %v5536, %v5918
    %v6059 = vadd.f32 %v5537, %v5921
    %v6060 = vadd.f32 %v5538, %v5926
    %v6061 = vadd.f32 %v5539, %v5929
    %v6062 = vadd.f32 %v5540, %v5934
    %v6063 = vadd.f32 %v5541, %v5937
    %v6064 = vadd.f32 %v5542, %v5942
    %v6065 = vadd.f32 %v5543, %v5945
    %v6066 = vadd.f32 %v5544, %v5950
    %v6067 = vadd.f32 %v5545, %v5953
    %v6068 = vadd.f32 %v5546, %v5958
    %v6069 = vadd.f32 %v5547, %v5961
    %v6070 = vadd.f32 %v5548, %v5966
    %v6071 = vadd.f32 %v5549, %v5969
    %v6072 = vadd.f32 %v5550, %v5974
    %v6073 = vadd.f32 %v5551, %v5977
    %v6074 = vadd.f32 %v5552, %v5982
    %v6075 = vadd.f32 %v5553, %v5985
    %v6076 = vadd.f32 %v5554, %v5990
    %v6077 = vadd.f32 %v5555, %v5993
    %v6078 = vadd.f32 %v5556, %v5998
    %v6079 = vadd.f32 %v5557, %v6001
    %v6080 = vadd.f32 %v5558, %v6006
    %v6081 = vadd.f32 %v5559, %v6009
    %v6082 = vadd.f32 %v5560, %v6014
    %v6083 = vadd.f32 %v5561, %v6017
    %v6084 = vpack.c.bf16 %v5595, %v5594
    %v6085 = vpack.c.bf16 %v5631, %v5630
    %s6086 = scalar_lea.vmem %s4, 256
    %v6087 = vld [vmem:[%s6086] sm:$0xf]
    %v6088 = vld [vmem:[%s6086 + $0x4] sm:$0xf]
    %v6089 = vld [vmem:[%s6086 + $0x8] sm:$0xf]
    %v6090 = vld [vmem:[%s6086 + $0xc] sm:$0xf]
    %v6091 = vld [vmem:[%s6086 + $0x10] sm:$0xf]
    %v6092 = vld [vmem:[%s6086 + $0x14] sm:$0xf]
    %v6093 = vld [vmem:[%s6086 + $0x18] sm:$0xf]
    %v6094 = vld [vmem:[%s6086 + $0x1c] sm:$0xf]
    %v6095 = vld [vmem:[%s6086 + $0x20] sm:$0xf]
    %v6096 = vld [vmem:[%s6086 + $0x24] sm:$0xf]
    %v6097 = vld [vmem:[%s6086 + $0x28] sm:$0xf]
    %v6098 = vld [vmem:[%s6086 + $0x2c] sm:$0xf]
    %v6099 = vld [vmem:[%s6086 + $0x30] sm:$0xf]
    %v6100 = vld [vmem:[%s6086 + $0x34] sm:$0xf]
    %v6101 = vld [vmem:[%s6086 + $0x38] sm:$0xf]
    %v6102 = vld [vmem:[%s6086 + $0x3c] sm:$0xf]
    %v6119 = vunpack.c.l.b16 %v6087
    %v6120 = vunpack.c.l.b16 %v6088
    %v6121 = vunpack.c.l.b16 %v6089
    %v6122 = vunpack.c.l.b16 %v6090
    %v6123 = vunpack.c.l.b16 %v6091
    %v6124 = vunpack.c.l.b16 %v6092
    %v6125 = vunpack.c.l.b16 %v6093
    %v6126 = vunpack.c.l.b16 %v6094
    %v6127 = vunpack.c.l.b16 %v6095
    %v6128 = vunpack.c.l.b16 %v6096
    %v6129 = vunpack.c.l.b16 %v6097
    %v6130 = vunpack.c.l.b16 %v6098
    %v6131 = vunpack.c.l.b16 %v6099
    %v6132 = vunpack.c.l.b16 %v6100
    %v6133 = vunpack.c.l.b16 %v6101
    %v6134 = vunpack.c.l.b16 %v6102
    %v6135 = vpack.c.b16 %v6120, %v6119
    %v6136 = vpack.c.b16 %v6122, %v6121
    %v6137 = vpack.c.b16 %v6124, %v6123
    %v6138 = vpack.c.b16 %v6126, %v6125
    %v6139 = vpack.c.b16 %v6128, %v6127
    %v6140 = vpack.c.b16 %v6130, %v6129
    %v6141 = vpack.c.b16 %v6132, %v6131
    %v6142 = vpack.c.b16 %v6134, %v6133
    %6151 = vmatprep.subr.bf16.mxu0 0
    %6152 = vmatpush1.bf16.msra.mxu0 %v6135
    %6153 = vmatprep.subr.bf16.mxu0 0
    %6154 = vmatpush1.bf16.msra.mxu0 %v6136
    %6155 = vmatprep.subr.bf16.mxu0 0
    %6156 = vmatpush1.bf16.msra.mxu0 %v6137
    %6157 = vmatprep.subr.bf16.mxu0 0
    %6158 = vmatpush1.bf16.msra.mxu0 %v6138
    %6159 = vmatprep.subr.bf16.mxu0 0
    %6160 = vmatpush1.bf16.msra.mxu0 %v6139
    %6161 = vmatprep.subr.bf16.mxu0 0
    %6162 = vmatpush1.bf16.msra.mxu0 %v6140
    %6163 = vmatprep.subr.bf16.mxu0 0
    %6164 = vmatpush1.bf16.msra.mxu0 %v6141
    %6165 = vmatprep.subr.bf16.mxu0 0
    %6166 = vmatpush1.bf16.msra.mxu0 %v6142
    %6167 = vmatprep.subr.bf16.mxu0 0
    %6168 = vmatpush1.bf16.msra.mxu0 0
    %6169 = vmatprep.subr.bf16.mxu0 0
    %6170 = vmatpush1.bf16.msra.mxu0 0
    %6171 = vmatprep.subr.bf16.mxu0 0
    %6172 = vmatpush1.bf16.msra.mxu0 0
    %6173 = vmatprep.subr.bf16.mxu0 0
    %6174 = vmatpush1.bf16.msra.mxu0 0
    %6175 = vmatprep.subr.bf16.mxu0 0
    %6176 = vmatpush1.bf16.msra.mxu0 0
    %6177 = vmatprep.subr.bf16.mxu0 0
    %6178 = vmatpush1.bf16.msra.mxu0 0
    %6179 = vmatprep.subr.bf16.mxu0 0
    %6180 = vmatpush1.bf16.msra.mxu0 0
    %6181 = vmatprep.subr.bf16.mxu0 0
    %6182 = vmatpush1.bf16.msra.mxu0 0
    %6183 = vmatprep.mubr.bf16.mxu0 0
    %6184 = vmatmul.mubr.bf16.gmra.mrb[0].mxu0 %v5635
    %v6185 = vpop.f32.mrb[0].mxu0
    %v6186 = vadd.f32 0.0, %v6185
    %v6187 = vpop.f32.mrb[0].mxu0
    %v6188 = vpop.f32.mrb[0].mxu0
    %v6189 = vadd.f32 0.0, %v6188
    %v6190 = vpop.f32.mrb[0].mxu0
    %6191 = vmatprep.mubr.bf16.mxu0 0
    %6192 = vmatmul.mubr.bf16.gmra.mrb[0].mxu0 %v5636
    %v6193 = vpop.f32.mrb[0].mxu0
    %v6194 = vadd.f32 0.0, %v6193
    %v6195 = vpop.f32.mrb[0].mxu0
    %v6196 = vpop.f32.mrb[0].mxu0
    %v6197 = vadd.f32 0.0, %v6196
    %v6198 = vpop.f32.mrb[0].mxu0
    %6199 = vmatprep.mubr.bf16.mxu0 0
    %6200 = vmatmul.mubr.bf16.gmra.mrb[0].mxu0 %v5637
    %v6201 = vpop.f32.mrb[0].mxu0
    %v6202 = vadd.f32 0.0, %v6201
    %v6203 = vpop.f32.mrb[0].mxu0
    %v6204 = vpop.f32.mrb[0].mxu0
    %v6205 = vadd.f32 0.0, %v6204
    %v6206 = vpop.f32.mrb[0].mxu0
    %6207 = vmatprep.mubr.bf16.mxu0 0
    %6208 = vmatmul.mubr.bf16.gmra.mrb[0].mxu0 %v5638
    %v6209 = vpop.f32.mrb[0].mxu0
    %v6210 = vadd.f32 0.0, %v6209
    %v6211 = vpop.f32.mrb[0].mxu0
    %v6212 = vpop.f32.mrb[0].mxu0
    %v6213 = vadd.f32 0.0, %v6212
    %v6214 = vpop.f32.mrb[0].mxu0
    %6215 = vmatprep.mubr.bf16.mxu0 0
    %6216 = vmatmul.mubr.bf16.gmra.mrb[0].mxu0 %v5639
    %v6217 = vpop.f32.mrb[0].mxu0
    %v6218 = vadd.f32 0.0, %v6217
    %v6219 = vpop.f32.mrb[0].mxu0
    %v6220 = vpop.f32.mrb[0].mxu0
    %v6221 = vadd.f32 0.0, %v6220
    %v6222 = vpop.f32.mrb[0].mxu0
    %6223 = vmatprep.mubr.bf16.mxu0 0
    %6224 = vmatmul.mubr.bf16.gmra.mrb[0].mxu0 %v5640
    %v6225 = vpop.f32.mrb[0].mxu0
    %v6226 = vadd.f32 0.0, %v6225
    %v6227 = vpop.f32.mrb[0].mxu0
    %v6228 = vpop.f32.mrb[0].mxu0
    %v6229 = vadd.f32 0.0, %v6228
    %v6230 = vpop.f32.mrb[0].mxu0
    %6231 = vmatprep.mubr.bf16.mxu0 0
    %6232 = vmatmul.mubr.bf16.gmra.mrb[0].mxu0 %v5641
    %v6233 = vpop.f32.mrb[0].mxu0
    %v6234 = vadd.f32 0.0, %v6233
    %v6235 = vpop.f32.mrb[0].mxu0
    %v6236 = vpop.f32.mrb[0].mxu0
    %v6237 = vadd.f32 0.0, %v6236
    %v6238 = vpop.f32.mrb[0].mxu0
    %6239 = vmatprep.mubr.bf16.mxu0 0
    %6240 = vmatmul.mubr.bf16.gmra.mrb[0].mxu0 %v5642
    %v6241 = vpop.f32.mrb[0].mxu0
    %v6242 = vadd.f32 0.0, %v6241
    %v6243 = vpop.f32.mrb[0].mxu0
    %v6244 = vpop.f32.mrb[0].mxu0
    %v6245 = vadd.f32 0.0, %v6244
    %v6246 = vpop.f32.mrb[0].mxu0
    %6247 = vmatprep.mubr.bf16.mxu0 0
    %6248 = vmatmul.mubr.bf16.gmra.mrb[0].mxu0 %v5643
    %v6249 = vpop.f32.mrb[0].mxu0
    %v6250 = vadd.f32 0.0, %v6249
    %v6251 = vpop.f32.mrb[0].mxu0
    %v6252 = vpop.f32.mrb[0].mxu0
    %v6253 = vadd.f32 0.0, %v6252
    %v6254 = vpop.f32.mrb[0].mxu0
    %6255 = vmatprep.mubr.bf16.mxu0 0
    %6256 = vmatmul.mubr.bf16.gmra.mrb[0].mxu0 %v5644
    %v6257 = vpop.f32.mrb[0].mxu0
    %v6258 = vadd.f32 0.0, %v6257
    %v6259 = vpop.f32.mrb[0].mxu0
    %v6260 = vpop.f32.mrb[0].mxu0
    %v6261 = vadd.f32 0.0, %v6260
    %v6262 = vpop.f32.mrb[0].mxu0
    %6263 = vmatprep.mubr.bf16.mxu0 0
    %6264 = vmatmul.mubr.bf16.gmra.mrb[0].mxu0 %v5645
    %v6265 = vpop.f32.mrb[0].mxu0
    %v6266 = vadd.f32 0.0, %v6265
    %v6267 = vpop.f32.mrb[0].mxu0
    %v6268 = vpop.f32.mrb[0].mxu0
    %v6269 = vadd.f32 0.0, %v6268
    %v6270 = vpop.f32.mrb[0].mxu0
    %6271 = vmatprep.mubr.bf16.mxu0 0
    %6272 = vmatmul.mubr.bf16.gmra.mrb[0].mxu0 %v5646
    %v6273 = vpop.f32.mrb[0].mxu0
    %v6274 = vadd.f32 0.0, %v6273
    %v6275 = vpop.f32.mrb[0].mxu0
    %v6276 = vpop.f32.mrb[0].mxu0
    %v6277 = vadd.f32 0.0, %v6276
    %v6278 = vpop.f32.mrb[0].mxu0
    %6279 = vmatprep.mubr.bf16.mxu0 0
    %6280 = vmatmul.mubr.bf16.gmra.mrb[0].mxu0 %v5647
    %v6281 = vpop.f32.mrb[0].mxu0
    %v6282 = vadd.f32 0.0, %v6281
    %v6283 = vpop.f32.mrb[0].mxu0
    %v6284 = vpop.f32.mrb[0].mxu0
    %v6285 = vadd.f32 0.0, %v6284
    %v6286 = vpop.f32.mrb[0].mxu0
    %6287 = vmatprep.mubr.bf16.mxu0 0
    %6288 = vmatmul.mubr.bf16.gmra.mrb[0].mxu0 %v5648
    %v6289 = vpop.f32.mrb[0].mxu0
    %v6290 = vadd.f32 0.0, %v6289
    %v6291 = vpop.f32.mrb[0].mxu0
    %v6292 = vpop.f32.mrb[0].mxu0
    %v6293 = vadd.f32 0.0, %v6292
    %v6294 = vpop.f32.mrb[0].mxu0
    %6295 = vmatprep.mubr.bf16.mxu0 0
    %6296 = vmatmul.mubr.bf16.gmra.mrb[0].mxu0 %v5649
    %v6297 = vpop.f32.mrb[0].mxu0
    %v6298 = vadd.f32 0.0, %v6297
    %v6299 = vpop.f32.mrb[0].mxu0
    %v6300 = vpop.f32.mrb[0].mxu0
    %v6301 = vadd.f32 0.0, %v6300
    %v6302 = vpop.f32.mrb[0].mxu0
    %6303 = vmatprep.mubr.bf16.mxu0 0
    %6304 = vmatmul.mubr.bf16.gmra.mrb[0].mxu0 %v6084
    %v6305 = vpop.f32.mrb[0].mxu0
    %v6306 = vadd.f32 0.0, %v6305
    %v6307 = vpop.f32.mrb[0].mxu0
    %v6308 = vpop.f32.mrb[0].mxu0
    %v6309 = vadd.f32 0.0, %v6308
    %v6310 = vpop.f32.mrb[0].mxu0
    %6311 = vmatprep.mubr.bf16.mxu0 0
    %6312 = vmatmul.mubr.bf16.gmra.mrb[0].mxu0 %v5651
    %v6313 = vpop.f32.mrb[0].mxu0
    %v6314 = vadd.f32 0.0, %v6313
    %v6315 = vpop.f32.mrb[0].mxu0
    %v6316 = vpop.f32.mrb[0].mxu0
    %v6317 = vadd.f32 0.0, %v6316
    %v6318 = vpop.f32.mrb[0].mxu0
    %6319 = vmatprep.mubr.bf16.mxu0 0
    %6320 = vmatmul.mubr.bf16.gmra.mrb[0].mxu0 %v5652
    %v6321 = vpop.f32.mrb[0].mxu0
    %v6322 = vadd.f32 0.0, %v6321
    %v6323 = vpop.f32.mrb[0].mxu0
    %v6324 = vpop.f32.mrb[0].mxu0
    %v6325 = vadd.f32 0.0, %v6324
    %v6326 = vpop.f32.mrb[0].mxu0
    %6327 = vmatprep.mubr.bf16.mxu0 0
    %6328 = vmatmul.mubr.bf16.gmra.mrb[0].mxu0 %v5653
    %v6329 = vpop.f32.mrb[0].mxu0
    %v6330 = vadd.f32 0.0, %v6329
    %v6331 = vpop.f32.mrb[0].mxu0
    %v6332 = vpop.f32.mrb[0].mxu0
    %v6333 = vadd.f32 0.0, %v6332
    %v6334 = vpop.f32.mrb[0].mxu0
    %6335 = vmatprep.mubr.bf16.mxu0 0
    %6336 = vmatmul.mubr.bf16.gmra.mrb[0].mxu0 %v5654
    %v6337 = vpop.f32.mrb[0].mxu0
    %v6338 = vadd.f32 0.0, %v6337
    %v6339 = vpop.f32.mrb[0].mxu0
    %v6340 = vpop.f32.mrb[0].mxu0
    %v6341 = vadd.f32 0.0, %v6340
    %v6342 = vpop.f32.mrb[0].mxu0
    %6343 = vmatprep.mubr.bf16.mxu0 0
    %6344 = vmatmul.mubr.bf16.gmra.mrb[0].mxu0 %v5655
    %v6345 = vpop.f32.mrb[0].mxu0
    %v6346 = vadd.f32 0.0, %v6345
    %v6347 = vpop.f32.mrb[0].mxu0
    %v6348 = vpop.f32.mrb[0].mxu0
    %v6349 = vadd.f32 0.0, %v6348
    %v6350 = vpop.f32.mrb[0].mxu0
    %6351 = vmatprep.mubr.bf16.mxu0 0
    %6352 = vmatmul.mubr.bf16.gmra.mrb[0].mxu0 %v5656
    %v6353 = vpop.f32.mrb[0].mxu0
    %v6354 = vadd.f32 0.0, %v6353
    %v6355 = vpop.f32.mrb[0].mxu0
    %v6356 = vpop.f32.mrb[0].mxu0
    %v6357 = vadd.f32 0.0, %v6356
    %v6358 = vpop.f32.mrb[0].mxu0
    %6359 = vmatprep.mubr.bf16.mxu0 0
    %6360 = vmatmul.mubr.bf16.gmra.mrb[0].mxu0 %v5657
    %v6361 = vpop.f32.mrb[0].mxu0
    %v6362 = vadd.f32 0.0, %v6361
    %v6363 = vpop.f32.mrb[0].mxu0
    %v6364 = vpop.f32.mrb[0].mxu0
    %v6365 = vadd.f32 0.0, %v6364
    %v6366 = vpop.f32.mrb[0].mxu0
    %6367 = vmatprep.mubr.bf16.mxu0 0
    %6368 = vmatmul.mubr.bf16.gmra.mrb[0].mxu0 %v5658
    %v6369 = vpop.f32.mrb[0].mxu0
    %v6370 = vadd.f32 0.0, %v6369
    %v6371 = vpop.f32.mrb[0].mxu0
    %v6372 = vpop.f32.mrb[0].mxu0
    %v6373 = vadd.f32 0.0, %v6372
    %v6374 = vpop.f32.mrb[0].mxu0
    %6375 = vmatprep.mubr.bf16.mxu0 0
    %6376 = vmatmul.mubr.bf16.gmra.mrb[0].mxu0 %v5659
    %v6377 = vpop.f32.mrb[0].mxu0
    %v6378 = vadd.f32 0.0, %v6377
    %v6379 = vpop.f32.mrb[0].mxu0
    %v6380 = vpop.f32.mrb[0].mxu0
    %v6381 = vadd.f32 0.0, %v6380
    %v6382 = vpop.f32.mrb[0].mxu0
    %6383 = vmatprep.mubr.bf16.mxu0 0
    %6384 = vmatmul.mubr.bf16.gmra.mrb[0].mxu0 %v5660
    %v6385 = vpop.f32.mrb[0].mxu0
    %v6386 = vadd.f32 0.0, %v6385
    %v6387 = vpop.f32.mrb[0].mxu0
    %v6388 = vpop.f32.mrb[0].mxu0
    %v6389 = vadd.f32 0.0, %v6388
    %v6390 = vpop.f32.mrb[0].mxu0
    %6391 = vmatprep.mubr.bf16.mxu0 0
    %6392 = vmatmul.mubr.bf16.gmra.mrb[0].mxu0 %v5661
    %v6393 = vpop.f32.mrb[0].mxu0
    %v6394 = vadd.f32 0.0, %v6393
    %v6395 = vpop.f32.mrb[0].mxu0
    %v6396 = vpop.f32.mrb[0].mxu0
    %v6397 = vadd.f32 0.0, %v6396
    %v6398 = vpop.f32.mrb[0].mxu0
    %6399 = vmatprep.mubr.bf16.mxu0 0
    %6400 = vmatmul.mubr.bf16.gmra.mrb[0].mxu0 %v5662
    %v6401 = vpop.f32.mrb[0].mxu0
    %v6402 = vadd.f32 0.0, %v6401
    %v6403 = vpop.f32.mrb[0].mxu0
    %v6404 = vpop.f32.mrb[0].mxu0
    %v6405 = vadd.f32 0.0, %v6404
    %v6406 = vpop.f32.mrb[0].mxu0
    %6407 = vmatprep.mubr.bf16.mxu0 0
    %6408 = vmatmul.mubr.bf16.gmra.mrb[0].mxu0 %v5663
    %v6409 = vpop.f32.mrb[0].mxu0
    %v6410 = vadd.f32 0.0, %v6409
    %v6411 = vpop.f32.mrb[0].mxu0
    %v6412 = vpop.f32.mrb[0].mxu0
    %v6413 = vadd.f32 0.0, %v6412
    %v6414 = vpop.f32.mrb[0].mxu0
    %6415 = vmatprep.mubr.bf16.mxu0 0
    %6416 = vmatmul.mubr.bf16.gmra.mrb[0].mxu0 %v5664
    %v6417 = vpop.f32.mrb[0].mxu0
    %v6418 = vadd.f32 0.0, %v6417
    %v6419 = vpop.f32.mrb[0].mxu0
    %v6420 = vpop.f32.mrb[0].mxu0
    %v6421 = vadd.f32 0.0, %v6420
    %v6422 = vpop.f32.mrb[0].mxu0
    %6423 = vmatprep.mubr.bf16.mxu0 0
    %6424 = vmatmul.mubr.bf16.gmra.mrb[0].mxu0 %v5665
    %v6425 = vpop.f32.mrb[0].mxu0
    %v6426 = vadd.f32 0.0, %v6425
    %v6427 = vpop.f32.mrb[0].mxu0
    %v6428 = vpop.f32.mrb[0].mxu0
    %v6429 = vadd.f32 0.0, %v6428
    %v6430 = vpop.f32.mrb[0].mxu0
    %6431 = vmatprep.mubr.bf16.mxu0 0
    %6432 = vmatmul.mubr.bf16.gmra.mrb[0].mxu0 %v6085
    %v6433 = vpop.f32.mrb[0].mxu0
    %v6434 = vadd.f32 0.0, %v6433
    %v6435 = vpop.f32.mrb[0].mxu0
    %v6436 = vpop.f32.mrb[0].mxu0
    %v6437 = vadd.f32 0.0, %v6436
    %v6438 = vpop.f32.mrb[0].mxu0
    %6439 = vdwg.mxu0
    %v6440 = vadd.f32 %v6020, %v6186
    %v6441 = vadd.f32 %v6021, %v6189
    %v6442 = vadd.f32 %v6022, %v6194
    %v6443 = vadd.f32 %v6023, %v6197
    %v6444 = vadd.f32 %v6024, %v6202
    %v6445 = vadd.f32 %v6025, %v6205
    %v6446 = vadd.f32 %v6026, %v6210
    %v6447 = vadd.f32 %v6027, %v6213
    %v6448 = vadd.f32 %v6028, %v6218
    %v6449 = vadd.f32 %v6029, %v6221
    %v6450 = vadd.f32 %v6030, %v6226
    %v6451 = vadd.f32 %v6031, %v6229
    %v6452 = vadd.f32 %v6032, %v6234
    %v6453 = vadd.f32 %v6033, %v6237
    %v6454 = vadd.f32 %v6034, %v6242
    %v6455 = vadd.f32 %v6035, %v6245
    %v6456 = vadd.f32 %v6036, %v6250
    %v6457 = vadd.f32 %v6037, %v6253
    %v6458 = vadd.f32 %v6038, %v6258
    %v6459 = vadd.f32 %v6039, %v6261
    %v6460 = vadd.f32 %v6040, %v6266
    %v6461 = vadd.f32 %v6041, %v6269
    %v6462 = vadd.f32 %v6042, %v6274
    %v6463 = vadd.f32 %v6043, %v6277
    %v6464 = vadd.f32 %v6044, %v6282
    %v6465 = vadd.f32 %v6045, %v6285
    %v6466 = vadd.f32 %v6046, %v6290
    %v6467 = vadd.f32 %v6047, %v6293
    %v6468 = vadd.f32 %v6048, %v6298
    %v6469 = vadd.f32 %v6049, %v6301
    %v6470 = vadd.f32 %v6050, %v6306
    %v6471 = vadd.f32 %v6051, %v6309
    %v6472 = vadd.f32 %v6052, %v6314
    %v6473 = vadd.f32 %v6053, %v6317
    %v6474 = vadd.f32 %v6054, %v6322
    %v6475 = vadd.f32 %v6055, %v6325
    %v6476 = vadd.f32 %v6056, %v6330
    %v6477 = vadd.f32 %v6057, %v6333
    %v6478 = vadd.f32 %v6058, %v6338
    %v6479 = vadd.f32 %v6059, %v6341
    %v6480 = vadd.f32 %v6060, %v6346
    %v6481 = vadd.f32 %v6061, %v6349
    %v6482 = vadd.f32 %v6062, %v6354
    %v6483 = vadd.f32 %v6063, %v6357
    %v6484 = vadd.f32 %v6064, %v6362
    %v6485 = vadd.f32 %v6065, %v6365
    %v6486 = vadd.f32 %v6066, %v6370
    %v6487 = vadd.f32 %v6067, %v6373
    %v6488 = vadd.f32 %v6068, %v6378
    %v6489 = vadd.f32 %v6069, %v6381
    %v6490 = vadd.f32 %v6070, %v6386
    %v6491 = vadd.f32 %v6071, %v6389
    %v6492 = vadd.f32 %v6072, %v6394
    %v6493 = vadd.f32 %v6073, %v6397
    %v6494 = vadd.f32 %v6074, %v6402
    %v6495 = vadd.f32 %v6075, %v6405
    %v6496 = vadd.f32 %v6076, %v6410
    %v6497 = vadd.f32 %v6077, %v6413
    %v6498 = vadd.f32 %v6078, %v6418
    %v6499 = vadd.f32 %v6079, %v6421
    %v6500 = vadd.f32 %v6080, %v6426
    %v6501 = vadd.f32 %v6081, %v6429
    %v6502 = vadd.f32 %v6082, %v6434
    %v6503 = vadd.f32 %v6083, %v6437
    %v6504 = vpack.c.bf16 %v5597, %v5596
    %v6505 = vpack.c.bf16 %v5633, %v5632
    %s6506 = scalar_lea.vmem %s4, 448
    %v6507 = vld [vmem:[%s6506] sm:$0xf]
    %v6508 = vld [vmem:[%s6506 + $0x4] sm:$0xf]
    %v6509 = vld [vmem:[%s6506 + $0x8] sm:$0xf]
    %v6510 = vld [vmem:[%s6506 + $0xc] sm:$0xf]
    %v6511 = vld [vmem:[%s6506 + $0x10] sm:$0xf]
    %v6512 = vld [vmem:[%s6506 + $0x14] sm:$0xf]
    %v6513 = vld [vmem:[%s6506 + $0x18] sm:$0xf]
    %v6514 = vld [vmem:[%s6506 + $0x1c] sm:$0xf]
    %v6515 = vld [vmem:[%s6506 + $0x20] sm:$0xf]
    %v6516 = vld [vmem:[%s6506 + $0x24] sm:$0xf]
    %v6517 = vld [vmem:[%s6506 + $0x28] sm:$0xf]
    %v6518 = vld [vmem:[%s6506 + $0x2c] sm:$0xf]
    %v6519 = vld [vmem:[%s6506 + $0x30] sm:$0xf]
    %v6520 = vld [vmem:[%s6506 + $0x34] sm:$0xf]
    %v6521 = vld [vmem:[%s6506 + $0x38] sm:$0xf]
    %v6522 = vld [vmem:[%s6506 + $0x3c] sm:$0xf]
    %v6539 = vunpack.c.l.b16 %v6507
    %v6540 = vunpack.c.l.b16 %v6508
    %v6541 = vunpack.c.l.b16 %v6509
    %v6542 = vunpack.c.l.b16 %v6510
    %v6543 = vunpack.c.l.b16 %v6511
    %v6544 = vunpack.c.l.b16 %v6512
    %v6545 = vunpack.c.l.b16 %v6513
    %v6546 = vunpack.c.l.b16 %v6514
    %v6547 = vunpack.c.l.b16 %v6515
    %v6548 = vunpack.c.l.b16 %v6516
    %v6549 = vunpack.c.l.b16 %v6517
    %v6550 = vunpack.c.l.b16 %v6518
    %v6551 = vunpack.c.l.b16 %v6519
    %v6552 = vunpack.c.l.b16 %v6520
    %v6553 = vunpack.c.l.b16 %v6521
    %v6554 = vunpack.c.l.b16 %v6522
    %v6555 = vpack.c.b16 %v6540, %v6539
    %v6556 = vpack.c.b16 %v6542, %v6541
    %v6557 = vpack.c.b16 %v6544, %v6543
    %v6558 = vpack.c.b16 %v6546, %v6545
    %v6559 = vpack.c.b16 %v6548, %v6547
    %v6560 = vpack.c.b16 %v6550, %v6549
    %v6561 = vpack.c.b16 %v6552, %v6551
    %v6562 = vpack.c.b16 %v6554, %v6553
    %6571 = vmatprep.subr.bf16.mxu0 0
    %6572 = vmatpush1.bf16.msra.mxu0 %v6555
    %6573 = vmatprep.subr.bf16.mxu0 0
    %6574 = vmatpush1.bf16.msra.mxu0 %v6556
    %6575 = vmatprep.subr.bf16.mxu0 0
    %6576 = vmatpush1.bf16.msra.mxu0 %v6557
    %6577 = vmatprep.subr.bf16.mxu0 0
    %6578 = vmatpush1.bf16.msra.mxu0 %v6558
    %6579 = vmatprep.subr.bf16.mxu0 0
    %6580 = vmatpush1.bf16.msra.mxu0 %v6559
    %6581 = vmatprep.subr.bf16.mxu0 0
    %6582 = vmatpush1.bf16.msra.mxu0 %v6560
    %6583 = vmatprep.subr.bf16.mxu0 0
    %6584 = vmatpush1.bf16.msra.mxu0 %v6561
    %6585 = vmatprep.subr.bf16.mxu0 0
    %6586 = vmatpush1.bf16.msra.mxu0 %v6562
    %6587 = vmatprep.subr.bf16.mxu0 0
    %6588 = vmatpush1.bf16.msra.mxu0 0
    %6589 = vmatprep.subr.bf16.mxu0 0
    %6590 = vmatpush1.bf16.msra.mxu0 0
    %6591 = vmatprep.subr.bf16.mxu0 0
    %6592 = vmatpush1.bf16.msra.mxu0 0
    %6593 = vmatprep.subr.bf16.mxu0 0
    %6594 = vmatpush1.bf16.msra.mxu0 0
    %6595 = vmatprep.subr.bf16.mxu0 0
    %6596 = vmatpush1.bf16.msra.mxu0 0
    %6597 = vmatprep.subr.bf16.mxu0 0
    %6598 = vmatpush1.bf16.msra.mxu0 0
    %6599 = vmatprep.subr.bf16.mxu0 0
    %6600 = vmatpush1.bf16.msra.mxu0 0
    %6601 = vmatprep.subr.bf16.mxu0 0
    %6602 = vmatpush1.bf16.msra.mxu0 0
    %6603 = vmatprep.mubr.bf16.mxu0 0
    %6604 = vmatmul.mubr.bf16.gmra.mrb[0].mxu0 %v5636
    %v6605 = vpop.f32.mrb[0].mxu0
    %v6606 = vadd.f32 0.0, %v6605
    %v6607 = vpop.f32.mrb[0].mxu0
    %v6608 = vpop.f32.mrb[0].mxu0
    %v6609 = vadd.f32 0.0, %v6608
    %v6610 = vpop.f32.mrb[0].mxu0
    %6611 = vmatprep.mubr.bf16.mxu0 0
    %6612 = vmatmul.mubr.bf16.gmra.mrb[0].mxu0 %v5637
    %v6613 = vpop.f32.mrb[0].mxu0
    %v6614 = vadd.f32 0.0, %v6613
    %v6615 = vpop.f32.mrb[0].mxu0
    %v6616 = vpop.f32.mrb[0].mxu0
    %v6617 = vadd.f32 0.0, %v6616
    %v6618 = vpop.f32.mrb[0].mxu0
    %6619 = vmatprep.mubr.bf16.mxu0 0
    %6620 = vmatmul.mubr.bf16.gmra.mrb[0].mxu0 %v5638
    %v6621 = vpop.f32.mrb[0].mxu0
    %v6622 = vadd.f32 0.0, %v6621
    %v6623 = vpop.f32.mrb[0].mxu0
    %v6624 = vpop.f32.mrb[0].mxu0
    %v6625 = vadd.f32 0.0, %v6624
    %v6626 = vpop.f32.mrb[0].mxu0
    %6627 = vmatprep.mubr.bf16.mxu0 0
    %6628 = vmatmul.mubr.bf16.gmra.mrb[0].mxu0 %v5639
    %v6629 = vpop.f32.mrb[0].mxu0
    %v6630 = vadd.f32 0.0, %v6629
    %v6631 = vpop.f32.mrb[0].mxu0
    %v6632 = vpop.f32.mrb[0].mxu0
    %v6633 = vadd.f32 0.0, %v6632
    %v6634 = vpop.f32.mrb[0].mxu0
    %6635 = vmatprep.mubr.bf16.mxu0 0
    %6636 = vmatmul.mubr.bf16.gmra.mrb[0].mxu0 %v5640
    %v6637 = vpop.f32.mrb[0].mxu0
    %v6638 = vadd.f32 0.0, %v6637
    %v6639 = vpop.f32.mrb[0].mxu0
    %v6640 = vpop.f32.mrb[0].mxu0
    %v6641 = vadd.f32 0.0, %v6640
    %v6642 = vpop.f32.mrb[0].mxu0
    %6643 = vmatprep.mubr.bf16.mxu0 0
    %6644 = vmatmul.mubr.bf16.gmra.mrb[0].mxu0 %v5641
    %v6645 = vpop.f32.mrb[0].mxu0
    %v6646 = vadd.f32 0.0, %v6645
    %v6647 = vpop.f32.mrb[0].mxu0
    %v6648 = vpop.f32.mrb[0].mxu0
    %v6649 = vadd.f32 0.0, %v6648
    %v6650 = vpop.f32.mrb[0].mxu0
    %6651 = vmatprep.mubr.bf16.mxu0 0
    %6652 = vmatmul.mubr.bf16.gmra.mrb[0].mxu0 %v5642
    %v6653 = vpop.f32.mrb[0].mxu0
    %v6654 = vadd.f32 0.0, %v6653
    %v6655 = vpop.f32.mrb[0].mxu0
    %v6656 = vpop.f32.mrb[0].mxu0
    %v6657 = vadd.f32 0.0, %v6656
    %v6658 = vpop.f32.mrb[0].mxu0
    %6659 = vmatprep.mubr.bf16.mxu0 0
    %6660 = vmatmul.mubr.bf16.gmra.mrb[0].mxu0 %v5643
    %v6661 = vpop.f32.mrb[0].mxu0
    %v6662 = vadd.f32 0.0, %v6661
    %v6663 = vpop.f32.mrb[0].mxu0
    %v6664 = vpop.f32.mrb[0].mxu0
    %v6665 = vadd.f32 0.0, %v6664
    %v6666 = vpop.f32.mrb[0].mxu0
    %6667 = vmatprep.mubr.bf16.mxu0 0
    %6668 = vmatmul.mubr.bf16.gmra.mrb[0].mxu0 %v5644
    %v6669 = vpop.f32.mrb[0].mxu0
    %v6670 = vadd.f32 0.0, %v6669
    %v6671 = vpop.f32.mrb[0].mxu0
    %v6672 = vpop.f32.mrb[0].mxu0
    %v6673 = vadd.f32 0.0, %v6672
    %v6674 = vpop.f32.mrb[0].mxu0
    %6675 = vmatprep.mubr.bf16.mxu0 0
    %6676 = vmatmul.mubr.bf16.gmra.mrb[0].mxu0 %v5645
    %v6677 = vpop.f32.mrb[0].mxu0
    %v6678 = vadd.f32 0.0, %v6677
    %v6679 = vpop.f32.mrb[0].mxu0
    %v6680 = vpop.f32.mrb[0].mxu0
    %v6681 = vadd.f32 0.0, %v6680
    %v6682 = vpop.f32.mrb[0].mxu0
    %6683 = vmatprep.mubr.bf16.mxu0 0
    %6684 = vmatmul.mubr.bf16.gmra.mrb[0].mxu0 %v5646
    %v6685 = vpop.f32.mrb[0].mxu0
    %v6686 = vadd.f32 0.0, %v6685
    %v6687 = vpop.f32.mrb[0].mxu0
    %v6688 = vpop.f32.mrb[0].mxu0
    %v6689 = vadd.f32 0.0, %v6688
    %v6690 = vpop.f32.mrb[0].mxu0
    %6691 = vmatprep.mubr.bf16.mxu0 0
    %6692 = vmatmul.mubr.bf16.gmra.mrb[0].mxu0 %v5647
    %v6693 = vpop.f32.mrb[0].mxu0
    %v6694 = vadd.f32 0.0, %v6693
    %v6695 = vpop.f32.mrb[0].mxu0
    %v6696 = vpop.f32.mrb[0].mxu0
    %v6697 = vadd.f32 0.0, %v6696
    %v6698 = vpop.f32.mrb[0].mxu0
    %6699 = vmatprep.mubr.bf16.mxu0 0
    %6700 = vmatmul.mubr.bf16.gmra.mrb[0].mxu0 %v5648
    %v6701 = vpop.f32.mrb[0].mxu0
    %v6702 = vadd.f32 0.0, %v6701
    %v6703 = vpop.f32.mrb[0].mxu0
    %v6704 = vpop.f32.mrb[0].mxu0
    %v6705 = vadd.f32 0.0, %v6704
    %v6706 = vpop.f32.mrb[0].mxu0
    %6707 = vmatprep.mubr.bf16.mxu0 0
    %6708 = vmatmul.mubr.bf16.gmra.mrb[0].mxu0 %v5649
    %v6709 = vpop.f32.mrb[0].mxu0
    %v6710 = vadd.f32 0.0, %v6709
    %v6711 = vpop.f32.mrb[0].mxu0
    %v6712 = vpop.f32.mrb[0].mxu0
    %v6713 = vadd.f32 0.0, %v6712
    %v6714 = vpop.f32.mrb[0].mxu0
    %6715 = vmatprep.mubr.bf16.mxu0 0
    %6716 = vmatmul.mubr.bf16.gmra.mrb[0].mxu0 %v6084
    %v6717 = vpop.f32.mrb[0].mxu0
    %v6718 = vadd.f32 0.0, %v6717
    %v6719 = vpop.f32.mrb[0].mxu0
    %v6720 = vpop.f32.mrb[0].mxu0
    %v6721 = vadd.f32 0.0, %v6720
    %v6722 = vpop.f32.mrb[0].mxu0
    %6723 = vmatprep.mubr.bf16.mxu0 0
    %6724 = vmatmul.mubr.bf16.gmra.mrb[0].mxu0 %v6504
    %v6725 = vpop.f32.mrb[0].mxu0
    %v6726 = vadd.f32 0.0, %v6725
    %v6727 = vpop.f32.mrb[0].mxu0
    %v6728 = vpop.f32.mrb[0].mxu0
    %v6729 = vadd.f32 0.0, %v6728
    %v6730 = vpop.f32.mrb[0].mxu0
    %6731 = vmatprep.mubr.bf16.mxu0 0
    %6732 = vmatmul.mubr.bf16.gmra.mrb[0].mxu0 %v5652
    %v6733 = vpop.f32.mrb[0].mxu0
    %v6734 = vadd.f32 0.0, %v6733
    %v6735 = vpop.f32.mrb[0].mxu0
    %v6736 = vpop.f32.mrb[0].mxu0
    %v6737 = vadd.f32 0.0, %v6736
    %v6738 = vpop.f32.mrb[0].mxu0
    %6739 = vmatprep.mubr.bf16.mxu0 0
    %6740 = vmatmul.mubr.bf16.gmra.mrb[0].mxu0 %v5653
    %v6741 = vpop.f32.mrb[0].mxu0
    %v6742 = vadd.f32 0.0, %v6741
    %v6743 = vpop.f32.mrb[0].mxu0
    %v6744 = vpop.f32.mrb[0].mxu0
    %v6745 = vadd.f32 0.0, %v6744
    %v6746 = vpop.f32.mrb[0].mxu0
    %6747 = vmatprep.mubr.bf16.mxu0 0
    %6748 = vmatmul.mubr.bf16.gmra.mrb[0].mxu0 %v5654
    %v6749 = vpop.f32.mrb[0].mxu0
    %v6750 = vadd.f32 0.0, %v6749
    %v6751 = vpop.f32.mrb[0].mxu0
    %v6752 = vpop.f32.mrb[0].mxu0
    %v6753 = vadd.f32 0.0, %v6752
    %v6754 = vpop.f32.mrb[0].mxu0
    %6755 = vmatprep.mubr.bf16.mxu0 0
    %6756 = vmatmul.mubr.bf16.gmra.mrb[0].mxu0 %v5655
    %v6757 = vpop.f32.mrb[0].mxu0
    %v6758 = vadd.f32 0.0, %v6757
    %v6759 = vpop.f32.mrb[0].mxu0
    %v6760 = vpop.f32.mrb[0].mxu0
    %v6761 = vadd.f32 0.0, %v6760
    %v6762 = vpop.f32.mrb[0].mxu0
    %6763 = vmatprep.mubr.bf16.mxu0 0
    %6764 = vmatmul.mubr.bf16.gmra.mrb[0].mxu0 %v5656
    %v6765 = vpop.f32.mrb[0].mxu0
    %v6766 = vadd.f32 0.0, %v6765
    %v6767 = vpop.f32.mrb[0].mxu0
    %v6768 = vpop.f32.mrb[0].mxu0
    %v6769 = vadd.f32 0.0, %v6768
    %v6770 = vpop.f32.mrb[0].mxu0
    %6771 = vmatprep.mubr.bf16.mxu0 0
    %6772 = vmatmul.mubr.bf16.gmra.mrb[0].mxu0 %v5657
    %v6773 = vpop.f32.mrb[0].mxu0
    %v6774 = vadd.f32 0.0, %v6773
    %v6775 = vpop.f32.mrb[0].mxu0
    %v6776 = vpop.f32.mrb[0].mxu0
    %v6777 = vadd.f32 0.0, %v6776
    %v6778 = vpop.f32.mrb[0].mxu0
    %6779 = vmatprep.mubr.bf16.mxu0 0
    %6780 = vmatmul.mubr.bf16.gmra.mrb[0].mxu0 %v5658
    %v6781 = vpop.f32.mrb[0].mxu0
    %v6782 = vadd.f32 0.0, %v6781
    %v6783 = vpop.f32.mrb[0].mxu0
    %v6784 = vpop.f32.mrb[0].mxu0
    %v6785 = vadd.f32 0.0, %v6784
    %v6786 = vpop.f32.mrb[0].mxu0
    %6787 = vmatprep.mubr.bf16.mxu0 0
    %6788 = vmatmul.mubr.bf16.gmra.mrb[0].mxu0 %v5659
    %v6789 = vpop.f32.mrb[0].mxu0
    %v6790 = vadd.f32 0.0, %v6789
    %v6791 = vpop.f32.mrb[0].mxu0
    %v6792 = vpop.f32.mrb[0].mxu0
    %v6793 = vadd.f32 0.0, %v6792
    %v6794 = vpop.f32.mrb[0].mxu0
    %6795 = vmatprep.mubr.bf16.mxu0 0
    %6796 = vmatmul.mubr.bf16.gmra.mrb[0].mxu0 %v5660
    %v6797 = vpop.f32.mrb[0].mxu0
    %v6798 = vadd.f32 0.0, %v6797
    %v6799 = vpop.f32.mrb[0].mxu0
    %v6800 = vpop.f32.mrb[0].mxu0
    %v6801 = vadd.f32 0.0, %v6800
    %v6802 = vpop.f32.mrb[0].mxu0
    %6803 = vmatprep.mubr.bf16.mxu0 0
    %6804 = vmatmul.mubr.bf16.gmra.mrb[0].mxu0 %v5661
    %v6805 = vpop.f32.mrb[0].mxu0
    %v6806 = vadd.f32 0.0, %v6805
    %v6807 = vpop.f32.mrb[0].mxu0
    %v6808 = vpop.f32.mrb[0].mxu0
    %v6809 = vadd.f32 0.0, %v6808
    %v6810 = vpop.f32.mrb[0].mxu0
    %6811 = vmatprep.mubr.bf16.mxu0 0
    %6812 = vmatmul.mubr.bf16.gmra.mrb[0].mxu0 %v5662
    %v6813 = vpop.f32.mrb[0].mxu0
    %v6814 = vadd.f32 0.0, %v6813
    %v6815 = vpop.f32.mrb[0].mxu0
    %v6816 = vpop.f32.mrb[0].mxu0
    %v6817 = vadd.f32 0.0, %v6816
    %v6818 = vpop.f32.mrb[0].mxu0
    %6819 = vmatprep.mubr.bf16.mxu0 0
    %6820 = vmatmul.mubr.bf16.gmra.mrb[0].mxu0 %v5663
    %v6821 = vpop.f32.mrb[0].mxu0
    %v6822 = vadd.f32 0.0, %v6821
    %v6823 = vpop.f32.mrb[0].mxu0
    %v6824 = vpop.f32.mrb[0].mxu0
    %v6825 = vadd.f32 0.0, %v6824
    %v6826 = vpop.f32.mrb[0].mxu0
    %6827 = vmatprep.mubr.bf16.mxu0 0
    %6828 = vmatmul.mubr.bf16.gmra.mrb[0].mxu0 %v5664
    %v6829 = vpop.f32.mrb[0].mxu0
    %v6830 = vadd.f32 0.0, %v6829
    %v6831 = vpop.f32.mrb[0].mxu0
    %v6832 = vpop.f32.mrb[0].mxu0
    %v6833 = vadd.f32 0.0, %v6832
    %v6834 = vpop.f32.mrb[0].mxu0
    %6835 = vmatprep.mubr.bf16.mxu0 0
    %6836 = vmatmul.mubr.bf16.gmra.mrb[0].mxu0 %v5665
    %v6837 = vpop.f32.mrb[0].mxu0
    %v6838 = vadd.f32 0.0, %v6837
    %v6839 = vpop.f32.mrb[0].mxu0
    %v6840 = vpop.f32.mrb[0].mxu0
    %v6841 = vadd.f32 0.0, %v6840
    %v6842 = vpop.f32.mrb[0].mxu0
    %6843 = vmatprep.mubr.bf16.mxu0 0
    %6844 = vmatmul.mubr.bf16.gmra.mrb[0].mxu0 %v6085
    %v6845 = vpop.f32.mrb[0].mxu0
    %v6846 = vadd.f32 0.0, %v6845
    %v6847 = vpop.f32.mrb[0].mxu0
    %v6848 = vpop.f32.mrb[0].mxu0
    %v6849 = vadd.f32 0.0, %v6848
    %v6850 = vpop.f32.mrb[0].mxu0
    %6851 = vmatprep.mubr.bf16.mxu0 0
    %6852 = vmatmul.mubr.bf16.gmra.mrb[0].mxu0 %v6505
    %v6853 = vpop.f32.mrb[0].mxu0
    %v6854 = vadd.f32 0.0, %v6853
    %v6855 = vpop.f32.mrb[0].mxu0
    %v6856 = vpop.f32.mrb[0].mxu0
    %v6857 = vadd.f32 0.0, %v6856
    %v6858 = vpop.f32.mrb[0].mxu0
    %6859 = vdwg.mxu0
    %v6860 = vadd.f32 %v6440, %v6606
    %v6861 = vadd.f32 %v6441, %v6609
    %v6862 = vadd.f32 %v6442, %v6614
    %v6863 = vadd.f32 %v6443, %v6617
    %v6864 = vadd.f32 %v6444, %v6622
    %v6865 = vadd.f32 %v6445, %v6625
    %v6866 = vadd.f32 %v6446, %v6630
    %v6867 = vadd.f32 %v6447, %v6633
    %v6868 = vadd.f32 %v6448, %v6638
    %v6869 = vadd.f32 %v6449, %v6641
    %v6870 = vadd.f32 %v6450, %v6646
    %v6871 = vadd.f32 %v6451, %v6649
    %v6872 = vadd.f32 %v6452, %v6654
    %v6873 = vadd.f32 %v6453, %v6657
    %v6874 = vadd.f32 %v6454, %v6662
    %v6875 = vadd.f32 %v6455, %v6665
    %v6876 = vadd.f32 %v6456, %v6670
    %v6877 = vadd.f32 %v6457, %v6673
    %v6878 = vadd.f32 %v6458, %v6678
    %v6879 = vadd.f32 %v6459, %v6681
    %v6880 = vadd.f32 %v6460, %v6686
    %v6881 = vadd.f32 %v6461, %v6689
    %v6882 = vadd.f32 %v6462, %v6694
    %v6883 = vadd.f32 %v6463, %v6697
    %v6884 = vadd.f32 %v6464, %v6702
    %v6885 = vadd.f32 %v6465, %v6705
    %v6886 = vadd.f32 %v6466, %v6710
    %v6887 = vadd.f32 %v6467, %v6713
    %v6888 = vadd.f32 %v6468, %v6718
    %v6889 = vadd.f32 %v6469, %v6721
    %v6890 = vadd.f32 %v6470, %v6726
    %v6891 = vadd.f32 %v6471, %v6729
    %v6892 = vadd.f32 %v6472, %v6734
    %v6893 = vadd.f32 %v6473, %v6737
    %v6894 = vadd.f32 %v6474, %v6742
    %v6895 = vadd.f32 %v6475, %v6745
    %v6896 = vadd.f32 %v6476, %v6750
    %v6897 = vadd.f32 %v6477, %v6753
    %v6898 = vadd.f32 %v6478, %v6758
    %v6899 = vadd.f32 %v6479, %v6761
    %v6900 = vadd.f32 %v6480, %v6766
    %v6901 = vadd.f32 %v6481, %v6769
    %v6902 = vadd.f32 %v6482, %v6774
    %v6903 = vadd.f32 %v6483, %v6777
    %v6904 = vadd.f32 %v6484, %v6782
    %v6905 = vadd.f32 %v6485, %v6785
    %v6906 = vadd.f32 %v6486, %v6790
    %v6907 = vadd.f32 %v6487, %v6793
    %v6908 = vadd.f32 %v6488, %v6798
    %v6909 = vadd.f32 %v6489, %v6801
    %v6910 = vadd.f32 %v6490, %v6806
    %v6911 = vadd.f32 %v6491, %v6809
    %v6912 = vadd.f32 %v6492, %v6814
    %v6913 = vadd.f32 %v6493, %v6817
    %v6914 = vadd.f32 %v6494, %v6822
    %v6915 = vadd.f32 %v6495, %v6825
    %v6916 = vadd.f32 %v6496, %v6830
    %v6917 = vadd.f32 %v6497, %v6833
    %v6918 = vadd.f32 %v6498, %v6838
    %v6919 = vadd.f32 %v6499, %v6841
    %v6920 = vadd.f32 %v6500, %v6846
    %v6921 = vadd.f32 %v6501, %v6849
    %v6922 = vadd.f32 %v6502, %v6854
    %v6923 = vadd.f32 %v6503, %v6857
    %v6924 = vld [vmem:[#allocation2 + $0x2] sm:$0xff]
    %v6925 = vld [vmem:[#allocation2 + $0xa] sm:$0xff]
    %v6926 = vld [vmem:[#allocation2 + $0x1a] sm:$0xff]
    %v6927 = vld [vmem:[#allocation2 + $0x22] sm:$0xff]
    %v6928 = vld [vmem:[#allocation2 + $0x32] sm:$0xff]
    %v6929 = vld [vmem:[#allocation2 + $0x3a] sm:$0xff]
    %v6930 = vld [vmem:[#allocation2 + $0x4a] sm:$0xff]
    %v6931 = vld [vmem:[#allocation2 + $0x52] sm:$0xff]
    %v6932 = vld [vmem:[#allocation2 + $0x62] sm:$0xff]
    %v6933 = vld [vmem:[#allocation2 + $0x6a] sm:$0xff]
    %v6934 = vld [vmem:[#allocation2 + $0x7a] sm:$0xff]
    %v6935 = vld [vmem:[#allocation2 + $0x82] sm:$0xff]
    %v6936 = vld [vmem:[#allocation2 + $0x92] sm:$0xff]
    %v6937 = vld [vmem:[#allocation2 + $0x9a] sm:$0xff]
    %v6938 = vld [vmem:[#allocation2 + $0xaa] sm:$0xff]
    %v6939 = vld [vmem:[#allocation2 + $0xb2] sm:$0xff]
    %v6940 = vld [vmem:[#allocation2 + $0xc2] sm:$0xff]
    %v6941 = vld [vmem:[#allocation2 + $0xca] sm:$0xff]
    %v6942 = vld [vmem:[#allocation2 + $0xda] sm:$0xff]
    %v6943 = vld [vmem:[#allocation2 + $0xe2] sm:$0xff]
    %v6944 = vld [vmem:[#allocation2 + $0xf2] sm:$0xff]
    %v6945 = vld [vmem:[#allocation2 + $0xfa] sm:$0xff]
    %v6946 = vld [vmem:[#allocation2 + $0x10a] sm:$0xff]
    %v6947 = vld [vmem:[#allocation2 + $0x112] sm:$0xff]
    %v6948 = vld [vmem:[#allocation2 + $0x122] sm:$0xff]
    %v6949 = vld [vmem:[#allocation2 + $0x12a] sm:$0xff]
    %v6950 = vld [vmem:[#allocation2 + $0x13a] sm:$0xff]
    %v6951 = vld [vmem:[#allocation2 + $0x142] sm:$0xff]
    %v6952 = vld [vmem:[#allocation2 + $0x152] sm:$0xff]
    %v6953 = vld [vmem:[#allocation2 + $0x15a] sm:$0xff]
    %v6954 = vld [vmem:[#allocation2 + $0x16a] sm:$0xff]
    %v6955 = vld [vmem:[#allocation2 + $0x172] sm:$0xff]
    %v6956 = vld [vmem:[#allocation2 + $0x182] sm:$0xff]
    %v6957 = vld [vmem:[#allocation2 + $0x18a] sm:$0xff]
    %v6958 = vld [vmem:[#allocation2 + $0x19a] sm:$0xff]
    %v6959 = vld [vmem:[#allocation2 + $0x1a2] sm:$0xff]
    %v6960 = vld [vmem:[#allocation2 + $0x1b2] sm:$0xff]
    %v6961 = vld [vmem:[#allocation2 + $0x1ba] sm:$0xff]
    %v6962 = vld [vmem:[#allocation2 + $0x1ca] sm:$0xff]
    %v6963 = vld [vmem:[#allocation2 + $0x1d2] sm:$0xff]
    %v6964 = vld [vmem:[#allocation2 + $0x1e2] sm:$0xff]
    %v6965 = vld [vmem:[#allocation2 + $0x1ea] sm:$0xff]
    %v6966 = vld [vmem:[#allocation2 + $0x1fa] sm:$0xff]
    %v6967 = vld [vmem:[#allocation2 + $0x202] sm:$0xff]
    %v6968 = vld [vmem:[#allocation2 + $0x212] sm:$0xff]
    %v6969 = vld [vmem:[#allocation2 + $0x21a] sm:$0xff]
    %v6970 = vld [vmem:[#allocation2 + $0x22a] sm:$0xff]
    %v6971 = vld [vmem:[#allocation2 + $0x232] sm:$0xff]
    %v6972 = vld [vmem:[#allocation2 + $0x242] sm:$0xff]
    %v6973 = vld [vmem:[#allocation2 + $0x24a] sm:$0xff]
    %v6974 = vld [vmem:[#allocation2 + $0x25a] sm:$0xff]
    %v6975 = vld [vmem:[#allocation2 + $0x262] sm:$0xff]
    %v6976 = vld [vmem:[#allocation2 + $0x272] sm:$0xff]
    %v6977 = vld [vmem:[#allocation2 + $0x27a] sm:$0xff]
    %v6978 = vld [vmem:[#allocation2 + $0x28a] sm:$0xff]
    %v6979 = vld [vmem:[#allocation2 + $0x292] sm:$0xff]
    %v6980 = vld [vmem:[#allocation2 + $0x2a2] sm:$0xff]
    %v6981 = vld [vmem:[#allocation2 + $0x2aa] sm:$0xff]
    %v6982 = vld [vmem:[#allocation2 + $0x2ba] sm:$0xff]
    %v6983 = vld [vmem:[#allocation2 + $0x2c2] sm:$0xff]
    %v6984 = vld [vmem:[#allocation2 + $0x2d2] sm:$0xff]
    %v6985 = vld [vmem:[#allocation2 + $0x2da] sm:$0xff]
    %v6986 = vld [vmem:[#allocation2 + $0x2ea] sm:$0xff]
    %v6987 = vld [vmem:[#allocation2 + $0x2f2] sm:$0xff]
    %v6988 = vld [vmem:[#allocation2 + $0x302] sm:$0xff]
    %v6989 = vld [vmem:[#allocation2 + $0x30a] sm:$0xff]
    %v6990 = vld [vmem:[#allocation2 + $0x31a] sm:$0xff]
    %v6991 = vld [vmem:[#allocation2 + $0x322] sm:$0xff]
    %v6992 = vld [vmem:[#allocation2 + $0x332] sm:$0xff]
    %v6993 = vld [vmem:[#allocation2 + $0x33a] sm:$0xff]
    %v6994 = vld [vmem:[#allocation2 + $0x34a] sm:$0xff]
    %v6995 = vld [vmem:[#allocation2 + $0x352] sm:$0xff]
    %v6996 = vpack.c.bf16 %v6925, %v6924
    %v6997 = vpack.c.bf16 %v6927, %v6926
    %v6998 = vpack.c.bf16 %v6929, %v6928
    %v6999 = vpack.c.bf16 %v6931, %v6930
    %v7000 = vpack.c.bf16 %v6933, %v6932
    %v7001 = vpack.c.bf16 %v6935, %v6934
    %v7002 = vpack.c.bf16 %v6937, %v6936
    %v7003 = vpack.c.bf16 %v6939, %v6938
    %v7004 = vpack.c.bf16 %v6941, %v6940
    %v7005 = vpack.c.bf16 %v6943, %v6942
    %v7006 = vpack.c.bf16 %v6945, %v6944
    %v7007 = vpack.c.bf16 %v6947, %v6946
    %v7008 = vpack.c.bf16 %v6949, %v6948
    %v7009 = vpack.c.bf16 %v6951, %v6950
    %v7010 = vpack.c.bf16 %v6953, %v6952
    %v7011 = vpack.c.bf16 %v6955, %v6954
    %v7012 = vpack.c.bf16 %v6961, %v6960
    %v7013 = vpack.c.bf16 %v6963, %v6962
    %v7014 = vpack.c.bf16 %v6965, %v6964
    %v7015 = vpack.c.bf16 %v6967, %v6966
    %v7016 = vpack.c.bf16 %v6969, %v6968
    %v7017 = vpack.c.bf16 %v6971, %v6970
    %v7018 = vpack.c.bf16 %v6973, %v6972
    %v7019 = vpack.c.bf16 %v6975, %v6974
    %v7020 = vpack.c.bf16 %v6977, %v6976
    %v7021 = vpack.c.bf16 %v6979, %v6978
    %v7022 = vpack.c.bf16 %v6981, %v6980
    %v7023 = vpack.c.bf16 %v6983, %v6982
    %v7024 = vpack.c.bf16 %v6985, %v6984
    %v7025 = vpack.c.bf16 %v6987, %v6986
    %v7026 = vpack.c.bf16 %v6989, %v6988
    %v7027 = vpack.c.bf16 %v6991, %v6990
    %s7028 = scalar_lea.vmem %s4, 128
    %v7029 = vld [vmem:[%s7028] sm:$0xf]
    %v7030 = vld [vmem:[%s7028 + $0x4] sm:$0xf]
    %v7031 = vld [vmem:[%s7028 + $0x8] sm:$0xf]
    %v7032 = vld [vmem:[%s7028 + $0xc] sm:$0xf]
    %v7033 = vld [vmem:[%s7028 + $0x10] sm:$0xf]
    %v7034 = vld [vmem:[%s7028 + $0x14] sm:$0xf]
    %v7035 = vld [vmem:[%s7028 + $0x18] sm:$0xf]
    %v7036 = vld [vmem:[%s7028 + $0x1c] sm:$0xf]
    %v7037 = vld [vmem:[%s7028 + $0x20] sm:$0xf]
    %v7038 = vld [vmem:[%s7028 + $0x24] sm:$0xf]
    %v7039 = vld [vmem:[%s7028 + $0x28] sm:$0xf]
    %v7040 = vld [vmem:[%s7028 + $0x2c] sm:$0xf]
    %v7041 = vld [vmem:[%s7028 + $0x30] sm:$0xf]
    %v7042 = vld [vmem:[%s7028 + $0x34] sm:$0xf]
    %v7043 = vld [vmem:[%s7028 + $0x38] sm:$0xf]
    %v7044 = vld [vmem:[%s7028 + $0x3c] sm:$0xf]
    %v7061 = vunpack.c.l.b16 %v7029
    %v7062 = vunpack.c.l.b16 %v7030
    %v7063 = vunpack.c.l.b16 %v7031
    %v7064 = vunpack.c.l.b16 %v7032
    %v7065 = vunpack.c.l.b16 %v7033
    %v7066 = vunpack.c.l.b16 %v7034
    %v7067 = vunpack.c.l.b16 %v7035
    %v7068 = vunpack.c.l.b16 %v7036
    %v7069 = vunpack.c.l.b16 %v7037
    %v7070 = vunpack.c.l.b16 %v7038
    %v7071 = vunpack.c.l.b16 %v7039
    %v7072 = vunpack.c.l.b16 %v7040
    %v7073 = vunpack.c.l.b16 %v7041
    %v7074 = vunpack.c.l.b16 %v7042
    %v7075 = vunpack.c.l.b16 %v7043
    %v7076 = vunpack.c.l.b16 %v7044
    %v7077 = vpack.c.b16 %v7062, %v7061
    %v7078 = vpack.c.b16 %v7064, %v7063
    %v7079 = vpack.c.b16 %v7066, %v7065
    %v7080 = vpack.c.b16 %v7068, %v7067
    %v7081 = vpack.c.b16 %v7070, %v7069
    %v7082 = vpack.c.b16 %v7072, %v7071
    %v7083 = vpack.c.b16 %v7074, %v7073
    %v7084 = vpack.c.b16 %v7076, %v7075
    %7093 = vmatprep.subr.bf16.mxu0 0
    %7094 = vmatpush1.bf16.msra.mxu0 %v7077
    %7095 = vmatprep.subr.bf16.mxu0 0
    %7096 = vmatpush1.bf16.msra.mxu0 %v7078
    %7097 = vmatprep.subr.bf16.mxu0 0
    %7098 = vmatpush1.bf16.msra.mxu0 %v7079
    %7099 = vmatprep.subr.bf16.mxu0 0
    %7100 = vmatpush1.bf16.msra.mxu0 %v7080
    %7101 = vmatprep.subr.bf16.mxu0 0
    %7102 = vmatpush1.bf16.msra.mxu0 %v7081
    %7103 = vmatprep.subr.bf16.mxu0 0
    %7104 = vmatpush1.bf16.msra.mxu0 %v7082
    %7105 = vmatprep.subr.bf16.mxu0 0
    %7106 = vmatpush1.bf16.msra.mxu0 %v7083
    %7107 = vmatprep.subr.bf16.mxu0 0
    %7108 = vmatpush1.bf16.msra.mxu0 %v7084
    %7109 = vmatprep.subr.bf16.mxu0 0
    %7110 = vmatpush1.bf16.msra.mxu0 0
    %7111 = vmatprep.subr.bf16.mxu0 0
    %7112 = vmatpush1.bf16.msra.mxu0 0
    %7113 = vmatprep.subr.bf16.mxu0 0
    %7114 = vmatpush1.bf16.msra.mxu0 0
    %7115 = vmatprep.subr.bf16.mxu0 0
    %7116 = vmatpush1.bf16.msra.mxu0 0
    %7117 = vmatprep.subr.bf16.mxu0 0
    %7118 = vmatpush1.bf16.msra.mxu0 0
    %7119 = vmatprep.subr.bf16.mxu0 0
    %7120 = vmatpush1.bf16.msra.mxu0 0
    %7121 = vmatprep.subr.bf16.mxu0 0
    %7122 = vmatpush1.bf16.msra.mxu0 0
    %7123 = vmatprep.subr.bf16.mxu0 0
    %7124 = vmatpush1.bf16.msra.mxu0 0
    %7125 = vmatprep.mubr.bf16.mxu0 0
    %7126 = vmatmul.mubr.bf16.gmra.mrb[0].mxu0 %v6996
    %v7127 = vpop.f32.mrb[0].mxu0
    %v7128 = vadd.f32 0.0, %v7127
    %v7129 = vpop.f32.mrb[0].mxu0
    %v7130 = vpop.f32.mrb[0].mxu0
    %v7131 = vadd.f32 0.0, %v7130
    %v7132 = vpop.f32.mrb[0].mxu0
    %7133 = vmatprep.mubr.bf16.mxu0 0
    %7134 = vmatmul.mubr.bf16.gmra.mrb[0].mxu0 %v6997
    %v7135 = vpop.f32.mrb[0].mxu0
    %v7136 = vadd.f32 0.0, %v7135
    %v7137 = vpop.f32.mrb[0].mxu0
    %v7138 = vpop.f32.mrb[0].mxu0
    %v7139 = vadd.f32 0.0, %v7138
    %v7140 = vpop.f32.mrb[0].mxu0
    %7141 = vmatprep.mubr.bf16.mxu0 0
    %7142 = vmatmul.mubr.bf16.gmra.mrb[0].mxu0 %v6998
    %v7143 = vpop.f32.mrb[0].mxu0
    %v7144 = vadd.f32 0.0, %v7143
    %v7145 = vpop.f32.mrb[0].mxu0
    %v7146 = vpop.f32.mrb[0].mxu0
    %v7147 = vadd.f32 0.0, %v7146
    %v7148 = vpop.f32.mrb[0].mxu0
    %7149 = vmatprep.mubr.bf16.mxu0 0
    %7150 = vmatmul.mubr.bf16.gmra.mrb[0].mxu0 %v6999
    %v7151 = vpop.f32.mrb[0].mxu0
    %v7152 = vadd.f32 0.0, %v7151
    %v7153 = vpop.f32.mrb[0].mxu0
    %v7154 = vpop.f32.mrb[0].mxu0
    %v7155 = vadd.f32 0.0, %v7154
    %v7156 = vpop.f32.mrb[0].mxu0
    %7157 = vmatprep.mubr.bf16.mxu0 0
    %7158 = vmatmul.mubr.bf16.gmra.mrb[0].mxu0 %v7000
    %v7159 = vpop.f32.mrb[0].mxu0
    %v7160 = vadd.f32 0.0, %v7159
    %v7161 = vpop.f32.mrb[0].mxu0
    %v7162 = vpop.f32.mrb[0].mxu0
    %v7163 = vadd.f32 0.0, %v7162
    %v7164 = vpop.f32.mrb[0].mxu0
    %7165 = vmatprep.mubr.bf16.mxu0 0
    %7166 = vmatmul.mubr.bf16.gmra.mrb[0].mxu0 %v7001
    %v7167 = vpop.f32.mrb[0].mxu0
    %v7168 = vadd.f32 0.0, %v7167
    %v7169 = vpop.f32.mrb[0].mxu0
    %v7170 = vpop.f32.mrb[0].mxu0
    %v7171 = vadd.f32 0.0, %v7170
    %v7172 = vpop.f32.mrb[0].mxu0
    %7173 = vmatprep.mubr.bf16.mxu0 0
    %7174 = vmatmul.mubr.bf16.gmra.mrb[0].mxu0 %v7002
    %v7175 = vpop.f32.mrb[0].mxu0
    %v7176 = vadd.f32 0.0, %v7175
    %v7177 = vpop.f32.mrb[0].mxu0
    %v7178 = vpop.f32.mrb[0].mxu0
    %v7179 = vadd.f32 0.0, %v7178
    %v7180 = vpop.f32.mrb[0].mxu0
    %7181 = vmatprep.mubr.bf16.mxu0 0
    %7182 = vmatmul.mubr.bf16.gmra.mrb[0].mxu0 %v7003
    %v7183 = vpop.f32.mrb[0].mxu0
    %v7184 = vadd.f32 0.0, %v7183
    %v7185 = vpop.f32.mrb[0].mxu0
    %v7186 = vpop.f32.mrb[0].mxu0
    %v7187 = vadd.f32 0.0, %v7186
    %v7188 = vpop.f32.mrb[0].mxu0
    %7189 = vmatprep.mubr.bf16.mxu0 0
    %7190 = vmatmul.mubr.bf16.gmra.mrb[0].mxu0 %v7004
    %v7191 = vpop.f32.mrb[0].mxu0
    %v7192 = vadd.f32 0.0, %v7191
    %v7193 = vpop.f32.mrb[0].mxu0
    %v7194 = vpop.f32.mrb[0].mxu0
    %v7195 = vadd.f32 0.0, %v7194
    %v7196 = vpop.f32.mrb[0].mxu0
    %7197 = vmatprep.mubr.bf16.mxu0 0
    %7198 = vmatmul.mubr.bf16.gmra.mrb[0].mxu0 %v7005
    %v7199 = vpop.f32.mrb[0].mxu0
    %v7200 = vadd.f32 0.0, %v7199
    %v7201 = vpop.f32.mrb[0].mxu0
    %v7202 = vpop.f32.mrb[0].mxu0
    %v7203 = vadd.f32 0.0, %v7202
    %v7204 = vpop.f32.mrb[0].mxu0
    %7205 = vmatprep.mubr.bf16.mxu0 0
    %7206 = vmatmul.mubr.bf16.gmra.mrb[0].mxu0 %v7006
    %v7207 = vpop.f32.mrb[0].mxu0
    %v7208 = vadd.f32 0.0, %v7207
    %v7209 = vpop.f32.mrb[0].mxu0
    %v7210 = vpop.f32.mrb[0].mxu0
    %v7211 = vadd.f32 0.0, %v7210
    %v7212 = vpop.f32.mrb[0].mxu0
    %7213 = vmatprep.mubr.bf16.mxu0 0
    %7214 = vmatmul.mubr.bf16.gmra.mrb[0].mxu0 %v7007
    %v7215 = vpop.f32.mrb[0].mxu0
    %v7216 = vadd.f32 0.0, %v7215
    %v7217 = vpop.f32.mrb[0].mxu0
    %v7218 = vpop.f32.mrb[0].mxu0
    %v7219 = vadd.f32 0.0, %v7218
    %v7220 = vpop.f32.mrb[0].mxu0
    %7221 = vmatprep.mubr.bf16.mxu0 0
    %7222 = vmatmul.mubr.bf16.gmra.mrb[0].mxu0 %v7008
    %v7223 = vpop.f32.mrb[0].mxu0
    %v7224 = vadd.f32 0.0, %v7223
    %v7225 = vpop.f32.mrb[0].mxu0
    %v7226 = vpop.f32.mrb[0].mxu0
    %v7227 = vadd.f32 0.0, %v7226
    %v7228 = vpop.f32.mrb[0].mxu0
    %7229 = vmatprep.mubr.bf16.mxu0 0
    %7230 = vmatmul.mubr.bf16.gmra.mrb[0].mxu0 %v7009
    %v7231 = vpop.f32.mrb[0].mxu0
    %v7232 = vadd.f32 0.0, %v7231
    %v7233 = vpop.f32.mrb[0].mxu0
    %v7234 = vpop.f32.mrb[0].mxu0
    %v7235 = vadd.f32 0.0, %v7234
    %v7236 = vpop.f32.mrb[0].mxu0
    %7237 = vmatprep.mubr.bf16.mxu0 0
    %7238 = vmatmul.mubr.bf16.gmra.mrb[0].mxu0 %v7010
    %v7239 = vpop.f32.mrb[0].mxu0
    %v7240 = vadd.f32 0.0, %v7239
    %v7241 = vpop.f32.mrb[0].mxu0
    %v7242 = vpop.f32.mrb[0].mxu0
    %v7243 = vadd.f32 0.0, %v7242
    %v7244 = vpop.f32.mrb[0].mxu0
    %7245 = vmatprep.mubr.bf16.mxu0 0
    %7246 = vmatmul.mubr.bf16.gmra.mrb[0].mxu0 %v7011
    %v7247 = vpop.f32.mrb[0].mxu0
    %v7248 = vadd.f32 0.0, %v7247
    %v7249 = vpop.f32.mrb[0].mxu0
    %v7250 = vpop.f32.mrb[0].mxu0
    %v7251 = vadd.f32 0.0, %v7250
    %v7252 = vpop.f32.mrb[0].mxu0
    %7253 = vmatprep.mubr.bf16.mxu0 0
    %7254 = vmatmul.mubr.bf16.gmra.mrb[0].mxu0 %v7012
    %v7255 = vpop.f32.mrb[0].mxu0
    %v7256 = vadd.f32 0.0, %v7255
    %v7257 = vpop.f32.mrb[0].mxu0
    %v7258 = vpop.f32.mrb[0].mxu0
    %v7259 = vadd.f32 0.0, %v7258
    %v7260 = vpop.f32.mrb[0].mxu0
    %7261 = vmatprep.mubr.bf16.mxu0 0
    %7262 = vmatmul.mubr.bf16.gmra.mrb[0].mxu0 %v7013
    %v7263 = vpop.f32.mrb[0].mxu0
    %v7264 = vadd.f32 0.0, %v7263
    %v7265 = vpop.f32.mrb[0].mxu0
    %v7266 = vpop.f32.mrb[0].mxu0
    %v7267 = vadd.f32 0.0, %v7266
    %v7268 = vpop.f32.mrb[0].mxu0
    %7269 = vmatprep.mubr.bf16.mxu0 0
    %7270 = vmatmul.mubr.bf16.gmra.mrb[0].mxu0 %v7014
    %v7271 = vpop.f32.mrb[0].mxu0
    %v7272 = vadd.f32 0.0, %v7271
    %v7273 = vpop.f32.mrb[0].mxu0
    %v7274 = vpop.f32.mrb[0].mxu0
    %v7275 = vadd.f32 0.0, %v7274
    %v7276 = vpop.f32.mrb[0].mxu0
    %7277 = vmatprep.mubr.bf16.mxu0 0
    %7278 = vmatmul.mubr.bf16.gmra.mrb[0].mxu0 %v7015
    %v7279 = vpop.f32.mrb[0].mxu0
    %v7280 = vadd.f32 0.0, %v7279
    %v7281 = vpop.f32.mrb[0].mxu0
    %v7282 = vpop.f32.mrb[0].mxu0
    %v7283 = vadd.f32 0.0, %v7282
    %v7284 = vpop.f32.mrb[0].mxu0
    %7285 = vmatprep.mubr.bf16.mxu0 0
    %7286 = vmatmul.mubr.bf16.gmra.mrb[0].mxu0 %v7016
    %v7287 = vpop.f32.mrb[0].mxu0
    %v7288 = vadd.f32 0.0, %v7287
    %v7289 = vpop.f32.mrb[0].mxu0
    %v7290 = vpop.f32.mrb[0].mxu0
    %v7291 = vadd.f32 0.0, %v7290
    %v7292 = vpop.f32.mrb[0].mxu0
    %7293 = vmatprep.mubr.bf16.mxu0 0
    %7294 = vmatmul.mubr.bf16.gmra.mrb[0].mxu0 %v7017
    %v7295 = vpop.f32.mrb[0].mxu0
    %v7296 = vadd.f32 0.0, %v7295
    %v7297 = vpop.f32.mrb[0].mxu0
    %v7298 = vpop.f32.mrb[0].mxu0
    %v7299 = vadd.f32 0.0, %v7298
    %v7300 = vpop.f32.mrb[0].mxu0
    %7301 = vmatprep.mubr.bf16.mxu0 0
    %7302 = vmatmul.mubr.bf16.gmra.mrb[0].mxu0 %v7018
    %v7303 = vpop.f32.mrb[0].mxu0
    %v7304 = vadd.f32 0.0, %v7303
    %v7305 = vpop.f32.mrb[0].mxu0
    %v7306 = vpop.f32.mrb[0].mxu0
    %v7307 = vadd.f32 0.0, %v7306
    %v7308 = vpop.f32.mrb[0].mxu0
    %7309 = vmatprep.mubr.bf16.mxu0 0
    %7310 = vmatmul.mubr.bf16.gmra.mrb[0].mxu0 %v7019
    %v7311 = vpop.f32.mrb[0].mxu0
    %v7312 = vadd.f32 0.0, %v7311
    %v7313 = vpop.f32.mrb[0].mxu0
    %v7314 = vpop.f32.mrb[0].mxu0
    %v7315 = vadd.f32 0.0, %v7314
    %v7316 = vpop.f32.mrb[0].mxu0
    %7317 = vmatprep.mubr.bf16.mxu0 0
    %7318 = vmatmul.mubr.bf16.gmra.mrb[0].mxu0 %v7020
    %v7319 = vpop.f32.mrb[0].mxu0
    %v7320 = vadd.f32 0.0, %v7319
    %v7321 = vpop.f32.mrb[0].mxu0
    %v7322 = vpop.f32.mrb[0].mxu0
    %v7323 = vadd.f32 0.0, %v7322
    %v7324 = vpop.f32.mrb[0].mxu0
    %7325 = vmatprep.mubr.bf16.mxu0 0
    %7326 = vmatmul.mubr.bf16.gmra.mrb[0].mxu0 %v7021
    %v7327 = vpop.f32.mrb[0].mxu0
    %v7328 = vadd.f32 0.0, %v7327
    %v7329 = vpop.f32.mrb[0].mxu0
    %v7330 = vpop.f32.mrb[0].mxu0
    %v7331 = vadd.f32 0.0, %v7330
    %v7332 = vpop.f32.mrb[0].mxu0
    %7333 = vmatprep.mubr.bf16.mxu0 0
    %7334 = vmatmul.mubr.bf16.gmra.mrb[0].mxu0 %v7022
    %v7335 = vpop.f32.mrb[0].mxu0
    %v7336 = vadd.f32 0.0, %v7335
    %v7337 = vpop.f32.mrb[0].mxu0
    %v7338 = vpop.f32.mrb[0].mxu0
    %v7339 = vadd.f32 0.0, %v7338
    %v7340 = vpop.f32.mrb[0].mxu0
    %7341 = vmatprep.mubr.bf16.mxu0 0
    %7342 = vmatmul.mubr.bf16.gmra.mrb[0].mxu0 %v7023
    %v7343 = vpop.f32.mrb[0].mxu0
    %v7344 = vadd.f32 0.0, %v7343
    %v7345 = vpop.f32.mrb[0].mxu0
    %v7346 = vpop.f32.mrb[0].mxu0
    %v7347 = vadd.f32 0.0, %v7346
    %v7348 = vpop.f32.mrb[0].mxu0
    %7349 = vmatprep.mubr.bf16.mxu0 0
    %7350 = vmatmul.mubr.bf16.gmra.mrb[0].mxu0 %v7024
    %v7351 = vpop.f32.mrb[0].mxu0
    %v7352 = vadd.f32 0.0, %v7351
    %v7353 = vpop.f32.mrb[0].mxu0
    %v7354 = vpop.f32.mrb[0].mxu0
    %v7355 = vadd.f32 0.0, %v7354
    %v7356 = vpop.f32.mrb[0].mxu0
    %7357 = vmatprep.mubr.bf16.mxu0 0
    %7358 = vmatmul.mubr.bf16.gmra.mrb[0].mxu0 %v7025
    %v7359 = vpop.f32.mrb[0].mxu0
    %v7360 = vadd.f32 0.0, %v7359
    %v7361 = vpop.f32.mrb[0].mxu0
    %v7362 = vpop.f32.mrb[0].mxu0
    %v7363 = vadd.f32 0.0, %v7362
    %v7364 = vpop.f32.mrb[0].mxu0
    %7365 = vmatprep.mubr.bf16.mxu0 0
    %7366 = vmatmul.mubr.bf16.gmra.mrb[0].mxu0 %v7026
    %v7367 = vpop.f32.mrb[0].mxu0
    %v7368 = vadd.f32 0.0, %v7367
    %v7369 = vpop.f32.mrb[0].mxu0
    %v7370 = vpop.f32.mrb[0].mxu0
    %v7371 = vadd.f32 0.0, %v7370
    %v7372 = vpop.f32.mrb[0].mxu0
    %7373 = vmatprep.mubr.bf16.mxu0 0
    %7374 = vmatmul.mubr.bf16.gmra.mrb[0].mxu0 %v7027
    %v7375 = vpop.f32.mrb[0].mxu0
    %v7376 = vadd.f32 0.0, %v7375
    %v7377 = vpop.f32.mrb[0].mxu0
    %v7378 = vpop.f32.mrb[0].mxu0
    %v7379 = vadd.f32 0.0, %v7378
    %v7380 = vpop.f32.mrb[0].mxu0
    %7381 = vdwg.mxu0
    %v7382 = vadd.f32 %v6860, %v7128
    %v7383 = vadd.f32 %v6861, %v7131
    %v7384 = vadd.f32 %v6862, %v7136
    %v7385 = vadd.f32 %v6863, %v7139
    %v7386 = vadd.f32 %v6864, %v7144
    %v7387 = vadd.f32 %v6865, %v7147
    %v7388 = vadd.f32 %v6866, %v7152
    %v7389 = vadd.f32 %v6867, %v7155
    %v7390 = vadd.f32 %v6868, %v7160
    %v7391 = vadd.f32 %v6869, %v7163
    %v7392 = vadd.f32 %v6870, %v7168
    %v7393 = vadd.f32 %v6871, %v7171
    %v7394 = vadd.f32 %v6872, %v7176
    %v7395 = vadd.f32 %v6873, %v7179
    %v7396 = vadd.f32 %v6874, %v7184
    %v7397 = vadd.f32 %v6875, %v7187
    %v7398 = vadd.f32 %v6876, %v7192
    %v7399 = vadd.f32 %v6877, %v7195
    %v7400 = vadd.f32 %v6878, %v7200
    %v7401 = vadd.f32 %v6879, %v7203
    %v7402 = vadd.f32 %v6880, %v7208
    %v7403 = vadd.f32 %v6881, %v7211
    %v7404 = vadd.f32 %v6882, %v7216
    %v7405 = vadd.f32 %v6883, %v7219
    %v7406 = vadd.f32 %v6884, %v7224
    %v7407 = vadd.f32 %v6885, %v7227
    %v7408 = vadd.f32 %v6886, %v7232
    %v7409 = vadd.f32 %v6887, %v7235
    %v7410 = vadd.f32 %v6888, %v7240
    %v7411 = vadd.f32 %v6889, %v7243
    %v7412 = vadd.f32 %v6890, %v7248
    %v7413 = vadd.f32 %v6891, %v7251
    %v7414 = vadd.f32 %v6892, %v7256
    %v7415 = vadd.f32 %v6893, %v7259
    %v7416 = vadd.f32 %v6894, %v7264
    %v7417 = vadd.f32 %v6895, %v7267
    %v7418 = vadd.f32 %v6896, %v7272
    %v7419 = vadd.f32 %v6897, %v7275
    %v7420 = vadd.f32 %v6898, %v7280
    %v7421 = vadd.f32 %v6899, %v7283
    %v7422 = vadd.f32 %v6900, %v7288
    %v7423 = vadd.f32 %v6901, %v7291
    %v7424 = vadd.f32 %v6902, %v7296
    %v7425 = vadd.f32 %v6903, %v7299
    %v7426 = vadd.f32 %v6904, %v7304
    %v7427 = vadd.f32 %v6905, %v7307
    %v7428 = vadd.f32 %v6906, %v7312
    %v7429 = vadd.f32 %v6907, %v7315
    %v7430 = vadd.f32 %v6908, %v7320
    %v7431 = vadd.f32 %v6909, %v7323
    %v7432 = vadd.f32 %v6910, %v7328
    %v7433 = vadd.f32 %v6911, %v7331
    %v7434 = vadd.f32 %v6912, %v7336
    %v7435 = vadd.f32 %v6913, %v7339
    %v7436 = vadd.f32 %v6914, %v7344
    %v7437 = vadd.f32 %v6915, %v7347
    %v7438 = vadd.f32 %v6916, %v7352
    %v7439 = vadd.f32 %v6917, %v7355
    %v7440 = vadd.f32 %v6918, %v7360
    %v7441 = vadd.f32 %v6919, %v7363
    %v7442 = vadd.f32 %v6920, %v7368
    %v7443 = vadd.f32 %v6921, %v7371
    %v7444 = vadd.f32 %v6922, %v7376
    %v7445 = vadd.f32 %v6923, %v7379
    %v7446 = vpack.c.bf16 %v6957, %v6956
    %v7447 = vpack.c.bf16 %v6993, %v6992
    %s7448 = scalar_lea.vmem %s4, 320
    %v7449 = vld [vmem:[%s7448] sm:$0xf]
    %v7450 = vld [vmem:[%s7448 + $0x4] sm:$0xf]
    %v7451 = vld [vmem:[%s7448 + $0x8] sm:$0xf]
    %v7452 = vld [vmem:[%s7448 + $0xc] sm:$0xf]
    %v7453 = vld [vmem:[%s7448 + $0x10] sm:$0xf]
    %v7454 = vld [vmem:[%s7448 + $0x14] sm:$0xf]
    %v7455 = vld [vmem:[%s7448 + $0x18] sm:$0xf]
    %v7456 = vld [vmem:[%s7448 + $0x1c] sm:$0xf]
    %v7457 = vld [vmem:[%s7448 + $0x20] sm:$0xf]
    %v7458 = vld [vmem:[%s7448 + $0x24] sm:$0xf]
    %v7459 = vld [vmem:[%s7448 + $0x28] sm:$0xf]
    %v7460 = vld [vmem:[%s7448 + $0x2c] sm:$0xf]
    %v7461 = vld [vmem:[%s7448 + $0x30] sm:$0xf]
    %v7462 = vld [vmem:[%s7448 + $0x34] sm:$0xf]
    %v7463 = vld [vmem:[%s7448 + $0x38] sm:$0xf]
    %v7464 = vld [vmem:[%s7448 + $0x3c] sm:$0xf]
    %v7481 = vunpack.c.l.b16 %v7449
    %v7482 = vunpack.c.l.b16 %v7450
    %v7483 = vunpack.c.l.b16 %v7451
    %v7484 = vunpack.c.l.b16 %v7452
    %v7485 = vunpack.c.l.b16 %v7453
    %v7486 = vunpack.c.l.b16 %v7454
    %v7487 = vunpack.c.l.b16 %v7455
    %v7488 = vunpack.c.l.b16 %v7456
    %v7489 = vunpack.c.l.b16 %v7457
    %v7490 = vunpack.c.l.b16 %v7458
    %v7491 = vunpack.c.l.b16 %v7459
    %v7492 = vunpack.c.l.b16 %v7460
    %v7493 = vunpack.c.l.b16 %v7461
    %v7494 = vunpack.c.l.b16 %v7462
    %v7495 = vunpack.c.l.b16 %v7463
    %v7496 = vunpack.c.l.b16 %v7464
    %v7497 = vpack.c.b16 %v7482, %v7481
    %v7498 = vpack.c.b16 %v7484, %v7483
    %v7499 = vpack.c.b16 %v7486, %v7485
    %v7500 = vpack.c.b16 %v7488, %v7487
    %v7501 = vpack.c.b16 %v7490, %v7489
    %v7502 = vpack.c.b16 %v7492, %v7491
    %v7503 = vpack.c.b16 %v7494, %v7493
    %v7504 = vpack.c.b16 %v7496, %v7495
    %7513 = vmatprep.subr.bf16.mxu0 0
    %7514 = vmatpush1.bf16.msra.mxu0 %v7497
    %7515 = vmatprep.subr.bf16.mxu0 0
    %7516 = vmatpush1.bf16.msra.mxu0 %v7498
    %7517 = vmatprep.subr.bf16.mxu0 0
    %7518 = vmatpush1.bf16.msra.mxu0 %v7499
    %7519 = vmatprep.subr.bf16.mxu0 0
    %7520 = vmatpush1.bf16.msra.mxu0 %v7500
    %7521 = vmatprep.subr.bf16.mxu0 0
    %7522 = vmatpush1.bf16.msra.mxu0 %v7501
    %7523 = vmatprep.subr.bf16.mxu0 0
    %7524 = vmatpush1.bf16.msra.mxu0 %v7502
    %7525 = vmatprep.subr.bf16.mxu0 0
    %7526 = vmatpush1.bf16.msra.mxu0 %v7503
    %7527 = vmatprep.subr.bf16.mxu0 0
    %7528 = vmatpush1.bf16.msra.mxu0 %v7504
    %7529 = vmatprep.subr.bf16.mxu0 0
    %7530 = vmatpush1.bf16.msra.mxu0 0
    %7531 = vmatprep.subr.bf16.mxu0 0
    %7532 = vmatpush1.bf16.msra.mxu0 0
    %7533 = vmatprep.subr.bf16.mxu0 0
    %7534 = vmatpush1.bf16.msra.mxu0 0
    %7535 = vmatprep.subr.bf16.mxu0 0
    %7536 = vmatpush1.bf16.msra.mxu0 0
    %7537 = vmatprep.subr.bf16.mxu0 0
    %7538 = vmatpush1.bf16.msra.mxu0 0
    %7539 = vmatprep.subr.bf16.mxu0 0
    %7540 = vmatpush1.bf16.msra.mxu0 0
    %7541 = vmatprep.subr.bf16.mxu0 0
    %7542 = vmatpush1.bf16.msra.mxu0 0
    %7543 = vmatprep.subr.bf16.mxu0 0
    %7544 = vmatpush1.bf16.msra.mxu0 0
    %7545 = vmatprep.mubr.bf16.mxu0 0
    %7546 = vmatmul.mubr.bf16.gmra.mrb[0].mxu0 %v6997
    %v7547 = vpop.f32.mrb[0].mxu0
    %v7548 = vadd.f32 0.0, %v7547
    %v7549 = vpop.f32.mrb[0].mxu0
    %v7550 = vpop.f32.mrb[0].mxu0
    %v7551 = vadd.f32 0.0, %v7550
    %v7552 = vpop.f32.mrb[0].mxu0
    %7553 = vmatprep.mubr.bf16.mxu0 0
    %7554 = vmatmul.mubr.bf16.gmra.mrb[0].mxu0 %v6998
    %v7555 = vpop.f32.mrb[0].mxu0
    %v7556 = vadd.f32 0.0, %v7555
    %v7557 = vpop.f32.mrb[0].mxu0
    %v7558 = vpop.f32.mrb[0].mxu0
    %v7559 = vadd.f32 0.0, %v7558
    %v7560 = vpop.f32.mrb[0].mxu0
    %7561 = vmatprep.mubr.bf16.mxu0 0
    %7562 = vmatmul.mubr.bf16.gmra.mrb[0].mxu0 %v6999
    %v7563 = vpop.f32.mrb[0].mxu0
    %v7564 = vadd.f32 0.0, %v7563
    %v7565 = vpop.f32.mrb[0].mxu0
    %v7566 = vpop.f32.mrb[0].mxu0
    %v7567 = vadd.f32 0.0, %v7566
    %v7568 = vpop.f32.mrb[0].mxu0
    %7569 = vmatprep.mubr.bf16.mxu0 0
    %7570 = vmatmul.mubr.bf16.gmra.mrb[0].mxu0 %v7000
    %v7571 = vpop.f32.mrb[0].mxu0
    %v7572 = vadd.f32 0.0, %v7571
    %v7573 = vpop.f32.mrb[0].mxu0
    %v7574 = vpop.f32.mrb[0].mxu0
    %v7575 = vadd.f32 0.0, %v7574
    %v7576 = vpop.f32.mrb[0].mxu0
    %7577 = vmatprep.mubr.bf16.mxu0 0
    %7578 = vmatmul.mubr.bf16.gmra.mrb[0].mxu0 %v7001
    %v7579 = vpop.f32.mrb[0].mxu0
    %v7580 = vadd.f32 0.0, %v7579
    %v7581 = vpop.f32.mrb[0].mxu0
    %v7582 = vpop.f32.mrb[0].mxu0
    %v7583 = vadd.f32 0.0, %v7582
    %v7584 = vpop.f32.mrb[0].mxu0
    %7585 = vmatprep.mubr.bf16.mxu0 0
    %7586 = vmatmul.mubr.bf16.gmra.mrb[0].mxu0 %v7002
    %v7587 = vpop.f32.mrb[0].mxu0
    %v7588 = vadd.f32 0.0, %v7587
    %v7589 = vpop.f32.mrb[0].mxu0
    %v7590 = vpop.f32.mrb[0].mxu0
    %v7591 = vadd.f32 0.0, %v7590
    %v7592 = vpop.f32.mrb[0].mxu0
    %7593 = vmatprep.mubr.bf16.mxu0 0
    %7594 = vmatmul.mubr.bf16.gmra.mrb[0].mxu0 %v7003
    %v7595 = vpop.f32.mrb[0].mxu0
    %v7596 = vadd.f32 0.0, %v7595
    %v7597 = vpop.f32.mrb[0].mxu0
    %v7598 = vpop.f32.mrb[0].mxu0
    %v7599 = vadd.f32 0.0, %v7598
    %v7600 = vpop.f32.mrb[0].mxu0
    %7601 = vmatprep.mubr.bf16.mxu0 0
    %7602 = vmatmul.mubr.bf16.gmra.mrb[0].mxu0 %v7004
    %v7603 = vpop.f32.mrb[0].mxu0
    %v7604 = vadd.f32 0.0, %v7603
    %v7605 = vpop.f32.mrb[0].mxu0
    %v7606 = vpop.f32.mrb[0].mxu0
    %v7607 = vadd.f32 0.0, %v7606
    %v7608 = vpop.f32.mrb[0].mxu0
    %7609 = vmatprep.mubr.bf16.mxu0 0
    %7610 = vmatmul.mubr.bf16.gmra.mrb[0].mxu0 %v7005
    %v7611 = vpop.f32.mrb[0].mxu0
    %v7612 = vadd.f32 0.0, %v7611
    %v7613 = vpop.f32.mrb[0].mxu0
    %v7614 = vpop.f32.mrb[0].mxu0
    %v7615 = vadd.f32 0.0, %v7614
    %v7616 = vpop.f32.mrb[0].mxu0
    %7617 = vmatprep.mubr.bf16.mxu0 0
    %7618 = vmatmul.mubr.bf16.gmra.mrb[0].mxu0 %v7006
    %v7619 = vpop.f32.mrb[0].mxu0
    %v7620 = vadd.f32 0.0, %v7619
    %v7621 = vpop.f32.mrb[0].mxu0
    %v7622 = vpop.f32.mrb[0].mxu0
    %v7623 = vadd.f32 0.0, %v7622
    %v7624 = vpop.f32.mrb[0].mxu0
    %7625 = vmatprep.mubr.bf16.mxu0 0
    %7626 = vmatmul.mubr.bf16.gmra.mrb[0].mxu0 %v7007
    %v7627 = vpop.f32.mrb[0].mxu0
    %v7628 = vadd.f32 0.0, %v7627
    %v7629 = vpop.f32.mrb[0].mxu0
    %v7630 = vpop.f32.mrb[0].mxu0
    %v7631 = vadd.f32 0.0, %v7630
    %v7632 = vpop.f32.mrb[0].mxu0
    %7633 = vmatprep.mubr.bf16.mxu0 0
    %7634 = vmatmul.mubr.bf16.gmra.mrb[0].mxu0 %v7008
    %v7635 = vpop.f32.mrb[0].mxu0
    %v7636 = vadd.f32 0.0, %v7635
    %v7637 = vpop.f32.mrb[0].mxu0
    %v7638 = vpop.f32.mrb[0].mxu0
    %v7639 = vadd.f32 0.0, %v7638
    %v7640 = vpop.f32.mrb[0].mxu0
    %7641 = vmatprep.mubr.bf16.mxu0 0
    %7642 = vmatmul.mubr.bf16.gmra.mrb[0].mxu0 %v7009
    %v7643 = vpop.f32.mrb[0].mxu0
    %v7644 = vadd.f32 0.0, %v7643
    %v7645 = vpop.f32.mrb[0].mxu0
    %v7646 = vpop.f32.mrb[0].mxu0
    %v7647 = vadd.f32 0.0, %v7646
    %v7648 = vpop.f32.mrb[0].mxu0
    %7649 = vmatprep.mubr.bf16.mxu0 0
    %7650 = vmatmul.mubr.bf16.gmra.mrb[0].mxu0 %v7010
    %v7651 = vpop.f32.mrb[0].mxu0
    %v7652 = vadd.f32 0.0, %v7651
    %v7653 = vpop.f32.mrb[0].mxu0
    %v7654 = vpop.f32.mrb[0].mxu0
    %v7655 = vadd.f32 0.0, %v7654
    %v7656 = vpop.f32.mrb[0].mxu0
    %7657 = vmatprep.mubr.bf16.mxu0 0
    %7658 = vmatmul.mubr.bf16.gmra.mrb[0].mxu0 %v7011
    %v7659 = vpop.f32.mrb[0].mxu0
    %v7660 = vadd.f32 0.0, %v7659
    %v7661 = vpop.f32.mrb[0].mxu0
    %v7662 = vpop.f32.mrb[0].mxu0
    %v7663 = vadd.f32 0.0, %v7662
    %v7664 = vpop.f32.mrb[0].mxu0
    %7665 = vmatprep.mubr.bf16.mxu0 0
    %7666 = vmatmul.mubr.bf16.gmra.mrb[0].mxu0 %v7446
    %v7667 = vpop.f32.mrb[0].mxu0
    %v7668 = vadd.f32 0.0, %v7667
    %v7669 = vpop.f32.mrb[0].mxu0
    %v7670 = vpop.f32.mrb[0].mxu0
    %v7671 = vadd.f32 0.0, %v7670
    %v7672 = vpop.f32.mrb[0].mxu0
    %7673 = vmatprep.mubr.bf16.mxu0 0
    %7674 = vmatmul.mubr.bf16.gmra.mrb[0].mxu0 %v7013
    %v7675 = vpop.f32.mrb[0].mxu0
    %v7676 = vadd.f32 0.0, %v7675
    %v7677 = vpop.f32.mrb[0].mxu0
    %v7678 = vpop.f32.mrb[0].mxu0
    %v7679 = vadd.f32 0.0, %v7678
    %v7680 = vpop.f32.mrb[0].mxu0
    %7681 = vmatprep.mubr.bf16.mxu0 0
    %7682 = vmatmul.mubr.bf16.gmra.mrb[0].mxu0 %v7014
    %v7683 = vpop.f32.mrb[0].mxu0
    %v7684 = vadd.f32 0.0, %v7683
    %v7685 = vpop.f32.mrb[0].mxu0
    %v7686 = vpop.f32.mrb[0].mxu0
    %v7687 = vadd.f32 0.0, %v7686
    %v7688 = vpop.f32.mrb[0].mxu0
    %7689 = vmatprep.mubr.bf16.mxu0 0
    %7690 = vmatmul.mubr.bf16.gmra.mrb[0].mxu0 %v7015
    %v7691 = vpop.f32.mrb[0].mxu0
    %v7692 = vadd.f32 0.0, %v7691
    %v7693 = vpop.f32.mrb[0].mxu0
    %v7694 = vpop.f32.mrb[0].mxu0
    %v7695 = vadd.f32 0.0, %v7694
    %v7696 = vpop.f32.mrb[0].mxu0
    %7697 = vmatprep.mubr.bf16.mxu0 0
    %7698 = vmatmul.mubr.bf16.gmra.mrb[0].mxu0 %v7016
    %v7699 = vpop.f32.mrb[0].mxu0
    %v7700 = vadd.f32 0.0, %v7699
    %v7701 = vpop.f32.mrb[0].mxu0
    %v7702 = vpop.f32.mrb[0].mxu0
    %v7703 = vadd.f32 0.0, %v7702
    %v7704 = vpop.f32.mrb[0].mxu0
    %7705 = vmatprep.mubr.bf16.mxu0 0
    %7706 = vmatmul.mubr.bf16.gmra.mrb[0].mxu0 %v7017
    %v7707 = vpop.f32.mrb[0].mxu0
    %v7708 = vadd.f32 0.0, %v7707
    %v7709 = vpop.f32.mrb[0].mxu0
    %v7710 = vpop.f32.mrb[0].mxu0
    %v7711 = vadd.f32 0.0, %v7710
    %v7712 = vpop.f32.mrb[0].mxu0
    %7713 = vmatprep.mubr.bf16.mxu0 0
    %7714 = vmatmul.mubr.bf16.gmra.mrb[0].mxu0 %v7018
    %v7715 = vpop.f32.mrb[0].mxu0
    %v7716 = vadd.f32 0.0, %v7715
    %v7717 = vpop.f32.mrb[0].mxu0
    %v7718 = vpop.f32.mrb[0].mxu0
    %v7719 = vadd.f32 0.0, %v7718
    %v7720 = vpop.f32.mrb[0].mxu0
    %7721 = vmatprep.mubr.bf16.mxu0 0
    %7722 = vmatmul.mubr.bf16.gmra.mrb[0].mxu0 %v7019
    %v7723 = vpop.f32.mrb[0].mxu0
    %v7724 = vadd.f32 0.0, %v7723
    %v7725 = vpop.f32.mrb[0].mxu0
    %v7726 = vpop.f32.mrb[0].mxu0
    %v7727 = vadd.f32 0.0, %v7726
    %v7728 = vpop.f32.mrb[0].mxu0
    %7729 = vmatprep.mubr.bf16.mxu0 0
    %7730 = vmatmul.mubr.bf16.gmra.mrb[0].mxu0 %v7020
    %v7731 = vpop.f32.mrb[0].mxu0
    %v7732 = vadd.f32 0.0, %v7731
    %v7733 = vpop.f32.mrb[0].mxu0
    %v7734 = vpop.f32.mrb[0].mxu0
    %v7735 = vadd.f32 0.0, %v7734
    %v7736 = vpop.f32.mrb[0].mxu0
    %7737 = vmatprep.mubr.bf16.mxu0 0
    %7738 = vmatmul.mubr.bf16.gmra.mrb[0].mxu0 %v7021
    %v7739 = vpop.f32.mrb[0].mxu0
    %v7740 = vadd.f32 0.0, %v7739
    %v7741 = vpop.f32.mrb[0].mxu0
    %v7742 = vpop.f32.mrb[0].mxu0
    %v7743 = vadd.f32 0.0, %v7742
    %v7744 = vpop.f32.mrb[0].mxu0
    %7745 = vmatprep.mubr.bf16.mxu0 0
    %7746 = vmatmul.mubr.bf16.gmra.mrb[0].mxu0 %v7022
    %v7747 = vpop.f32.mrb[0].mxu0
    %v7748 = vadd.f32 0.0, %v7747
    %v7749 = vpop.f32.mrb[0].mxu0
    %v7750 = vpop.f32.mrb[0].mxu0
    %v7751 = vadd.f32 0.0, %v7750
    %v7752 = vpop.f32.mrb[0].mxu0
    %7753 = vmatprep.mubr.bf16.mxu0 0
    %7754 = vmatmul.mubr.bf16.gmra.mrb[0].mxu0 %v7023
    %v7755 = vpop.f32.mrb[0].mxu0
    %v7756 = vadd.f32 0.0, %v7755
    %v7757 = vpop.f32.mrb[0].mxu0
    %v7758 = vpop.f32.mrb[0].mxu0
    %v7759 = vadd.f32 0.0, %v7758
    %v7760 = vpop.f32.mrb[0].mxu0
    %7761 = vmatprep.mubr.bf16.mxu0 0
    %7762 = vmatmul.mubr.bf16.gmra.mrb[0].mxu0 %v7024
    %v7763 = vpop.f32.mrb[0].mxu0
    %v7764 = vadd.f32 0.0, %v7763
    %v7765 = vpop.f32.mrb[0].mxu0
    %v7766 = vpop.f32.mrb[0].mxu0
    %v7767 = vadd.f32 0.0, %v7766
    %v7768 = vpop.f32.mrb[0].mxu0
    %7769 = vmatprep.mubr.bf16.mxu0 0
    %7770 = vmatmul.mubr.bf16.gmra.mrb[0].mxu0 %v7025
    %v7771 = vpop.f32.mrb[0].mxu0
    %v7772 = vadd.f32 0.0, %v7771
    %v7773 = vpop.f32.mrb[0].mxu0
    %v7774 = vpop.f32.mrb[0].mxu0
    %v7775 = vadd.f32 0.0, %v7774
    %v7776 = vpop.f32.mrb[0].mxu0
    %7777 = vmatprep.mubr.bf16.mxu0 0
    %7778 = vmatmul.mubr.bf16.gmra.mrb[0].mxu0 %v7026
    %v7779 = vpop.f32.mrb[0].mxu0
    %v7780 = vadd.f32 0.0, %v7779
    %v7781 = vpop.f32.mrb[0].mxu0
    %v7782 = vpop.f32.mrb[0].mxu0
    %v7783 = vadd.f32 0.0, %v7782
    %v7784 = vpop.f32.mrb[0].mxu0
    %7785 = vmatprep.mubr.bf16.mxu0 0
    %7786 = vmatmul.mubr.bf16.gmra.mrb[0].mxu0 %v7027
    %v7787 = vpop.f32.mrb[0].mxu0
    %v7788 = vadd.f32 0.0, %v7787
    %v7789 = vpop.f32.mrb[0].mxu0
    %v7790 = vpop.f32.mrb[0].mxu0
    %v7791 = vadd.f32 0.0, %v7790
    %v7792 = vpop.f32.mrb[0].mxu0
    %7793 = vmatprep.mubr.bf16.mxu0 0
    %7794 = vmatmul.mubr.bf16.gmra.mrb[0].mxu0 %v7447
    %v7795 = vpop.f32.mrb[0].mxu0
    %v7796 = vadd.f32 0.0, %v7795
    %v7797 = vpop.f32.mrb[0].mxu0
    %v7798 = vpop.f32.mrb[0].mxu0
    %v7799 = vadd.f32 0.0, %v7798
    %v7800 = vpop.f32.mrb[0].mxu0
    %7801 = vdwg.mxu0
    %v7802 = vadd.f32 %v7382, %v7548
    %v7803 = vadd.f32 %v7383, %v7551
    %v7804 = vadd.f32 %v7384, %v7556
    %v7805 = vadd.f32 %v7385, %v7559
    %v7806 = vadd.f32 %v7386, %v7564
    %v7807 = vadd.f32 %v7387, %v7567
    %v7808 = vadd.f32 %v7388, %v7572
    %v7809 = vadd.f32 %v7389, %v7575
    %v7810 = vadd.f32 %v7390, %v7580
    %v7811 = vadd.f32 %v7391, %v7583
    %v7812 = vadd.f32 %v7392, %v7588
    %v7813 = vadd.f32 %v7393, %v7591
    %v7814 = vadd.f32 %v7394, %v7596
    %v7815 = vadd.f32 %v7395, %v7599
    %v7816 = vadd.f32 %v7396, %v7604
    %v7817 = vadd.f32 %v7397, %v7607
    %v7818 = vadd.f32 %v7398, %v7612
    %v7819 = vadd.f32 %v7399, %v7615
    %v7820 = vadd.f32 %v7400, %v7620
    %v7821 = vadd.f32 %v7401, %v7623
    %v7822 = vadd.f32 %v7402, %v7628
    %v7823 = vadd.f32 %v7403, %v7631
    %v7824 = vadd.f32 %v7404, %v7636
    %v7825 = vadd.f32 %v7405, %v7639
    %v7826 = vadd.f32 %v7406, %v7644
    %v7827 = vadd.f32 %v7407, %v7647
    %v7828 = vadd.f32 %v7408, %v7652
    %v7829 = vadd.f32 %v7409, %v7655
    %v7830 = vadd.f32 %v7410, %v7660
    %v7831 = vadd.f32 %v7411, %v7663
    %v7832 = vadd.f32 %v7412, %v7668
    %v7833 = vadd.f32 %v7413, %v7671
    %v7834 = vadd.f32 %v7414, %v7676
    %v7835 = vadd.f32 %v7415, %v7679
    %v7836 = vadd.f32 %v7416, %v7684
    %v7837 = vadd.f32 %v7417, %v7687
    %v7838 = vadd.f32 %v7418, %v7692
    %v7839 = vadd.f32 %v7419, %v7695
    %v7840 = vadd.f32 %v7420, %v7700
    %v7841 = vadd.f32 %v7421, %v7703
    %v7842 = vadd.f32 %v7422, %v7708
    %v7843 = vadd.f32 %v7423, %v7711
    %v7844 = vadd.f32 %v7424, %v7716
    %v7845 = vadd.f32 %v7425, %v7719
    %v7846 = vadd.f32 %v7426, %v7724
    %v7847 = vadd.f32 %v7427, %v7727
    %v7848 = vadd.f32 %v7428, %v7732
    %v7849 = vadd.f32 %v7429, %v7735
    %v7850 = vadd.f32 %v7430, %v7740
    %v7851 = vadd.f32 %v7431, %v7743
    %v7852 = vadd.f32 %v7432, %v7748
    %v7853 = vadd.f32 %v7433, %v7751
    %v7854 = vadd.f32 %v7434, %v7756
    %v7855 = vadd.f32 %v7435, %v7759
    %v7856 = vadd.f32 %v7436, %v7764
    %v7857 = vadd.f32 %v7437, %v7767
    %v7858 = vadd.f32 %v7438, %v7772
    %v7859 = vadd.f32 %v7439, %v7775
    %v7860 = vadd.f32 %v7440, %v7780
    %v7861 = vadd.f32 %v7441, %v7783
    %v7862 = vadd.f32 %v7442, %v7788
    %v7863 = vadd.f32 %v7443, %v7791
    %v7864 = vadd.f32 %v7444, %v7796
    %v7865 = vadd.f32 %v7445, %v7799
    %v7866 = vpack.c.bf16 %v6959, %v6958
    %v7867 = vpack.c.bf16 %v6995, %v6994
    %s7868 = scalar_lea.vmem %s4, 512
    %v7869 = vld [vmem:[%s7868] sm:$0xf]
    %v7870 = vld [vmem:[%s7868 + $0x4] sm:$0xf]
    %v7871 = vld [vmem:[%s7868 + $0x8] sm:$0xf]
    %v7872 = vld [vmem:[%s7868 + $0xc] sm:$0xf]
    %v7873 = vld [vmem:[%s7868 + $0x10] sm:$0xf]
    %v7874 = vld [vmem:[%s7868 + $0x14] sm:$0xf]
    %v7875 = vld [vmem:[%s7868 + $0x18] sm:$0xf]
    %v7876 = vld [vmem:[%s7868 + $0x1c] sm:$0xf]
    %v7877 = vld [vmem:[%s7868 + $0x20] sm:$0xf]
    %v7878 = vld [vmem:[%s7868 + $0x24] sm:$0xf]
    %v7879 = vld [vmem:[%s7868 + $0x28] sm:$0xf]
    %v7880 = vld [vmem:[%s7868 + $0x2c] sm:$0xf]
    %v7881 = vld [vmem:[%s7868 + $0x30] sm:$0xf]
    %v7882 = vld [vmem:[%s7868 + $0x34] sm:$0xf]
    %v7883 = vld [vmem:[%s7868 + $0x38] sm:$0xf]
    %v7884 = vld [vmem:[%s7868 + $0x3c] sm:$0xf]
    %v7901 = vunpack.c.l.b16 %v7869
    %v7902 = vunpack.c.l.b16 %v7870
    %v7903 = vunpack.c.l.b16 %v7871
    %v7904 = vunpack.c.l.b16 %v7872
    %v7905 = vunpack.c.l.b16 %v7873
    %v7906 = vunpack.c.l.b16 %v7874
    %v7907 = vunpack.c.l.b16 %v7875
    %v7908 = vunpack.c.l.b16 %v7876
    %v7909 = vunpack.c.l.b16 %v7877
    %v7910 = vunpack.c.l.b16 %v7878
    %v7911 = vunpack.c.l.b16 %v7879
    %v7912 = vunpack.c.l.b16 %v7880
    %v7913 = vunpack.c.l.b16 %v7881
    %v7914 = vunpack.c.l.b16 %v7882
    %v7915 = vunpack.c.l.b16 %v7883
    %v7916 = vunpack.c.l.b16 %v7884
    %v7917 = vpack.c.b16 %v7902, %v7901
    %v7918 = vpack.c.b16 %v7904, %v7903
    %v7919 = vpack.c.b16 %v7906, %v7905
    %v7920 = vpack.c.b16 %v7908, %v7907
    %v7921 = vpack.c.b16 %v7910, %v7909
    %v7922 = vpack.c.b16 %v7912, %v7911
    %v7923 = vpack.c.b16 %v7914, %v7913
    %v7924 = vpack.c.b16 %v7916, %v7915
    %7933 = vmatprep.subr.bf16.mxu0 0
    %7934 = vmatpush1.bf16.msra.mxu0 %v7917
    %7935 = vmatprep.subr.bf16.mxu0 0
    %7936 = vmatpush1.bf16.msra.mxu0 %v7918
    %7937 = vmatprep.subr.bf16.mxu0 0
    %7938 = vmatpush1.bf16.msra.mxu0 %v7919
    %7939 = vmatprep.subr.bf16.mxu0 0
    %7940 = vmatpush1.bf16.msra.mxu0 %v7920
    %7941 = vmatprep.subr.bf16.mxu0 0
    %7942 = vmatpush1.bf16.msra.mxu0 %v7921
    %7943 = vmatprep.subr.bf16.mxu0 0
    %7944 = vmatpush1.bf16.msra.mxu0 %v7922
    %7945 = vmatprep.subr.bf16.mxu0 0
    %7946 = vmatpush1.bf16.msra.mxu0 %v7923
    %7947 = vmatprep.subr.bf16.mxu0 0
    %7948 = vmatpush1.bf16.msra.mxu0 %v7924
    %7949 = vmatprep.subr.bf16.mxu0 0
    %7950 = vmatpush1.bf16.msra.mxu0 0
    %7951 = vmatprep.subr.bf16.mxu0 0
    %7952 = vmatpush1.bf16.msra.mxu0 0
    %7953 = vmatprep.subr.bf16.mxu0 0
    %7954 = vmatpush1.bf16.msra.mxu0 0
    %7955 = vmatprep.subr.bf16.mxu0 0
    %7956 = vmatpush1.bf16.msra.mxu0 0
    %7957 = vmatprep.subr.bf16.mxu0 0
    %7958 = vmatpush1.bf16.msra.mxu0 0
    %7959 = vmatprep.subr.bf16.mxu0 0
    %7960 = vmatpush1.bf16.msra.mxu0 0
    %7961 = vmatprep.subr.bf16.mxu0 0
    %7962 = vmatpush1.bf16.msra.mxu0 0
    %7963 = vmatprep.subr.bf16.mxu0 0
    %7964 = vmatpush1.bf16.msra.mxu0 0
    %7965 = vmatprep.mubr.bf16.mxu0 0
    %7966 = vmatmul.mubr.bf16.gmra.mrb[0].mxu0 %v6998
    %v7967 = vpop.f32.mrb[0].mxu0
    %v7968 = vadd.f32 0.0, %v7967
    %v7969 = vpop.f32.mrb[0].mxu0
    %v7970 = vpop.f32.mrb[0].mxu0
    %v7971 = vadd.f32 0.0, %v7970
    %v7972 = vpop.f32.mrb[0].mxu0
    %7973 = vmatprep.mubr.bf16.mxu0 0
    %7974 = vmatmul.mubr.bf16.gmra.mrb[0].mxu0 %v6999
    %v7975 = vpop.f32.mrb[0].mxu0
    %v7976 = vadd.f32 0.0, %v7975
    %v7977 = vpop.f32.mrb[0].mxu0
    %v7978 = vpop.f32.mrb[0].mxu0
    %v7979 = vadd.f32 0.0, %v7978
    %v7980 = vpop.f32.mrb[0].mxu0
    %7981 = vmatprep.mubr.bf16.mxu0 0
    %7982 = vmatmul.mubr.bf16.gmra.mrb[0].mxu0 %v7000
    %v7983 = vpop.f32.mrb[0].mxu0
    %v7984 = vadd.f32 0.0, %v7983
    %v7985 = vpop.f32.mrb[0].mxu0
    %v7986 = vpop.f32.mrb[0].mxu0
    %v7987 = vadd.f32 0.0, %v7986
    %v7988 = vpop.f32.mrb[0].mxu0
    %7989 = vmatprep.mubr.bf16.mxu0 0
    %7990 = vmatmul.mubr.bf16.gmra.mrb[0].mxu0 %v7001
    %v7991 = vpop.f32.mrb[0].mxu0
    %v7992 = vadd.f32 0.0, %v7991
    %v7993 = vpop.f32.mrb[0].mxu0
    %v7994 = vpop.f32.mrb[0].mxu0
    %v7995 = vadd.f32 0.0, %v7994
    %v7996 = vpop.f32.mrb[0].mxu0
    %7997 = vmatprep.mubr.bf16.mxu0 0
    %7998 = vmatmul.mubr.bf16.gmra.mrb[0].mxu0 %v7002
    %v7999 = vpop.f32.mrb[0].mxu0
    %v8000 = vadd.f32 0.0, %v7999
    %v8001 = vpop.f32.mrb[0].mxu0
    %v8002 = vpop.f32.mrb[0].mxu0
    %v8003 = vadd.f32 0.0, %v8002
    %v8004 = vpop.f32.mrb[0].mxu0
    %8005 = vmatprep.mubr.bf16.mxu0 0
    %8006 = vmatmul.mubr.bf16.gmra.mrb[0].mxu0 %v7003
    %v8007 = vpop.f32.mrb[0].mxu0
    %v8008 = vadd.f32 0.0, %v8007
    %v8009 = vpop.f32.mrb[0].mxu0
    %v8010 = vpop.f32.mrb[0].mxu0
    %v8011 = vadd.f32 0.0, %v8010
    %v8012 = vpop.f32.mrb[0].mxu0
    %8013 = vmatprep.mubr.bf16.mxu0 0
    %8014 = vmatmul.mubr.bf16.gmra.mrb[0].mxu0 %v7004
    %v8015 = vpop.f32.mrb[0].mxu0
    %v8016 = vadd.f32 0.0, %v8015
    %v8017 = vpop.f32.mrb[0].mxu0
    %v8018 = vpop.f32.mrb[0].mxu0
    %v8019 = vadd.f32 0.0, %v8018
    %v8020 = vpop.f32.mrb[0].mxu0
    %8021 = vmatprep.mubr.bf16.mxu0 0
    %8022 = vmatmul.mubr.bf16.gmra.mrb[0].mxu0 %v7005
    %v8023 = vpop.f32.mrb[0].mxu0
    %v8024 = vadd.f32 0.0, %v8023
    %v8025 = vpop.f32.mrb[0].mxu0
    %v8026 = vpop.f32.mrb[0].mxu0
    %v8027 = vadd.f32 0.0, %v8026
    %v8028 = vpop.f32.mrb[0].mxu0
    %8029 = vmatprep.mubr.bf16.mxu0 0
    %8030 = vmatmul.mubr.bf16.gmra.mrb[0].mxu0 %v7006
    %v8031 = vpop.f32.mrb[0].mxu0
    %v8032 = vadd.f32 0.0, %v8031
    %v8033 = vpop.f32.mrb[0].mxu0
    %v8034 = vpop.f32.mrb[0].mxu0
    %v8035 = vadd.f32 0.0, %v8034
    %v8036 = vpop.f32.mrb[0].mxu0
    %8037 = vmatprep.mubr.bf16.mxu0 0
    %8038 = vmatmul.mubr.bf16.gmra.mrb[0].mxu0 %v7007
    %v8039 = vpop.f32.mrb[0].mxu0
    %v8040 = vadd.f32 0.0, %v8039
    %v8041 = vpop.f32.mrb[0].mxu0
    %v8042 = vpop.f32.mrb[0].mxu0
    %v8043 = vadd.f32 0.0, %v8042
    %v8044 = vpop.f32.mrb[0].mxu0
    %8045 = vmatprep.mubr.bf16.mxu0 0
    %8046 = vmatmul.mubr.bf16.gmra.mrb[0].mxu0 %v7008
    %v8047 = vpop.f32.mrb[0].mxu0
    %v8048 = vadd.f32 0.0, %v8047
    %v8049 = vpop.f32.mrb[0].mxu0
    %v8050 = vpop.f32.mrb[0].mxu0
    %v8051 = vadd.f32 0.0, %v8050
    %v8052 = vpop.f32.mrb[0].mxu0
    %8053 = vmatprep.mubr.bf16.mxu0 0
    %8054 = vmatmul.mubr.bf16.gmra.mrb[0].mxu0 %v7009
    %v8055 = vpop.f32.mrb[0].mxu0
    %v8056 = vadd.f32 0.0, %v8055
    %v8057 = vpop.f32.mrb[0].mxu0
    %v8058 = vpop.f32.mrb[0].mxu0
    %v8059 = vadd.f32 0.0, %v8058
    %v8060 = vpop.f32.mrb[0].mxu0
    %8061 = vmatprep.mubr.bf16.mxu0 0
    %8062 = vmatmul.mubr.bf16.gmra.mrb[0].mxu0 %v7010
    %v8063 = vpop.f32.mrb[0].mxu0
    %v8064 = vadd.f32 0.0, %v8063
    %v8065 = vpop.f32.mrb[0].mxu0
    %v8066 = vpop.f32.mrb[0].mxu0
    %v8067 = vadd.f32 0.0, %v8066
    %v8068 = vpop.f32.mrb[0].mxu0
    %8069 = vmatprep.mubr.bf16.mxu0 0
    %8070 = vmatmul.mubr.bf16.gmra.mrb[0].mxu0 %v7011
    %v8071 = vpop.f32.mrb[0].mxu0
    %v8072 = vadd.f32 0.0, %v8071
    %v8073 = vpop.f32.mrb[0].mxu0
    %v8074 = vpop.f32.mrb[0].mxu0
    %v8075 = vadd.f32 0.0, %v8074
    %v8076 = vpop.f32.mrb[0].mxu0
    %8077 = vmatprep.mubr.bf16.mxu0 0
    %8078 = vmatmul.mubr.bf16.gmra.mrb[0].mxu0 %v7446
    %v8079 = vpop.f32.mrb[0].mxu0
    %v8080 = vadd.f32 0.0, %v8079
    %v8081 = vpop.f32.mrb[0].mxu0
    %v8082 = vpop.f32.mrb[0].mxu0
    %v8083 = vadd.f32 0.0, %v8082
    %v8084 = vpop.f32.mrb[0].mxu0
    %8085 = vmatprep.mubr.bf16.mxu0 0
    %8086 = vmatmul.mubr.bf16.gmra.mrb[0].mxu0 %v7866
    %v8087 = vpop.f32.mrb[0].mxu0
    %v8088 = vadd.f32 0.0, %v8087
    %v8089 = vpop.f32.mrb[0].mxu0
    %v8090 = vpop.f32.mrb[0].mxu0
    %v8091 = vadd.f32 0.0, %v8090
    %v8092 = vpop.f32.mrb[0].mxu0
    %8093 = vmatprep.mubr.bf16.mxu0 0
    %8094 = vmatmul.mubr.bf16.gmra.mrb[0].mxu0 %v7014
    %v8095 = vpop.f32.mrb[0].mxu0
    %v8096 = vadd.f32 0.0, %v8095
    %v8097 = vpop.f32.mrb[0].mxu0
    %v8098 = vpop.f32.mrb[0].mxu0
    %v8099 = vadd.f32 0.0, %v8098
    %v8100 = vpop.f32.mrb[0].mxu0
    %8101 = vmatprep.mubr.bf16.mxu0 0
    %8102 = vmatmul.mubr.bf16.gmra.mrb[0].mxu0 %v7015
    %v8103 = vpop.f32.mrb[0].mxu0
    %v8104 = vadd.f32 0.0, %v8103
    %v8105 = vpop.f32.mrb[0].mxu0
    %v8106 = vpop.f32.mrb[0].mxu0
    %v8107 = vadd.f32 0.0, %v8106
    %v8108 = vpop.f32.mrb[0].mxu0
    %8109 = vmatprep.mubr.bf16.mxu0 0
    %8110 = vmatmul.mubr.bf16.gmra.mrb[0].mxu0 %v7016
    %v8111 = vpop.f32.mrb[0].mxu0
    %v8112 = vadd.f32 0.0, %v8111
    %v8113 = vpop.f32.mrb[0].mxu0
    %v8114 = vpop.f32.mrb[0].mxu0
    %v8115 = vadd.f32 0.0, %v8114
    %v8116 = vpop.f32.mrb[0].mxu0
    %8117 = vmatprep.mubr.bf16.mxu0 0
    %8118 = vmatmul.mubr.bf16.gmra.mrb[0].mxu0 %v7017
    %v8119 = vpop.f32.mrb[0].mxu0
    %v8120 = vadd.f32 0.0, %v8119
    %v8121 = vpop.f32.mrb[0].mxu0
    %v8122 = vpop.f32.mrb[0].mxu0
    %v8123 = vadd.f32 0.0, %v8122
    %v8124 = vpop.f32.mrb[0].mxu0
    %8125 = vmatprep.mubr.bf16.mxu0 0
    %8126 = vmatmul.mubr.bf16.gmra.mrb[0].mxu0 %v7018
    %v8127 = vpop.f32.mrb[0].mxu0
    %v8128 = vadd.f32 0.0, %v8127
    %v8129 = vpop.f32.mrb[0].mxu0
    %v8130 = vpop.f32.mrb[0].mxu0
    %v8131 = vadd.f32 0.0, %v8130
    %v8132 = vpop.f32.mrb[0].mxu0
    %8133 = vmatprep.mubr.bf16.mxu0 0
    %8134 = vmatmul.mubr.bf16.gmra.mrb[0].mxu0 %v7019
    %v8135 = vpop.f32.mrb[0].mxu0
    %v8136 = vadd.f32 0.0, %v8135
    %v8137 = vpop.f32.mrb[0].mxu0
    %v8138 = vpop.f32.mrb[0].mxu0
    %v8139 = vadd.f32 0.0, %v8138
    %v8140 = vpop.f32.mrb[0].mxu0
    %8141 = vmatprep.mubr.bf16.mxu0 0
    %8142 = vmatmul.mubr.bf16.gmra.mrb[0].mxu0 %v7020
    %v8143 = vpop.f32.mrb[0].mxu0
    %v8144 = vadd.f32 0.0, %v8143
    %v8145 = vpop.f32.mrb[0].mxu0
    %v8146 = vpop.f32.mrb[0].mxu0
    %v8147 = vadd.f32 0.0, %v8146
    %v8148 = vpop.f32.mrb[0].mxu0
    %8149 = vmatprep.mubr.bf16.mxu0 0
    %8150 = vmatmul.mubr.bf16.gmra.mrb[0].mxu0 %v7021
    %v8151 = vpop.f32.mrb[0].mxu0
    %v8152 = vadd.f32 0.0, %v8151
    %v8153 = vpop.f32.mrb[0].mxu0
    %v8154 = vpop.f32.mrb[0].mxu0
    %v8155 = vadd.f32 0.0, %v8154
    %v8156 = vpop.f32.mrb[0].mxu0
    %8157 = vmatprep.mubr.bf16.mxu0 0
    %8158 = vmatmul.mubr.bf16.gmra.mrb[0].mxu0 %v7022
    %v8159 = vpop.f32.mrb[0].mxu0
    %v8160 = vadd.f32 0.0, %v8159
    %v8161 = vpop.f32.mrb[0].mxu0
    %v8162 = vpop.f32.mrb[0].mxu0
    %v8163 = vadd.f32 0.0, %v8162
    %v8164 = vpop.f32.mrb[0].mxu0
    %8165 = vmatprep.mubr.bf16.mxu0 0
    %8166 = vmatmul.mubr.bf16.gmra.mrb[0].mxu0 %v7023
    %v8167 = vpop.f32.mrb[0].mxu0
    %v8168 = vadd.f32 0.0, %v8167
    %v8169 = vpop.f32.mrb[0].mxu0
    %v8170 = vpop.f32.mrb[0].mxu0
    %v8171 = vadd.f32 0.0, %v8170
    %v8172 = vpop.f32.mrb[0].mxu0
    %8173 = vmatprep.mubr.bf16.mxu0 0
    %8174 = vmatmul.mubr.bf16.gmra.mrb[0].mxu0 %v7024
    %v8175 = vpop.f32.mrb[0].mxu0
    %v8176 = vadd.f32 0.0, %v8175
    %v8177 = vpop.f32.mrb[0].mxu0
    %v8178 = vpop.f32.mrb[0].mxu0
    %v8179 = vadd.f32 0.0, %v8178
    %v8180 = vpop.f32.mrb[0].mxu0
    %8181 = vmatprep.mubr.bf16.mxu0 0
    %8182 = vmatmul.mubr.bf16.gmra.mrb[0].mxu0 %v7025
    %v8183 = vpop.f32.mrb[0].mxu0
    %v8184 = vadd.f32 0.0, %v8183
    %v8185 = vpop.f32.mrb[0].mxu0
    %v8186 = vpop.f32.mrb[0].mxu0
    %v8187 = vadd.f32 0.0, %v8186
    %v8188 = vpop.f32.mrb[0].mxu0
    %8189 = vmatprep.mubr.bf16.mxu0 0
    %8190 = vmatmul.mubr.bf16.gmra.mrb[0].mxu0 %v7026
    %v8191 = vpop.f32.mrb[0].mxu0
    %v8192 = vadd.f32 0.0, %v8191
    %v8193 = vpop.f32.mrb[0].mxu0
    %v8194 = vpop.f32.mrb[0].mxu0
    %v8195 = vadd.f32 0.0, %v8194
    %v8196 = vpop.f32.mrb[0].mxu0
    %8197 = vmatprep.mubr.bf16.mxu0 0
    %8198 = vmatmul.mubr.bf16.gmra.mrb[0].mxu0 %v7027
    %v8199 = vpop.f32.mrb[0].mxu0
    %v8200 = vadd.f32 0.0, %v8199
    %v8201 = vpop.f32.mrb[0].mxu0
    %v8202 = vpop.f32.mrb[0].mxu0
    %v8203 = vadd.f32 0.0, %v8202
    %v8204 = vpop.f32.mrb[0].mxu0
    %8205 = vmatprep.mubr.bf16.mxu0 0
    %8206 = vmatmul.mubr.bf16.gmra.mrb[0].mxu0 %v7447
    %v8207 = vpop.f32.mrb[0].mxu0
    %v8208 = vadd.f32 0.0, %v8207
    %v8209 = vpop.f32.mrb[0].mxu0
    %v8210 = vpop.f32.mrb[0].mxu0
    %v8211 = vadd.f32 0.0, %v8210
    %v8212 = vpop.f32.mrb[0].mxu0
    %8213 = vmatprep.mubr.bf16.mxu0 0
    %8214 = vmatmul.mubr.bf16.gmra.mrb[0].mxu0 %v7867
    %v8215 = vpop.f32.mrb[0].mxu0
    %v8216 = vadd.f32 0.0, %v8215
    %v8217 = vpop.f32.mrb[0].mxu0
    %v8218 = vpop.f32.mrb[0].mxu0
    %v8219 = vadd.f32 0.0, %v8218
    %v8220 = vpop.f32.mrb[0].mxu0
    %8221 = vdwg.mxu0
    %v8222 = vadd.f32 %v7802, %v7968
    %v8223 = vadd.f32 %v7803, %v7971
    %v8224 = vadd.f32 %v7804, %v7976
    %v8225 = vadd.f32 %v7805, %v7979
    %v8226 = vadd.f32 %v7806, %v7984
    %v8227 = vadd.f32 %v7807, %v7987
    %v8228 = vadd.f32 %v7808, %v7992
    %v8229 = vadd.f32 %v7809, %v7995
    %v8230 = vadd.f32 %v7810, %v8000
    %v8231 = vadd.f32 %v7811, %v8003
    %v8232 = vadd.f32 %v7812, %v8008
    %v8233 = vadd.f32 %v7813, %v8011
    %v8234 = vadd.f32 %v7814, %v8016
    %v8235 = vadd.f32 %v7815, %v8019
    %v8236 = vadd.f32 %v7816, %v8024
    %v8237 = vadd.f32 %v7817, %v8027
    %v8238 = vadd.f32 %v7818, %v8032
    %v8239 = vadd.f32 %v7819, %v8035
    %v8240 = vadd.f32 %v7820, %v8040
    %v8241 = vadd.f32 %v7821, %v8043
    %v8242 = vadd.f32 %v7822, %v8048
    %v8243 = vadd.f32 %v7823, %v8051
    %v8244 = vadd.f32 %v7824, %v8056
    %v8245 = vadd.f32 %v7825, %v8059
    %v8246 = vadd.f32 %v7826, %v8064
    %v8247 = vadd.f32 %v7827, %v8067
    %v8248 = vadd.f32 %v7828, %v8072
    %v8249 = vadd.f32 %v7829, %v8075
    %v8250 = vadd.f32 %v7830, %v8080
    %v8251 = vadd.f32 %v7831, %v8083
    %v8252 = vadd.f32 %v7832, %v8088
    %v8253 = vadd.f32 %v7833, %v8091
    %v8254 = vadd.f32 %v7834, %v8096
    %v8255 = vadd.f32 %v7835, %v8099
    %v8256 = vadd.f32 %v7836, %v8104
    %v8257 = vadd.f32 %v7837, %v8107
    %v8258 = vadd.f32 %v7838, %v8112
    %v8259 = vadd.f32 %v7839, %v8115
    %v8260 = vadd.f32 %v7840, %v8120
    %v8261 = vadd.f32 %v7841, %v8123
    %v8262 = vadd.f32 %v7842, %v8128
    %v8263 = vadd.f32 %v7843, %v8131
    %v8264 = vadd.f32 %v7844, %v8136
    %v8265 = vadd.f32 %v7845, %v8139
    %v8266 = vadd.f32 %v7846, %v8144
    %v8267 = vadd.f32 %v7847, %v8147
    %v8268 = vadd.f32 %v7848, %v8152
    %v8269 = vadd.f32 %v7849, %v8155
    %v8270 = vadd.f32 %v7850, %v8160
    %v8271 = vadd.f32 %v7851, %v8163
    %v8272 = vadd.f32 %v7852, %v8168
    %v8273 = vadd.f32 %v7853, %v8171
    %v8274 = vadd.f32 %v7854, %v8176
    %v8275 = vadd.f32 %v7855, %v8179
    %v8276 = vadd.f32 %v7856, %v8184
    %v8277 = vadd.f32 %v7857, %v8187
    %v8278 = vadd.f32 %v7858, %v8192
    %v8279 = vadd.f32 %v7859, %v8195
    %v8280 = vadd.f32 %v7860, %v8200
    %v8281 = vadd.f32 %v7861, %v8203
    %v8282 = vadd.f32 %v7862, %v8208
    %v8283 = vadd.f32 %v7863, %v8211
    %v8284 = vadd.f32 %v7864, %v8216
    %v8285 = vadd.f32 %v7865, %v8219
    %v8286 = vld [vmem:[%s5] sm:$0x1]
    %v8287 = vld [vmem:[%s6] sm:$0x1]
    %v8288 = vadd.f32 %v8222, %v8223
    %v8289 = vadd.f32 %v8288, %v8224
    %v8290 = vadd.f32 %v8289, %v8225
    %v8291 = vadd.f32 %v8290, %v8226
    %v8292 = vadd.f32 %v8291, %v8227
    %v8293 = vadd.f32 %v8292, %v8228
    %v8294 = vadd.f32 %v8293, %v8229
    %v8295 = vadd.f32 %v8294, %v8230
    %v8296 = vadd.f32 %v8295, %v8231
    %v8297 = vadd.f32 %v8296, %v8232
    %v8298 = vadd.f32 %v8297, %v8233
    %v8299 = vadd.f32 %v8298, %v8234
    %v8300 = vadd.f32 %v8299, %v8235
    %v8301 = vadd.f32 %v8300, %v8236
    %v8302 = vadd.f32 %v8301, %v8237
    %v8303 = vadd.f32 %v8302, %v8238
    %v8304 = vadd.f32 %v8303, %v8239
    %v8305 = vadd.f32 %v8304, %v8240
    %v8306 = vadd.f32 %v8305, %v8241
    %v8307 = vadd.f32 %v8306, %v8242
    %v8308 = vadd.f32 %v8307, %v8243
    %v8309 = vadd.f32 %v8308, %v8244
    %v8310 = vadd.f32 %v8309, %v8245
    %v8311 = vadd.f32 %v8310, %v8246
    %v8312 = vadd.f32 %v8311, %v8247
    %v8313 = vadd.f32 %v8312, %v8248
    %v8314 = vadd.f32 %v8313, %v8249
    %v8315 = vadd.f32 %v8314, %v8250
    %v8316 = vadd.f32 %v8315, %v8251
    %v8317 = vadd.f32 %v8316, %v8252
    %v8318 = vadd.f32 %v8317, %v8253
    %v8319 = vadd.f32 %v8318, %v8254
    %v8320 = vadd.f32 %v8319, %v8255
    %v8321 = vadd.f32 %v8320, %v8256
    %v8322 = vadd.f32 %v8321, %v8257
    %v8323 = vadd.f32 %v8322, %v8258
    %v8324 = vadd.f32 %v8323, %v8259
    %v8325 = vadd.f32 %v8324, %v8260
    %v8326 = vadd.f32 %v8325, %v8261
    %v8327 = vadd.f32 %v8326, %v8262
    %v8328 = vadd.f32 %v8327, %v8263
    %v8329 = vadd.f32 %v8328, %v8264
    %v8330 = vadd.f32 %v8329, %v8265
    %v8331 = vadd.f32 %v8330, %v8266
    %v8332 = vadd.f32 %v8331, %v8267
    %v8333 = vadd.f32 %v8332, %v8268
    %v8334 = vadd.f32 %v8333, %v8269
    %v8335 = vadd.f32 %v8334, %v8270
    %v8336 = vadd.f32 %v8335, %v8271
    %v8337 = vadd.f32 %v8336, %v8272
    %v8338 = vadd.f32 %v8337, %v8273
    %v8339 = vadd.f32 %v8338, %v8274
    %v8340 = vadd.f32 %v8339, %v8275
    %v8341 = vadd.f32 %v8340, %v8276
    %v8342 = vadd.f32 %v8341, %v8277
    %v8343 = vadd.f32 %v8342, %v8278
    %v8344 = vadd.f32 %v8343, %v8279
    %v8345 = vadd.f32 %v8344, %v8280
    %v8346 = vadd.f32 %v8345, %v8281
    %v8347 = vadd.f32 %v8346, %v8282
    %v8348 = vadd.f32 %v8347, %v8283
    %v8349 = vadd.f32 %v8348, %v8284
    %v8350 = vadd.f32 %v8349, %v8285
    %v8351 = vrot.slane %v8350, 4
    %v8352 = vadd.f32 %v8350, %v8351
    %v8353 = vrot.slane %v8352, 2
    %v8354 = vadd.f32 %v8352, %v8353
    %v8355 = vrot.slane %v8354, 1
    %v8356 = vadd.f32 %v8354, %v8355
    %v8357 = vmul.f32 %v8356, 0.001953125
    %v8358 = vmul.f32 %v8222, %v8222
    %v8359 = vmul.f32 %v8223, %v8223
    %v8360 = vmul.f32 %v8224, %v8224
    %v8361 = vmul.f32 %v8225, %v8225
    %v8362 = vmul.f32 %v8226, %v8226
    %v8363 = vmul.f32 %v8227, %v8227
    %v8364 = vmul.f32 %v8228, %v8228
    %v8365 = vmul.f32 %v8229, %v8229
    %v8366 = vmul.f32 %v8230, %v8230
    %v8367 = vmul.f32 %v8231, %v8231
    %v8368 = vmul.f32 %v8232, %v8232
    %v8369 = vmul.f32 %v8233, %v8233
    %v8370 = vmul.f32 %v8234, %v8234
    %v8371 = vmul.f32 %v8235, %v8235
    %v8372 = vmul.f32 %v8236, %v8236
    %v8373 = vmul.f32 %v8237, %v8237
    %v8374 = vmul.f32 %v8238, %v8238
    %v8375 = vmul.f32 %v8239, %v8239
    %v8376 = vmul.f32 %v8240, %v8240
    %v8377 = vmul.f32 %v8241, %v8241
    %v8378 = vmul.f32 %v8242, %v8242
    %v8379 = vmul.f32 %v8243, %v8243
    %v8380 = vmul.f32 %v8244, %v8244
    %v8381 = vmul.f32 %v8245, %v8245
    %v8382 = vmul.f32 %v8246, %v8246
    %v8383 = vmul.f32 %v8247, %v8247
    %v8384 = vmul.f32 %v8248, %v8248
    %v8385 = vmul.f32 %v8249, %v8249
    %v8386 = vmul.f32 %v8250, %v8250
    %v8387 = vmul.f32 %v8251, %v8251
    %v8388 = vmul.f32 %v8252, %v8252
    %v8389 = vmul.f32 %v8253, %v8253
    %v8390 = vmul.f32 %v8254, %v8254
    %v8391 = vmul.f32 %v8255, %v8255
    %v8392 = vmul.f32 %v8256, %v8256
    %v8393 = vmul.f32 %v8257, %v8257
    %v8394 = vmul.f32 %v8258, %v8258
    %v8395 = vmul.f32 %v8259, %v8259
    %v8396 = vmul.f32 %v8260, %v8260
    %v8397 = vmul.f32 %v8261, %v8261
    %v8398 = vmul.f32 %v8262, %v8262
    %v8399 = vmul.f32 %v8263, %v8263
    %v8400 = vmul.f32 %v8264, %v8264
    %v8401 = vmul.f32 %v8265, %v8265
    %v8402 = vmul.f32 %v8266, %v8266
    %v8403 = vmul.f32 %v8267, %v8267
    %v8404 = vmul.f32 %v8268, %v8268
    %v8405 = vmul.f32 %v8269, %v8269
    %v8406 = vmul.f32 %v8270, %v8270
    %v8407 = vmul.f32 %v8271, %v8271
    %v8408 = vmul.f32 %v8272, %v8272
    %v8409 = vmul.f32 %v8273, %v8273
    %v8410 = vmul.f32 %v8274, %v8274
    %v8411 = vmul.f32 %v8275, %v8275
    %v8412 = vmul.f32 %v8276, %v8276
    %v8413 = vmul.f32 %v8277, %v8277
    %v8414 = vmul.f32 %v8278, %v8278
    %v8415 = vmul.f32 %v8279, %v8279
    %v8416 = vmul.f32 %v8280, %v8280
    %v8417 = vmul.f32 %v8281, %v8281
    %v8418 = vmul.f32 %v8282, %v8282
    %v8419 = vmul.f32 %v8283, %v8283
    %v8420 = vmul.f32 %v8284, %v8284
    %v8421 = vmul.f32 %v8285, %v8285
    %v8422 = vadd.f32 %v8358, %v8359
    %v8423 = vadd.f32 %v8422, %v8360
    %v8424 = vadd.f32 %v8423, %v8361
    %v8425 = vadd.f32 %v8424, %v8362
    %v8426 = vadd.f32 %v8425, %v8363
    %v8427 = vadd.f32 %v8426, %v8364
    %v8428 = vadd.f32 %v8427, %v8365
    %v8429 = vadd.f32 %v8428, %v8366
    %v8430 = vadd.f32 %v8429, %v8367
    %v8431 = vadd.f32 %v8430, %v8368
    %v8432 = vadd.f32 %v8431, %v8369
    %v8433 = vadd.f32 %v8432, %v8370
    %v8434 = vadd.f32 %v8433, %v8371
    %v8435 = vadd.f32 %v8434, %v8372
    %v8436 = vadd.f32 %v8435, %v8373
    %v8437 = vadd.f32 %v8436, %v8374
    %v8438 = vadd.f32 %v8437, %v8375
    %v8439 = vadd.f32 %v8438, %v8376
    %v8440 = vadd.f32 %v8439, %v8377
    %v8441 = vadd.f32 %v8440, %v8378
    %v8442 = vadd.f32 %v8441, %v8379
    %v8443 = vadd.f32 %v8442, %v8380
    %v8444 = vadd.f32 %v8443, %v8381
    %v8445 = vadd.f32 %v8444, %v8382
    %v8446 = vadd.f32 %v8445, %v8383
    %v8447 = vadd.f32 %v8446, %v8384
    %v8448 = vadd.f32 %v8447, %v8385
    %v8449 = vadd.f32 %v8448, %v8386
    %v8450 = vadd.f32 %v8449, %v8387
    %v8451 = vadd.f32 %v8450, %v8388
    %v8452 = vadd.f32 %v8451, %v8389
    %v8453 = vadd.f32 %v8452, %v8390
    %v8454 = vadd.f32 %v8453, %v8391
    %v8455 = vadd.f32 %v8454, %v8392
    %v8456 = vadd.f32 %v8455, %v8393
    %v8457 = vadd.f32 %v8456, %v8394
    %v8458 = vadd.f32 %v8457, %v8395
    %v8459 = vadd.f32 %v8458, %v8396
    %v8460 = vadd.f32 %v8459, %v8397
    %v8461 = vadd.f32 %v8460, %v8398
    %v8462 = vadd.f32 %v8461, %v8399
    %v8463 = vadd.f32 %v8462, %v8400
    %v8464 = vadd.f32 %v8463, %v8401
    %v8465 = vadd.f32 %v8464, %v8402
    %v8466 = vadd.f32 %v8465, %v8403
    %v8467 = vadd.f32 %v8466, %v8404
    %v8468 = vadd.f32 %v8467, %v8405
    %v8469 = vadd.f32 %v8468, %v8406
    %v8470 = vadd.f32 %v8469, %v8407
    %v8471 = vadd.f32 %v8470, %v8408
    %v8472 = vadd.f32 %v8471, %v8409
    %v8473 = vadd.f32 %v8472, %v8410
    %v8474 = vadd.f32 %v8473, %v8411
    %v8475 = vadd.f32 %v8474, %v8412
    %v8476 = vadd.f32 %v8475, %v8413
    %v8477 = vadd.f32 %v8476, %v8414
    %v8478 = vadd.f32 %v8477, %v8415
    %v8479 = vadd.f32 %v8478, %v8416
    %v8480 = vadd.f32 %v8479, %v8417
    %v8481 = vadd.f32 %v8480, %v8418
    %v8482 = vadd.f32 %v8481, %v8419
    %v8483 = vadd.f32 %v8482, %v8420
    %v8484 = vadd.f32 %v8483, %v8421
    %v8485 = vrot.slane %v8484, 4
    %v8486 = vadd.f32 %v8484, %v8485
    %v8487 = vrot.slane %v8486, 2
    %v8488 = vadd.f32 %v8486, %v8487
    %v8489 = vrot.slane %v8488, 1
    %v8490 = vadd.f32 %v8488, %v8489
    %v8491 = vmul.f32 %v8490, 0.001953125
    %v8492 = vmul.f32 %v8357, %v8357
    %v8493 = vsub.f32 %v8491, %v8492
    %v8494 = vmax.f32 %v8493, 0.0
    %v8495 = vadd.f32 %v8494, 1e-05
    %v8496 = vrsqrt.pop %v8495
    %v8497 = vmul.f32 %v8496, %v8286
    %v8498 = vmul.f32 %v8357, %v8497
    %v8499 = vsub.f32 %v8287, %v8498
    %v8500 = vlaneseq
    %v8501 = vshrl.u32 %v8500, 7
    %v8502 = vsub.s32 0, %v8501
    %v8503 = vrot.slane %v8497, %v8502
    %v8504 = vmul.f32 %v8222, %v8503
    %v8505 = vmul.f32 %v8223, %v8503
    %v8506 = vmul.f32 %v8224, %v8503
    %v8507 = vmul.f32 %v8225, %v8503
    %v8508 = vmul.f32 %v8226, %v8503
    %v8509 = vmul.f32 %v8227, %v8503
    %v8510 = vmul.f32 %v8228, %v8503
    %v8511 = vmul.f32 %v8229, %v8503
    %v8512 = vmul.f32 %v8230, %v8503
    %v8513 = vmul.f32 %v8231, %v8503
    %v8514 = vmul.f32 %v8232, %v8503
    %v8515 = vmul.f32 %v8233, %v8503
    %v8516 = vmul.f32 %v8234, %v8503
    %v8517 = vmul.f32 %v8235, %v8503
    %v8518 = vmul.f32 %v8236, %v8503
    %v8519 = vmul.f32 %v8237, %v8503
    %v8520 = vmul.f32 %v8238, %v8503
    %v8521 = vmul.f32 %v8239, %v8503
    %v8522 = vmul.f32 %v8240, %v8503
    %v8523 = vmul.f32 %v8241, %v8503
    %v8524 = vmul.f32 %v8242, %v8503
    %v8525 = vmul.f32 %v8243, %v8503
    %v8526 = vmul.f32 %v8244, %v8503
    %v8527 = vmul.f32 %v8245, %v8503
    %v8528 = vmul.f32 %v8246, %v8503
    %v8529 = vmul.f32 %v8247, %v8503
    %v8530 = vmul.f32 %v8248, %v8503
    %v8531 = vmul.f32 %v8249, %v8503
    %v8532 = vmul.f32 %v8250, %v8503
    %v8533 = vmul.f32 %v8251, %v8503
    %v8534 = vmul.f32 %v8252, %v8503
    %v8535 = vmul.f32 %v8253, %v8503
    %v8536 = vmul.f32 %v8254, %v8503
    %v8537 = vmul.f32 %v8255, %v8503
    %v8538 = vmul.f32 %v8256, %v8503
    %v8539 = vmul.f32 %v8257, %v8503
    %v8540 = vmul.f32 %v8258, %v8503
    %v8541 = vmul.f32 %v8259, %v8503
    %v8542 = vmul.f32 %v8260, %v8503
    %v8543 = vmul.f32 %v8261, %v8503
    %v8544 = vmul.f32 %v8262, %v8503
    %v8545 = vmul.f32 %v8263, %v8503
    %v8546 = vmul.f32 %v8264, %v8503
    %v8547 = vmul.f32 %v8265, %v8503
    %v8548 = vmul.f32 %v8266, %v8503
    %v8549 = vmul.f32 %v8267, %v8503
    %v8550 = vmul.f32 %v8268, %v8503
    %v8551 = vmul.f32 %v8269, %v8503
    %v8552 = vmul.f32 %v8270, %v8503
    %v8553 = vmul.f32 %v8271, %v8503
    %v8554 = vmul.f32 %v8272, %v8503
    %v8555 = vmul.f32 %v8273, %v8503
    %v8556 = vmul.f32 %v8274, %v8503
    %v8557 = vmul.f32 %v8275, %v8503
    %v8558 = vmul.f32 %v8276, %v8503
    %v8559 = vmul.f32 %v8277, %v8503
    %v8560 = vmul.f32 %v8278, %v8503
    %v8561 = vmul.f32 %v8279, %v8503
    %v8562 = vmul.f32 %v8280, %v8503
    %v8563 = vmul.f32 %v8281, %v8503
    %v8564 = vmul.f32 %v8282, %v8503
    %v8565 = vmul.f32 %v8283, %v8503
    %v8566 = vmul.f32 %v8284, %v8503
    %v8567 = vmul.f32 %v8285, %v8503
    %v8569 = vlaneseq
    %v8570 = vshrl.u32 %v8569, 7
    %v8571 = vsub.s32 0, %v8570
    %v8572 = vrot.slane %v8499, %v8571
    %v8574 = vadd.f32 %v8504, %v8572
    %v8575 = vadd.f32 %v8505, %v8572
    %v8576 = vadd.f32 %v8506, %v8572
    %v8577 = vadd.f32 %v8507, %v8572
    %v8578 = vadd.f32 %v8508, %v8572
    %v8579 = vadd.f32 %v8509, %v8572
    %v8580 = vadd.f32 %v8510, %v8572
    %v8581 = vadd.f32 %v8511, %v8572
    %v8582 = vadd.f32 %v8512, %v8572
    %v8583 = vadd.f32 %v8513, %v8572
    %v8584 = vadd.f32 %v8514, %v8572
    %v8585 = vadd.f32 %v8515, %v8572
    %v8586 = vadd.f32 %v8516, %v8572
    %v8587 = vadd.f32 %v8517, %v8572
    %v8588 = vadd.f32 %v8518, %v8572
    %v8589 = vadd.f32 %v8519, %v8572
    %v8590 = vadd.f32 %v8520, %v8572
    %v8591 = vadd.f32 %v8521, %v8572
    %v8592 = vadd.f32 %v8522, %v8572
    %v8593 = vadd.f32 %v8523, %v8572
    %v8594 = vadd.f32 %v8524, %v8572
    %v8595 = vadd.f32 %v8525, %v8572
    %v8596 = vadd.f32 %v8526, %v8572
    %v8597 = vadd.f32 %v8527, %v8572
    %v8598 = vadd.f32 %v8528, %v8572
    %v8599 = vadd.f32 %v8529, %v8572
    %v8600 = vadd.f32 %v8530, %v8572
    %v8601 = vadd.f32 %v8531, %v8572
    %v8602 = vadd.f32 %v8532, %v8572
    %v8603 = vadd.f32 %v8533, %v8572
    %v8604 = vadd.f32 %v8534, %v8572
    %v8605 = vadd.f32 %v8535, %v8572
    %v8606 = vadd.f32 %v8536, %v8572
    %v8607 = vadd.f32 %v8537, %v8572
    %v8608 = vadd.f32 %v8538, %v8572
    %v8609 = vadd.f32 %v8539, %v8572
    %v8610 = vadd.f32 %v8540, %v8572
    %v8611 = vadd.f32 %v8541, %v8572
    %v8612 = vadd.f32 %v8542, %v8572
    %v8613 = vadd.f32 %v8543, %v8572
    %v8614 = vadd.f32 %v8544, %v8572
    %v8615 = vadd.f32 %v8545, %v8572
    %v8616 = vadd.f32 %v8546, %v8572
    %v8617 = vadd.f32 %v8547, %v8572
    %v8618 = vadd.f32 %v8548, %v8572
    %v8619 = vadd.f32 %v8549, %v8572
    %v8620 = vadd.f32 %v8550, %v8572
    %v8621 = vadd.f32 %v8551, %v8572
    %v8622 = vadd.f32 %v8552, %v8572
    %v8623 = vadd.f32 %v8553, %v8572
    %v8624 = vadd.f32 %v8554, %v8572
    %v8625 = vadd.f32 %v8555, %v8572
    %v8626 = vadd.f32 %v8556, %v8572
    %v8627 = vadd.f32 %v8557, %v8572
    %v8628 = vadd.f32 %v8558, %v8572
    %v8629 = vadd.f32 %v8559, %v8572
    %v8630 = vadd.f32 %v8560, %v8572
    %v8631 = vadd.f32 %v8561, %v8572
    %v8632 = vadd.f32 %v8562, %v8572
    %v8633 = vadd.f32 %v8563, %v8572
    %v8634 = vadd.f32 %v8564, %v8572
    %v8635 = vadd.f32 %v8565, %v8572
    %v8636 = vadd.f32 %v8566, %v8572
    %v8637 = vadd.f32 %v8567, %v8572
    %v8638 = vmax.f32 %v8574, %v8576
    %v8639 = vmax.f32 %v8575, %v8577
    %v8640 = vmax.f32 %v8578, %v8580
    %v8641 = vmax.f32 %v8579, %v8581
    %v8642 = vmax.f32 %v8582, %v8584
    %v8643 = vmax.f32 %v8583, %v8585
    %v8644 = vmax.f32 %v8586, %v8588
    %v8645 = vmax.f32 %v8587, %v8589
    %v8646 = vmax.f32 %v8590, %v8592
    %v8647 = vmax.f32 %v8591, %v8593
    %v8648 = vmax.f32 %v8594, %v8596
    %v8649 = vmax.f32 %v8595, %v8597
    %v8650 = vmax.f32 %v8598, %v8600
    %v8651 = vmax.f32 %v8599, %v8601
    %v8652 = vmax.f32 %v8602, %v8604
    %v8653 = vmax.f32 %v8603, %v8605
    %v8654 = vmax.f32 %v8606, %v8608
    %v8655 = vmax.f32 %v8607, %v8609
    %v8656 = vmax.f32 %v8610, %v8612
    %v8657 = vmax.f32 %v8611, %v8613
    %v8658 = vmax.f32 %v8614, %v8616
    %v8659 = vmax.f32 %v8615, %v8617
    %v8660 = vmax.f32 %v8618, %v8620
    %v8661 = vmax.f32 %v8619, %v8621
    %v8662 = vmax.f32 %v8622, %v8624
    %v8663 = vmax.f32 %v8623, %v8625
    %v8664 = vmax.f32 %v8626, %v8628
    %v8665 = vmax.f32 %v8627, %v8629
    %v8666 = vmax.f32 %v8630, %v8632
    %v8667 = vmax.f32 %v8631, %v8633
    %v8668 = vmax.f32 %v8634, %v8636
    %v8669 = vmax.f32 %v8635, %v8637
    %v8702 = vcombine.high %v8638, %v8638
    %v8704 = vunpack.c.l.s4 1983009808
    %v8705 = vunpack.c.0.s8 %v8704
    %v8706 = vlaneseq
    %v8707 = vshrl.u32 %v8706, 7
    %v8708 = vsub.s32 %v8705, %v8707
    %v8709 = vrot.slane %v8638, %v8708
    %v8711 = vunpack.c.l.s4 1983009808
    %v8712 = vunpack.c.0.s8 %v8711
    %v8713 = vlaneseq
    %v8714 = vshrl.u32 %v8713, 7
    %v8715 = vsub.s32 %v8712, %v8714
    %v8716 = vrot.slane %v8702, %v8715
    %v8717 = vcombine.high %v8709, %v8709
    %v8718 = vcombine.high %v8716, %v8716
    %v8719 = vcombine.high %v8639, %v8639
    %v8721 = vunpack.c.l.s4 1983009808
    %v8722 = vunpack.c.0.s8 %v8721
    %v8723 = vlaneseq
    %v8724 = vshrl.u32 %v8723, 7
    %v8725 = vsub.s32 %v8722, %v8724
    %v8726 = vrot.slane %v8639, %v8725
    %v8728 = vunpack.c.l.s4 1983009808
    %v8729 = vunpack.c.0.s8 %v8728
    %v8730 = vlaneseq
    %v8731 = vshrl.u32 %v8730, 7
    %v8732 = vsub.s32 %v8729, %v8731
    %v8733 = vrot.slane %v8719, %v8732
    %v8734 = vcombine.high %v8726, %v8726
    %v8735 = vcombine.high %v8733, %v8733
    %v8736 = vcombine.high %v8640, %v8640
    %v8738 = vunpack.c.l.s4 1983009808
    %v8739 = vunpack.c.0.s8 %v8738
    %v8740 = vlaneseq
    %v8741 = vshrl.u32 %v8740, 7
    %v8742 = vsub.s32 %v8739, %v8741
    %v8743 = vrot.slane %v8640, %v8742
    %v8745 = vunpack.c.l.s4 1983009808
    %v8746 = vunpack.c.0.s8 %v8745
    %v8747 = vlaneseq
    %v8748 = vshrl.u32 %v8747, 7
    %v8749 = vsub.s32 %v8746, %v8748
    %v8750 = vrot.slane %v8736, %v8749
    %v8751 = vcombine.high %v8743, %v8743
    %v8752 = vcombine.high %v8750, %v8750
    %v8753 = vcombine.high %v8641, %v8641
    %v8755 = vunpack.c.l.s4 1983009808
    %v8756 = vunpack.c.0.s8 %v8755
    %v8757 = vlaneseq
    %v8758 = vshrl.u32 %v8757, 7
    %v8759 = vsub.s32 %v8756, %v8758
    %v8760 = vrot.slane %v8641, %v8759
    %v8762 = vunpack.c.l.s4 1983009808
    %v8763 = vunpack.c.0.s8 %v8762
    %v8764 = vlaneseq
    %v8765 = vshrl.u32 %v8764, 7
    %v8766 = vsub.s32 %v8763, %v8765
    %v8767 = vrot.slane %v8753, %v8766
    %v8768 = vcombine.high %v8760, %v8760
    %v8769 = vcombine.high %v8767, %v8767
    %v8770 = vcombine.high %v8642, %v8642
    %v8772 = vunpack.c.l.s4 1983009808
    %v8773 = vunpack.c.0.s8 %v8772
    %v8774 = vlaneseq
    %v8775 = vshrl.u32 %v8774, 7
    %v8776 = vsub.s32 %v8773, %v8775
    %v8777 = vrot.slane %v8642, %v8776
    %v8779 = vunpack.c.l.s4 1983009808
    %v8780 = vunpack.c.0.s8 %v8779
    %v8781 = vlaneseq
    %v8782 = vshrl.u32 %v8781, 7
    %v8783 = vsub.s32 %v8780, %v8782
    %v8784 = vrot.slane %v8770, %v8783
    %v8785 = vcombine.high %v8777, %v8777
    %v8786 = vcombine.high %v8784, %v8784
    %v8787 = vcombine.high %v8643, %v8643
    %v8789 = vunpack.c.l.s4 1983009808
    %v8790 = vunpack.c.0.s8 %v8789
    %v8791 = vlaneseq
    %v8792 = vshrl.u32 %v8791, 7
    %v8793 = vsub.s32 %v8790, %v8792
    %v8794 = vrot.slane %v8643, %v8793
    %v8796 = vunpack.c.l.s4 1983009808
    %v8797 = vunpack.c.0.s8 %v8796
    %v8798 = vlaneseq
    %v8799 = vshrl.u32 %v8798, 7
    %v8800 = vsub.s32 %v8797, %v8799
    %v8801 = vrot.slane %v8787, %v8800
    %v8802 = vcombine.high %v8794, %v8794
    %v8803 = vcombine.high %v8801, %v8801
    %v8804 = vcombine.high %v8644, %v8644
    %v8806 = vunpack.c.l.s4 1983009808
    %v8807 = vunpack.c.0.s8 %v8806
    %v8808 = vlaneseq
    %v8809 = vshrl.u32 %v8808, 7
    %v8810 = vsub.s32 %v8807, %v8809
    %v8811 = vrot.slane %v8644, %v8810
    %v8813 = vunpack.c.l.s4 1983009808
    %v8814 = vunpack.c.0.s8 %v8813
    %v8815 = vlaneseq
    %v8816 = vshrl.u32 %v8815, 7
    %v8817 = vsub.s32 %v8814, %v8816
    %v8818 = vrot.slane %v8804, %v8817
    %v8819 = vcombine.high %v8811, %v8811
    %v8820 = vcombine.high %v8818, %v8818
    %v8821 = vcombine.high %v8645, %v8645
    %v8823 = vunpack.c.l.s4 1983009808
    %v8824 = vunpack.c.0.s8 %v8823
    %v8825 = vlaneseq
    %v8826 = vshrl.u32 %v8825, 7
    %v8827 = vsub.s32 %v8824, %v8826
    %v8828 = vrot.slane %v8645, %v8827
    %v8830 = vunpack.c.l.s4 1983009808
    %v8831 = vunpack.c.0.s8 %v8830
    %v8832 = vlaneseq
    %v8833 = vshrl.u32 %v8832, 7
    %v8834 = vsub.s32 %v8831, %v8833
    %v8835 = vrot.slane %v8821, %v8834
    %v8836 = vcombine.high %v8828, %v8828
    %v8837 = vcombine.high %v8835, %v8835
    %v8838 = vcombine.high %v8646, %v8646
    %v8840 = vunpack.c.l.s4 1983009808
    %v8841 = vunpack.c.0.s8 %v8840
    %v8842 = vlaneseq
    %v8843 = vshrl.u32 %v8842, 7
    %v8844 = vsub.s32 %v8841, %v8843
    %v8845 = vrot.slane %v8646, %v8844
    %v8847 = vunpack.c.l.s4 1983009808
    %v8848 = vunpack.c.0.s8 %v8847
    %v8849 = vlaneseq
    %v8850 = vshrl.u32 %v8849, 7
    %v8851 = vsub.s32 %v8848, %v8850
    %v8852 = vrot.slane %v8838, %v8851
    %v8853 = vcombine.high %v8845, %v8845
    %v8854 = vcombine.high %v8852, %v8852
    %v8855 = vcombine.high %v8647, %v8647
    %v8857 = vunpack.c.l.s4 1983009808
    %v8858 = vunpack.c.0.s8 %v8857
    %v8859 = vlaneseq
    %v8860 = vshrl.u32 %v8859, 7
    %v8861 = vsub.s32 %v8858, %v8860
    %v8862 = vrot.slane %v8647, %v8861
    %v8864 = vunpack.c.l.s4 1983009808
    %v8865 = vunpack.c.0.s8 %v8864
    %v8866 = vlaneseq
    %v8867 = vshrl.u32 %v8866, 7
    %v8868 = vsub.s32 %v8865, %v8867
    %v8869 = vrot.slane %v8855, %v8868
    %v8870 = vcombine.high %v8862, %v8862
    %v8871 = vcombine.high %v8869, %v8869
    %v8872 = vcombine.high %v8648, %v8648
    %v8874 = vunpack.c.l.s4 1983009808
    %v8875 = vunpack.c.0.s8 %v8874
    %v8876 = vlaneseq
    %v8877 = vshrl.u32 %v8876, 7
    %v8878 = vsub.s32 %v8875, %v8877
    %v8879 = vrot.slane %v8648, %v8878
    %v8881 = vunpack.c.l.s4 1983009808
    %v8882 = vunpack.c.0.s8 %v8881
    %v8883 = vlaneseq
    %v8884 = vshrl.u32 %v8883, 7
    %v8885 = vsub.s32 %v8882, %v8884
    %v8886 = vrot.slane %v8872, %v8885
    %v8887 = vcombine.high %v8879, %v8879
    %v8888 = vcombine.high %v8886, %v8886
    %v8889 = vcombine.high %v8649, %v8649
    %v8891 = vunpack.c.l.s4 1983009808
    %v8892 = vunpack.c.0.s8 %v8891
    %v8893 = vlaneseq
    %v8894 = vshrl.u32 %v8893, 7
    %v8895 = vsub.s32 %v8892, %v8894
    %v8896 = vrot.slane %v8649, %v8895
    %v8898 = vunpack.c.l.s4 1983009808
    %v8899 = vunpack.c.0.s8 %v8898
    %v8900 = vlaneseq
    %v8901 = vshrl.u32 %v8900, 7
    %v8902 = vsub.s32 %v8899, %v8901
    %v8903 = vrot.slane %v8889, %v8902
    %v8904 = vcombine.high %v8896, %v8896
    %v8905 = vcombine.high %v8903, %v8903
    %v8906 = vcombine.high %v8650, %v8650
    %v8908 = vunpack.c.l.s4 1983009808
    %v8909 = vunpack.c.0.s8 %v8908
    %v8910 = vlaneseq
    %v8911 = vshrl.u32 %v8910, 7
    %v8912 = vsub.s32 %v8909, %v8911
    %v8913 = vrot.slane %v8650, %v8912
    %v8915 = vunpack.c.l.s4 1983009808
    %v8916 = vunpack.c.0.s8 %v8915
    %v8917 = vlaneseq
    %v8918 = vshrl.u32 %v8917, 7
    %v8919 = vsub.s32 %v8916, %v8918
    %v8920 = vrot.slane %v8906, %v8919
    %v8921 = vcombine.high %v8913, %v8913
    %v8922 = vcombine.high %v8920, %v8920
    %v8923 = vcombine.high %v8651, %v8651
    %v8925 = vunpack.c.l.s4 1983009808
    %v8926 = vunpack.c.0.s8 %v8925
    %v8927 = vlaneseq
    %v8928 = vshrl.u32 %v8927, 7
    %v8929 = vsub.s32 %v8926, %v8928
    %v8930 = vrot.slane %v8651, %v8929
    %v8932 = vunpack.c.l.s4 1983009808
    %v8933 = vunpack.c.0.s8 %v8932
    %v8934 = vlaneseq
    %v8935 = vshrl.u32 %v8934, 7
    %v8936 = vsub.s32 %v8933, %v8935
    %v8937 = vrot.slane %v8923, %v8936
    %v8938 = vcombine.high %v8930, %v8930
    %v8939 = vcombine.high %v8937, %v8937
    %v8940 = vcombine.high %v8652, %v8652
    %v8942 = vunpack.c.l.s4 1983009808
    %v8943 = vunpack.c.0.s8 %v8942
    %v8944 = vlaneseq
    %v8945 = vshrl.u32 %v8944, 7
    %v8946 = vsub.s32 %v8943, %v8945
    %v8947 = vrot.slane %v8652, %v8946
    %v8949 = vunpack.c.l.s4 1983009808
    %v8950 = vunpack.c.0.s8 %v8949
    %v8951 = vlaneseq
    %v8952 = vshrl.u32 %v8951, 7
    %v8953 = vsub.s32 %v8950, %v8952
    %v8954 = vrot.slane %v8940, %v8953
    %v8955 = vcombine.high %v8947, %v8947
    %v8956 = vcombine.high %v8954, %v8954
    %v8957 = vcombine.high %v8653, %v8653
    %v8959 = vunpack.c.l.s4 1983009808
    %v8960 = vunpack.c.0.s8 %v8959
    %v8961 = vlaneseq
    %v8962 = vshrl.u32 %v8961, 7
    %v8963 = vsub.s32 %v8960, %v8962
    %v8964 = vrot.slane %v8653, %v8963
    %v8966 = vunpack.c.l.s4 1983009808
    %v8967 = vunpack.c.0.s8 %v8966
    %v8968 = vlaneseq
    %v8969 = vshrl.u32 %v8968, 7
    %v8970 = vsub.s32 %v8967, %v8969
    %v8971 = vrot.slane %v8957, %v8970
    %v8972 = vcombine.high %v8964, %v8964
    %v8973 = vcombine.high %v8971, %v8971
    %v8974 = vcombine.high %v8654, %v8654
    %v8976 = vunpack.c.l.s4 1983009808
    %v8977 = vunpack.c.0.s8 %v8976
    %v8978 = vlaneseq
    %v8979 = vshrl.u32 %v8978, 7
    %v8980 = vsub.s32 %v8977, %v8979
    %v8981 = vrot.slane %v8654, %v8980
    %v8983 = vunpack.c.l.s4 1983009808
    %v8984 = vunpack.c.0.s8 %v8983
    %v8985 = vlaneseq
    %v8986 = vshrl.u32 %v8985, 7
    %v8987 = vsub.s32 %v8984, %v8986
    %v8988 = vrot.slane %v8974, %v8987
    %v8989 = vcombine.high %v8981, %v8981
    %v8990 = vcombine.high %v8988, %v8988
    %v8991 = vcombine.high %v8655, %v8655
    %v8993 = vunpack.c.l.s4 1983009808
    %v8994 = vunpack.c.0.s8 %v8993
    %v8995 = vlaneseq
    %v8996 = vshrl.u32 %v8995, 7
    %v8997 = vsub.s32 %v8994, %v8996
    %v8998 = vrot.slane %v8655, %v8997
    %v9000 = vunpack.c.l.s4 1983009808
    %v9001 = vunpack.c.0.s8 %v9000
    %v9002 = vlaneseq
    %v9003 = vshrl.u32 %v9002, 7
    %v9004 = vsub.s32 %v9001, %v9003
    %v9005 = vrot.slane %v8991, %v9004
    %v9006 = vcombine.high %v8998, %v8998
    %v9007 = vcombine.high %v9005, %v9005
    %v9008 = vcombine.high %v8656, %v8656
    %v9010 = vunpack.c.l.s4 1983009808
    %v9011 = vunpack.c.0.s8 %v9010
    %v9012 = vlaneseq
    %v9013 = vshrl.u32 %v9012, 7
    %v9014 = vsub.s32 %v9011, %v9013
    %v9015 = vrot.slane %v8656, %v9014
    %v9017 = vunpack.c.l.s4 1983009808
    %v9018 = vunpack.c.0.s8 %v9017
    %v9019 = vlaneseq
    %v9020 = vshrl.u32 %v9019, 7
    %v9021 = vsub.s32 %v9018, %v9020
    %v9022 = vrot.slane %v9008, %v9021
    %v9023 = vcombine.high %v9015, %v9015
    %v9024 = vcombine.high %v9022, %v9022
    %v9025 = vcombine.high %v8657, %v8657
    %v9027 = vunpack.c.l.s4 1983009808
    %v9028 = vunpack.c.0.s8 %v9027
    %v9029 = vlaneseq
    %v9030 = vshrl.u32 %v9029, 7
    %v9031 = vsub.s32 %v9028, %v9030
    %v9032 = vrot.slane %v8657, %v9031
    %v9034 = vunpack.c.l.s4 1983009808
    %v9035 = vunpack.c.0.s8 %v9034
    %v9036 = vlaneseq
    %v9037 = vshrl.u32 %v9036, 7
    %v9038 = vsub.s32 %v9035, %v9037
    %v9039 = vrot.slane %v9025, %v9038
    %v9040 = vcombine.high %v9032, %v9032
    %v9041 = vcombine.high %v9039, %v9039
    %v9042 = vcombine.high %v8658, %v8658
    %v9044 = vunpack.c.l.s4 1983009808
    %v9045 = vunpack.c.0.s8 %v9044
    %v9046 = vlaneseq
    %v9047 = vshrl.u32 %v9046, 7
    %v9048 = vsub.s32 %v9045, %v9047
    %v9049 = vrot.slane %v8658, %v9048
    %v9051 = vunpack.c.l.s4 1983009808
    %v9052 = vunpack.c.0.s8 %v9051
    %v9053 = vlaneseq
    %v9054 = vshrl.u32 %v9053, 7
    %v9055 = vsub.s32 %v9052, %v9054
    %v9056 = vrot.slane %v9042, %v9055
    %v9057 = vcombine.high %v9049, %v9049
    %v9058 = vcombine.high %v9056, %v9056
    %v9059 = vcombine.high %v8659, %v8659
    %v9061 = vunpack.c.l.s4 1983009808
    %v9062 = vunpack.c.0.s8 %v9061
    %v9063 = vlaneseq
    %v9064 = vshrl.u32 %v9063, 7
    %v9065 = vsub.s32 %v9062, %v9064
    %v9066 = vrot.slane %v8659, %v9065
    %v9068 = vunpack.c.l.s4 1983009808
    %v9069 = vunpack.c.0.s8 %v9068
    %v9070 = vlaneseq
    %v9071 = vshrl.u32 %v9070, 7
    %v9072 = vsub.s32 %v9069, %v9071
    %v9073 = vrot.slane %v9059, %v9072
    %v9074 = vcombine.high %v9066, %v9066
    %v9075 = vcombine.high %v9073, %v9073
    %v9076 = vcombine.high %v8660, %v8660
    %v9078 = vunpack.c.l.s4 1983009808
    %v9079 = vunpack.c.0.s8 %v9078
    %v9080 = vlaneseq
    %v9081 = vshrl.u32 %v9080, 7
    %v9082 = vsub.s32 %v9079, %v9081
    %v9083 = vrot.slane %v8660, %v9082
    %v9085 = vunpack.c.l.s4 1983009808
    %v9086 = vunpack.c.0.s8 %v9085
    %v9087 = vlaneseq
    %v9088 = vshrl.u32 %v9087, 7
    %v9089 = vsub.s32 %v9086, %v9088
    %v9090 = vrot.slane %v9076, %v9089
    %v9091 = vcombine.high %v9083, %v9083
    %v9092 = vcombine.high %v9090, %v9090
    %v9093 = vcombine.high %v8661, %v8661
    %v9095 = vunpack.c.l.s4 1983009808
    %v9096 = vunpack.c.0.s8 %v9095
    %v9097 = vlaneseq
    %v9098 = vshrl.u32 %v9097, 7
    %v9099 = vsub.s32 %v9096, %v9098
    %v9100 = vrot.slane %v8661, %v9099
    %v9102 = vunpack.c.l.s4 1983009808
    %v9103 = vunpack.c.0.s8 %v9102
    %v9104 = vlaneseq
    %v9105 = vshrl.u32 %v9104, 7
    %v9106 = vsub.s32 %v9103, %v9105
    %v9107 = vrot.slane %v9093, %v9106
    %v9108 = vcombine.high %v9100, %v9100
    %v9109 = vcombine.high %v9107, %v9107
    %v9110 = vcombine.high %v8662, %v8662
    %v9112 = vunpack.c.l.s4 1983009808
    %v9113 = vunpack.c.0.s8 %v9112
    %v9114 = vlaneseq
    %v9115 = vshrl.u32 %v9114, 7
    %v9116 = vsub.s32 %v9113, %v9115
    %v9117 = vrot.slane %v8662, %v9116
    %v9119 = vunpack.c.l.s4 1983009808
    %v9120 = vunpack.c.0.s8 %v9119
    %v9121 = vlaneseq
    %v9122 = vshrl.u32 %v9121, 7
    %v9123 = vsub.s32 %v9120, %v9122
    %v9124 = vrot.slane %v9110, %v9123
    %v9125 = vcombine.high %v9117, %v9117
    %v9126 = vcombine.high %v9124, %v9124
    %v9127 = vcombine.high %v8663, %v8663
    %v9129 = vunpack.c.l.s4 1983009808
    %v9130 = vunpack.c.0.s8 %v9129
    %v9131 = vlaneseq
    %v9132 = vshrl.u32 %v9131, 7
    %v9133 = vsub.s32 %v9130, %v9132
    %v9134 = vrot.slane %v8663, %v9133
    %v9136 = vunpack.c.l.s4 1983009808
    %v9137 = vunpack.c.0.s8 %v9136
    %v9138 = vlaneseq
    %v9139 = vshrl.u32 %v9138, 7
    %v9140 = vsub.s32 %v9137, %v9139
    %v9141 = vrot.slane %v9127, %v9140
    %v9142 = vcombine.high %v9134, %v9134
    %v9143 = vcombine.high %v9141, %v9141
    %v9144 = vcombine.high %v8664, %v8664
    %v9146 = vunpack.c.l.s4 1983009808
    %v9147 = vunpack.c.0.s8 %v9146
    %v9148 = vlaneseq
    %v9149 = vshrl.u32 %v9148, 7
    %v9150 = vsub.s32 %v9147, %v9149
    %v9151 = vrot.slane %v8664, %v9150
    %v9153 = vunpack.c.l.s4 1983009808
    %v9154 = vunpack.c.0.s8 %v9153
    %v9155 = vlaneseq
    %v9156 = vshrl.u32 %v9155, 7
    %v9157 = vsub.s32 %v9154, %v9156
    %v9158 = vrot.slane %v9144, %v9157
    %v9159 = vcombine.high %v9151, %v9151
    %v9160 = vcombine.high %v9158, %v9158
    %v9161 = vcombine.high %v8665, %v8665
    %v9163 = vunpack.c.l.s4 1983009808
    %v9164 = vunpack.c.0.s8 %v9163
    %v9165 = vlaneseq
    %v9166 = vshrl.u32 %v9165, 7
    %v9167 = vsub.s32 %v9164, %v9166
    %v9168 = vrot.slane %v8665, %v9167
    %v9170 = vunpack.c.l.s4 1983009808
    %v9171 = vunpack.c.0.s8 %v9170
    %v9172 = vlaneseq
    %v9173 = vshrl.u32 %v9172, 7
    %v9174 = vsub.s32 %v9171, %v9173
    %v9175 = vrot.slane %v9161, %v9174
    %v9176 = vcombine.high %v9168, %v9168
    %v9177 = vcombine.high %v9175, %v9175
    %v9178 = vcombine.high %v8666, %v8666
    %v9180 = vunpack.c.l.s4 1983009808
    %v9181 = vunpack.c.0.s8 %v9180
    %v9182 = vlaneseq
    %v9183 = vshrl.u32 %v9182, 7
    %v9184 = vsub.s32 %v9181, %v9183
    %v9185 = vrot.slane %v8666, %v9184
    %v9187 = vunpack.c.l.s4 1983009808
    %v9188 = vunpack.c.0.s8 %v9187
    %v9189 = vlaneseq
    %v9190 = vshrl.u32 %v9189, 7
    %v9191 = vsub.s32 %v9188, %v9190
    %v9192 = vrot.slane %v9178, %v9191
    %v9193 = vcombine.high %v9185, %v9185
    %v9194 = vcombine.high %v9192, %v9192
    %v9195 = vcombine.high %v8667, %v8667
    %v9197 = vunpack.c.l.s4 1983009808
    %v9198 = vunpack.c.0.s8 %v9197
    %v9199 = vlaneseq
    %v9200 = vshrl.u32 %v9199, 7
    %v9201 = vsub.s32 %v9198, %v9200
    %v9202 = vrot.slane %v8667, %v9201
    %v9204 = vunpack.c.l.s4 1983009808
    %v9205 = vunpack.c.0.s8 %v9204
    %v9206 = vlaneseq
    %v9207 = vshrl.u32 %v9206, 7
    %v9208 = vsub.s32 %v9205, %v9207
    %v9209 = vrot.slane %v9195, %v9208
    %v9210 = vcombine.high %v9202, %v9202
    %v9211 = vcombine.high %v9209, %v9209
    %v9212 = vcombine.high %v8668, %v8668
    %v9214 = vunpack.c.l.s4 1983009808
    %v9215 = vunpack.c.0.s8 %v9214
    %v9216 = vlaneseq
    %v9217 = vshrl.u32 %v9216, 7
    %v9218 = vsub.s32 %v9215, %v9217
    %v9219 = vrot.slane %v8668, %v9218
    %v9221 = vunpack.c.l.s4 1983009808
    %v9222 = vunpack.c.0.s8 %v9221
    %v9223 = vlaneseq
    %v9224 = vshrl.u32 %v9223, 7
    %v9225 = vsub.s32 %v9222, %v9224
    %v9226 = vrot.slane %v9212, %v9225
    %v9227 = vcombine.high %v9219, %v9219
    %v9228 = vcombine.high %v9226, %v9226
    %v9229 = vcombine.high %v8669, %v8669
    %v9231 = vunpack.c.l.s4 1983009808
    %v9232 = vunpack.c.0.s8 %v9231
    %v9233 = vlaneseq
    %v9234 = vshrl.u32 %v9233, 7
    %v9235 = vsub.s32 %v9232, %v9234
    %v9236 = vrot.slane %v8669, %v9235
    %v9238 = vunpack.c.l.s4 1983009808
    %v9239 = vunpack.c.0.s8 %v9238
    %v9240 = vlaneseq
    %v9241 = vshrl.u32 %v9240, 7
    %v9242 = vsub.s32 %v9239, %v9241
    %v9243 = vrot.slane %v9229, %v9242
    %v9244 = vcombine.high %v9236, %v9236
    %v9245 = vcombine.high %v9243, %v9243
    %v9374 = vrot.slane %v8709, 7
    %v9375 = vrot.slane %v9374, 2
    %v9376 = vrot.slane %v8717, 7
    %v9377 = vrot.slane %v9376, 2
    %v9378 = vrot.slane %v8716, 7
    %v9379 = vrot.slane %v9378, 2
    %v9380 = vrot.slane %v8718, 7
    %v9381 = vrot.slane %v9380, 2
    %v9382 = vrot.slane %v8726, 7
    %v9383 = vrot.slane %v9382, 2
    %v9384 = vrot.slane %v8734, 7
    %v9385 = vrot.slane %v9384, 2
    %v9386 = vrot.slane %v8733, 7
    %v9387 = vrot.slane %v9386, 2
    %v9388 = vrot.slane %v8735, 7
    %v9389 = vrot.slane %v9388, 2
    %v9390 = vrot.slane %v8743, 7
    %v9391 = vrot.slane %v9390, 2
    %v9392 = vrot.slane %v8751, 7
    %v9393 = vrot.slane %v9392, 2
    %v9394 = vrot.slane %v8750, 7
    %v9395 = vrot.slane %v9394, 2
    %v9396 = vrot.slane %v8752, 7
    %v9397 = vrot.slane %v9396, 2
    %v9398 = vrot.slane %v8760, 7
    %v9399 = vrot.slane %v9398, 2
    %v9400 = vrot.slane %v8768, 7
    %v9401 = vrot.slane %v9400, 2
    %v9402 = vrot.slane %v8767, 7
    %v9403 = vrot.slane %v9402, 2
    %v9404 = vrot.slane %v8769, 7
    %v9405 = vrot.slane %v9404, 2
    %v9406 = vrot.slane %v8777, 7
    %v9407 = vrot.slane %v9406, 2
    %v9408 = vrot.slane %v8785, 7
    %v9409 = vrot.slane %v9408, 2
    %v9410 = vrot.slane %v8784, 7
    %v9411 = vrot.slane %v9410, 2
    %v9412 = vrot.slane %v8786, 7
    %v9413 = vrot.slane %v9412, 2
    %v9414 = vrot.slane %v8794, 7
    %v9415 = vrot.slane %v9414, 2
    %v9416 = vrot.slane %v8802, 7
    %v9417 = vrot.slane %v9416, 2
    %v9418 = vrot.slane %v8801, 7
    %v9419 = vrot.slane %v9418, 2
    %v9420 = vrot.slane %v8803, 7
    %v9421 = vrot.slane %v9420, 2
    %v9422 = vrot.slane %v8811, 7
    %v9423 = vrot.slane %v9422, 2
    %v9424 = vrot.slane %v8819, 7
    %v9425 = vrot.slane %v9424, 2
    %v9426 = vrot.slane %v8818, 7
    %v9427 = vrot.slane %v9426, 2
    %v9428 = vrot.slane %v8820, 7
    %v9429 = vrot.slane %v9428, 2
    %v9430 = vrot.slane %v8828, 7
    %v9431 = vrot.slane %v9430, 2
    %v9432 = vrot.slane %v8836, 7
    %v9433 = vrot.slane %v9432, 2
    %v9434 = vrot.slane %v8835, 7
    %v9435 = vrot.slane %v9434, 2
    %v9436 = vrot.slane %v8837, 7
    %v9437 = vrot.slane %v9436, 2
    %v9438 = vrot.slane %v8845, 7
    %v9439 = vrot.slane %v9438, 2
    %v9440 = vrot.slane %v8853, 7
    %v9441 = vrot.slane %v9440, 2
    %v9442 = vrot.slane %v8852, 7
    %v9443 = vrot.slane %v9442, 2
    %v9444 = vrot.slane %v8854, 7
    %v9445 = vrot.slane %v9444, 2
    %v9446 = vrot.slane %v8862, 7
    %v9447 = vrot.slane %v9446, 2
    %v9448 = vrot.slane %v8870, 7
    %v9449 = vrot.slane %v9448, 2
    %v9450 = vrot.slane %v8869, 7
    %v9451 = vrot.slane %v9450, 2
    %v9452 = vrot.slane %v8871, 7
    %v9453 = vrot.slane %v9452, 2
    %v9454 = vrot.slane %v8879, 7
    %v9455 = vrot.slane %v9454, 2
    %v9456 = vrot.slane %v8887, 7
    %v9457 = vrot.slane %v9456, 2
    %v9458 = vrot.slane %v8886, 7
    %v9459 = vrot.slane %v9458, 2
    %v9460 = vrot.slane %v8888, 7
    %v9461 = vrot.slane %v9460, 2
    %v9462 = vrot.slane %v8896, 7
    %v9463 = vrot.slane %v9462, 2
    %v9464 = vrot.slane %v8904, 7
    %v9465 = vrot.slane %v9464, 2
    %v9466 = vrot.slane %v8903, 7
    %v9467 = vrot.slane %v9466, 2
    %v9468 = vrot.slane %v8905, 7
    %v9469 = vrot.slane %v9468, 2
    %v9470 = vrot.slane %v8913, 7
    %v9471 = vrot.slane %v9470, 2
    %v9472 = vrot.slane %v8921, 7
    %v9473 = vrot.slane %v9472, 2
    %v9474 = vrot.slane %v8920, 7
    %v9475 = vrot.slane %v9474, 2
    %v9476 = vrot.slane %v8922, 7
    %v9477 = vrot.slane %v9476, 2
    %v9478 = vrot.slane %v8930, 7
    %v9479 = vrot.slane %v9478, 2
    %v9480 = vrot.slane %v8938, 7
    %v9481 = vrot.slane %v9480, 2
    %v9482 = vrot.slane %v8937, 7
    %v9483 = vrot.slane %v9482, 2
    %v9484 = vrot.slane %v8939, 7
    %v9485 = vrot.slane %v9484, 2
    %v9486 = vrot.slane %v8947, 7
    %v9487 = vrot.slane %v9486, 2
    %v9488 = vrot.slane %v8955, 7
    %v9489 = vrot.slane %v9488, 2
    %v9490 = vrot.slane %v8954, 7
    %v9491 = vrot.slane %v9490, 2
    %v9492 = vrot.slane %v8956, 7
    %v9493 = vrot.slane %v9492, 2
    %v9494 = vrot.slane %v8964, 7
    %v9495 = vrot.slane %v9494, 2
    %v9496 = vrot.slane %v8972, 7
    %v9497 = vrot.slane %v9496, 2
    %v9498 = vrot.slane %v8971, 7
    %v9499 = vrot.slane %v9498, 2
    %v9500 = vrot.slane %v8973, 7
    %v9501 = vrot.slane %v9500, 2
    %v9502 = vrot.slane %v8981, 7
    %v9503 = vrot.slane %v9502, 2
    %v9504 = vrot.slane %v8989, 7
    %v9505 = vrot.slane %v9504, 2
    %v9506 = vrot.slane %v8988, 7
    %v9507 = vrot.slane %v9506, 2
    %v9508 = vrot.slane %v8990, 7
    %v9509 = vrot.slane %v9508, 2
    %v9510 = vrot.slane %v8998, 7
    %v9511 = vrot.slane %v9510, 2
    %v9512 = vrot.slane %v9006, 7
    %v9513 = vrot.slane %v9512, 2
    %v9514 = vrot.slane %v9005, 7
    %v9515 = vrot.slane %v9514, 2
    %v9516 = vrot.slane %v9007, 7
    %v9517 = vrot.slane %v9516, 2
    %v9518 = vrot.slane %v9015, 7
    %v9519 = vrot.slane %v9518, 2
    %v9520 = vrot.slane %v9023, 7
    %v9521 = vrot.slane %v9520, 2
    %v9522 = vrot.slane %v9022, 7
    %v9523 = vrot.slane %v9522, 2
    %v9524 = vrot.slane %v9024, 7
    %v9525 = vrot.slane %v9524, 2
    %v9526 = vrot.slane %v9032, 7
    %v9527 = vrot.slane %v9526, 2
    %v9528 = vrot.slane %v9040, 7
    %v9529 = vrot.slane %v9528, 2
    %v9530 = vrot.slane %v9039, 7
    %v9531 = vrot.slane %v9530, 2
    %v9532 = vrot.slane %v9041, 7
    %v9533 = vrot.slane %v9532, 2
    %v9534 = vrot.slane %v9049, 7
    %v9535 = vrot.slane %v9534, 2
    %v9536 = vrot.slane %v9057, 7
    %v9537 = vrot.slane %v9536, 2
    %v9538 = vrot.slane %v9056, 7
    %v9539 = vrot.slane %v9538, 2
    %v9540 = vrot.slane %v9058, 7
    %v9541 = vrot.slane %v9540, 2
    %v9542 = vrot.slane %v9066, 7
    %v9543 = vrot.slane %v9542, 2
    %v9544 = vrot.slane %v9074, 7
    %v9545 = vrot.slane %v9544, 2
    %v9546 = vrot.slane %v9073, 7
    %v9547 = vrot.slane %v9546, 2
    %v9548 = vrot.slane %v9075, 7
    %v9549 = vrot.slane %v9548, 2
    %v9550 = vrot.slane %v9083, 7
    %v9551 = vrot.slane %v9550, 2
    %v9552 = vrot.slane %v9091, 7
    %v9553 = vrot.slane %v9552, 2
    %v9554 = vrot.slane %v9090, 7
    %v9555 = vrot.slane %v9554, 2
    %v9556 = vrot.slane %v9092, 7
    %v9557 = vrot.slane %v9556, 2
    %v9558 = vrot.slane %v9100, 7
    %v9559 = vrot.slane %v9558, 2
    %v9560 = vrot.slane %v9108, 7
    %v9561 = vrot.slane %v9560, 2
    %v9562 = vrot.slane %v9107, 7
    %v9563 = vrot.slane %v9562, 2
    %v9564 = vrot.slane %v9109, 7
    %v9565 = vrot.slane %v9564, 2
    %v9566 = vrot.slane %v9117, 7
    %v9567 = vrot.slane %v9566, 2
    %v9568 = vrot.slane %v9125, 7
    %v9569 = vrot.slane %v9568, 2
    %v9570 = vrot.slane %v9124, 7
    %v9571 = vrot.slane %v9570, 2
    %v9572 = vrot.slane %v9126, 7
    %v9573 = vrot.slane %v9572, 2
    %v9574 = vrot.slane %v9134, 7
    %v9575 = vrot.slane %v9574, 2
    %v9576 = vrot.slane %v9142, 7
    %v9577 = vrot.slane %v9576, 2
    %v9578 = vrot.slane %v9141, 7
    %v9579 = vrot.slane %v9578, 2
    %v9580 = vrot.slane %v9143, 7
    %v9581 = vrot.slane %v9580, 2
    %v9582 = vrot.slane %v9151, 7
    %v9583 = vrot.slane %v9582, 2
    %v9584 = vrot.slane %v9159, 7
    %v9585 = vrot.slane %v9584, 2
    %v9586 = vrot.slane %v9158, 7
    %v9587 = vrot.slane %v9586, 2
    %v9588 = vrot.slane %v9160, 7
    %v9589 = vrot.slane %v9588, 2
    %v9590 = vrot.slane %v9168, 7
    %v9591 = vrot.slane %v9590, 2
    %v9592 = vrot.slane %v9176, 7
    %v9593 = vrot.slane %v9592, 2
    %v9594 = vrot.slane %v9175, 7
    %v9595 = vrot.slane %v9594, 2
    %v9596 = vrot.slane %v9177, 7
    %v9597 = vrot.slane %v9596, 2
    %v9598 = vrot.slane %v9185, 7
    %v9599 = vrot.slane %v9598, 2
    %v9600 = vrot.slane %v9193, 7
    %v9601 = vrot.slane %v9600, 2
    %v9602 = vrot.slane %v9192, 7
    %v9603 = vrot.slane %v9602, 2
    %v9604 = vrot.slane %v9194, 7
    %v9605 = vrot.slane %v9604, 2
    %v9606 = vrot.slane %v9202, 7
    %v9607 = vrot.slane %v9606, 2
    %v9608 = vrot.slane %v9210, 7
    %v9609 = vrot.slane %v9608, 2
    %v9610 = vrot.slane %v9209, 7
    %v9611 = vrot.slane %v9610, 2
    %v9612 = vrot.slane %v9211, 7
    %v9613 = vrot.slane %v9612, 2
    %v9614 = vrot.slane %v9219, 7
    %v9615 = vrot.slane %v9614, 2
    %v9616 = vrot.slane %v9227, 7
    %v9617 = vrot.slane %v9616, 2
    %v9618 = vrot.slane %v9226, 7
    %v9619 = vrot.slane %v9618, 2
    %v9620 = vrot.slane %v9228, 7
    %v9621 = vrot.slane %v9620, 2
    %v9622 = vrot.slane %v9236, 7
    %v9623 = vrot.slane %v9622, 2
    %v9624 = vrot.slane %v9244, 7
    %v9625 = vrot.slane %v9624, 2
    %v9626 = vrot.slane %v9243, 7
    %v9627 = vrot.slane %v9626, 2
    %v9628 = vrot.slane %v9245, 7
    %v9629 = vrot.slane %v9628, 2
    %v9758 = vmax.f32 %v8709, %v9375
    %v9759 = vmax.f32 %v8717, %v9377
    %v9760 = vmax.f32 %v8716, %v9379
    %v9761 = vmax.f32 %v8718, %v9381
    %v9762 = vmax.f32 %v8726, %v9383
    %v9763 = vmax.f32 %v8734, %v9385
    %v9764 = vmax.f32 %v8733, %v9387
    %v9765 = vmax.f32 %v8735, %v9389
    %v9766 = vmax.f32 %v8743, %v9391
    %v9767 = vmax.f32 %v8751, %v9393
    %v9768 = vmax.f32 %v8750, %v9395
    %v9769 = vmax.f32 %v8752, %v9397
    %v9770 = vmax.f32 %v8760, %v9399
    %v9771 = vmax.f32 %v8768, %v9401
    %v9772 = vmax.f32 %v8767, %v9403
    %v9773 = vmax.f32 %v8769, %v9405
    %v9774 = vmax.f32 %v8777, %v9407
    %v9775 = vmax.f32 %v8785, %v9409
    %v9776 = vmax.f32 %v8784, %v9411
    %v9777 = vmax.f32 %v8786, %v9413
    %v9778 = vmax.f32 %v8794, %v9415
    %v9779 = vmax.f32 %v8802, %v9417
    %v9780 = vmax.f32 %v8801, %v9419
    %v9781 = vmax.f32 %v8803, %v9421
    %v9782 = vmax.f32 %v8811, %v9423
    %v9783 = vmax.f32 %v8819, %v9425
    %v9784 = vmax.f32 %v8818, %v9427
    %v9785 = vmax.f32 %v8820, %v9429
    %v9786 = vmax.f32 %v8828, %v9431
    %v9787 = vmax.f32 %v8836, %v9433
    %v9788 = vmax.f32 %v8835, %v9435
    %v9789 = vmax.f32 %v8837, %v9437
    %v9790 = vmax.f32 %v8845, %v9439
    %v9791 = vmax.f32 %v8853, %v9441
    %v9792 = vmax.f32 %v8852, %v9443
    %v9793 = vmax.f32 %v8854, %v9445
    %v9794 = vmax.f32 %v8862, %v9447
    %v9795 = vmax.f32 %v8870, %v9449
    %v9796 = vmax.f32 %v8869, %v9451
    %v9797 = vmax.f32 %v8871, %v9453
    %v9798 = vmax.f32 %v8879, %v9455
    %v9799 = vmax.f32 %v8887, %v9457
    %v9800 = vmax.f32 %v8886, %v9459
    %v9801 = vmax.f32 %v8888, %v9461
    %v9802 = vmax.f32 %v8896, %v9463
    %v9803 = vmax.f32 %v8904, %v9465
    %v9804 = vmax.f32 %v8903, %v9467
    %v9805 = vmax.f32 %v8905, %v9469
    %v9806 = vmax.f32 %v8913, %v9471
    %v9807 = vmax.f32 %v8921, %v9473
    %v9808 = vmax.f32 %v8920, %v9475
    %v9809 = vmax.f32 %v8922, %v9477
    %v9810 = vmax.f32 %v8930, %v9479
    %v9811 = vmax.f32 %v8938, %v9481
    %v9812 = vmax.f32 %v8937, %v9483
    %v9813 = vmax.f32 %v8939, %v9485
    %v9814 = vmax.f32 %v8947, %v9487
    %v9815 = vmax.f32 %v8955, %v9489
    %v9816 = vmax.f32 %v8954, %v9491
    %v9817 = vmax.f32 %v8956, %v9493
    %v9818 = vmax.f32 %v8964, %v9495
    %v9819 = vmax.f32 %v8972, %v9497
    %v9820 = vmax.f32 %v8971, %v9499
    %v9821 = vmax.f32 %v8973, %v9501
    %v9822 = vmax.f32 %v8981, %v9503
    %v9823 = vmax.f32 %v8989, %v9505
    %v9824 = vmax.f32 %v8988, %v9507
    %v9825 = vmax.f32 %v8990, %v9509
    %v9826 = vmax.f32 %v8998, %v9511
    %v9827 = vmax.f32 %v9006, %v9513
    %v9828 = vmax.f32 %v9005, %v9515
    %v9829 = vmax.f32 %v9007, %v9517
    %v9830 = vmax.f32 %v9015, %v9519
    %v9831 = vmax.f32 %v9023, %v9521
    %v9832 = vmax.f32 %v9022, %v9523
    %v9833 = vmax.f32 %v9024, %v9525
    %v9834 = vmax.f32 %v9032, %v9527
    %v9835 = vmax.f32 %v9040, %v9529
    %v9836 = vmax.f32 %v9039, %v9531
    %v9837 = vmax.f32 %v9041, %v9533
    %v9838 = vmax.f32 %v9049, %v9535
    %v9839 = vmax.f32 %v9057, %v9537
    %v9840 = vmax.f32 %v9056, %v9539
    %v9841 = vmax.f32 %v9058, %v9541
    %v9842 = vmax.f32 %v9066, %v9543
    %v9843 = vmax.f32 %v9074, %v9545
    %v9844 = vmax.f32 %v9073, %v9547
    %v9845 = vmax.f32 %v9075, %v9549
    %v9846 = vmax.f32 %v9083, %v9551
    %v9847 = vmax.f32 %v9091, %v9553
    %v9848 = vmax.f32 %v9090, %v9555
    %v9849 = vmax.f32 %v9092, %v9557
    %v9850 = vmax.f32 %v9100, %v9559
    %v9851 = vmax.f32 %v9108, %v9561
    %v9852 = vmax.f32 %v9107, %v9563
    %v9853 = vmax.f32 %v9109, %v9565
    %v9854 = vmax.f32 %v9117, %v9567
    %v9855 = vmax.f32 %v9125, %v9569
    %v9856 = vmax.f32 %v9124, %v9571
    %v9857 = vmax.f32 %v9126, %v9573
    %v9858 = vmax.f32 %v9134, %v9575
    %v9859 = vmax.f32 %v9142, %v9577
    %v9860 = vmax.f32 %v9141, %v9579
    %v9861 = vmax.f32 %v9143, %v9581
    %v9862 = vmax.f32 %v9151, %v9583
    %v9863 = vmax.f32 %v9159, %v9585
    %v9864 = vmax.f32 %v9158, %v9587
    %v9865 = vmax.f32 %v9160, %v9589
    %v9866 = vmax.f32 %v9168, %v9591
    %v9867 = vmax.f32 %v9176, %v9593
    %v9868 = vmax.f32 %v9175, %v9595
    %v9869 = vmax.f32 %v9177, %v9597
    %v9870 = vmax.f32 %v9185, %v9599
    %v9871 = vmax.f32 %v9193, %v9601
    %v9872 = vmax.f32 %v9192, %v9603
    %v9873 = vmax.f32 %v9194, %v9605
    %v9874 = vmax.f32 %v9202, %v9607
    %v9875 = vmax.f32 %v9210, %v9609
    %v9876 = vmax.f32 %v9209, %v9611
    %v9877 = vmax.f32 %v9211, %v9613
    %v9878 = vmax.f32 %v9219, %v9615
    %v9879 = vmax.f32 %v9227, %v9617
    %v9880 = vmax.f32 %v9226, %v9619
    %v9881 = vmax.f32 %v9228, %v9621
    %v9882 = vmax.f32 %v9236, %v9623
    %v9883 = vmax.f32 %v9244, %v9625
    %v9884 = vmax.f32 %v9243, %v9627
    %v9885 = vmax.f32 %v9245, %v9629
    %v9886 = vmax.f32 %v9758, 0.0
    %v9887 = vmax.f32 %v9759, 0.0
    %v9888 = vmax.f32 %v9760, 0.0
    %v9889 = vmax.f32 %v9761, 0.0
    %v9890 = vmax.f32 %v9762, 0.0
    %v9891 = vmax.f32 %v9763, 0.0
    %v9892 = vmax.f32 %v9764, 0.0
    %v9893 = vmax.f32 %v9765, 0.0
    %v9894 = vmax.f32 %v9766, 0.0
    %v9895 = vmax.f32 %v9767, 0.0
    %v9896 = vmax.f32 %v9768, 0.0
    %v9897 = vmax.f32 %v9769, 0.0
    %v9898 = vmax.f32 %v9770, 0.0
    %v9899 = vmax.f32 %v9771, 0.0
    %v9900 = vmax.f32 %v9772, 0.0
    %v9901 = vmax.f32 %v9773, 0.0
    %v9902 = vmax.f32 %v9774, 0.0
    %v9903 = vmax.f32 %v9775, 0.0
    %v9904 = vmax.f32 %v9776, 0.0
    %v9905 = vmax.f32 %v9777, 0.0
    %v9906 = vmax.f32 %v9778, 0.0
    %v9907 = vmax.f32 %v9779, 0.0
    %v9908 = vmax.f32 %v9780, 0.0
    %v9909 = vmax.f32 %v9781, 0.0
    %v9910 = vmax.f32 %v9782, 0.0
    %v9911 = vmax.f32 %v9783, 0.0
    %v9912 = vmax.f32 %v9784, 0.0
    %v9913 = vmax.f32 %v9785, 0.0
    %v9914 = vmax.f32 %v9786, 0.0
    %v9915 = vmax.f32 %v9787, 0.0
    %v9916 = vmax.f32 %v9788, 0.0
    %v9917 = vmax.f32 %v9789, 0.0
    %v9918 = vmax.f32 %v9790, 0.0
    %v9919 = vmax.f32 %v9791, 0.0
    %v9920 = vmax.f32 %v9792, 0.0
    %v9921 = vmax.f32 %v9793, 0.0
    %v9922 = vmax.f32 %v9794, 0.0
    %v9923 = vmax.f32 %v9795, 0.0
    %v9924 = vmax.f32 %v9796, 0.0
    %v9925 = vmax.f32 %v9797, 0.0
    %v9926 = vmax.f32 %v9798, 0.0
    %v9927 = vmax.f32 %v9799, 0.0
    %v9928 = vmax.f32 %v9800, 0.0
    %v9929 = vmax.f32 %v9801, 0.0
    %v9930 = vmax.f32 %v9802, 0.0
    %v9931 = vmax.f32 %v9803, 0.0
    %v9932 = vmax.f32 %v9804, 0.0
    %v9933 = vmax.f32 %v9805, 0.0
    %v9934 = vmax.f32 %v9806, 0.0
    %v9935 = vmax.f32 %v9807, 0.0
    %v9936 = vmax.f32 %v9808, 0.0
    %v9937 = vmax.f32 %v9809, 0.0
    %v9938 = vmax.f32 %v9810, 0.0
    %v9939 = vmax.f32 %v9811, 0.0
    %v9940 = vmax.f32 %v9812, 0.0
    %v9941 = vmax.f32 %v9813, 0.0
    %v9942 = vmax.f32 %v9814, 0.0
    %v9943 = vmax.f32 %v9815, 0.0
    %v9944 = vmax.f32 %v9816, 0.0
    %v9945 = vmax.f32 %v9817, 0.0
    %v9946 = vmax.f32 %v9818, 0.0
    %v9947 = vmax.f32 %v9819, 0.0
    %v9948 = vmax.f32 %v9820, 0.0
    %v9949 = vmax.f32 %v9821, 0.0
    %v9950 = vmax.f32 %v9822, 0.0
    %v9951 = vmax.f32 %v9823, 0.0
    %v9952 = vmax.f32 %v9824, 0.0
    %v9953 = vmax.f32 %v9825, 0.0
    %v9954 = vmax.f32 %v9826, 0.0
    %v9955 = vmax.f32 %v9827, 0.0
    %v9956 = vmax.f32 %v9828, 0.0
    %v9957 = vmax.f32 %v9829, 0.0
    %v9958 = vmax.f32 %v9830, 0.0
    %v9959 = vmax.f32 %v9831, 0.0
    %v9960 = vmax.f32 %v9832, 0.0
    %v9961 = vmax.f32 %v9833, 0.0
    %v9962 = vmax.f32 %v9834, 0.0
    %v9963 = vmax.f32 %v9835, 0.0
    %v9964 = vmax.f32 %v9836, 0.0
    %v9965 = vmax.f32 %v9837, 0.0
    %v9966 = vmax.f32 %v9838, 0.0
    %v9967 = vmax.f32 %v9839, 0.0
    %v9968 = vmax.f32 %v9840, 0.0
    %v9969 = vmax.f32 %v9841, 0.0
    %v9970 = vmax.f32 %v9842, 0.0
    %v9971 = vmax.f32 %v9843, 0.0
    %v9972 = vmax.f32 %v9844, 0.0
    %v9973 = vmax.f32 %v9845, 0.0
    %v9974 = vmax.f32 %v9846, 0.0
    %v9975 = vmax.f32 %v9847, 0.0
    %v9976 = vmax.f32 %v9848, 0.0
    %v9977 = vmax.f32 %v9849, 0.0
    %v9978 = vmax.f32 %v9850, 0.0
    %v9979 = vmax.f32 %v9851, 0.0
    %v9980 = vmax.f32 %v9852, 0.0
    %v9981 = vmax.f32 %v9853, 0.0
    %v9982 = vmax.f32 %v9854, 0.0
    %v9983 = vmax.f32 %v9855, 0.0
    %v9984 = vmax.f32 %v9856, 0.0
    %v9985 = vmax.f32 %v9857, 0.0
    %v9986 = vmax.f32 %v9858, 0.0
    %v9987 = vmax.f32 %v9859, 0.0
    %v9988 = vmax.f32 %v9860, 0.0
    %v9989 = vmax.f32 %v9861, 0.0
    %v9990 = vmax.f32 %v9862, 0.0
    %v9991 = vmax.f32 %v9863, 0.0
    %v9992 = vmax.f32 %v9864, 0.0
    %v9993 = vmax.f32 %v9865, 0.0
    %v9994 = vmax.f32 %v9866, 0.0
    %v9995 = vmax.f32 %v9867, 0.0
    %v9996 = vmax.f32 %v9868, 0.0
    %v9997 = vmax.f32 %v9869, 0.0
    %v9998 = vmax.f32 %v9870, 0.0
    %v9999 = vmax.f32 %v9871, 0.0
    %v10000 = vmax.f32 %v9872, 0.0
    %v10001 = vmax.f32 %v9873, 0.0
    %v10002 = vmax.f32 %v9874, 0.0
    %v10003 = vmax.f32 %v9875, 0.0
    %v10004 = vmax.f32 %v9876, 0.0
    %v10005 = vmax.f32 %v9877, 0.0
    %v10006 = vmax.f32 %v9878, 0.0
    %v10007 = vmax.f32 %v9879, 0.0
    %v10008 = vmax.f32 %v9880, 0.0
    %v10009 = vmax.f32 %v9881, 0.0
    %v10010 = vmax.f32 %v9882, 0.0
    %v10011 = vmax.f32 %v9883, 0.0
    %v10012 = vmax.f32 %v9884, 0.0
    %v10013 = vmax.f32 %v9885, 0.0
    %v10142 = vlaneseq
    %v10143 = vshrl.u32 %v10142, 7
    %v10144 = vsub.s32 0, %v10143
    %v10145 = vrot.slane %v9886, %v10144
    %v10146 = vlaneseq
    %v10147 = vshrl.u32 %v10146, 7
    %v10148 = vsub.s32 0, %v10147
    %v10149 = vrot.slane %v9887, %v10148
    %v10150 = vlaneseq
    %v10151 = vshrl.u32 %v10150, 7
    %v10152 = vsub.s32 0, %v10151
    %v10153 = vrot.slane %v9888, %v10152
    %v10154 = vlaneseq
    %v10155 = vshrl.u32 %v10154, 7
    %v10156 = vsub.s32 0, %v10155
    %v10157 = vrot.slane %v9889, %v10156
    %v10158 = vlaneseq
    %v10159 = vshrl.u32 %v10158, 7
    %v10160 = vsub.s32 0, %v10159
    %v10161 = vrot.slane %v9890, %v10160
    %v10162 = vlaneseq
    %v10163 = vshrl.u32 %v10162, 7
    %v10164 = vsub.s32 0, %v10163
    %v10165 = vrot.slane %v9891, %v10164
    %v10166 = vlaneseq
    %v10167 = vshrl.u32 %v10166, 7
    %v10168 = vsub.s32 0, %v10167
    %v10169 = vrot.slane %v9892, %v10168
    %v10170 = vlaneseq
    %v10171 = vshrl.u32 %v10170, 7
    %v10172 = vsub.s32 0, %v10171
    %v10173 = vrot.slane %v9893, %v10172
    %v10174 = vlaneseq
    %v10175 = vshrl.u32 %v10174, 7
    %v10176 = vsub.s32 0, %v10175
    %v10177 = vrot.slane %v9894, %v10176
    %v10178 = vlaneseq
    %v10179 = vshrl.u32 %v10178, 7
    %v10180 = vsub.s32 0, %v10179
    %v10181 = vrot.slane %v9895, %v10180
    %v10182 = vlaneseq
    %v10183 = vshrl.u32 %v10182, 7
    %v10184 = vsub.s32 0, %v10183
    %v10185 = vrot.slane %v9896, %v10184
    %v10186 = vlaneseq
    %v10187 = vshrl.u32 %v10186, 7
    %v10188 = vsub.s32 0, %v10187
    %v10189 = vrot.slane %v9897, %v10188
    %v10190 = vlaneseq
    %v10191 = vshrl.u32 %v10190, 7
    %v10192 = vsub.s32 0, %v10191
    %v10193 = vrot.slane %v9898, %v10192
    %v10194 = vlaneseq
    %v10195 = vshrl.u32 %v10194, 7
    %v10196 = vsub.s32 0, %v10195
    %v10197 = vrot.slane %v9899, %v10196
    %v10198 = vlaneseq
    %v10199 = vshrl.u32 %v10198, 7
    %v10200 = vsub.s32 0, %v10199
    %v10201 = vrot.slane %v9900, %v10200
    %v10202 = vlaneseq
    %v10203 = vshrl.u32 %v10202, 7
    %v10204 = vsub.s32 0, %v10203
    %v10205 = vrot.slane %v9901, %v10204
    %v10206 = vlaneseq
    %v10207 = vshrl.u32 %v10206, 7
    %v10208 = vsub.s32 0, %v10207
    %v10209 = vrot.slane %v9902, %v10208
    %v10210 = vlaneseq
    %v10211 = vshrl.u32 %v10210, 7
    %v10212 = vsub.s32 0, %v10211
    %v10213 = vrot.slane %v9903, %v10212
    %v10214 = vlaneseq
    %v10215 = vshrl.u32 %v10214, 7
    %v10216 = vsub.s32 0, %v10215
    %v10217 = vrot.slane %v9904, %v10216
    %v10218 = vlaneseq
    %v10219 = vshrl.u32 %v10218, 7
    %v10220 = vsub.s32 0, %v10219
    %v10221 = vrot.slane %v9905, %v10220
    %v10222 = vlaneseq
    %v10223 = vshrl.u32 %v10222, 7
    %v10224 = vsub.s32 0, %v10223
    %v10225 = vrot.slane %v9906, %v10224
    %v10226 = vlaneseq
    %v10227 = vshrl.u32 %v10226, 7
    %v10228 = vsub.s32 0, %v10227
    %v10229 = vrot.slane %v9907, %v10228
    %v10230 = vlaneseq
    %v10231 = vshrl.u32 %v10230, 7
    %v10232 = vsub.s32 0, %v10231
    %v10233 = vrot.slane %v9908, %v10232
    %v10234 = vlaneseq
    %v10235 = vshrl.u32 %v10234, 7
    %v10236 = vsub.s32 0, %v10235
    %v10237 = vrot.slane %v9909, %v10236
    %v10238 = vlaneseq
    %v10239 = vshrl.u32 %v10238, 7
    %v10240 = vsub.s32 0, %v10239
    %v10241 = vrot.slane %v9910, %v10240
    %v10242 = vlaneseq
    %v10243 = vshrl.u32 %v10242, 7
    %v10244 = vsub.s32 0, %v10243
    %v10245 = vrot.slane %v9911, %v10244
    %v10246 = vlaneseq
    %v10247 = vshrl.u32 %v10246, 7
    %v10248 = vsub.s32 0, %v10247
    %v10249 = vrot.slane %v9912, %v10248
    %v10250 = vlaneseq
    %v10251 = vshrl.u32 %v10250, 7
    %v10252 = vsub.s32 0, %v10251
    %v10253 = vrot.slane %v9913, %v10252
    %v10254 = vlaneseq
    %v10255 = vshrl.u32 %v10254, 7
    %v10256 = vsub.s32 0, %v10255
    %v10257 = vrot.slane %v9914, %v10256
    %v10258 = vlaneseq
    %v10259 = vshrl.u32 %v10258, 7
    %v10260 = vsub.s32 0, %v10259
    %v10261 = vrot.slane %v9915, %v10260
    %v10262 = vlaneseq
    %v10263 = vshrl.u32 %v10262, 7
    %v10264 = vsub.s32 0, %v10263
    %v10265 = vrot.slane %v9916, %v10264
    %v10266 = vlaneseq
    %v10267 = vshrl.u32 %v10266, 7
    %v10268 = vsub.s32 0, %v10267
    %v10269 = vrot.slane %v9917, %v10268
    %v10270 = vlaneseq
    %v10271 = vshrl.u32 %v10270, 7
    %v10272 = vsub.s32 0, %v10271
    %v10273 = vrot.slane %v9918, %v10272
    %v10274 = vlaneseq
    %v10275 = vshrl.u32 %v10274, 7
    %v10276 = vsub.s32 0, %v10275
    %v10277 = vrot.slane %v9919, %v10276
    %v10278 = vlaneseq
    %v10279 = vshrl.u32 %v10278, 7
    %v10280 = vsub.s32 0, %v10279
    %v10281 = vrot.slane %v9920, %v10280
    %v10282 = vlaneseq
    %v10283 = vshrl.u32 %v10282, 7
    %v10284 = vsub.s32 0, %v10283
    %v10285 = vrot.slane %v9921, %v10284
    %v10286 = vlaneseq
    %v10287 = vshrl.u32 %v10286, 7
    %v10288 = vsub.s32 0, %v10287
    %v10289 = vrot.slane %v9922, %v10288
    %v10290 = vlaneseq
    %v10291 = vshrl.u32 %v10290, 7
    %v10292 = vsub.s32 0, %v10291
    %v10293 = vrot.slane %v9923, %v10292
    %v10294 = vlaneseq
    %v10295 = vshrl.u32 %v10294, 7
    %v10296 = vsub.s32 0, %v10295
    %v10297 = vrot.slane %v9924, %v10296
    %v10298 = vlaneseq
    %v10299 = vshrl.u32 %v10298, 7
    %v10300 = vsub.s32 0, %v10299
    %v10301 = vrot.slane %v9925, %v10300
    %v10302 = vlaneseq
    %v10303 = vshrl.u32 %v10302, 7
    %v10304 = vsub.s32 0, %v10303
    %v10305 = vrot.slane %v9926, %v10304
    %v10306 = vlaneseq
    %v10307 = vshrl.u32 %v10306, 7
    %v10308 = vsub.s32 0, %v10307
    %v10309 = vrot.slane %v9927, %v10308
    %v10310 = vlaneseq
    %v10311 = vshrl.u32 %v10310, 7
    %v10312 = vsub.s32 0, %v10311
    %v10313 = vrot.slane %v9928, %v10312
    %v10314 = vlaneseq
    %v10315 = vshrl.u32 %v10314, 7
    %v10316 = vsub.s32 0, %v10315
    %v10317 = vrot.slane %v9929, %v10316
    %v10318 = vlaneseq
    %v10319 = vshrl.u32 %v10318, 7
    %v10320 = vsub.s32 0, %v10319
    %v10321 = vrot.slane %v9930, %v10320
    %v10322 = vlaneseq
    %v10323 = vshrl.u32 %v10322, 7
    %v10324 = vsub.s32 0, %v10323
    %v10325 = vrot.slane %v9931, %v10324
    %v10326 = vlaneseq
    %v10327 = vshrl.u32 %v10326, 7
    %v10328 = vsub.s32 0, %v10327
    %v10329 = vrot.slane %v9932, %v10328
    %v10330 = vlaneseq
    %v10331 = vshrl.u32 %v10330, 7
    %v10332 = vsub.s32 0, %v10331
    %v10333 = vrot.slane %v9933, %v10332
    %v10334 = vlaneseq
    %v10335 = vshrl.u32 %v10334, 7
    %v10336 = vsub.s32 0, %v10335
    %v10337 = vrot.slane %v9934, %v10336
    %v10338 = vlaneseq
    %v10339 = vshrl.u32 %v10338, 7
    %v10340 = vsub.s32 0, %v10339
    %v10341 = vrot.slane %v9935, %v10340
    %v10342 = vlaneseq
    %v10343 = vshrl.u32 %v10342, 7
    %v10344 = vsub.s32 0, %v10343
    %v10345 = vrot.slane %v9936, %v10344
    %v10346 = vlaneseq
    %v10347 = vshrl.u32 %v10346, 7
    %v10348 = vsub.s32 0, %v10347
    %v10349 = vrot.slane %v9937, %v10348
    %v10350 = vlaneseq
    %v10351 = vshrl.u32 %v10350, 7
    %v10352 = vsub.s32 0, %v10351
    %v10353 = vrot.slane %v9938, %v10352
    %v10354 = vlaneseq
    %v10355 = vshrl.u32 %v10354, 7
    %v10356 = vsub.s32 0, %v10355
    %v10357 = vrot.slane %v9939, %v10356
    %v10358 = vlaneseq
    %v10359 = vshrl.u32 %v10358, 7
    %v10360 = vsub.s32 0, %v10359
    %v10361 = vrot.slane %v9940, %v10360
    %v10362 = vlaneseq
    %v10363 = vshrl.u32 %v10362, 7
    %v10364 = vsub.s32 0, %v10363
    %v10365 = vrot.slane %v9941, %v10364
    %v10366 = vlaneseq
    %v10367 = vshrl.u32 %v10366, 7
    %v10368 = vsub.s32 0, %v10367
    %v10369 = vrot.slane %v9942, %v10368
    %v10370 = vlaneseq
    %v10371 = vshrl.u32 %v10370, 7
    %v10372 = vsub.s32 0, %v10371
    %v10373 = vrot.slane %v9943, %v10372
    %v10374 = vlaneseq
    %v10375 = vshrl.u32 %v10374, 7
    %v10376 = vsub.s32 0, %v10375
    %v10377 = vrot.slane %v9944, %v10376
    %v10378 = vlaneseq
    %v10379 = vshrl.u32 %v10378, 7
    %v10380 = vsub.s32 0, %v10379
    %v10381 = vrot.slane %v9945, %v10380
    %v10382 = vlaneseq
    %v10383 = vshrl.u32 %v10382, 7
    %v10384 = vsub.s32 0, %v10383
    %v10385 = vrot.slane %v9946, %v10384
    %v10386 = vlaneseq
    %v10387 = vshrl.u32 %v10386, 7
    %v10388 = vsub.s32 0, %v10387
    %v10389 = vrot.slane %v9947, %v10388
    %v10390 = vlaneseq
    %v10391 = vshrl.u32 %v10390, 7
    %v10392 = vsub.s32 0, %v10391
    %v10393 = vrot.slane %v9948, %v10392
    %v10394 = vlaneseq
    %v10395 = vshrl.u32 %v10394, 7
    %v10396 = vsub.s32 0, %v10395
    %v10397 = vrot.slane %v9949, %v10396
    %v10398 = vlaneseq
    %v10399 = vshrl.u32 %v10398, 7
    %v10400 = vsub.s32 0, %v10399
    %v10401 = vrot.slane %v9950, %v10400
    %v10402 = vlaneseq
    %v10403 = vshrl.u32 %v10402, 7
    %v10404 = vsub.s32 0, %v10403
    %v10405 = vrot.slane %v9951, %v10404
    %v10406 = vlaneseq
    %v10407 = vshrl.u32 %v10406, 7
    %v10408 = vsub.s32 0, %v10407
    %v10409 = vrot.slane %v9952, %v10408
    %v10410 = vlaneseq
    %v10411 = vshrl.u32 %v10410, 7
    %v10412 = vsub.s32 0, %v10411
    %v10413 = vrot.slane %v9953, %v10412
    %v10414 = vlaneseq
    %v10415 = vshrl.u32 %v10414, 7
    %v10416 = vsub.s32 0, %v10415
    %v10417 = vrot.slane %v9954, %v10416
    %v10418 = vlaneseq
    %v10419 = vshrl.u32 %v10418, 7
    %v10420 = vsub.s32 0, %v10419
    %v10421 = vrot.slane %v9955, %v10420
    %v10422 = vlaneseq
    %v10423 = vshrl.u32 %v10422, 7
    %v10424 = vsub.s32 0, %v10423
    %v10425 = vrot.slane %v9956, %v10424
    %v10426 = vlaneseq
    %v10427 = vshrl.u32 %v10426, 7
    %v10428 = vsub.s32 0, %v10427
    %v10429 = vrot.slane %v9957, %v10428
    %v10430 = vlaneseq
    %v10431 = vshrl.u32 %v10430, 7
    %v10432 = vsub.s32 0, %v10431
    %v10433 = vrot.slane %v9958, %v10432
    %v10434 = vlaneseq
    %v10435 = vshrl.u32 %v10434, 7
    %v10436 = vsub.s32 0, %v10435
    %v10437 = vrot.slane %v9959, %v10436
    %v10438 = vlaneseq
    %v10439 = vshrl.u32 %v10438, 7
    %v10440 = vsub.s32 0, %v10439
    %v10441 = vrot.slane %v9960, %v10440
    %v10442 = vlaneseq
    %v10443 = vshrl.u32 %v10442, 7
    %v10444 = vsub.s32 0, %v10443
    %v10445 = vrot.slane %v9961, %v10444
    %v10446 = vlaneseq
    %v10447 = vshrl.u32 %v10446, 7
    %v10448 = vsub.s32 0, %v10447
    %v10449 = vrot.slane %v9962, %v10448
    %v10450 = vlaneseq
    %v10451 = vshrl.u32 %v10450, 7
    %v10452 = vsub.s32 0, %v10451
    %v10453 = vrot.slane %v9963, %v10452
    %v10454 = vlaneseq
    %v10455 = vshrl.u32 %v10454, 7
    %v10456 = vsub.s32 0, %v10455
    %v10457 = vrot.slane %v9964, %v10456
    %v10458 = vlaneseq
    %v10459 = vshrl.u32 %v10458, 7
    %v10460 = vsub.s32 0, %v10459
    %v10461 = vrot.slane %v9965, %v10460
    %v10462 = vlaneseq
    %v10463 = vshrl.u32 %v10462, 7
    %v10464 = vsub.s32 0, %v10463
    %v10465 = vrot.slane %v9966, %v10464
    %v10466 = vlaneseq
    %v10467 = vshrl.u32 %v10466, 7
    %v10468 = vsub.s32 0, %v10467
    %v10469 = vrot.slane %v9967, %v10468
    %v10470 = vlaneseq
    %v10471 = vshrl.u32 %v10470, 7
    %v10472 = vsub.s32 0, %v10471
    %v10473 = vrot.slane %v9968, %v10472
    %v10474 = vlaneseq
    %v10475 = vshrl.u32 %v10474, 7
    %v10476 = vsub.s32 0, %v10475
    %v10477 = vrot.slane %v9969, %v10476
    %v10478 = vlaneseq
    %v10479 = vshrl.u32 %v10478, 7
    %v10480 = vsub.s32 0, %v10479
    %v10481 = vrot.slane %v9970, %v10480
    %v10482 = vlaneseq
    %v10483 = vshrl.u32 %v10482, 7
    %v10484 = vsub.s32 0, %v10483
    %v10485 = vrot.slane %v9971, %v10484
    %v10486 = vlaneseq
    %v10487 = vshrl.u32 %v10486, 7
    %v10488 = vsub.s32 0, %v10487
    %v10489 = vrot.slane %v9972, %v10488
    %v10490 = vlaneseq
    %v10491 = vshrl.u32 %v10490, 7
    %v10492 = vsub.s32 0, %v10491
    %v10493 = vrot.slane %v9973, %v10492
    %v10494 = vlaneseq
    %v10495 = vshrl.u32 %v10494, 7
    %v10496 = vsub.s32 0, %v10495
    %v10497 = vrot.slane %v9974, %v10496
    %v10498 = vlaneseq
    %v10499 = vshrl.u32 %v10498, 7
    %v10500 = vsub.s32 0, %v10499
    %v10501 = vrot.slane %v9975, %v10500
    %v10502 = vlaneseq
    %v10503 = vshrl.u32 %v10502, 7
    %v10504 = vsub.s32 0, %v10503
    %v10505 = vrot.slane %v9976, %v10504
    %v10506 = vlaneseq
    %v10507 = vshrl.u32 %v10506, 7
    %v10508 = vsub.s32 0, %v10507
    %v10509 = vrot.slane %v9977, %v10508
    %v10510 = vlaneseq
    %v10511 = vshrl.u32 %v10510, 7
    %v10512 = vsub.s32 0, %v10511
    %v10513 = vrot.slane %v9978, %v10512
    %v10514 = vlaneseq
    %v10515 = vshrl.u32 %v10514, 7
    %v10516 = vsub.s32 0, %v10515
    %v10517 = vrot.slane %v9979, %v10516
    %v10518 = vlaneseq
    %v10519 = vshrl.u32 %v10518, 7
    %v10520 = vsub.s32 0, %v10519
    %v10521 = vrot.slane %v9980, %v10520
    %v10522 = vlaneseq
    %v10523 = vshrl.u32 %v10522, 7
    %v10524 = vsub.s32 0, %v10523
    %v10525 = vrot.slane %v9981, %v10524
    %v10526 = vlaneseq
    %v10527 = vshrl.u32 %v10526, 7
    %v10528 = vsub.s32 0, %v10527
    %v10529 = vrot.slane %v9982, %v10528
    %v10530 = vlaneseq
    %v10531 = vshrl.u32 %v10530, 7
    %v10532 = vsub.s32 0, %v10531
    %v10533 = vrot.slane %v9983, %v10532
    %v10534 = vlaneseq
    %v10535 = vshrl.u32 %v10534, 7
    %v10536 = vsub.s32 0, %v10535
    %v10537 = vrot.slane %v9984, %v10536
    %v10538 = vlaneseq
    %v10539 = vshrl.u32 %v10538, 7
    %v10540 = vsub.s32 0, %v10539
    %v10541 = vrot.slane %v9985, %v10540
    %v10542 = vlaneseq
    %v10543 = vshrl.u32 %v10542, 7
    %v10544 = vsub.s32 0, %v10543
    %v10545 = vrot.slane %v9986, %v10544
    %v10546 = vlaneseq
    %v10547 = vshrl.u32 %v10546, 7
    %v10548 = vsub.s32 0, %v10547
    %v10549 = vrot.slane %v9987, %v10548
    %v10550 = vlaneseq
    %v10551 = vshrl.u32 %v10550, 7
    %v10552 = vsub.s32 0, %v10551
    %v10553 = vrot.slane %v9988, %v10552
    %v10554 = vlaneseq
    %v10555 = vshrl.u32 %v10554, 7
    %v10556 = vsub.s32 0, %v10555
    %v10557 = vrot.slane %v9989, %v10556
    %v10558 = vlaneseq
    %v10559 = vshrl.u32 %v10558, 7
    %v10560 = vsub.s32 0, %v10559
    %v10561 = vrot.slane %v9990, %v10560
    %v10562 = vlaneseq
    %v10563 = vshrl.u32 %v10562, 7
    %v10564 = vsub.s32 0, %v10563
    %v10565 = vrot.slane %v9991, %v10564
    %v10566 = vlaneseq
    %v10567 = vshrl.u32 %v10566, 7
    %v10568 = vsub.s32 0, %v10567
    %v10569 = vrot.slane %v9992, %v10568
    %v10570 = vlaneseq
    %v10571 = vshrl.u32 %v10570, 7
    %v10572 = vsub.s32 0, %v10571
    %v10573 = vrot.slane %v9993, %v10572
    %v10574 = vlaneseq
    %v10575 = vshrl.u32 %v10574, 7
    %v10576 = vsub.s32 0, %v10575
    %v10577 = vrot.slane %v9994, %v10576
    %v10578 = vlaneseq
    %v10579 = vshrl.u32 %v10578, 7
    %v10580 = vsub.s32 0, %v10579
    %v10581 = vrot.slane %v9995, %v10580
    %v10582 = vlaneseq
    %v10583 = vshrl.u32 %v10582, 7
    %v10584 = vsub.s32 0, %v10583
    %v10585 = vrot.slane %v9996, %v10584
    %v10586 = vlaneseq
    %v10587 = vshrl.u32 %v10586, 7
    %v10588 = vsub.s32 0, %v10587
    %v10589 = vrot.slane %v9997, %v10588
    %v10590 = vlaneseq
    %v10591 = vshrl.u32 %v10590, 7
    %v10592 = vsub.s32 0, %v10591
    %v10593 = vrot.slane %v9998, %v10592
    %v10594 = vlaneseq
    %v10595 = vshrl.u32 %v10594, 7
    %v10596 = vsub.s32 0, %v10595
    %v10597 = vrot.slane %v9999, %v10596
    %v10598 = vlaneseq
    %v10599 = vshrl.u32 %v10598, 7
    %v10600 = vsub.s32 0, %v10599
    %v10601 = vrot.slane %v10000, %v10600
    %v10602 = vlaneseq
    %v10603 = vshrl.u32 %v10602, 7
    %v10604 = vsub.s32 0, %v10603
    %v10605 = vrot.slane %v10001, %v10604
    %v10606 = vlaneseq
    %v10607 = vshrl.u32 %v10606, 7
    %v10608 = vsub.s32 0, %v10607
    %v10609 = vrot.slane %v10002, %v10608
    %v10610 = vlaneseq
    %v10611 = vshrl.u32 %v10610, 7
    %v10612 = vsub.s32 0, %v10611
    %v10613 = vrot.slane %v10003, %v10612
    %v10614 = vlaneseq
    %v10615 = vshrl.u32 %v10614, 7
    %v10616 = vsub.s32 0, %v10615
    %v10617 = vrot.slane %v10004, %v10616
    %v10618 = vlaneseq
    %v10619 = vshrl.u32 %v10618, 7
    %v10620 = vsub.s32 0, %v10619
    %v10621 = vrot.slane %v10005, %v10620
    %v10622 = vlaneseq
    %v10623 = vshrl.u32 %v10622, 7
    %v10624 = vsub.s32 0, %v10623
    %v10625 = vrot.slane %v10006, %v10624
    %v10626 = vlaneseq
    %v10627 = vshrl.u32 %v10626, 7
    %v10628 = vsub.s32 0, %v10627
    %v10629 = vrot.slane %v10007, %v10628
    %v10630 = vlaneseq
    %v10631 = vshrl.u32 %v10630, 7
    %v10632 = vsub.s32 0, %v10631
    %v10633 = vrot.slane %v10008, %v10632
    %v10634 = vlaneseq
    %v10635 = vshrl.u32 %v10634, 7
    %v10636 = vsub.s32 0, %v10635
    %v10637 = vrot.slane %v10009, %v10636
    %v10638 = vlaneseq
    %v10639 = vshrl.u32 %v10638, 7
    %v10640 = vsub.s32 0, %v10639
    %v10641 = vrot.slane %v10010, %v10640
    %v10642 = vlaneseq
    %v10643 = vshrl.u32 %v10642, 7
    %v10644 = vsub.s32 0, %v10643
    %v10645 = vrot.slane %v10011, %v10644
    %v10646 = vlaneseq
    %v10647 = vshrl.u32 %v10646, 7
    %v10648 = vsub.s32 0, %v10647
    %v10649 = vrot.slane %v10012, %v10648
    %v10650 = vlaneseq
    %v10651 = vshrl.u32 %v10650, 7
    %v10652 = vsub.s32 0, %v10651
    %v10653 = vrot.slane %v10013, %v10652
    %vm10654 = vcmask 1041409
    %v10655 = vsel %vm10654, %v10149, %v10145
    %vm10656 = vcmask 1042434
    %v10657 = vsel %vm10656, %v10153, %v10655
    %vm10658 = vcmask 1043459
    %v10659 = vsel %vm10658, %v10157, %v10657
    %vm10660 = vcmask 1044484
    %v10661 = vsel %vm10660, %v10161, %v10659
    %vm10662 = vcmask 1045509
    %v10663 = vsel %vm10662, %v10165, %v10661
    %vm10664 = vcmask 1046534
    %v10665 = vsel %vm10664, %v10169, %v10663
    %vm10666 = vcmask 1047559
    %v10667 = vsel %vm10666, %v10173, %v10665
    %v10668 = vsel %vm10654, %v10181, %v10177
    %v10669 = vsel %vm10656, %v10185, %v10668
    %v10670 = vsel %vm10658, %v10189, %v10669
    %v10671 = vsel %vm10660, %v10193, %v10670
    %v10672 = vsel %vm10662, %v10197, %v10671
    %v10673 = vsel %vm10664, %v10201, %v10672
    %v10674 = vsel %vm10666, %v10205, %v10673
    %v10675 = vsel %vm10654, %v10213, %v10209
    %v10676 = vsel %vm10656, %v10217, %v10675
    %v10677 = vsel %vm10658, %v10221, %v10676
    %v10678 = vsel %vm10660, %v10225, %v10677
    %v10679 = vsel %vm10662, %v10229, %v10678
    %v10680 = vsel %vm10664, %v10233, %v10679
    %v10681 = vsel %vm10666, %v10237, %v10680
    %v10682 = vsel %vm10654, %v10245, %v10241
    %v10683 = vsel %vm10656, %v10249, %v10682
    %v10684 = vsel %vm10658, %v10253, %v10683
    %v10685 = vsel %vm10660, %v10257, %v10684
    %v10686 = vsel %vm10662, %v10261, %v10685
    %v10687 = vsel %vm10664, %v10265, %v10686
    %v10688 = vsel %vm10666, %v10269, %v10687
    %v10689 = vsel %vm10654, %v10277, %v10273
    %v10690 = vsel %vm10656, %v10281, %v10689
    %v10691 = vsel %vm10658, %v10285, %v10690
    %v10692 = vsel %vm10660, %v10289, %v10691
    %v10693 = vsel %vm10662, %v10293, %v10692
    %v10694 = vsel %vm10664, %v10297, %v10693
    %v10695 = vsel %vm10666, %v10301, %v10694
    %v10696 = vsel %vm10654, %v10309, %v10305
    %v10697 = vsel %vm10656, %v10313, %v10696
    %v10698 = vsel %vm10658, %v10317, %v10697
    %v10699 = vsel %vm10660, %v10321, %v10698
    %v10700 = vsel %vm10662, %v10325, %v10699
    %v10701 = vsel %vm10664, %v10329, %v10700
    %v10702 = vsel %vm10666, %v10333, %v10701
    %v10703 = vsel %vm10654, %v10341, %v10337
    %v10704 = vsel %vm10656, %v10345, %v10703
    %v10705 = vsel %vm10658, %v10349, %v10704
    %v10706 = vsel %vm10660, %v10353, %v10705
    %v10707 = vsel %vm10662, %v10357, %v10706
    %v10708 = vsel %vm10664, %v10361, %v10707
    %v10709 = vsel %vm10666, %v10365, %v10708
    %v10710 = vsel %vm10654, %v10373, %v10369
    %v10711 = vsel %vm10656, %v10377, %v10710
    %v10712 = vsel %vm10658, %v10381, %v10711
    %v10713 = vsel %vm10660, %v10385, %v10712
    %v10714 = vsel %vm10662, %v10389, %v10713
    %v10715 = vsel %vm10664, %v10393, %v10714
    %v10716 = vsel %vm10666, %v10397, %v10715
    %v10717 = vsel %vm10654, %v10405, %v10401
    %v10718 = vsel %vm10656, %v10409, %v10717
    %v10719 = vsel %vm10658, %v10413, %v10718
    %v10720 = vsel %vm10660, %v10417, %v10719
    %v10721 = vsel %vm10662, %v10421, %v10720
    %v10722 = vsel %vm10664, %v10425, %v10721
    %v10723 = vsel %vm10666, %v10429, %v10722
    %v10724 = vsel %vm10654, %v10437, %v10433
    %v10725 = vsel %vm10656, %v10441, %v10724
    %v10726 = vsel %vm10658, %v10445, %v10725
    %v10727 = vsel %vm10660, %v10449, %v10726
    %v10728 = vsel %vm10662, %v10453, %v10727
    %v10729 = vsel %vm10664, %v10457, %v10728
    %v10730 = vsel %vm10666, %v10461, %v10729
    %v10731 = vsel %vm10654, %v10469, %v10465
    %v10732 = vsel %vm10656, %v10473, %v10731
    %v10733 = vsel %vm10658, %v10477, %v10732
    %v10734 = vsel %vm10660, %v10481, %v10733
    %v10735 = vsel %vm10662, %v10485, %v10734
    %v10736 = vsel %vm10664, %v10489, %v10735
    %v10737 = vsel %vm10666, %v10493, %v10736
    %v10738 = vsel %vm10654, %v10501, %v10497
    %v10739 = vsel %vm10656, %v10505, %v10738
    %v10740 = vsel %vm10658, %v10509, %v10739
    %v10741 = vsel %vm10660, %v10513, %v10740
    %v10742 = vsel %vm10662, %v10517, %v10741
    %v10743 = vsel %vm10664, %v10521, %v10742
    %v10744 = vsel %vm10666, %v10525, %v10743
    %v10745 = vsel %vm10654, %v10533, %v10529
    %v10746 = vsel %vm10656, %v10537, %v10745
    %v10747 = vsel %vm10658, %v10541, %v10746
    %v10748 = vsel %vm10660, %v10545, %v10747
    %v10749 = vsel %vm10662, %v10549, %v10748
    %v10750 = vsel %vm10664, %v10553, %v10749
    %v10751 = vsel %vm10666, %v10557, %v10750
    %v10752 = vsel %vm10654, %v10565, %v10561
    %v10753 = vsel %vm10656, %v10569, %v10752
    %v10754 = vsel %vm10658, %v10573, %v10753
    %v10755 = vsel %vm10660, %v10577, %v10754
    %v10756 = vsel %vm10662, %v10581, %v10755
    %v10757 = vsel %vm10664, %v10585, %v10756
    %v10758 = vsel %vm10666, %v10589, %v10757
    %v10759 = vsel %vm10654, %v10597, %v10593
    %v10760 = vsel %vm10656, %v10601, %v10759
    %v10761 = vsel %vm10658, %v10605, %v10760
    %v10762 = vsel %vm10660, %v10609, %v10761
    %v10763 = vsel %vm10662, %v10613, %v10762
    %v10764 = vsel %vm10664, %v10617, %v10763
    %v10765 = vsel %vm10666, %v10621, %v10764
    %v10766 = vsel %vm10654, %v10629, %v10625
    %v10767 = vsel %vm10656, %v10633, %v10766
    %v10768 = vsel %vm10658, %v10637, %v10767
    %v10769 = vsel %vm10660, %v10641, %v10768
    %v10770 = vsel %vm10662, %v10645, %v10769
    %v10771 = vsel %vm10664, %v10649, %v10770
    %v10772 = vsel %vm10666, %v10653, %v10771
    %10789 = vst [vmem:[#allocation3] sm:$0xff] %v10667
    %10790 = vst [vmem:[#allocation3 + $0x8] sm:$0xff] %v10674
    %10791 = vst [vmem:[#allocation3 + $0x10] sm:$0xff] %v10681
    %10792 = vst [vmem:[#allocation3 + $0x18] sm:$0xff] %v10688
    %10793 = vst [vmem:[#allocation3 + $0x20] sm:$0xff] %v10695
    %10794 = vst [vmem:[#allocation3 + $0x28] sm:$0xff] %v10702
    %10795 = vst [vmem:[#allocation3 + $0x30] sm:$0xff] %v10709
    %10796 = vst [vmem:[#allocation3 + $0x38] sm:$0xff] %v10716
    %10797 = vst [vmem:[#allocation3 + $0x40] sm:$0xff] %v10723
    %10798 = vst [vmem:[#allocation3 + $0x48] sm:$0xff] %v10730
    %10799 = vst [vmem:[#allocation3 + $0x50] sm:$0xff] %v10737
    %10800 = vst [vmem:[#allocation3 + $0x58] sm:$0xff] %v10744
    %10801 = vst [vmem:[#allocation3 + $0x60] sm:$0xff] %v10751
    %10802 = vst [vmem:[#allocation3 + $0x68] sm:$0xff] %v10758
    %10803 = vst [vmem:[#allocation3 + $0x70] sm:$0xff] %v10765
    %10804 = vst [vmem:[#allocation3 + $0x78] sm:$0xff] %v10772
    // Predicated region
    $region30: #{tpu_custom_call.1} parent=1 // pred_check
      _
    $region31: #{tpu_custom_call.1} parent=1 // pred_check_branch
      %10806 = sbr.rel (0) target = $region33
    $region32: #{tpu_custom_call.1} parent=1 // pred_region
      %s10808 = ssub.s32 2048, 2048
      %10809 = vsyncadd [#allocation4], %s10808
      %s10810 = sshll.u32 [#allocation3], 4
      %s10811 = int_to_ptr.vmem [resolvable:$true] %s10810
      %10816 = dma.vmem_to_hbm [thread:$0]  %s10811, 2048, %s7, [#allocation4], 128, 128, 8
    $region33: #{tpu_custom_call.1} parent=1 // pred_fallthru
      _
    // Predicated region
    $region34: #{tpu_custom_call.1} parent=1 // pred_check
      _
    $region35: #{tpu_custom_call.1} parent=1 // pred_check_branch
      %10818 = sbr.rel (0) target = $region37
    $region36: #{tpu_custom_call.1} parent=1 // pred_region
      %10819 = dma.done [#allocation4], 2048
    $region37: #{tpu_custom_call.1} parent=1 // pred_fallthru
      _
    %10820 = vsyncpa [#allocation4], 1

</llo_original>
